<compile_context>
chip_gen: v5e
topology: v5e:2x2
jax: 0.10.0
libtpu: 0.0.40
codegen_flags: <defaults>
</compile_context>

<pallas_src>
import jax
import jax.numpy as jnp
import numpy as np
from jax.experimental import pallas as pl
from jax.experimental.pallas import tpu as pltpu

KS = 9                    # kernel_size
PAD = (KS - 1) // 2       # padding = 4
EPS = 1e-5                # BatchNorm eps


def _gelu(x):
    # exact GELU (matches torch.nn.GELU default).
    # NOTE(perf): jax.nn.gelu(..., approximate=True) (tanh form, runs on the EUP) is a
    # knob if ~1e-3 relative numeric shift is acceptable; exact form kept for parity.
    return 0.5 * x * (1.0 + jax.lax.erf(x / jnp.sqrt(2.0).astype(x.dtype)))


def _build_kernel(H, W, C, TH, use_bf16_matmul):
    def kernel(x_ref, wdw_ref, bdw_ref, s1_ref, t1_ref,
               w11_ref, b11_ref, s2_ref, t2_ref, out_ref, xpad_sc):
        s = pl.program_id(1)

        # Build the zero-padded image in the VMEM scratch once per image.  The strip
        # axis is "arbitrary" (sequential), so strip 0 always runs before the others
        # for a given image on a given core.
        @pl.when(s == 0)
        def _():
            xpad_sc[...] = jnp.zeros_like(xpad_sc)
            xpad_sc[PAD:PAD + H, PAD:PAD + W, :] = x_ref[0].astype(jnp.float32)

        # Hoisted parameter loads (once per grid step, not per tap).
        wdw = wdw_ref[...]                  # (KS, KS, C)
        bdw = bdw_ref[0, :]
        s1 = s1_ref[0, :]
        t1 = t1_ref[0, :]
        b11 = b11_ref[0, :]
        s2 = s2_ref[0, :]
        t2 = t2_ref[0, :]

        # Padded rows needed by this strip (dynamic slice on an outer dim: cheap).
        row0 = pl.multiple_of(s * TH, TH)
        xs = xpad_sc[pl.ds(row0, TH + 2 * PAD), :, :]     # (TH+2*PAD, Wp, C)

        # Depthwise 9x9 conv: one misaligned W-window slice per kw (9 total per strip);
        # the 9 kh taps slice only the leading row axis (free).  MACs on the VPU.
        acc = jnp.zeros((TH, W, C), jnp.float32)
        for kw in range(KS):
            xw = xs[:, kw:kw + W, :]                      # (TH+2*PAD, W, C)
            for kh in range(KS):
                acc = acc + xw[kh:kh + TH, :, :] * wdw[kh, kw, :]
        acc = _gelu(acc + bdw)
        acc = acc * s1 + t1                               # BatchNorm2d #1 (folded)

        # Residual add (interior window of this strip).
        h = xs[PAD:PAD + TH, PAD:PAD + W, :] + acc        # (TH, W, C)

        # 1x1 conv == channel matmul on the MXU.
        # The reshape is free when W % 8 == 0 (TH merges into the sublane axis).
        lhs = h.reshape(TH * W, C)
        rhs = w11_ref[...]
        if use_bf16_matmul:
            lhs = lhs.astype(jnp.bfloat16)                # rhs already bf16 (wrapper)
        z = jnp.dot(lhs, rhs, preferred_element_type=jnp.float32)
        z = _gelu(z + b11)
        z = z * s2 + t2                                   # BatchNorm2d #2 (folded)

        out_ref[...] = z.reshape(1, TH, W, C).astype(out_ref.dtype)

    return kernel


def conv_mixer_layer(x_nchw, params, *, strip_rows=None):
    """ConvMixerLayer forward (inference-mode BN) as one fused Pallas call."""
    N, C, H, W = x_nchw.shape
    Hp, Wp = H + 2 * PAD, W + 2 * PAD

    # NCHW -> NHWC (channels on lanes).  No jnp.pad: the halo is built in-kernel.
    x = jnp.transpose(x_nchw, (0, 2, 3, 1)).astype(jnp.float32)

    # Row-strip height: second grid axis bounds live ranges / per-step VMEM.
    if strip_rows is not None:
        TH = strip_rows
    else:
        TH = 8 if (H % 8 == 0 and H > 8) else H
    assert H % TH == 0, "strip height must divide H"
    S = H // TH

    # Fold BN running stats into per-channel scale/shift.
    s1 = params["bn1_gamma"] / jnp.sqrt(params["bn1_var"] + EPS)
    t1 = params["bn1_beta"] - params["bn1_mean"] * s1
    s2 = params["bn2_gamma"] / jnp.sqrt(params["bn2_var"] + EPS)
    t2 = params["bn2_beta"] - params["bn2_mean"] * s2

    # Depthwise weight: torch (dim, 1, KS, KS) -> (KS, KS, dim).
    wdw = jnp.transpose(params["dw_weight"][:, 0, :, :], (1, 2, 0)).astype(jnp.float32)
    # Pointwise weight: torch (out, in, 1, 1) -> (in, out) so y = h @ w11.
    # Feed the MXU bf16 operands (f32 accumulation) once C is large enough to matter;
    # tiny-C configs keep exact f32 (and the matmul is trivial anyway).
    use_bf16_matmul = C >= 256
    w11 = jnp.transpose(params["pw_weight"][:, :, 0, 0], (1, 0))
    w11 = w11.astype(jnp.bfloat16 if use_bf16_matmul else jnp.float32)

    row = lambda v: v.reshape(1, C).astype(jnp.float32)

    def full(shape):
        zeros = (0,) * len(shape)
        return pl.BlockSpec(shape, lambda b, s, _z=zeros: _z)

    # VMEM budget: double-buffered in/out blocks + padded-image scratch + weights.
    f32b = 4
    need = (2 * H * W * C * f32b            # input blocks (double buffered)
            + 2 * TH * W * C * f32b         # output strip blocks
            + Hp * Wp * C * f32b            # padded-image scratch
            + 2 * (KS * KS * C + C * C + 7 * C) * f32b)
    vmem_limit = int(min(max(2 * need, 32 * 2 ** 20), 100 * 2 ** 20))
    # TODO(synk): on v7x (64 MiB physical VMEM) shrink TH / re-derive so `need` stays well
    #             below the physical budget at large dim.

    kernel = _build_kernel(H, W, C, TH, use_bf16_matmul)

    out = pl.pallas_call(
        kernel,
        out_shape=jax.ShapeDtypeStruct((N, H, W, C), jnp.float32),
        grid=(N, S),
        in_specs=[
            pl.BlockSpec((1, H, W, C), lambda b, s: (b, 0, 0, 0)),  # unpadded image
            full((KS, KS, C)),                                      # depthwise weight
            full((1, C)),                                           # depthwise bias
            full((1, C)), full((1, C)),                             # BN1 scale / shift
            full((C, C)),                                           # 1x1 weight
            full((1, C)),                                           # 1x1 bias
            full((1, C)), full((1, C)),                             # BN2 scale / shift
        ],
        out_specs=pl.BlockSpec((1, TH, W, C), lambda b, s: (b, s, 0, 0)),
        scratch_shapes=[pltpu.VMEM((Hp, Wp, C), jnp.float32)],      # padded image
        compiler_params=pltpu.CompilerParams(
            # Batch axis parallel (megacore).  The strip axis must stay sequential
            # because the padded-image scratch is built at strip 0 and reused.
            # TODO(synk): per-strip halo DMA would let the strip axis be "parallel" (v7x).
            dimension_semantics=("parallel", "arbitrary"),
            vmem_limit_bytes=vmem_limit,
        ),
    )(x, wdw, row(params["dw_bias"]),
      row(s1), row(t1),
      w11, row(params["pw_bias"]),
      row(s2), row(t2))

    return jnp.transpose(out, (0, 3, 1, 2))                          # back to NCHW


def reference_nchw(x_nchw, params):
    """Pure-JAX reference (lax convs), inference-mode BN, for validation."""
    x = x_nchw.astype(jnp.float32)
    dim = x.shape[1]
    dw = jax.lax.conv_general_dilated(
        x, params["dw_weight"].astype(jnp.float32),
        window_strides=(1, 1), padding=((PAD, PAD), (PAD, PAD)),
        dimension_numbers=("NCHW", "OIHW", "NCHW"),
        feature_group_count=dim)
    dw = dw + params["dw_bias"][None, :, None, None]
    dw = _gelu(dw)
    s1 = params["bn1_gamma"] / jnp.sqrt(params["bn1_var"] + EPS)
    t1 = params["bn1_beta"] - params["bn1_mean"] * s1
    dw = dw * s1[None, :, None, None] + t1[None, :, None, None]
    h = x + dw
    pw = jax.lax.conv_general_dilated(
        h, params["pw_weight"].astype(jnp.float32),
        window_strides=(1, 1), padding="VALID",
        dimension_numbers=("NCHW", "OIHW", "NCHW"))
    pw = pw + params["pw_bias"][None, :, None, None]
    pw = _gelu(pw)
    s2 = params["bn2_gamma"] / jnp.sqrt(params["bn2_var"] + EPS)
    t2 = params["bn2_beta"] - params["bn2_mean"] * s2
    return pw * s2[None, :, None, None] + t2[None, :, None, None]


def make_params(dim, key):
    k0, k1, k2, k3 = jax.random.split(key, 4)
    ones = jnp.ones((dim,), jnp.float32)
    zeros = jnp.zeros((dim,), jnp.float32)
    return {
        # nn.Conv2d(dim, dim, 9, groups=dim): weight (dim, 1, 9, 9), bias (dim,)
        "dw_weight": 0.1 * jax.random.normal(k0, (dim, 1, KS, KS), jnp.float32),
        "dw_bias":   0.1 * jax.random.normal(k1, (dim,), jnp.float32),
        # nn.Conv2d(dim, dim, 1): weight (dim, dim, 1, 1), bias (dim,)
        "pw_weight": 0.1 * jax.random.normal(k2, (dim, dim, 1, 1), jnp.float32),
        "pw_bias":   0.1 * jax.random.normal(k3, (dim,), jnp.float32),
        # BatchNorm2d defaults: gamma=1, beta=0, running_mean=0, running_var=1
        "bn1_gamma": ones, "bn1_beta": zeros, "bn1_mean": zeros, "bn1_var": ones,
        "bn2_gamma": ones, "bn2_beta": zeros, "bn2_mean": zeros, "bn2_var": ones,
    }


if __name__ == "__main__":
    key = jax.random.PRNGKey(0)
    k_x, k_p = jax.random.split(key)

    N, dim, H, W = 2, 4, 16, 16                 # x: (2, 4, 16, 16), NCHW like PyTorch
    x = jax.random.normal(k_x, (N, dim, H, W), jnp.float32)
    params = make_params(dim, k_p)

    out = conv_mixer_layer(x, params)           # H=16 -> 2 row strips of 8
    out = jax.block_until_ready(out)

    ref = jax.block_until_ready(reference_nchw(x, params))
    assert out.shape == (N, dim, H, W)
    # C=4 < 256 uses the exact f32 matmul path, so the comparison stays tight.
    np.testing.assert_allclose(np.asarray(out), np.asarray(ref), rtol=1e-5, atol=1e-4)

    print("KERNEL_OK")
</pallas_src>

<mosaic_0001>
module attributes {stable_mosaic.version = 11 : i64} {
  func.func @kernel(%arg0: i32, %arg1: i32, %arg2: memref<1x16x16x4xf32, #tpu.memory_space<vmem>>, %arg3: memref<9x9x4xf32, #tpu.memory_space<vmem>>, %arg4: memref<1x4xf32, #tpu.memory_space<vmem>>, %arg5: memref<1x4xf32, #tpu.memory_space<vmem>>, %arg6: memref<1x4xf32, #tpu.memory_space<vmem>>, %arg7: memref<4x4xf32, #tpu.memory_space<vmem>>, %arg8: memref<1x4xf32, #tpu.memory_space<vmem>>, %arg9: memref<1x4xf32, #tpu.memory_space<vmem>>, %arg10: memref<1x4xf32, #tpu.memory_space<vmem>>, %arg11: memref<1x8x16x4xf32, #tpu.memory_space<vmem>>, %arg12: memref<24x24x4xf32, #tpu.memory_space<vmem>>) attributes {dimension_semantics = [#tpu.dimension_semantics<parallel>, #tpu.dimension_semantics<arbitrary>], iteration_bounds = array<i64: 2, 2>, scalar_prefetch = 0 : i64, scratch_operands = 1 : i64, tpu.core_type = #tpu.core_type<tc>, window_params = [{transform_indices = @transform_0, window_bounds = array<i64: 1, 16, 16, 4>}, {pipeline_mode = #tpu.pipeline_mode<synchronous>, transform_indices = @transform_1, window_bounds = array<i64: 9, 9, 4>}, {pipeline_mode = #tpu.pipeline_mode<synchronous>, transform_indices = @transform_2, window_bounds = array<i64: 1, 4>}, {pipeline_mode = #tpu.pipeline_mode<synchronous>, transform_indices = @transform_3, window_bounds = array<i64: 1, 4>}, {pipeline_mode = #tpu.pipeline_mode<synchronous>, transform_indices = @transform_4, window_bounds = array<i64: 1, 4>}, {pipeline_mode = #tpu.pipeline_mode<synchronous>, transform_indices = @transform_5, window_bounds = array<i64: 4, 4>}, {pipeline_mode = #tpu.pipeline_mode<synchronous>, transform_indices = @transform_6, window_bounds = array<i64: 1, 4>}, {pipeline_mode = #tpu.pipeline_mode<synchronous>, transform_indices = @transform_7, window_bounds = array<i64: 1, 4>}, {pipeline_mode = #tpu.pipeline_mode<synchronous>, transform_indices = @transform_8, window_bounds = array<i64: 1, 4>}, {transform_indices = @transform_9, window_bounds = array<i64: 1, 8, 16, 4>}]} {
    %c0_i32 = arith.constant 0 : i32
    %0 = arith.cmpi eq, %arg1, %c0_i32 : i32
    %1 = arith.extui %0 : i1 to i32
    %c0_i32_0 = arith.constant 0 : i32
    %2 = arith.cmpi ne, %1, %c0_i32_0 : i32
    scf.if %2 {
      %cst_30 = arith.constant 0.000000e+00 : f32
      %640 = vector.broadcast %cst_30 : f32 to vector<24x24x4xf32>
      %c0_31 = arith.constant 0 : index
      %c0_32 = arith.constant 0 : index
      %c0_33 = arith.constant 0 : index
      %641 = vector.load %arg12[%c0_31, %c0_32, %c0_33] : memref<24x24x4xf32, #tpu.memory_space<vmem>>, vector<24x24x4xf32>
      tpu.vector_store %arg12[%c0_31, %c0_32, %c0_33], %640 {strides = array<i32>} : memref<24x24x4xf32, #tpu.memory_space<vmem>>, vector<24x24x4xf32>,
      %c0_34 = arith.constant 0 : index
      %c0_35 = arith.constant 0 : index
      %c0_36 = arith.constant 0 : index
      %c0_37 = arith.constant 0 : index
      %642 = vector.load %arg2[%c0_34, %c0_35, %c0_36, %c0_37] : memref<1x16x16x4xf32, #tpu.memory_space<vmem>>, vector<1x16x16x4xf32>
      %643 = vector.shape_cast %642 : vector<1x16x16x4xf32> to vector<16x16x4xf32>
      %c4 = arith.constant 4 : index
      %c4_38 = arith.constant 4 : index
      %c0_39 = arith.constant 0 : index
      %644 = vector.load %arg12[%c4, %c4_38, %c0_39] : memref<24x24x4xf32, #tpu.memory_space<vmem>>, vector<16x16x4xf32>
      tpu.vector_store %arg12[%c4, %c4_38, %c0_39], %643 {strides = array<i32>} : memref<24x24x4xf32, #tpu.memory_space<vmem>>, vector<16x16x4xf32>,
    } else {
    }
    %c0 = arith.constant 0 : index
    %c0_1 = arith.constant 0 : index
    %c0_2 = arith.constant 0 : index
    %3 = vector.load %arg3[%c0, %c0_1, %c0_2] : memref<9x9x4xf32, #tpu.memory_space<vmem>>, vector<9x9x4xf32>
    %c0_3 = arith.constant 0 : index
    %c0_4 = arith.constant 0 : index
    %4 = vector.load %arg4[%c0_3, %c0_4] : memref<1x4xf32, #tpu.memory_space<vmem>>, vector<1x4xf32>
    %5 = vector.shape_cast %4 : vector<1x4xf32> to vector<4xf32>
    %c0_5 = arith.constant 0 : index
    %c0_6 = arith.constant 0 : index
    %6 = vector.load %arg5[%c0_5, %c0_6] : memref<1x4xf32, #tpu.memory_space<vmem>>, vector<1x4xf32>
    %7 = vector.shape_cast %6 : vector<1x4xf32> to vector<4xf32>
    %c0_7 = arith.constant 0 : index
    %c0_8 = arith.constant 0 : index
    %8 = vector.load %arg6[%c0_7, %c0_8] : memref<1x4xf32, #tpu.memory_space<vmem>>, vector<1x4xf32>
    %9 = vector.shape_cast %8 : vector<1x4xf32> to vector<4xf32>
    %c0_9 = arith.constant 0 : index
    %c0_10 = arith.constant 0 : index
    %10 = vector.load %arg8[%c0_9, %c0_10] : memref<1x4xf32, #tpu.memory_space<vmem>>, vector<1x4xf32>
    %11 = vector.shape_cast %10 : vector<1x4xf32> to vector<4xf32>
    %c0_11 = arith.constant 0 : index
    %c0_12 = arith.constant 0 : index
    %12 = vector.load %arg9[%c0_11, %c0_12] : memref<1x4xf32, #tpu.memory_space<vmem>>, vector<1x4xf32>
    %13 = vector.shape_cast %12 : vector<1x4xf32> to vector<4xf32>
    %c0_13 = arith.constant 0 : index
    %c0_14 = arith.constant 0 : index
    %14 = vector.load %arg10[%c0_13, %c0_14] : memref<1x4xf32, #tpu.memory_space<vmem>>, vector<1x4xf32>
    %15 = vector.shape_cast %14 : vector<1x4xf32> to vector<4xf32>
    %c8_i32 = arith.constant 8 : i32
    %16 = arith.muli %arg1, %c8_i32 : i32
    %17 = tpu.assume_multiple %16, 8 : i32
    %18 = arith.index_cast %17 : i32 to index
    %c0_15 = arith.constant 0 : index
    %c0_16 = arith.constant 0 : index
    %19 = vector.load %arg12[%18, %c0_15, %c0_16] : memref<24x24x4xf32, #tpu.memory_space<vmem>>, vector<16x24x4xf32>
    %cst = arith.constant 0.000000e+00 : f32
    %20 = vector.broadcast %cst : f32 to vector<8x16x4xf32>
    %21 = vector.extract_strided_slice %19 {offsets = [0, 0, 0], sizes = [16, 16, 4], strides = [1, 1, 1]} : vector<16x24x4xf32> to vector<16x16x4xf32>
    %22 = vector.extract_strided_slice %21 {offsets = [0, 0, 0], sizes = [8, 16, 4], strides = [1, 1, 1]} : vector<16x16x4xf32> to vector<8x16x4xf32>
    %23 = vector.extract_strided_slice %3 {offsets = [0, 0, 0], sizes = [1, 1, 4], strides = [1, 1, 1]} : vector<9x9x4xf32> to vector<1x1x4xf32>
    %24 = vector.shape_cast %23 : vector<1x1x4xf32> to vector<4xf32>
    %25 = vector.shape_cast %24 : vector<4xf32> to vector<1x1x4xf32>
    %26 = vector.broadcast %25 : vector<1x1x4xf32> to vector<8x16x4xf32>
    %27 = arith.mulf %22, %26 : vector<8x16x4xf32>
    %28 = arith.addf %20, %27 : vector<8x16x4xf32>
    %29 = vector.extract_strided_slice %21 {offsets = [1, 0, 0], sizes = [8, 16, 4], strides = [1, 1, 1]} : vector<16x16x4xf32> to vector<8x16x4xf32>
    %30 = vector.extract_strided_slice %3 {offsets = [1, 0, 0], sizes = [1, 1, 4], strides = [1, 1, 1]} : vector<9x9x4xf32> to vector<1x1x4xf32>
    %31 = vector.shape_cast %30 : vector<1x1x4xf32> to vector<4xf32>
    %32 = vector.shape_cast %31 : vector<4xf32> to vector<1x1x4xf32>
    %33 = vector.broadcast %32 : vector<1x1x4xf32> to vector<8x16x4xf32>
    %34 = arith.mulf %29, %33 : vector<8x16x4xf32>
    %35 = arith.addf %28, %34 : vector<8x16x4xf32>
    %36 = vector.extract_strided_slice %21 {offsets = [2, 0, 0], sizes = [8, 16, 4], strides = [1, 1, 1]} : vector<16x16x4xf32> to vector<8x16x4xf32>
    %37 = vector.extract_strided_slice %3 {offsets = [2, 0, 0], sizes = [1, 1, 4], strides = [1, 1, 1]} : vector<9x9x4xf32> to vector<1x1x4xf32>
    %38 = vector.shape_cast %37 : vector<1x1x4xf32> to vector<4xf32>
    %39 = vector.shape_cast %38 : vector<4xf32> to vector<1x1x4xf32>
    %40 = vector.broadcast %39 : vector<1x1x4xf32> to vector<8x16x4xf32>
    %41 = arith.mulf %36, %40 : vector<8x16x4xf32>
    %42 = arith.addf %35, %41 : vector<8x16x4xf32>
    %43 = vector.extract_strided_slice %21 {offsets = [3, 0, 0], sizes = [8, 16, 4], strides = [1, 1, 1]} : vector<16x16x4xf32> to vector<8x16x4xf32>
    %44 = vector.extract_strided_slice %3 {offsets = [3, 0, 0], sizes = [1, 1, 4], strides = [1, 1, 1]} : vector<9x9x4xf32> to vector<1x1x4xf32>
    %45 = vector.shape_cast %44 : vector<1x1x4xf32> to vector<4xf32>
    %46 = vector.shape_cast %45 : vector<4xf32> to vector<1x1x4xf32>
    %47 = vector.broadcast %46 : vector<1x1x4xf32> to vector<8x16x4xf32>
    %48 = arith.mulf %43, %47 : vector<8x16x4xf32>
    %49 = arith.addf %42, %48 : vector<8x16x4xf32>
    %50 = vector.extract_strided_slice %21 {offsets = [4, 0, 0], sizes = [8, 16, 4], strides = [1, 1, 1]} : vector<16x16x4xf32> to vector<8x16x4xf32>
    %51 = vector.extract_strided_slice %3 {offsets = [4, 0, 0], sizes = [1, 1, 4], strides = [1, 1, 1]} : vector<9x9x4xf32> to vector<1x1x4xf32>
    %52 = vector.shape_cast %51 : vector<1x1x4xf32> to vector<4xf32>
    %53 = vector.shape_cast %52 : vector<4xf32> to vector<1x1x4xf32>
    %54 = vector.broadcast %53 : vector<1x1x4xf32> to vector<8x16x4xf32>
    %55 = arith.mulf %50, %54 : vector<8x16x4xf32>
    %56 = arith.addf %49, %55 : vector<8x16x4xf32>
    %57 = vector.extract_strided_slice %21 {offsets = [5, 0, 0], sizes = [8, 16, 4], strides = [1, 1, 1]} : vector<16x16x4xf32> to vector<8x16x4xf32>
    %58 = vector.extract_strided_slice %3 {offsets = [5, 0, 0], sizes = [1, 1, 4], strides = [1, 1, 1]} : vector<9x9x4xf32> to vector<1x1x4xf32>
    %59 = vector.shape_cast %58 : vector<1x1x4xf32> to vector<4xf32>
    %60 = vector.shape_cast %59 : vector<4xf32> to vector<1x1x4xf32>
    %61 = vector.broadcast %60 : vector<1x1x4xf32> to vector<8x16x4xf32>
    %62 = arith.mulf %57, %61 : vector<8x16x4xf32>
    %63 = arith.addf %56, %62 : vector<8x16x4xf32>
    %64 = vector.extract_strided_slice %21 {offsets = [6, 0, 0], sizes = [8, 16, 4], strides = [1, 1, 1]} : vector<16x16x4xf32> to vector<8x16x4xf32>
    %65 = vector.extract_strided_slice %3 {offsets = [6, 0, 0], sizes = [1, 1, 4], strides = [1, 1, 1]} : vector<9x9x4xf32> to vector<1x1x4xf32>
    %66 = vector.shape_cast %65 : vector<1x1x4xf32> to vector<4xf32>
    %67 = vector.shape_cast %66 : vector<4xf32> to vector<1x1x4xf32>
    %68 = vector.broadcast %67 : vector<1x1x4xf32> to vector<8x16x4xf32>
    %69 = arith.mulf %64, %68 : vector<8x16x4xf32>
    %70 = arith.addf %63, %69 : vector<8x16x4xf32>
    %71 = vector.extract_strided_slice %21 {offsets = [7, 0, 0], sizes = [8, 16, 4], strides = [1, 1, 1]} : vector<16x16x4xf32> to vector<8x16x4xf32>
    %72 = vector.extract_strided_slice %3 {offsets = [7, 0, 0], sizes = [1, 1, 4], strides = [1, 1, 1]} : vector<9x9x4xf32> to vector<1x1x4xf32>
    %73 = vector.shape_cast %72 : vector<1x1x4xf32> to vector<4xf32>
    %74 = vector.shape_cast %73 : vector<4xf32> to vector<1x1x4xf32>
    %75 = vector.broadcast %74 : vector<1x1x4xf32> to vector<8x16x4xf32>
    %76 = arith.mulf %71, %75 : vector<8x16x4xf32>
    %77 = arith.addf %70, %76 : vector<8x16x4xf32>
    %78 = vector.extract_strided_slice %21 {offsets = [8, 0, 0], sizes = [8, 16, 4], strides = [1, 1, 1]} : vector<16x16x4xf32> to vector<8x16x4xf32>
    %79 = vector.extract_strided_slice %3 {offsets = [8, 0, 0], sizes = [1, 1, 4], strides = [1, 1, 1]} : vector<9x9x4xf32> to vector<1x1x4xf32>
    %80 = vector.shape_cast %79 : vector<1x1x4xf32> to vector<4xf32>
    %81 = vector.shape_cast %80 : vector<4xf32> to vector<1x1x4xf32>
    %82 = vector.broadcast %81 : vector<1x1x4xf32> to vector<8x16x4xf32>
    %83 = arith.mulf %78, %82 : vector<8x16x4xf32>
    %84 = arith.addf %77, %83 : vector<8x16x4xf32>
    %85 = vector.extract_strided_slice %19 {offsets = [0, 1, 0], sizes = [16, 16, 4], strides = [1, 1, 1]} : vector<16x24x4xf32> to vector<16x16x4xf32>
    %86 = vector.extract_strided_slice %85 {offsets = [0, 0, 0], sizes = [8, 16, 4], strides = [1, 1, 1]} : vector<16x16x4xf32> to vector<8x16x4xf32>
    %87 = vector.extract_strided_slice %3 {offsets = [0, 1, 0], sizes = [1, 1, 4], strides = [1, 1, 1]} : vector<9x9x4xf32> to vector<1x1x4xf32>
    %88 = vector.shape_cast %87 : vector<1x1x4xf32> to vector<4xf32>
    %89 = vector.shape_cast %88 : vector<4xf32> to vector<1x1x4xf32>
    %90 = vector.broadcast %89 : vector<1x1x4xf32> to vector<8x16x4xf32>
    %91 = arith.mulf %86, %90 : vector<8x16x4xf32>
    %92 = arith.addf %84, %91 : vector<8x16x4xf32>
    %93 = vector.extract_strided_slice %85 {offsets = [1, 0, 0], sizes = [8, 16, 4], strides = [1, 1, 1]} : vector<16x16x4xf32> to vector<8x16x4xf32>
    %94 = vector.extract_strided_slice %3 {offsets = [1, 1, 0], sizes = [1, 1, 4], strides = [1, 1, 1]} : vector<9x9x4xf32> to vector<1x1x4xf32>
    %95 = vector.shape_cast %94 : vector<1x1x4xf32> to vector<4xf32>
    %96 = vector.shape_cast %95 : vector<4xf32> to vector<1x1x4xf32>
    %97 = vector.broadcast %96 : vector<1x1x4xf32> to vector<8x16x4xf32>
    %98 = arith.mulf %93, %97 : vector<8x16x4xf32>
    %99 = arith.addf %92, %98 : vector<8x16x4xf32>
    %100 = vector.extract_strided_slice %85 {offsets = [2, 0, 0], sizes = [8, 16, 4], strides = [1, 1, 1]} : vector<16x16x4xf32> to vector<8x16x4xf32>
    %101 = vector.extract_strided_slice %3 {offsets = [2, 1, 0], sizes = [1, 1, 4], strides = [1, 1, 1]} : vector<9x9x4xf32> to vector<1x1x4xf32>
    %102 = vector.shape_cast %101 : vector<1x1x4xf32> to vector<4xf32>
    %103 = vector.shape_cast %102 : vector<4xf32> to vector<1x1x4xf32>
    %104 = vector.broadcast %103 : vector<1x1x4xf32> to vector<8x16x4xf32>
    %105 = arith.mulf %100, %104 : vector<8x16x4xf32>
    %106 = arith.addf %99, %105 : vector<8x16x4xf32>
    %107 = vector.extract_strided_slice %85 {offsets = [3, 0, 0], sizes = [8, 16, 4], strides = [1, 1, 1]} : vector<16x16x4xf32> to vector<8x16x4xf32>
    %108 = vector.extract_strided_slice %3 {offsets = [3, 1, 0], sizes = [1, 1, 4], strides = [1, 1, 1]} : vector<9x9x4xf32> to vector<1x1x4xf32>
    %109 = vector.shape_cast %108 : vector<1x1x4xf32> to vector<4xf32>
    %110 = vector.shape_cast %109 : vector<4xf32> to vector<1x1x4xf32>
    %111 = vector.broadcast %110 : vector<1x1x4xf32> to vector<8x16x4xf32>
    %112 = arith.mulf %107, %111 : vector<8x16x4xf32>
    %113 = arith.addf %106, %112 : vector<8x16x4xf32>
    %114 = vector.extract_strided_slice %85 {offsets = [4, 0, 0], sizes = [8, 16, 4], strides = [1, 1, 1]} : vector<16x16x4xf32> to vector<8x16x4xf32>
    %115 = vector.extract_strided_slice %3 {offsets = [4, 1, 0], sizes = [1, 1, 4], strides = [1, 1, 1]} : vector<9x9x4xf32> to vector<1x1x4xf32>
    %116 = vector.shape_cast %115 : vector<1x1x4xf32> to vector<4xf32>
    %117 = vector.shape_cast %116 : vector<4xf32> to vector<1x1x4xf32>
    %118 = vector.broadcast %117 : vector<1x1x4xf32> to vector<8x16x4xf32>
    %119 = arith.mulf %114, %118 : vector<8x16x4xf32>
    %120 = arith.addf %113, %119 : vector<8x16x4xf32>
    %121 = vector.extract_strided_slice %85 {offsets = [5, 0, 0], sizes = [8, 16, 4], strides = [1, 1, 1]} : vector<16x16x4xf32> to vector<8x16x4xf32>
    %122 = vector.extract_strided_slice %3 {offsets = [5, 1, 0], sizes = [1, 1, 4], strides = [1, 1, 1]} : vector<9x9x4xf32> to vector<1x1x4xf32>
    %123 = vector.shape_cast %122 : vector<1x1x4xf32> to vector<4xf32>
    %124 = vector.shape_cast %123 : vector<4xf32> to vector<1x1x4xf32>
    %125 = vector.broadcast %124 : vector<1x1x4xf32> to vector<8x16x4xf32>
    %126 = arith.mulf %121, %125 : vector<8x16x4xf32>
    %127 = arith.addf %120, %126 : vector<8x16x4xf32>
    %128 = vector.extract_strided_slice %85 {offsets = [6, 0, 0], sizes = [8, 16, 4], strides = [1, 1, 1]} : vector<16x16x4xf32> to vector<8x16x4xf32>
    %129 = vector.extract_strided_slice %3 {offsets = [6, 1, 0], sizes = [1, 1, 4], strides = [1, 1, 1]} : vector<9x9x4xf32> to vector<1x1x4xf32>
    %130 = vector.shape_cast %129 : vector<1x1x4xf32> to vector<4xf32>
    %131 = vector.shape_cast %130 : vector<4xf32> to vector<1x1x4xf32>
    %132 = vector.broadcast %131 : vector<1x1x4xf32> to vector<8x16x4xf32>
    %133 = arith.mulf %128, %132 : vector<8x16x4xf32>
    %134 = arith.addf %127, %133 : vector<8x16x4xf32>
    %135 = vector.extract_strided_slice %85 {offsets = [7, 0, 0], sizes = [8, 16, 4], strides = [1, 1, 1]} : vector<16x16x4xf32> to vector<8x16x4xf32>
    %136 = vector.extract_strided_slice %3 {offsets = [7, 1, 0], sizes = [1, 1, 4], strides = [1, 1, 1]} : vector<9x9x4xf32> to vector<1x1x4xf32>
    %137 = vector.shape_cast %136 : vector<1x1x4xf32> to vector<4xf32>
    %138 = vector.shape_cast %137 : vector<4xf32> to vector<1x1x4xf32>
    %139 = vector.broadcast %138 : vector<1x1x4xf32> to vector<8x16x4xf32>
    %140 = arith.mulf %135, %139 : vector<8x16x4xf32>
    %141 = arith.addf %134, %140 : vector<8x16x4xf32>
    %142 = vector.extract_strided_slice %85 {offsets = [8, 0, 0], sizes = [8, 16, 4], strides = [1, 1, 1]} : vector<16x16x4xf32> to vector<8x16x4xf32>
    %143 = vector.extract_strided_slice %3 {offsets = [8, 1, 0], sizes = [1, 1, 4], strides = [1, 1, 1]} : vector<9x9x4xf32> to vector<1x1x4xf32>
    %144 = vector.shape_cast %143 : vector<1x1x4xf32> to vector<4xf32>
    %145 = vector.shape_cast %144 : vector<4xf32> to vector<1x1x4xf32>
    %146 = vector.broadcast %145 : vector<1x1x4xf32> to vector<8x16x4xf32>
    %147 = arith.mulf %142, %146 : vector<8x16x4xf32>
    %148 = arith.addf %141, %147 : vector<8x16x4xf32>
    %149 = vector.extract_strided_slice %19 {offsets = [0, 2, 0], sizes = [16, 16, 4], strides = [1, 1, 1]} : vector<16x24x4xf32> to vector<16x16x4xf32>
    %150 = vector.extract_strided_slice %149 {offsets = [0, 0, 0], sizes = [8, 16, 4], strides = [1, 1, 1]} : vector<16x16x4xf32> to vector<8x16x4xf32>
    %151 = vector.extract_strided_slice %3 {offsets = [0, 2, 0], sizes = [1, 1, 4], strides = [1, 1, 1]} : vector<9x9x4xf32> to vector<1x1x4xf32>
    %152 = vector.shape_cast %151 : vector<1x1x4xf32> to vector<4xf32>
    %153 = vector.shape_cast %152 : vector<4xf32> to vector<1x1x4xf32>
    %154 = vector.broadcast %153 : vector<1x1x4xf32> to vector<8x16x4xf32>
    %155 = arith.mulf %150, %154 : vector<8x16x4xf32>
    %156 = arith.addf %148, %155 : vector<8x16x4xf32>
    %157 = vector.extract_strided_slice %149 {offsets = [1, 0, 0], sizes = [8, 16, 4], strides = [1, 1, 1]} : vector<16x16x4xf32> to vector<8x16x4xf32>
    %158 = vector.extract_strided_slice %3 {offsets = [1, 2, 0], sizes = [1, 1, 4], strides = [1, 1, 1]} : vector<9x9x4xf32> to vector<1x1x4xf32>
    %159 = vector.shape_cast %158 : vector<1x1x4xf32> to vector<4xf32>
    %160 = vector.shape_cast %159 : vector<4xf32> to vector<1x1x4xf32>
    %161 = vector.broadcast %160 : vector<1x1x4xf32> to vector<8x16x4xf32>
    %162 = arith.mulf %157, %161 : vector<8x16x4xf32>
    %163 = arith.addf %156, %162 : vector<8x16x4xf32>
    %164 = vector.extract_strided_slice %149 {offsets = [2, 0, 0], sizes = [8, 16, 4], strides = [1, 1, 1]} : vector<16x16x4xf32> to vector<8x16x4xf32>
    %165 = vector.extract_strided_slice %3 {offsets = [2, 2, 0], sizes = [1, 1, 4], strides = [1, 1, 1]} : vector<9x9x4xf32> to vector<1x1x4xf32>
    %166 = vector.shape_cast %165 : vector<1x1x4xf32> to vector<4xf32>
    %167 = vector.shape_cast %166 : vector<4xf32> to vector<1x1x4xf32>
    %168 = vector.broadcast %167 : vector<1x1x4xf32> to vector<8x16x4xf32>
    %169 = arith.mulf %164, %168 : vector<8x16x4xf32>
    %170 = arith.addf %163, %169 : vector<8x16x4xf32>
    %171 = vector.extract_strided_slice %149 {offsets = [3, 0, 0], sizes = [8, 16, 4], strides = [1, 1, 1]} : vector<16x16x4xf32> to vector<8x16x4xf32>
    %172 = vector.extract_strided_slice %3 {offsets = [3, 2, 0], sizes = [1, 1, 4], strides = [1, 1, 1]} : vector<9x9x4xf32> to vector<1x1x4xf32>
    %173 = vector.shape_cast %172 : vector<1x1x4xf32> to vector<4xf32>
    %174 = vector.shape_cast %173 : vector<4xf32> to vector<1x1x4xf32>
    %175 = vector.broadcast %174 : vector<1x1x4xf32> to vector<8x16x4xf32>
    %176 = arith.mulf %171, %175 : vector<8x16x4xf32>
    %177 = arith.addf %170, %176 : vector<8x16x4xf32>
    %178 = vector.extract_strided_slice %149 {offsets = [4, 0, 0], sizes = [8, 16, 4], strides = [1, 1, 1]} : vector<16x16x4xf32> to vector<8x16x4xf32>
    %179 = vector.extract_strided_slice %3 {offsets = [4, 2, 0], sizes = [1, 1, 4], strides = [1, 1, 1]} : vector<9x9x4xf32> to vector<1x1x4xf32>
    %180 = vector.shape_cast %179 : vector<1x1x4xf32> to vector<4xf32>
    %181 = vector.shape_cast %180 : vector<4xf32> to vector<1x1x4xf32>
    %182 = vector.broadcast %181 : vector<1x1x4xf32> to vector<8x16x4xf32>
    %183 = arith.mulf %178, %182 : vector<8x16x4xf32>
    %184 = arith.addf %177, %183 : vector<8x16x4xf32>
    %185 = vector.extract_strided_slice %149 {offsets = [5, 0, 0], sizes = [8, 16, 4], strides = [1, 1, 1]} : vector<16x16x4xf32> to vector<8x16x4xf32>
    %186 = vector.extract_strided_slice %3 {offsets = [5, 2, 0], sizes = [1, 1, 4], strides = [1, 1, 1]} : vector<9x9x4xf32> to vector<1x1x4xf32>
    %187 = vector.shape_cast %186 : vector<1x1x4xf32> to vector<4xf32>
    %188 = vector.shape_cast %187 : vector<4xf32> to vector<1x1x4xf32>
    %189 = vector.broadcast %188 : vector<1x1x4xf32> to vector<8x16x4xf32>
    %190 = arith.mulf %185, %189 : vector<8x16x4xf32>
    %191 = arith.addf %184, %190 : vector<8x16x4xf32>
    %192 = vector.extract_strided_slice %149 {offsets = [6, 0, 0], sizes = [8, 16, 4], strides = [1, 1, 1]} : vector<16x16x4xf32> to vector<8x16x4xf32>
    %193 = vector.extract_strided_slice %3 {offsets = [6, 2, 0], sizes = [1, 1, 4], strides = [1, 1, 1]} : vector<9x9x4xf32> to vector<1x1x4xf32>
    %194 = vector.shape_cast %193 : vector<1x1x4xf32> to vector<4xf32>
    %195 = vector.shape_cast %194 : vector<4xf32> to vector<1x1x4xf32>
    %196 = vector.broadcast %195 : vector<1x1x4xf32> to vector<8x16x4xf32>
    %197 = arith.mulf %192, %196 : vector<8x16x4xf32>
    %198 = arith.addf %191, %197 : vector<8x16x4xf32>
    %199 = vector.extract_strided_slice %149 {offsets = [7, 0, 0], sizes = [8, 16, 4], strides = [1, 1, 1]} : vector<16x16x4xf32> to vector<8x16x4xf32>
    %200 = vector.extract_strided_slice %3 {offsets = [7, 2, 0], sizes = [1, 1, 4], strides = [1, 1, 1]} : vector<9x9x4xf32> to vector<1x1x4xf32>
    %201 = vector.shape_cast %200 : vector<1x1x4xf32> to vector<4xf32>
    %202 = vector.shape_cast %201 : vector<4xf32> to vector<1x1x4xf32>
    %203 = vector.broadcast %202 : vector<1x1x4xf32> to vector<8x16x4xf32>
    %204 = arith.mulf %199, %203 : vector<8x16x4xf32>
    %205 = arith.addf %198, %204 : vector<8x16x4xf32>
    %206 = vector.extract_strided_slice %149 {offsets = [8, 0, 0], sizes = [8, 16, 4], strides = [1, 1, 1]} : vector<16x16x4xf32> to vector<8x16x4xf32>
    %207 = vector.extract_strided_slice %3 {offsets = [8, 2, 0], sizes = [1, 1, 4], strides = [1, 1, 1]} : vector<9x9x4xf32> to vector<1x1x4xf32>
    %208 = vector.shape_cast %207 : vector<1x1x4xf32> to vector<4xf32>
    %209 = vector.shape_cast %208 : vector<4xf32> to vector<1x1x4xf32>
    %210 = vector.broadcast %209 : vector<1x1x4xf32> to vector<8x16x4xf32>
    %211 = arith.mulf %206, %210 : vector<8x16x4xf32>
    %212 = arith.addf %205, %211 : vector<8x16x4xf32>
    %213 = vector.extract_strided_slice %19 {offsets = [0, 3, 0], sizes = [16, 16, 4], strides = [1, 1, 1]} : vector<16x24x4xf32> to vector<16x16x4xf32>
    %214 = vector.extract_strided_slice %213 {offsets = [0, 0, 0], sizes = [8, 16, 4], strides = [1, 1, 1]} : vector<16x16x4xf32> to vector<8x16x4xf32>
    %215 = vector.extract_strided_slice %3 {offsets = [0, 3, 0], sizes = [1, 1, 4], strides = [1, 1, 1]} : vector<9x9x4xf32> to vector<1x1x4xf32>
    %216 = vector.shape_cast %215 : vector<1x1x4xf32> to vector<4xf32>
    %217 = vector.shape_cast %216 : vector<4xf32> to vector<1x1x4xf32>
    %218 = vector.broadcast %217 : vector<1x1x4xf32> to vector<8x16x4xf32>
    %219 = arith.mulf %214, %218 : vector<8x16x4xf32>
    %220 = arith.addf %212, %219 : vector<8x16x4xf32>
    %221 = vector.extract_strided_slice %213 {offsets = [1, 0, 0], sizes = [8, 16, 4], strides = [1, 1, 1]} : vector<16x16x4xf32> to vector<8x16x4xf32>
    %222 = vector.extract_strided_slice %3 {offsets = [1, 3, 0], sizes = [1, 1, 4], strides = [1, 1, 1]} : vector<9x9x4xf32> to vector<1x1x4xf32>
    %223 = vector.shape_cast %222 : vector<1x1x4xf32> to vector<4xf32>
    %224 = vector.shape_cast %223 : vector<4xf32> to vector<1x1x4xf32>
    %225 = vector.broadcast %224 : vector<1x1x4xf32> to vector<8x16x4xf32>
    %226 = arith.mulf %221, %225 : vector<8x16x4xf32>
    %227 = arith.addf %220, %226 : vector<8x16x4xf32>
    %228 = vector.extract_strided_slice %213 {offsets = [2, 0, 0], sizes = [8, 16, 4], strides = [1, 1, 1]} : vector<16x16x4xf32> to vector<8x16x4xf32>
    %229 = vector.extract_strided_slice %3 {offsets = [2, 3, 0], sizes = [1, 1, 4], strides = [1, 1, 1]} : vector<9x9x4xf32> to vector<1x1x4xf32>
    %230 = vector.shape_cast %229 : vector<1x1x4xf32> to vector<4xf32>
    %231 = vector.shape_cast %230 : vector<4xf32> to vector<1x1x4xf32>
    %232 = vector.broadcast %231 : vector<1x1x4xf32> to vector<8x16x4xf32>
    %233 = arith.mulf %228, %232 : vector<8x16x4xf32>
    %234 = arith.addf %227, %233 : vector<8x16x4xf32>
    %235 = vector.extract_strided_slice %213 {offsets = [3, 0, 0], sizes = [8, 16, 4], strides = [1, 1, 1]} : vector<16x16x4xf32> to vector<8x16x4xf32>
    %236 = vector.extract_strided_slice %3 {offsets = [3, 3, 0], sizes = [1, 1, 4], strides = [1, 1, 1]} : vector<9x9x4xf32> to vector<1x1x4xf32>
    %237 = vector.shape_cast %236 : vector<1x1x4xf32> to vector<4xf32>
    %238 = vector.shape_cast %237 : vector<4xf32> to vector<1x1x4xf32>
    %239 = vector.broadcast %238 : vector<1x1x4xf32> to vector<8x16x4xf32>
    %240 = arith.mulf %235, %239 : vector<8x16x4xf32>
    %241 = arith.addf %234, %240 : vector<8x16x4xf32>
    %242 = vector.extract_strided_slice %213 {offsets = [4, 0, 0], sizes = [8, 16, 4], strides = [1, 1, 1]} : vector<16x16x4xf32> to vector<8x16x4xf32>
    %243 = vector.extract_strided_slice %3 {offsets = [4, 3, 0], sizes = [1, 1, 4], strides = [1, 1, 1]} : vector<9x9x4xf32> to vector<1x1x4xf32>
    %244 = vector.shape_cast %243 : vector<1x1x4xf32> to vector<4xf32>
    %245 = vector.shape_cast %244 : vector<4xf32> to vector<1x1x4xf32>
    %246 = vector.broadcast %245 : vector<1x1x4xf32> to vector<8x16x4xf32>
    %247 = arith.mulf %242, %246 : vector<8x16x4xf32>
    %248 = arith.addf %241, %247 : vector<8x16x4xf32>
    %249 = vector.extract_strided_slice %213 {offsets = [5, 0, 0], sizes = [8, 16, 4], strides = [1, 1, 1]} : vector<16x16x4xf32> to vector<8x16x4xf32>
    %250 = vector.extract_strided_slice %3 {offsets = [5, 3, 0], sizes = [1, 1, 4], strides = [1, 1, 1]} : vector<9x9x4xf32> to vector<1x1x4xf32>
    %251 = vector.shape_cast %250 : vector<1x1x4xf32> to vector<4xf32>
    %252 = vector.shape_cast %251 : vector<4xf32> to vector<1x1x4xf32>
    %253 = vector.broadcast %252 : vector<1x1x4xf32> to vector<8x16x4xf32>
    %254 = arith.mulf %249, %253 : vector<8x16x4xf32>
    %255 = arith.addf %248, %254 : vector<8x16x4xf32>
    %256 = vector.extract_strided_slice %213 {offsets = [6, 0, 0], sizes = [8, 16, 4], strides = [1, 1, 1]} : vector<16x16x4xf32> to vector<8x16x4xf32>
    %257 = vector.extract_strided_slice %3 {offsets = [6, 3, 0], sizes = [1, 1, 4], strides = [1, 1, 1]} : vector<9x9x4xf32> to vector<1x1x4xf32>
    %258 = vector.shape_cast %257 : vector<1x1x4xf32> to vector<4xf32>
    %259 = vector.shape_cast %258 : vector<4xf32> to vector<1x1x4xf32>
    %260 = vector.broadcast %259 : vector<1x1x4xf32> to vector<8x16x4xf32>
    %261 = arith.mulf %256, %260 : vector<8x16x4xf32>
    %262 = arith.addf %255, %261 : vector<8x16x4xf32>
    %263 = vector.extract_strided_slice %213 {offsets = [7, 0, 0], sizes = [8, 16, 4], strides = [1, 1, 1]} : vector<16x16x4xf32> to vector<8x16x4xf32>
    %264 = vector.extract_strided_slice %3 {offsets = [7, 3, 0], sizes = [1, 1, 4], strides = [1, 1, 1]} : vector<9x9x4xf32> to vector<1x1x4xf32>
    %265 = vector.shape_cast %264 : vector<1x1x4xf32> to vector<4xf32>
    %266 = vector.shape_cast %265 : vector<4xf32> to vector<1x1x4xf32>
    %267 = vector.broadcast %266 : vector<1x1x4xf32> to vector<8x16x4xf32>
    %268 = arith.mulf %263, %267 : vector<8x16x4xf32>
    %269 = arith.addf %262, %268 : vector<8x16x4xf32>
    %270 = vector.extract_strided_slice %213 {offsets = [8, 0, 0], sizes = [8, 16, 4], strides = [1, 1, 1]} : vector<16x16x4xf32> to vector<8x16x4xf32>
    %271 = vector.extract_strided_slice %3 {offsets = [8, 3, 0], sizes = [1, 1, 4], strides = [1, 1, 1]} : vector<9x9x4xf32> to vector<1x1x4xf32>
    %272 = vector.shape_cast %271 : vector<1x1x4xf32> to vector<4xf32>
    %273 = vector.shape_cast %272 : vector<4xf32> to vector<1x1x4xf32>
    %274 = vector.broadcast %273 : vector<1x1x4xf32> to vector<8x16x4xf32>
    %275 = arith.mulf %270, %274 : vector<8x16x4xf32>
    %276 = arith.addf %269, %275 : vector<8x16x4xf32>
    %277 = vector.extract_strided_slice %19 {offsets = [0, 4, 0], sizes = [16, 16, 4], strides = [1, 1, 1]} : vector<16x24x4xf32> to vector<16x16x4xf32>
    %278 = vector.extract_strided_slice %277 {offsets = [0, 0, 0], sizes = [8, 16, 4], strides = [1, 1, 1]} : vector<16x16x4xf32> to vector<8x16x4xf32>
    %279 = vector.extract_strided_slice %3 {offsets = [0, 4, 0], sizes = [1, 1, 4], strides = [1, 1, 1]} : vector<9x9x4xf32> to vector<1x1x4xf32>
    %280 = vector.shape_cast %279 : vector<1x1x4xf32> to vector<4xf32>
    %281 = vector.shape_cast %280 : vector<4xf32> to vector<1x1x4xf32>
    %282 = vector.broadcast %281 : vector<1x1x4xf32> to vector<8x16x4xf32>
    %283 = arith.mulf %278, %282 : vector<8x16x4xf32>
    %284 = arith.addf %276, %283 : vector<8x16x4xf32>
    %285 = vector.extract_strided_slice %277 {offsets = [1, 0, 0], sizes = [8, 16, 4], strides = [1, 1, 1]} : vector<16x16x4xf32> to vector<8x16x4xf32>
    %286 = vector.extract_strided_slice %3 {offsets = [1, 4, 0], sizes = [1, 1, 4], strides = [1, 1, 1]} : vector<9x9x4xf32> to vector<1x1x4xf32>
    %287 = vector.shape_cast %286 : vector<1x1x4xf32> to vector<4xf32>
    %288 = vector.shape_cast %287 : vector<4xf32> to vector<1x1x4xf32>
    %289 = vector.broadcast %288 : vector<1x1x4xf32> to vector<8x16x4xf32>
    %290 = arith.mulf %285, %289 : vector<8x16x4xf32>
    %291 = arith.addf %284, %290 : vector<8x16x4xf32>
    %292 = vector.extract_strided_slice %277 {offsets = [2, 0, 0], sizes = [8, 16, 4], strides = [1, 1, 1]} : vector<16x16x4xf32> to vector<8x16x4xf32>
    %293 = vector.extract_strided_slice %3 {offsets = [2, 4, 0], sizes = [1, 1, 4], strides = [1, 1, 1]} : vector<9x9x4xf32> to vector<1x1x4xf32>
    %294 = vector.shape_cast %293 : vector<1x1x4xf32> to vector<4xf32>
    %295 = vector.shape_cast %294 : vector<4xf32> to vector<1x1x4xf32>
    %296 = vector.broadcast %295 : vector<1x1x4xf32> to vector<8x16x4xf32>
    %297 = arith.mulf %292, %296 : vector<8x16x4xf32>
    %298 = arith.addf %291, %297 : vector<8x16x4xf32>
    %299 = vector.extract_strided_slice %277 {offsets = [3, 0, 0], sizes = [8, 16, 4], strides = [1, 1, 1]} : vector<16x16x4xf32> to vector<8x16x4xf32>
    %300 = vector.extract_strided_slice %3 {offsets = [3, 4, 0], sizes = [1, 1, 4], strides = [1, 1, 1]} : vector<9x9x4xf32> to vector<1x1x4xf32>
    %301 = vector.shape_cast %300 : vector<1x1x4xf32> to vector<4xf32>
    %302 = vector.shape_cast %301 : vector<4xf32> to vector<1x1x4xf32>
    %303 = vector.broadcast %302 : vector<1x1x4xf32> to vector<8x16x4xf32>
    %304 = arith.mulf %299, %303 : vector<8x16x4xf32>
    %305 = arith.addf %298, %304 : vector<8x16x4xf32>
    %306 = vector.extract_strided_slice %277 {offsets = [4, 0, 0], sizes = [8, 16, 4], strides = [1, 1, 1]} : vector<16x16x4xf32> to vector<8x16x4xf32>
    %307 = vector.extract_strided_slice %3 {offsets = [4, 4, 0], sizes = [1, 1, 4], strides = [1, 1, 1]} : vector<9x9x4xf32> to vector<1x1x4xf32>
    %308 = vector.shape_cast %307 : vector<1x1x4xf32> to vector<4xf32>
    %309 = vector.shape_cast %308 : vector<4xf32> to vector<1x1x4xf32>
    %310 = vector.broadcast %309 : vector<1x1x4xf32> to vector<8x16x4xf32>
    %311 = arith.mulf %306, %310 : vector<8x16x4xf32>
    %312 = arith.addf %305, %311 : vector<8x16x4xf32>
    %313 = vector.extract_strided_slice %277 {offsets = [5, 0, 0], sizes = [8, 16, 4], strides = [1, 1, 1]} : vector<16x16x4xf32> to vector<8x16x4xf32>
    %314 = vector.extract_strided_slice %3 {offsets = [5, 4, 0], sizes = [1, 1, 4], strides = [1, 1, 1]} : vector<9x9x4xf32> to vector<1x1x4xf32>
    %315 = vector.shape_cast %314 : vector<1x1x4xf32> to vector<4xf32>
    %316 = vector.shape_cast %315 : vector<4xf32> to vector<1x1x4xf32>
    %317 = vector.broadcast %316 : vector<1x1x4xf32> to vector<8x16x4xf32>
    %318 = arith.mulf %313, %317 : vector<8x16x4xf32>
    %319 = arith.addf %312, %318 : vector<8x16x4xf32>
    %320 = vector.extract_strided_slice %277 {offsets = [6, 0, 0], sizes = [8, 16, 4], strides = [1, 1, 1]} : vector<16x16x4xf32> to vector<8x16x4xf32>
    %321 = vector.extract_strided_slice %3 {offsets = [6, 4, 0], sizes = [1, 1, 4], strides = [1, 1, 1]} : vector<9x9x4xf32> to vector<1x1x4xf32>
    %322 = vector.shape_cast %321 : vector<1x1x4xf32> to vector<4xf32>
    %323 = vector.shape_cast %322 : vector<4xf32> to vector<1x1x4xf32>
    %324 = vector.broadcast %323 : vector<1x1x4xf32> to vector<8x16x4xf32>
    %325 = arith.mulf %320, %324 : vector<8x16x4xf32>
    %326 = arith.addf %319, %325 : vector<8x16x4xf32>
    %327 = vector.extract_strided_slice %277 {offsets = [7, 0, 0], sizes = [8, 16, 4], strides = [1, 1, 1]} : vector<16x16x4xf32> to vector<8x16x4xf32>
    %328 = vector.extract_strided_slice %3 {offsets = [7, 4, 0], sizes = [1, 1, 4], strides = [1, 1, 1]} : vector<9x9x4xf32> to vector<1x1x4xf32>
    %329 = vector.shape_cast %328 : vector<1x1x4xf32> to vector<4xf32>
    %330 = vector.shape_cast %329 : vector<4xf32> to vector<1x1x4xf32>
    %331 = vector.broadcast %330 : vector<1x1x4xf32> to vector<8x16x4xf32>
    %332 = arith.mulf %327, %331 : vector<8x16x4xf32>
    %333 = arith.addf %326, %332 : vector<8x16x4xf32>
    %334 = vector.extract_strided_slice %277 {offsets = [8, 0, 0], sizes = [8, 16, 4], strides = [1, 1, 1]} : vector<16x16x4xf32> to vector<8x16x4xf32>
    %335 = vector.extract_strided_slice %3 {offsets = [8, 4, 0], sizes = [1, 1, 4], strides = [1, 1, 1]} : vector<9x9x4xf32> to vector<1x1x4xf32>
    %336 = vector.shape_cast %335 : vector<1x1x4xf32> to vector<4xf32>
    %337 = vector.shape_cast %336 : vector<4xf32> to vector<1x1x4xf32>
    %338 = vector.broadcast %337 : vector<1x1x4xf32> to vector<8x16x4xf32>
    %339 = arith.mulf %334, %338 : vector<8x16x4xf32>
    %340 = arith.addf %333, %339 : vector<8x16x4xf32>
    %341 = vector.extract_strided_slice %19 {offsets = [0, 5, 0], sizes = [16, 16, 4], strides = [1, 1, 1]} : vector<16x24x4xf32> to vector<16x16x4xf32>
    %342 = vector.extract_strided_slice %341 {offsets = [0, 0, 0], sizes = [8, 16, 4], strides = [1, 1, 1]} : vector<16x16x4xf32> to vector<8x16x4xf32>
    %343 = vector.extract_strided_slice %3 {offsets = [0, 5, 0], sizes = [1, 1, 4], strides = [1, 1, 1]} : vector<9x9x4xf32> to vector<1x1x4xf32>
    %344 = vector.shape_cast %343 : vector<1x1x4xf32> to vector<4xf32>
    %345 = vector.shape_cast %344 : vector<4xf32> to vector<1x1x4xf32>
    %346 = vector.broadcast %345 : vector<1x1x4xf32> to vector<8x16x4xf32>
    %347 = arith.mulf %342, %346 : vector<8x16x4xf32>
    %348 = arith.addf %340, %347 : vector<8x16x4xf32>
    %349 = vector.extract_strided_slice %341 {offsets = [1, 0, 0], sizes = [8, 16, 4], strides = [1, 1, 1]} : vector<16x16x4xf32> to vector<8x16x4xf32>
    %350 = vector.extract_strided_slice %3 {offsets = [1, 5, 0], sizes = [1, 1, 4], strides = [1, 1, 1]} : vector<9x9x4xf32> to vector<1x1x4xf32>
    %351 = vector.shape_cast %350 : vector<1x1x4xf32> to vector<4xf32>
    %352 = vector.shape_cast %351 : vector<4xf32> to vector<1x1x4xf32>
    %353 = vector.broadcast %352 : vector<1x1x4xf32> to vector<8x16x4xf32>
    %354 = arith.mulf %349, %353 : vector<8x16x4xf32>
    %355 = arith.addf %348, %354 : vector<8x16x4xf32>
    %356 = vector.extract_strided_slice %341 {offsets = [2, 0, 0], sizes = [8, 16, 4], strides = [1, 1, 1]} : vector<16x16x4xf32> to vector<8x16x4xf32>
    %357 = vector.extract_strided_slice %3 {offsets = [2, 5, 0], sizes = [1, 1, 4], strides = [1, 1, 1]} : vector<9x9x4xf32> to vector<1x1x4xf32>
    %358 = vector.shape_cast %357 : vector<1x1x4xf32> to vector<4xf32>
    %359 = vector.shape_cast %358 : vector<4xf32> to vector<1x1x4xf32>
    %360 = vector.broadcast %359 : vector<1x1x4xf32> to vector<8x16x4xf32>
    %361 = arith.mulf %356, %360 : vector<8x16x4xf32>
    %362 = arith.addf %355, %361 : vector<8x16x4xf32>
    %363 = vector.extract_strided_slice %341 {offsets = [3, 0, 0], sizes = [8, 16, 4], strides = [1, 1, 1]} : vector<16x16x4xf32> to vector<8x16x4xf32>
    %364 = vector.extract_strided_slice %3 {offsets = [3, 5, 0], sizes = [1, 1, 4], strides = [1, 1, 1]} : vector<9x9x4xf32> to vector<1x1x4xf32>
    %365 = vector.shape_cast %364 : vector<1x1x4xf32> to vector<4xf32>
    %366 = vector.shape_cast %365 : vector<4xf32> to vector<1x1x4xf32>
    %367 = vector.broadcast %366 : vector<1x1x4xf32> to vector<8x16x4xf32>
    %368 = arith.mulf %363, %367 : vector<8x16x4xf32>
    %369 = arith.addf %362, %368 : vector<8x16x4xf32>
    %370 = vector.extract_strided_slice %341 {offsets = [4, 0, 0], sizes = [8, 16, 4], strides = [1, 1, 1]} : vector<16x16x4xf32> to vector<8x16x4xf32>
    %371 = vector.extract_strided_slice %3 {offsets = [4, 5, 0], sizes = [1, 1, 4], strides = [1, 1, 1]} : vector<9x9x4xf32> to vector<1x1x4xf32>
    %372 = vector.shape_cast %371 : vector<1x1x4xf32> to vector<4xf32>
    %373 = vector.shape_cast %372 : vector<4xf32> to vector<1x1x4xf32>
    %374 = vector.broadcast %373 : vector<1x1x4xf32> to vector<8x16x4xf32>
    %375 = arith.mulf %370, %374 : vector<8x16x4xf32>
    %376 = arith.addf %369, %375 : vector<8x16x4xf32>
    %377 = vector.extract_strided_slice %341 {offsets = [5, 0, 0], sizes = [8, 16, 4], strides = [1, 1, 1]} : vector<16x16x4xf32> to vector<8x16x4xf32>
    %378 = vector.extract_strided_slice %3 {offsets = [5, 5, 0], sizes = [1, 1, 4], strides = [1, 1, 1]} : vector<9x9x4xf32> to vector<1x1x4xf32>
    %379 = vector.shape_cast %378 : vector<1x1x4xf32> to vector<4xf32>
    %380 = vector.shape_cast %379 : vector<4xf32> to vector<1x1x4xf32>
    %381 = vector.broadcast %380 : vector<1x1x4xf32> to vector<8x16x4xf32>
    %382 = arith.mulf %377, %381 : vector<8x16x4xf32>
    %383 = arith.addf %376, %382 : vector<8x16x4xf32>
    %384 = vector.extract_strided_slice %341 {offsets = [6, 0, 0], sizes = [8, 16, 4], strides = [1, 1, 1]} : vector<16x16x4xf32> to vector<8x16x4xf32>
    %385 = vector.extract_strided_slice %3 {offsets = [6, 5, 0], sizes = [1, 1, 4], strides = [1, 1, 1]} : vector<9x9x4xf32> to vector<1x1x4xf32>
    %386 = vector.shape_cast %385 : vector<1x1x4xf32> to vector<4xf32>
    %387 = vector.shape_cast %386 : vector<4xf32> to vector<1x1x4xf32>
    %388 = vector.broadcast %387 : vector<1x1x4xf32> to vector<8x16x4xf32>
    %389 = arith.mulf %384, %388 : vector<8x16x4xf32>
    %390 = arith.addf %383, %389 : vector<8x16x4xf32>
    %391 = vector.extract_strided_slice %341 {offsets = [7, 0, 0], sizes = [8, 16, 4], strides = [1, 1, 1]} : vector<16x16x4xf32> to vector<8x16x4xf32>
    %392 = vector.extract_strided_slice %3 {offsets = [7, 5, 0], sizes = [1, 1, 4], strides = [1, 1, 1]} : vector<9x9x4xf32> to vector<1x1x4xf32>
    %393 = vector.shape_cast %392 : vector<1x1x4xf32> to vector<4xf32>
    %394 = vector.shape_cast %393 : vector<4xf32> to vector<1x1x4xf32>
    %395 = vector.broadcast %394 : vector<1x1x4xf32> to vector<8x16x4xf32>
    %396 = arith.mulf %391, %395 : vector<8x16x4xf32>
    %397 = arith.addf %390, %396 : vector<8x16x4xf32>
    %398 = vector.extract_strided_slice %341 {offsets = [8, 0, 0], sizes = [8, 16, 4], strides = [1, 1, 1]} : vector<16x16x4xf32> to vector<8x16x4xf32>
    %399 = vector.extract_strided_slice %3 {offsets = [8, 5, 0], sizes = [1, 1, 4], strides = [1, 1, 1]} : vector<9x9x4xf32> to vector<1x1x4xf32>
    %400 = vector.shape_cast %399 : vector<1x1x4xf32> to vector<4xf32>
    %401 = vector.shape_cast %400 : vector<4xf32> to vector<1x1x4xf32>
    %402 = vector.broadcast %401 : vector<1x1x4xf32> to vector<8x16x4xf32>
    %403 = arith.mulf %398, %402 : vector<8x16x4xf32>
    %404 = arith.addf %397, %403 : vector<8x16x4xf32>
    %405 = vector.extract_strided_slice %19 {offsets = [0, 6, 0], sizes = [16, 16, 4], strides = [1, 1, 1]} : vector<16x24x4xf32> to vector<16x16x4xf32>
    %406 = vector.extract_strided_slice %405 {offsets = [0, 0, 0], sizes = [8, 16, 4], strides = [1, 1, 1]} : vector<16x16x4xf32> to vector<8x16x4xf32>
    %407 = vector.extract_strided_slice %3 {offsets = [0, 6, 0], sizes = [1, 1, 4], strides = [1, 1, 1]} : vector<9x9x4xf32> to vector<1x1x4xf32>
    %408 = vector.shape_cast %407 : vector<1x1x4xf32> to vector<4xf32>
    %409 = vector.shape_cast %408 : vector<4xf32> to vector<1x1x4xf32>
    %410 = vector.broadcast %409 : vector<1x1x4xf32> to vector<8x16x4xf32>
    %411 = arith.mulf %406, %410 : vector<8x16x4xf32>
    %412 = arith.addf %404, %411 : vector<8x16x4xf32>
    %413 = vector.extract_strided_slice %405 {offsets = [1, 0, 0], sizes = [8, 16, 4], strides = [1, 1, 1]} : vector<16x16x4xf32> to vector<8x16x4xf32>
    %414 = vector.extract_strided_slice %3 {offsets = [1, 6, 0], sizes = [1, 1, 4], strides = [1, 1, 1]} : vector<9x9x4xf32> to vector<1x1x4xf32>
    %415 = vector.shape_cast %414 : vector<1x1x4xf32> to vector<4xf32>
    %416 = vector.shape_cast %415 : vector<4xf32> to vector<1x1x4xf32>
    %417 = vector.broadcast %416 : vector<1x1x4xf32> to vector<8x16x4xf32>
    %418 = arith.mulf %413, %417 : vector<8x16x4xf32>
    %419 = arith.addf %412, %418 : vector<8x16x4xf32>
    %420 = vector.extract_strided_slice %405 {offsets = [2, 0, 0], sizes = [8, 16, 4], strides = [1, 1, 1]} : vector<16x16x4xf32> to vector<8x16x4xf32>
    %421 = vector.extract_strided_slice %3 {offsets = [2, 6, 0], sizes = [1, 1, 4], strides = [1, 1, 1]} : vector<9x9x4xf32> to vector<1x1x4xf32>
    %422 = vector.shape_cast %421 : vector<1x1x4xf32> to vector<4xf32>
    %423 = vector.shape_cast %422 : vector<4xf32> to vector<1x1x4xf32>
    %424 = vector.broadcast %423 : vector<1x1x4xf32> to vector<8x16x4xf32>
    %425 = arith.mulf %420, %424 : vector<8x16x4xf32>
    %426 = arith.addf %419, %425 : vector<8x16x4xf32>
    %427 = vector.extract_strided_slice %405 {offsets = [3, 0, 0], sizes = [8, 16, 4], strides = [1, 1, 1]} : vector<16x16x4xf32> to vector<8x16x4xf32>
    %428 = vector.extract_strided_slice %3 {offsets = [3, 6, 0], sizes = [1, 1, 4], strides = [1, 1, 1]} : vector<9x9x4xf32> to vector<1x1x4xf32>
    %429 = vector.shape_cast %428 : vector<1x1x4xf32> to vector<4xf32>
    %430 = vector.shape_cast %429 : vector<4xf32> to vector<1x1x4xf32>
    %431 = vector.broadcast %430 : vector<1x1x4xf32> to vector<8x16x4xf32>
    %432 = arith.mulf %427, %431 : vector<8x16x4xf32>
    %433 = arith.addf %426, %432 : vector<8x16x4xf32>
    %434 = vector.extract_strided_slice %405 {offsets = [4, 0, 0], sizes = [8, 16, 4], strides = [1, 1, 1]} : vector<16x16x4xf32> to vector<8x16x4xf32>
    %435 = vector.extract_strided_slice %3 {offsets = [4, 6, 0], sizes = [1, 1, 4], strides = [1, 1, 1]} : vector<9x9x4xf32> to vector<1x1x4xf32>
    %436 = vector.shape_cast %435 : vector<1x1x4xf32> to vector<4xf32>
    %437 = vector.shape_cast %436 : vector<4xf32> to vector<1x1x4xf32>
    %438 = vector.broadcast %437 : vector<1x1x4xf32> to vector<8x16x4xf32>
    %439 = arith.mulf %434, %438 : vector<8x16x4xf32>
    %440 = arith.addf %433, %439 : vector<8x16x4xf32>
    %441 = vector.extract_strided_slice %405 {offsets = [5, 0, 0], sizes = [8, 16, 4], strides = [1, 1, 1]} : vector<16x16x4xf32> to vector<8x16x4xf32>
    %442 = vector.extract_strided_slice %3 {offsets = [5, 6, 0], sizes = [1, 1, 4], strides = [1, 1, 1]} : vector<9x9x4xf32> to vector<1x1x4xf32>
    %443 = vector.shape_cast %442 : vector<1x1x4xf32> to vector<4xf32>
    %444 = vector.shape_cast %443 : vector<4xf32> to vector<1x1x4xf32>
    %445 = vector.broadcast %444 : vector<1x1x4xf32> to vector<8x16x4xf32>
    %446 = arith.mulf %441, %445 : vector<8x16x4xf32>
    %447 = arith.addf %440, %446 : vector<8x16x4xf32>
    %448 = vector.extract_strided_slice %405 {offsets = [6, 0, 0], sizes = [8, 16, 4], strides = [1, 1, 1]} : vector<16x16x4xf32> to vector<8x16x4xf32>
    %449 = vector.extract_strided_slice %3 {offsets = [6, 6, 0], sizes = [1, 1, 4], strides = [1, 1, 1]} : vector<9x9x4xf32> to vector<1x1x4xf32>
    %450 = vector.shape_cast %449 : vector<1x1x4xf32> to vector<4xf32>
    %451 = vector.shape_cast %450 : vector<4xf32> to vector<1x1x4xf32>
    %452 = vector.broadcast %451 : vector<1x1x4xf32> to vector<8x16x4xf32>
    %453 = arith.mulf %448, %452 : vector<8x16x4xf32>
    %454 = arith.addf %447, %453 : vector<8x16x4xf32>
    %455 = vector.extract_strided_slice %405 {offsets = [7, 0, 0], sizes = [8, 16, 4], strides = [1, 1, 1]} : vector<16x16x4xf32> to vector<8x16x4xf32>
    %456 = vector.extract_strided_slice %3 {offsets = [7, 6, 0], sizes = [1, 1, 4], strides = [1, 1, 1]} : vector<9x9x4xf32> to vector<1x1x4xf32>
    %457 = vector.shape_cast %456 : vector<1x1x4xf32> to vector<4xf32>
    %458 = vector.shape_cast %457 : vector<4xf32> to vector<1x1x4xf32>
    %459 = vector.broadcast %458 : vector<1x1x4xf32> to vector<8x16x4xf32>
    %460 = arith.mulf %455, %459 : vector<8x16x4xf32>
    %461 = arith.addf %454, %460 : vector<8x16x4xf32>
    %462 = vector.extract_strided_slice %405 {offsets = [8, 0, 0], sizes = [8, 16, 4], strides = [1, 1, 1]} : vector<16x16x4xf32> to vector<8x16x4xf32>
    %463 = vector.extract_strided_slice %3 {offsets = [8, 6, 0], sizes = [1, 1, 4], strides = [1, 1, 1]} : vector<9x9x4xf32> to vector<1x1x4xf32>
    %464 = vector.shape_cast %463 : vector<1x1x4xf32> to vector<4xf32>
    %465 = vector.shape_cast %464 : vector<4xf32> to vector<1x1x4xf32>
    %466 = vector.broadcast %465 : vector<1x1x4xf32> to vector<8x16x4xf32>
    %467 = arith.mulf %462, %466 : vector<8x16x4xf32>
    %468 = arith.addf %461, %467 : vector<8x16x4xf32>
    %469 = vector.extract_strided_slice %19 {offsets = [0, 7, 0], sizes = [16, 16, 4], strides = [1, 1, 1]} : vector<16x24x4xf32> to vector<16x16x4xf32>
    %470 = vector.extract_strided_slice %469 {offsets = [0, 0, 0], sizes = [8, 16, 4], strides = [1, 1, 1]} : vector<16x16x4xf32> to vector<8x16x4xf32>
    %471 = vector.extract_strided_slice %3 {offsets = [0, 7, 0], sizes = [1, 1, 4], strides = [1, 1, 1]} : vector<9x9x4xf32> to vector<1x1x4xf32>
    %472 = vector.shape_cast %471 : vector<1x1x4xf32> to vector<4xf32>
    %473 = vector.shape_cast %472 : vector<4xf32> to vector<1x1x4xf32>
    %474 = vector.broadcast %473 : vector<1x1x4xf32> to vector<8x16x4xf32>
    %475 = arith.mulf %470, %474 : vector<8x16x4xf32>
    %476 = arith.addf %468, %475 : vector<8x16x4xf32>
    %477 = vector.extract_strided_slice %469 {offsets = [1, 0, 0], sizes = [8, 16, 4], strides = [1, 1, 1]} : vector<16x16x4xf32> to vector<8x16x4xf32>
    %478 = vector.extract_strided_slice %3 {offsets = [1, 7, 0], sizes = [1, 1, 4], strides = [1, 1, 1]} : vector<9x9x4xf32> to vector<1x1x4xf32>
    %479 = vector.shape_cast %478 : vector<1x1x4xf32> to vector<4xf32>
    %480 = vector.shape_cast %479 : vector<4xf32> to vector<1x1x4xf32>
    %481 = vector.broadcast %480 : vector<1x1x4xf32> to vector<8x16x4xf32>
    %482 = arith.mulf %477, %481 : vector<8x16x4xf32>
    %483 = arith.addf %476, %482 : vector<8x16x4xf32>
    %484 = vector.extract_strided_slice %469 {offsets = [2, 0, 0], sizes = [8, 16, 4], strides = [1, 1, 1]} : vector<16x16x4xf32> to vector<8x16x4xf32>
    %485 = vector.extract_strided_slice %3 {offsets = [2, 7, 0], sizes = [1, 1, 4], strides = [1, 1, 1]} : vector<9x9x4xf32> to vector<1x1x4xf32>
    %486 = vector.shape_cast %485 : vector<1x1x4xf32> to vector<4xf32>
    %487 = vector.shape_cast %486 : vector<4xf32> to vector<1x1x4xf32>
    %488 = vector.broadcast %487 : vector<1x1x4xf32> to vector<8x16x4xf32>
    %489 = arith.mulf %484, %488 : vector<8x16x4xf32>
    %490 = arith.addf %483, %489 : vector<8x16x4xf32>
    %491 = vector.extract_strided_slice %469 {offsets = [3, 0, 0], sizes = [8, 16, 4], strides = [1, 1, 1]} : vector<16x16x4xf32> to vector<8x16x4xf32>
    %492 = vector.extract_strided_slice %3 {offsets = [3, 7, 0], sizes = [1, 1, 4], strides = [1, 1, 1]} : vector<9x9x4xf32> to vector<1x1x4xf32>
    %493 = vector.shape_cast %492 : vector<1x1x4xf32> to vector<4xf32>
    %494 = vector.shape_cast %493 : vector<4xf32> to vector<1x1x4xf32>
    %495 = vector.broadcast %494 : vector<1x1x4xf32> to vector<8x16x4xf32>
    %496 = arith.mulf %491, %495 : vector<8x16x4xf32>
    %497 = arith.addf %490, %496 : vector<8x16x4xf32>
    %498 = vector.extract_strided_slice %469 {offsets = [4, 0, 0], sizes = [8, 16, 4], strides = [1, 1, 1]} : vector<16x16x4xf32> to vector<8x16x4xf32>
    %499 = vector.extract_strided_slice %3 {offsets = [4, 7, 0], sizes = [1, 1, 4], strides = [1, 1, 1]} : vector<9x9x4xf32> to vector<1x1x4xf32>
    %500 = vector.shape_cast %499 : vector<1x1x4xf32> to vector<4xf32>
    %501 = vector.shape_cast %500 : vector<4xf32> to vector<1x1x4xf32>
    %502 = vector.broadcast %501 : vector<1x1x4xf32> to vector<8x16x4xf32>
    %503 = arith.mulf %498, %502 : vector<8x16x4xf32>
    %504 = arith.addf %497, %503 : vector<8x16x4xf32>
    %505 = vector.extract_strided_slice %469 {offsets = [5, 0, 0], sizes = [8, 16, 4], strides = [1, 1, 1]} : vector<16x16x4xf32> to vector<8x16x4xf32>
    %506 = vector.extract_strided_slice %3 {offsets = [5, 7, 0], sizes = [1, 1, 4], strides = [1, 1, 1]} : vector<9x9x4xf32> to vector<1x1x4xf32>
    %507 = vector.shape_cast %506 : vector<1x1x4xf32> to vector<4xf32>
    %508 = vector.shape_cast %507 : vector<4xf32> to vector<1x1x4xf32>
    %509 = vector.broadcast %508 : vector<1x1x4xf32> to vector<8x16x4xf32>
    %510 = arith.mulf %505, %509 : vector<8x16x4xf32>
    %511 = arith.addf %504, %510 : vector<8x16x4xf32>
    %512 = vector.extract_strided_slice %469 {offsets = [6, 0, 0], sizes = [8, 16, 4], strides = [1, 1, 1]} : vector<16x16x4xf32> to vector<8x16x4xf32>
    %513 = vector.extract_strided_slice %3 {offsets = [6, 7, 0], sizes = [1, 1, 4], strides = [1, 1, 1]} : vector<9x9x4xf32> to vector<1x1x4xf32>
    %514 = vector.shape_cast %513 : vector<1x1x4xf32> to vector<4xf32>
    %515 = vector.shape_cast %514 : vector<4xf32> to vector<1x1x4xf32>
    %516 = vector.broadcast %515 : vector<1x1x4xf32> to vector<8x16x4xf32>
    %517 = arith.mulf %512, %516 : vector<8x16x4xf32>
    %518 = arith.addf %511, %517 : vector<8x16x4xf32>
    %519 = vector.extract_strided_slice %469 {offsets = [7, 0, 0], sizes = [8, 16, 4], strides = [1, 1, 1]} : vector<16x16x4xf32> to vector<8x16x4xf32>
    %520 = vector.extract_strided_slice %3 {offsets = [7, 7, 0], sizes = [1, 1, 4], strides = [1, 1, 1]} : vector<9x9x4xf32> to vector<1x1x4xf32>
    %521 = vector.shape_cast %520 : vector<1x1x4xf32> to vector<4xf32>
    %522 = vector.shape_cast %521 : vector<4xf32> to vector<1x1x4xf32>
    %523 = vector.broadcast %522 : vector<1x1x4xf32> to vector<8x16x4xf32>
    %524 = arith.mulf %519, %523 : vector<8x16x4xf32>
    %525 = arith.addf %518, %524 : vector<8x16x4xf32>
    %526 = vector.extract_strided_slice %469 {offsets = [8, 0, 0], sizes = [8, 16, 4], strides = [1, 1, 1]} : vector<16x16x4xf32> to vector<8x16x4xf32>
    %527 = vector.extract_strided_slice %3 {offsets = [8, 7, 0], sizes = [1, 1, 4], strides = [1, 1, 1]} : vector<9x9x4xf32> to vector<1x1x4xf32>
    %528 = vector.shape_cast %527 : vector<1x1x4xf32> to vector<4xf32>
    %529 = vector.shape_cast %528 : vector<4xf32> to vector<1x1x4xf32>
    %530 = vector.broadcast %529 : vector<1x1x4xf32> to vector<8x16x4xf32>
    %531 = arith.mulf %526, %530 : vector<8x16x4xf32>
    %532 = arith.addf %525, %531 : vector<8x16x4xf32>
    %533 = vector.extract_strided_slice %19 {offsets = [0, 8, 0], sizes = [16, 16, 4], strides = [1, 1, 1]} : vector<16x24x4xf32> to vector<16x16x4xf32>
    %534 = vector.extract_strided_slice %533 {offsets = [0, 0, 0], sizes = [8, 16, 4], strides = [1, 1, 1]} : vector<16x16x4xf32> to vector<8x16x4xf32>
    %535 = vector.extract_strided_slice %3 {offsets = [0, 8, 0], sizes = [1, 1, 4], strides = [1, 1, 1]} : vector<9x9x4xf32> to vector<1x1x4xf32>
    %536 = vector.shape_cast %535 : vector<1x1x4xf32> to vector<4xf32>
    %537 = vector.shape_cast %536 : vector<4xf32> to vector<1x1x4xf32>
    %538 = vector.broadcast %537 : vector<1x1x4xf32> to vector<8x16x4xf32>
    %539 = arith.mulf %534, %538 : vector<8x16x4xf32>
    %540 = arith.addf %532, %539 : vector<8x16x4xf32>
    %541 = vector.extract_strided_slice %533 {offsets = [1, 0, 0], sizes = [8, 16, 4], strides = [1, 1, 1]} : vector<16x16x4xf32> to vector<8x16x4xf32>
    %542 = vector.extract_strided_slice %3 {offsets = [1, 8, 0], sizes = [1, 1, 4], strides = [1, 1, 1]} : vector<9x9x4xf32> to vector<1x1x4xf32>
    %543 = vector.shape_cast %542 : vector<1x1x4xf32> to vector<4xf32>
    %544 = vector.shape_cast %543 : vector<4xf32> to vector<1x1x4xf32>
    %545 = vector.broadcast %544 : vector<1x1x4xf32> to vector<8x16x4xf32>
    %546 = arith.mulf %541, %545 : vector<8x16x4xf32>
    %547 = arith.addf %540, %546 : vector<8x16x4xf32>
    %548 = vector.extract_strided_slice %533 {offsets = [2, 0, 0], sizes = [8, 16, 4], strides = [1, 1, 1]} : vector<16x16x4xf32> to vector<8x16x4xf32>
    %549 = vector.extract_strided_slice %3 {offsets = [2, 8, 0], sizes = [1, 1, 4], strides = [1, 1, 1]} : vector<9x9x4xf32> to vector<1x1x4xf32>
    %550 = vector.shape_cast %549 : vector<1x1x4xf32> to vector<4xf32>
    %551 = vector.shape_cast %550 : vector<4xf32> to vector<1x1x4xf32>
    %552 = vector.broadcast %551 : vector<1x1x4xf32> to vector<8x16x4xf32>
    %553 = arith.mulf %548, %552 : vector<8x16x4xf32>
    %554 = arith.addf %547, %553 : vector<8x16x4xf32>
    %555 = vector.extract_strided_slice %533 {offsets = [3, 0, 0], sizes = [8, 16, 4], strides = [1, 1, 1]} : vector<16x16x4xf32> to vector<8x16x4xf32>
    %556 = vector.extract_strided_slice %3 {offsets = [3, 8, 0], sizes = [1, 1, 4], strides = [1, 1, 1]} : vector<9x9x4xf32> to vector<1x1x4xf32>
    %557 = vector.shape_cast %556 : vector<1x1x4xf32> to vector<4xf32>
    %558 = vector.shape_cast %557 : vector<4xf32> to vector<1x1x4xf32>
    %559 = vector.broadcast %558 : vector<1x1x4xf32> to vector<8x16x4xf32>
    %560 = arith.mulf %555, %559 : vector<8x16x4xf32>
    %561 = arith.addf %554, %560 : vector<8x16x4xf32>
    %562 = vector.extract_strided_slice %533 {offsets = [4, 0, 0], sizes = [8, 16, 4], strides = [1, 1, 1]} : vector<16x16x4xf32> to vector<8x16x4xf32>
    %563 = vector.extract_strided_slice %3 {offsets = [4, 8, 0], sizes = [1, 1, 4], strides = [1, 1, 1]} : vector<9x9x4xf32> to vector<1x1x4xf32>
    %564 = vector.shape_cast %563 : vector<1x1x4xf32> to vector<4xf32>
    %565 = vector.shape_cast %564 : vector<4xf32> to vector<1x1x4xf32>
    %566 = vector.broadcast %565 : vector<1x1x4xf32> to vector<8x16x4xf32>
    %567 = arith.mulf %562, %566 : vector<8x16x4xf32>
    %568 = arith.addf %561, %567 : vector<8x16x4xf32>
    %569 = vector.extract_strided_slice %533 {offsets = [5, 0, 0], sizes = [8, 16, 4], strides = [1, 1, 1]} : vector<16x16x4xf32> to vector<8x16x4xf32>
    %570 = vector.extract_strided_slice %3 {offsets = [5, 8, 0], sizes = [1, 1, 4], strides = [1, 1, 1]} : vector<9x9x4xf32> to vector<1x1x4xf32>
    %571 = vector.shape_cast %570 : vector<1x1x4xf32> to vector<4xf32>
    %572 = vector.shape_cast %571 : vector<4xf32> to vector<1x1x4xf32>
    %573 = vector.broadcast %572 : vector<1x1x4xf32> to vector<8x16x4xf32>
    %574 = arith.mulf %569, %573 : vector<8x16x4xf32>
    %575 = arith.addf %568, %574 : vector<8x16x4xf32>
    %576 = vector.extract_strided_slice %533 {offsets = [6, 0, 0], sizes = [8, 16, 4], strides = [1, 1, 1]} : vector<16x16x4xf32> to vector<8x16x4xf32>
    %577 = vector.extract_strided_slice %3 {offsets = [6, 8, 0], sizes = [1, 1, 4], strides = [1, 1, 1]} : vector<9x9x4xf32> to vector<1x1x4xf32>
    %578 = vector.shape_cast %577 : vector<1x1x4xf32> to vector<4xf32>
    %579 = vector.shape_cast %578 : vector<4xf32> to vector<1x1x4xf32>
    %580 = vector.broadcast %579 : vector<1x1x4xf32> to vector<8x16x4xf32>
    %581 = arith.mulf %576, %580 : vector<8x16x4xf32>
    %582 = arith.addf %575, %581 : vector<8x16x4xf32>
    %583 = vector.extract_strided_slice %533 {offsets = [7, 0, 0], sizes = [8, 16, 4], strides = [1, 1, 1]} : vector<16x16x4xf32> to vector<8x16x4xf32>
    %584 = vector.extract_strided_slice %3 {offsets = [7, 8, 0], sizes = [1, 1, 4], strides = [1, 1, 1]} : vector<9x9x4xf32> to vector<1x1x4xf32>
    %585 = vector.shape_cast %584 : vector<1x1x4xf32> to vector<4xf32>
    %586 = vector.shape_cast %585 : vector<4xf32> to vector<1x1x4xf32>
    %587 = vector.broadcast %586 : vector<1x1x4xf32> to vector<8x16x4xf32>
    %588 = arith.mulf %583, %587 : vector<8x16x4xf32>
    %589 = arith.addf %582, %588 : vector<8x16x4xf32>
    %590 = vector.extract_strided_slice %533 {offsets = [8, 0, 0], sizes = [8, 16, 4], strides = [1, 1, 1]} : vector<16x16x4xf32> to vector<8x16x4xf32>
    %591 = vector.extract_strided_slice %3 {offsets = [8, 8, 0], sizes = [1, 1, 4], strides = [1, 1, 1]} : vector<9x9x4xf32> to vector<1x1x4xf32>
    %592 = vector.shape_cast %591 : vector<1x1x4xf32> to vector<4xf32>
    %593 = vector.shape_cast %592 : vector<4xf32> to vector<1x1x4xf32>
    %594 = vector.broadcast %593 : vector<1x1x4xf32> to vector<8x16x4xf32>
    %595 = arith.mulf %590, %594 : vector<8x16x4xf32>
    %596 = arith.addf %589, %595 : vector<8x16x4xf32>
    %597 = vector.shape_cast %5 : vector<4xf32> to vector<1x1x4xf32>
    %598 = vector.broadcast %597 : vector<1x1x4xf32> to vector<8x16x4xf32>
    %599 = arith.addf %596, %598 : vector<8x16x4xf32>
    %cst_17 = arith.constant 5.000000e-01 : f32
    %600 = vector.broadcast %cst_17 : f32 to vector<8x16x4xf32>
    %601 = arith.mulf %600, %599 : vector<8x16x4xf32>
    %cst_18 = arith.constant 2.000000e+00 : f32
    %602 = math.sqrt %cst_18 : f32
    %603 = vector.broadcast %602 : f32 to vector<8x16x4xf32>
    %604 = arith.divf %599, %603 : vector<8x16x4xf32>
    %605 = math.erf %604 : vector<8x16x4xf32>
    %cst_19 = arith.constant 1.000000e+00 : f32
    %606 = vector.broadcast %cst_19 : f32 to vector<8x16x4xf32>
    %607 = arith.addf %606, %605 : vector<8x16x4xf32>
    %608 = arith.mulf %601, %607 : vector<8x16x4xf32>
    %609 = vector.shape_cast %7 : vector<4xf32> to vector<1x1x4xf32>
    %610 = vector.broadcast %609 : vector<1x1x4xf32> to vector<8x16x4xf32>
    %611 = arith.mulf %608, %610 : vector<8x16x4xf32>
    %612 = vector.shape_cast %9 : vector<4xf32> to vector<1x1x4xf32>
    %613 = vector.broadcast %612 : vector<1x1x4xf32> to vector<8x16x4xf32>
    %614 = arith.addf %611, %613 : vector<8x16x4xf32>
    %615 = vector.extract_strided_slice %19 {offsets = [4, 4, 0], sizes = [8, 16, 4], strides = [1, 1, 1]} : vector<16x24x4xf32> to vector<8x16x4xf32>
    %616 = arith.addf %615, %614 : vector<8x16x4xf32>
    %617 = vector.shape_cast %616 : vector<8x16x4xf32> to vector<128x4xf32>
    %c0_20 = arith.constant 0 : index
    %c0_21 = arith.constant 0 : index
    %618 = vector.load %arg7[%c0_20, %c0_21] : memref<4x4xf32, #tpu.memory_space<vmem>>, vector<4x4xf32>
    %cst_22 = arith.constant dense<0.000000e+00> : vector<128x4xf32>
    %619 = tpu.matmul %617, %618, %cst_22 {dimension_numbers = #tpu.dot_dimension_numbers<[1], [0], [0], [1], [0, 0, 1, 1], [], []>} : vector<128x4xf32>, vector<4x4xf32>, vector<128x4xf32> -> vector<128x4xf32>
    %620 = vector.shape_cast %11 : vector<4xf32> to vector<1x4xf32>
    %621 = vector.broadcast %620 : vector<1x4xf32> to vector<128x4xf32>
    %622 = arith.addf %619, %621 : vector<128x4xf32>
    %cst_23 = arith.constant 5.000000e-01 : f32
    %623 = vector.broadcast %cst_23 : f32 to vector<128x4xf32>
    %624 = arith.mulf %623, %622 : vector<128x4xf32>
    %cst_24 = arith.constant 2.000000e+00 : f32
    %625 = math.sqrt %cst_24 : f32
    %626 = vector.broadcast %625 : f32 to vector<128x4xf32>
    %627 = arith.divf %622, %626 : vector<128x4xf32>
    %628 = math.erf %627 : vector<128x4xf32>
    %cst_25 = arith.constant 1.000000e+00 : f32
    %629 = vector.broadcast %cst_25 : f32 to vector<128x4xf32>
    %630 = arith.addf %629, %628 : vector<128x4xf32>
    %631 = arith.mulf %624, %630 : vector<128x4xf32>
    %632 = vector.shape_cast %13 : vector<4xf32> to vector<1x4xf32>
    %633 = vector.broadcast %632 : vector<1x4xf32> to vector<128x4xf32>
    %634 = arith.mulf %631, %633 : vector<128x4xf32>
    %635 = vector.shape_cast %15 : vector<4xf32> to vector<1x4xf32>
    %636 = vector.broadcast %635 : vector<1x4xf32> to vector<128x4xf32>
    %637 = arith.addf %634, %636 : vector<128x4xf32>
    %638 = vector.shape_cast %637 : vector<128x4xf32> to vector<1x8x16x4xf32>
    %c0_26 = arith.constant 0 : index
    %c0_27 = arith.constant 0 : index
    %c0_28 = arith.constant 0 : index
    %c0_29 = arith.constant 0 : index
    %639 = vector.load %arg11[%c0_26, %c0_27, %c0_28, %c0_29] : memref<1x8x16x4xf32, #tpu.memory_space<vmem>>, vector<1x8x16x4xf32>
    tpu.vector_store %arg11[%c0_26, %c0_27, %c0_28, %c0_29], %638 {strides = array<i32>} : memref<1x8x16x4xf32, #tpu.memory_space<vmem>>, vector<1x8x16x4xf32>,
    return
  }
  func.func @transform_0(%arg0: i32, %arg1: i32) -> (i32, i32, i32, i32) {
    %c0_i32 = arith.constant 0 : i32
    %c0_i32_0 = arith.constant 0 : i32
    %c0_i32_1 = arith.constant 0 : i32
    %c0_i32_2 = arith.constant 0 : i32
    return %arg0, %c0_i32, %c0_i32_0, %c0_i32_1 : i32, i32, i32, i32
  }
  func.func @transform_1(%arg0: i32, %arg1: i32) -> (i32, i32, i32) {
    %c0_i32 = arith.constant 0 : i32
    %c0_i32_0 = arith.constant 0 : i32
    %c0_i32_1 = arith.constant 0 : i32
    %c0_i32_2 = arith.constant 0 : i32
    return %c0_i32, %c0_i32_0, %c0_i32_1 : i32, i32, i32
  }
  func.func @transform_2(%arg0: i32, %arg1: i32) -> (i32, i32) {
    %c0_i32 = arith.constant 0 : i32
    %c0_i32_0 = arith.constant 0 : i32
    %c0_i32_1 = arith.constant 0 : i32
    return %c0_i32, %c0_i32_0 : i32, i32
  }
  func.func @transform_3(%arg0: i32, %arg1: i32) -> (i32, i32) {
    %c0_i32 = arith.constant 0 : i32
    %c0_i32_0 = arith.constant 0 : i32
    %c0_i32_1 = arith.constant 0 : i32
    return %c0_i32, %c0_i32_0 : i32, i32
  }
  func.func @transform_4(%arg0: i32, %arg1: i32) -> (i32, i32) {
    %c0_i32 = arith.constant 0 : i32
    %c0_i32_0 = arith.constant 0 : i32
    %c0_i32_1 = arith.constant 0 : i32
    return %c0_i32, %c0_i32_0 : i32, i32
  }
  func.func @transform_5(%arg0: i32, %arg1: i32) -> (i32, i32) {
    %c0_i32 = arith.constant 0 : i32
    %c0_i32_0 = arith.constant 0 : i32
    %c0_i32_1 = arith.constant 0 : i32
    return %c0_i32, %c0_i32_0 : i32, i32
  }
  func.func @transform_6(%arg0: i32, %arg1: i32) -> (i32, i32) {
    %c0_i32 = arith.constant 0 : i32
    %c0_i32_0 = arith.constant 0 : i32
    %c0_i32_1 = arith.constant 0 : i32
    return %c0_i32, %c0_i32_0 : i32, i32
  }
  func.func @transform_7(%arg0: i32, %arg1: i32) -> (i32, i32) {
    %c0_i32 = arith.constant 0 : i32
    %c0_i32_0 = arith.constant 0 : i32
    %c0_i32_1 = arith.constant 0 : i32
    return %c0_i32, %c0_i32_0 : i32, i32
  }
  func.func @transform_8(%arg0: i32, %arg1: i32) -> (i32, i32) {
    %c0_i32 = arith.constant 0 : i32
    %c0_i32_0 = arith.constant 0 : i32
    %c0_i32_1 = arith.constant 0 : i32
    return %c0_i32, %c0_i32_0 : i32, i32
  }
  func.func @transform_9(%arg0: i32, %arg1: i32) -> (i32, i32, i32, i32) {
    %c0_i32 = arith.constant 0 : i32
    %c0_i32_0 = arith.constant 0 : i32
    %c0_i32_1 = arith.constant 0 : i32
    return %arg0, %arg1, %c0_i32, %c0_i32_0 : i32, i32, i32, i32
  }
}

</mosaic_0001>

<llo_original>
// kernel: tpu_custom_call.1
$region0: #{tpu_custom_call.1}
  #allocation0 [shape = 'u32[]', space=smem, size = 0x4, offset = 0x4, fixed_abs, tag = 'smem constant byte address 0x4 - core index']
  #allocation1 [shape = 'u32[72,128]{1,0:T(1,128)}', space=vmem, size = 0x9000, scoped, tag = 'internal scratch']
  #allocation2 [shape = 'f32[24,24,4]{2,1,0:T(8,128)}', space=vmem, size = 0x48000, scoped, tag = 'scratch operand']
  %s0 = inlined_call_operand.vmem [shape: f32[2,16,16,4], index: 0, kind: input, shape index: {}]
  %s1 = inlined_call_operand.vmem [shape: f32[9,9,4], index: 1, kind: input, shape index: {}]
  %s2 = inlined_call_operand.vmem [shape: f32[1,4], index: 2, kind: input, shape index: {}]
  %s3 = inlined_call_operand.vmem [shape: f32[1,4], index: 3, kind: input, shape index: {}]
  %s4 = inlined_call_operand.vmem [shape: f32[1,4], index: 4, kind: input, shape index: {}]
  %s5 = inlined_call_operand.vmem [shape: f32[4,4], index: 5, kind: input, shape index: {}]
  %s6 = inlined_call_operand.vmem [shape: f32[1,4], index: 6, kind: input, shape index: {}]
  %s7 = inlined_call_operand.vmem [shape: f32[1,4], index: 7, kind: input, shape index: {}]
  %s8 = inlined_call_operand.vmem [shape: f32[1,4], index: 8, kind: input, shape index: {}]
  %s9 = inlined_call_operand.vmem [shape: f32[2,16,16,4], index: 9, kind: output, shape index: {}]
  %s10 = sld [smem:[#allocation0]]
  $region73: #{tpu_custom_call.1} parent=0
    _
  %s12 = ssub.s32 1, %s10
  %s13 = scalar_select 0, %s12, %s10
  loop: start=0, step=1, limit=6
  $region2: #{tpu_custom_call.1} parent=0 // loop_pre_header
    _
  $region3: #{tpu_custom_call.1} parent=0 // loop_header
    %s15 = sphi 0, %s19
    %p16 = scmp.ge.s32.totalorder %s15, 6
    %s22 = sphi 0, %s34
    %s23 = sphi 0, %s30
    %s24 = sphi 0, %s22
    %s25 = sphi 0, %s23
    %s26 = sphi 0, %s24
    %s27 = sphi 0, %s25
    %s37 = sphi 0, %s39
    %s40 = sphi 0, %s37
    %s41 = sphi 0, %s40
    %s57 = sphi 0, %s41
    %s61 = sphi 0, %s61
    %s63 = sphi 0, %s61
    %s64 = sphi 0, %s63
    %s78 = sphi 0, %s64
    %s82 = sphi 0, %s82
    %s84 = sphi 0, %s82
    %s85 = sphi 0, %s84
    %s99 = sphi 0, %s85
    %s103 = sphi 0, %s103
    %s105 = sphi 0, %s103
    %s106 = sphi 0, %s105
    %s120 = sphi 0, %s106
    %s124 = sphi 0, %s124
    %s126 = sphi 0, %s124
    %s127 = sphi 0, %s126
    %s141 = sphi 0, %s127
    %s145 = sphi 0, %s145
    %s147 = sphi 0, %s145
    %s148 = sphi 0, %s147
    %s162 = sphi 0, %s148
    %s166 = sphi 0, %s166
    %s168 = sphi 0, %s166
    %s169 = sphi 0, %s168
    %s183 = sphi 0, %s169
    %s187 = sphi 0, %s187
    %s189 = sphi 0, %s187
    %s190 = sphi 0, %s189
    %s204 = sphi 0, %s190
    %s208 = sphi 0, %s208
    %s210 = sphi 0, %s208
    %s211 = sphi 0, %s210
    %s225 = sphi 0, %s211
    %s233 = sphi 0, %s235
    %s236 = sphi 0, %s233
    %s237 = sphi 0, %s236
    %s253 = sphi 0, %s237
  $region4: #{tpu_custom_call.1} parent=0 // loop_header_branch
    %18 = sbr.rel (%p16) target = $region8
  $region5: #{tpu_custom_call.1} parent=0 // loop_body
    %s20 = ssub.s32 %s15, 1
    %s21 = ssub.s32 %s15, 2
    %s28 = sadd.s32 1, %s23
    %p29 = scmp.ge.s32.totalorder %s28, 2
    %s30 = scalar_select %p29, 0, %s28
    %s31 = sadd.s32 1, %s22
    %s32 = scalar_select %p29, %s31, %s22
    %p33 = scmp.ge.s32.totalorder %s32, 2
    %s34 = scalar_select %p33, 0, %s32
    %s35 = ssub.s32 %s22, %s34
    %p36 = scmp.eq.s32.totalorder %s35, 0
    %s38 = sadd.s32 %s37, 1
    %s39 = scalar_select %p36, %s37, %s38
    %p42 = pneg %p36
    %p43 = scmp.eq.s32.totalorder %s15, 3
    %p44 = por %p42, %p43
    %p45 = scmp.ne.s32.totalorder %s37, %s40
    %p46 = scmp.eq.s32.totalorder %s15, 0
    %p47 = por %p45, %p46
    %p48 = scmp.ne.s32.totalorder %s37, %s40
    %p49 = scmp.eq.s32.totalorder %s20, 3
    %p50 = por %p48, %p49
    %p51 = scmp.ne.s32.totalorder %s40, %s41
    %p52 = scmp.eq.s32.totalorder %s20, 0
    %p53 = por %p51, %p52
    %p54 = scmp.ne.s32.totalorder %s40, %s41
    %p55 = scmp.eq.s32.totalorder %s21, 3
    %p56 = por %p54, %p55
    %p58 = scmp.ne.s32.totalorder %s41, %s57
    %p59 = scmp.eq.s32.totalorder %s21, 0
    %p60 = por %p58, %p59
    %s62 = sadd.s32 %s61, 1
    %p65 = scmp.eq.s32.totalorder %s15, 3
    %p66 = scmp.ne.s32.totalorder %s61, %s63
    %p67 = scmp.eq.s32.totalorder %s15, 0
    %p68 = por %p66, %p67
    %p69 = scmp.ne.s32.totalorder %s61, %s63
    %p70 = scmp.eq.s32.totalorder %s20, 3
    %p71 = por %p69, %p70
    %p72 = scmp.ne.s32.totalorder %s63, %s64
    %p73 = scmp.eq.s32.totalorder %s20, 0
    %p74 = por %p72, %p73
    %p75 = scmp.ne.s32.totalorder %s63, %s64
    %p76 = scmp.eq.s32.totalorder %s21, 3
    %p77 = por %p75, %p76
    %p79 = scmp.ne.s32.totalorder %s64, %s78
    %p80 = scmp.eq.s32.totalorder %s21, 0
    %p81 = por %p79, %p80
    %s83 = sadd.s32 %s82, 1
    %p86 = scmp.eq.s32.totalorder %s15, 3
    %p87 = scmp.ne.s32.totalorder %s82, %s84
    %p88 = scmp.eq.s32.totalorder %s15, 0
    %p89 = por %p87, %p88
    %p90 = scmp.ne.s32.totalorder %s82, %s84
    %p91 = scmp.eq.s32.totalorder %s20, 3
    %p92 = por %p90, %p91
    %p93 = scmp.ne.s32.totalorder %s84, %s85
    %p94 = scmp.eq.s32.totalorder %s20, 0
    %p95 = por %p93, %p94
    %p96 = scmp.ne.s32.totalorder %s84, %s85
    %p97 = scmp.eq.s32.totalorder %s21, 3
    %p98 = por %p96, %p97
    %p100 = scmp.ne.s32.totalorder %s85, %s99
    %p101 = scmp.eq.s32.totalorder %s21, 0
    %p102 = por %p100, %p101
    %s104 = sadd.s32 %s103, 1
    %p107 = scmp.eq.s32.totalorder %s15, 3
    %p108 = scmp.ne.s32.totalorder %s103, %s105
    %p109 = scmp.eq.s32.totalorder %s15, 0
    %p110 = por %p108, %p109
    %p111 = scmp.ne.s32.totalorder %s103, %s105
    %p112 = scmp.eq.s32.totalorder %s20, 3
    %p113 = por %p111, %p112
    %p114 = scmp.ne.s32.totalorder %s105, %s106
    %p115 = scmp.eq.s32.totalorder %s20, 0
    %p116 = por %p114, %p115
    %p117 = scmp.ne.s32.totalorder %s105, %s106
    %p118 = scmp.eq.s32.totalorder %s21, 3
    %p119 = por %p117, %p118
    %p121 = scmp.ne.s32.totalorder %s106, %s120
    %p122 = scmp.eq.s32.totalorder %s21, 0
    %p123 = por %p121, %p122
    %s125 = sadd.s32 %s124, 1
    %p128 = scmp.eq.s32.totalorder %s15, 3
    %p129 = scmp.ne.s32.totalorder %s124, %s126
    %p130 = scmp.eq.s32.totalorder %s15, 0
    %p131 = por %p129, %p130
    %p132 = scmp.ne.s32.totalorder %s124, %s126
    %p133 = scmp.eq.s32.totalorder %s20, 3
    %p134 = por %p132, %p133
    %p135 = scmp.ne.s32.totalorder %s126, %s127
    %p136 = scmp.eq.s32.totalorder %s20, 0
    %p137 = por %p135, %p136
    %p138 = scmp.ne.s32.totalorder %s126, %s127
    %p139 = scmp.eq.s32.totalorder %s21, 3
    %p140 = por %p138, %p139
    %p142 = scmp.ne.s32.totalorder %s127, %s141
    %p143 = scmp.eq.s32.totalorder %s21, 0
    %p144 = por %p142, %p143
    %s146 = sadd.s32 %s145, 1
    %p149 = scmp.eq.s32.totalorder %s15, 3
    %p150 = scmp.ne.s32.totalorder %s145, %s147
    %p151 = scmp.eq.s32.totalorder %s15, 0
    %p152 = por %p150, %p151
    %p153 = scmp.ne.s32.totalorder %s145, %s147
    %p154 = scmp.eq.s32.totalorder %s20, 3
    %p155 = por %p153, %p154
    %p156 = scmp.ne.s32.totalorder %s147, %s148
    %p157 = scmp.eq.s32.totalorder %s20, 0
    %p158 = por %p156, %p157
    %p159 = scmp.ne.s32.totalorder %s147, %s148
    %p160 = scmp.eq.s32.totalorder %s21, 3
    %p161 = por %p159, %p160
    %p163 = scmp.ne.s32.totalorder %s148, %s162
    %p164 = scmp.eq.s32.totalorder %s21, 0
    %p165 = por %p163, %p164
    %s167 = sadd.s32 %s166, 1
    %p170 = scmp.eq.s32.totalorder %s15, 3
    %p171 = scmp.ne.s32.totalorder %s166, %s168
    %p172 = scmp.eq.s32.totalorder %s15, 0
    %p173 = por %p171, %p172
    %p174 = scmp.ne.s32.totalorder %s166, %s168
    %p175 = scmp.eq.s32.totalorder %s20, 3
    %p176 = por %p174, %p175
    %p177 = scmp.ne.s32.totalorder %s168, %s169
    %p178 = scmp.eq.s32.totalorder %s20, 0
    %p179 = por %p177, %p178
    %p180 = scmp.ne.s32.totalorder %s168, %s169
    %p181 = scmp.eq.s32.totalorder %s21, 3
    %p182 = por %p180, %p181
    %p184 = scmp.ne.s32.totalorder %s169, %s183
    %p185 = scmp.eq.s32.totalorder %s21, 0
    %p186 = por %p184, %p185
    %s188 = sadd.s32 %s187, 1
    %p191 = scmp.eq.s32.totalorder %s15, 3
    %p192 = scmp.ne.s32.totalorder %s187, %s189
    %p193 = scmp.eq.s32.totalorder %s15, 0
    %p194 = por %p192, %p193
    %p195 = scmp.ne.s32.totalorder %s187, %s189
    %p196 = scmp.eq.s32.totalorder %s20, 3
    %p197 = por %p195, %p196
    %p198 = scmp.ne.s32.totalorder %s189, %s190
    %p199 = scmp.eq.s32.totalorder %s20, 0
    %p200 = por %p198, %p199
    %p201 = scmp.ne.s32.totalorder %s189, %s190
    %p202 = scmp.eq.s32.totalorder %s21, 3
    %p203 = por %p201, %p202
    %p205 = scmp.ne.s32.totalorder %s190, %s204
    %p206 = scmp.eq.s32.totalorder %s21, 0
    %p207 = por %p205, %p206
    %s209 = sadd.s32 %s208, 1
    %p212 = scmp.eq.s32.totalorder %s15, 3
    %p213 = scmp.ne.s32.totalorder %s208, %s210
    %p214 = scmp.eq.s32.totalorder %s15, 0
    %p215 = por %p213, %p214
    %p216 = scmp.ne.s32.totalorder %s208, %s210
    %p217 = scmp.eq.s32.totalorder %s20, 3
    %p218 = por %p216, %p217
    %p219 = scmp.ne.s32.totalorder %s210, %s211
    %p220 = scmp.eq.s32.totalorder %s20, 0
    %p221 = por %p219, %p220
    %p222 = scmp.ne.s32.totalorder %s210, %s211
    %p223 = scmp.eq.s32.totalorder %s21, 3
    %p224 = por %p222, %p223
    %p226 = scmp.ne.s32.totalorder %s211, %s225
    %p227 = scmp.eq.s32.totalorder %s21, 0
    %p228 = por %p226, %p227
    %s229 = ssub.s32 %s22, %s34
    %s230 = ssub.s32 %s23, %s30
    %s231 = sor.u32 %s229, %s230
    %p232 = scmp.eq.s32.totalorder %s231, 0
    %s234 = sadd.s32 %s233, 1
    %s235 = scalar_select %p232, %s233, %s234
    %p238 = pneg %p232
    %p239 = scmp.eq.s32.totalorder %s15, 3
    %p240 = por %p238, %p239
    %p241 = scmp.ne.s32.totalorder %s233, %s236
    %p242 = scmp.eq.s32.totalorder %s15, 0
    %p243 = por %p241, %p242
    %p244 = scmp.ne.s32.totalorder %s233, %s236
    %p245 = scmp.eq.s32.totalorder %s20, 3
    %p246 = por %p244, %p245
    %p247 = scmp.ne.s32.totalorder %s236, %s237
    %p248 = scmp.eq.s32.totalorder %s20, 0
    %p249 = por %p247, %p248
    %p250 = scmp.ne.s32.totalorder %s236, %s237
    %p251 = scmp.eq.s32.totalorder %s21, 3
    %p252 = por %p250, %p251
    %p254 = scmp.ne.s32.totalorder %s237, %s253
    %p255 = scmp.eq.s32.totalorder %s21, 0
    %p256 = por %p254, %p255
    %p257 = scmp.le.s32.totalorder 1, %s15
    %p258 = scmp.lt.s32.totalorder %s15, 5
    %p259 = pnand %p257, %p258
    %p260 = pneg %p259
    // Predicated region
    $region9: #{tpu_custom_call.1} parent=5 // pred_check
      _
    $region10: #{tpu_custom_call.1} parent=5 // pred_check_branch
      %262 = sbr.rel (%p259) target = $region12
    $region11: #{tpu_custom_call.1} parent=5 // pred_region
      %s263 = ssub.s32 %s15, 1
      // Predicated region
      $region13: #{tpu_custom_call.1} parent=11 // pred_check
        %p264 = pneg %p74
      $region14: #{tpu_custom_call.1} parent=11 // pred_check_branch
        %266 = sbr.rel (%p264) target = $region16
      $region15: #{tpu_custom_call.1} parent=11 // pred_region
        _
      $region16: #{tpu_custom_call.1} parent=11 // pred_fallthru
        _
      // Predicated region
      $region17: #{tpu_custom_call.1} parent=11 // pred_check
        %p267 = pneg %p95
      $region18: #{tpu_custom_call.1} parent=11 // pred_check_branch
        %269 = sbr.rel (%p267) target = $region20
      $region19: #{tpu_custom_call.1} parent=11 // pred_region
        _
      $region20: #{tpu_custom_call.1} parent=11 // pred_fallthru
        _
      // Predicated region
      $region21: #{tpu_custom_call.1} parent=11 // pred_check
        %p270 = pneg %p116
      $region22: #{tpu_custom_call.1} parent=11 // pred_check_branch
        %272 = sbr.rel (%p270) target = $region24
      $region23: #{tpu_custom_call.1} parent=11 // pred_region
        _
      $region24: #{tpu_custom_call.1} parent=11 // pred_fallthru
        _
      // Predicated region
      $region25: #{tpu_custom_call.1} parent=11 // pred_check
        %p273 = pneg %p137
      $region26: #{tpu_custom_call.1} parent=11 // pred_check_branch
        %275 = sbr.rel (%p273) target = $region28
      $region27: #{tpu_custom_call.1} parent=11 // pred_region
        _
      $region28: #{tpu_custom_call.1} parent=11 // pred_fallthru
        _
      // Predicated region
      $region29: #{tpu_custom_call.1} parent=11 // pred_check
        %p276 = pneg %p158
      $region30: #{tpu_custom_call.1} parent=11 // pred_check_branch
        %278 = sbr.rel (%p276) target = $region32
      $region31: #{tpu_custom_call.1} parent=11 // pred_region
        _
      $region32: #{tpu_custom_call.1} parent=11 // pred_fallthru
        _
      // Predicated region
      $region33: #{tpu_custom_call.1} parent=11 // pred_check
        %p279 = pneg %p179
      $region34: #{tpu_custom_call.1} parent=11 // pred_check_branch
        %281 = sbr.rel (%p279) target = $region36
      $region35: #{tpu_custom_call.1} parent=11 // pred_region
        _
      $region36: #{tpu_custom_call.1} parent=11 // pred_fallthru
        _
      // Predicated region
      $region37: #{tpu_custom_call.1} parent=11 // pred_check
        %p282 = pneg %p200
      $region38: #{tpu_custom_call.1} parent=11 // pred_check_branch
        %284 = sbr.rel (%p282) target = $region40
      $region39: #{tpu_custom_call.1} parent=11 // pred_region
        _
      $region40: #{tpu_custom_call.1} parent=11 // pred_fallthru
        _
      // Predicated region
      $region41: #{tpu_custom_call.1} parent=11 // pred_check
        %p285 = pneg %p221
      $region42: #{tpu_custom_call.1} parent=11 // pred_check_branch
        %287 = sbr.rel (%p285) target = $region44
      $region43: #{tpu_custom_call.1} parent=11 // pred_region
        _
      $region44: #{tpu_custom_call.1} parent=11 // pred_fallthru
        _
    $region12: #{tpu_custom_call.1} parent=5 // pred_fallthru
      _
    %p288 = scmp.lt.s32.totalorder %s15, 4
    // Predicated region
    $region45: #{tpu_custom_call.1} parent=5 // pred_check
      %p289 = pneg %p288
    $region46: #{tpu_custom_call.1} parent=5 // pred_check_branch
      %291 = sbr.rel (%p289) target = $region48
    $region47: #{tpu_custom_call.1} parent=5 // pred_region
      // Predicated region
      $region49: #{tpu_custom_call.1} parent=47 // pred_check
        %p292 = pneg %p47
      $region50: #{tpu_custom_call.1} parent=47 // pred_check_branch
        %294 = sbr.rel (%p292) target = $region52
      $region51: #{tpu_custom_call.1} parent=47 // pred_region
        %p295 = scmp.lt.s32.totalorder %s22, 1
        %s296 = scalar_select %p295, %s22, 1
        %s297 = smul.addr %s296, 32
        %s298 = smul.addr %s297, 8
        %s299 = scalar_lea.vmem %s0, %s298
      $region52: #{tpu_custom_call.1} parent=47 // pred_fallthru
        _
    $region48: #{tpu_custom_call.1} parent=5 // pred_fallthru
      _
    %p300 = scmp.le.s32.totalorder 1, %s15
    %p301 = scmp.lt.s32.totalorder %s15, 5
    %p302 = pnand %p300, %p301
    %p303 = pneg %p302
    // Predicated region
    $region53: #{tpu_custom_call.1} parent=5 // pred_check
      _
    $region54: #{tpu_custom_call.1} parent=5 // pred_check_branch
      %305 = sbr.rel (%p302) target = $region56
    $region55: #{tpu_custom_call.1} parent=5 // pred_region
      %s306 = ssub.s32 %s15, 1
      %p307 = scmp.lt.s32.totalorder %s24, 1
      %s308 = scalar_select %p307, %s24, 1
      %s309 = smul.addr %s308, 32
      %s310 = smul.addr %s309, 8
      %s311 = scalar_lea.vmem %s0, %s310
      %p312 = pneg %p53
      %p313 = pneg %p50
      %p314 = pneg %p74
      %p315 = pneg %p71
      %p316 = pneg %p95
      %p317 = pneg %p92
      %p318 = pneg %p116
      %p319 = pneg %p113
      %p320 = pneg %p137
      %p321 = pneg %p134
      %p322 = pneg %p158
      %p323 = pneg %p155
      %p324 = pneg %p179
      %p325 = pneg %p176
      %p326 = pneg %p200
      %p327 = pneg %p197
      %p328 = pneg %p221
      %p329 = pneg %p218
      %p330 = pneg %p249
      %p331 = pneg %p246
      %s332 = smul.u32 8, %s25
      %p333 = scmp.lt.s32.totalorder %s24, 1
      %s334 = scalar_select %p333, %s24, 1
      %p335 = scmp.lt.s32.totalorder %s332, 15
      %s336 = scalar_select %p335, %s332, 15
      %s337 = smul.addr %s336, 2
      %s338 = smul.addr %s334, 32
      %s339 = sadd.s32 %s337, %s338
      %s340 = smul.addr %s339, 8
      %s341 = scalar_lea.vmem %s9, %s340
      %p342 = scmp.lt.s32.totalorder %s24, 1
      %s343 = scalar_select %p342, %s24, 1
      %s344 = smul.addr %s343, 32
      %s345 = smul.addr %s344, 8
      %s346 = scalar_lea.vmem %s0, %s345
      %s347 = smul.u32 8, %s25
      %p348 = scmp.lt.s32.totalorder %s24, 1
      %s349 = scalar_select %p348, %s24, 1
      %p350 = scmp.lt.s32.totalorder %s347, 15
      %s351 = scalar_select %p350, %s347, 15
      %s352 = smul.addr %s351, 2
      %s353 = smul.addr %s349, 32
      %s354 = sadd.s32 %s352, %s353
      %s355 = smul.addr %s354, 8
      %s356 = scalar_lea.vmem %s9, %s355
      %s357 = smul.u32 8, %s25
      %p358 = scmp.eq.s32.totalorder %s25, 0
      // Predicated region
      $region57: #{tpu_custom_call.1} parent=55 // pred_check
        %p359 = pneg %p358
      $region58: #{tpu_custom_call.1} parent=55 // pred_check_branch
        %361 = sbr.rel (%p359) target = $region60
      $region59: #{tpu_custom_call.1} parent=55 // pred_region
        %vm362 = vcmask 31744
        %363 = vst.msk [vmem:[#allocation2] sm:$0xff] %vm362, 0.0
        %364 = vst.msk [vmem:[#allocation2 + $0x8] sm:$0xff] %vm362, 0.0
        %365 = vst.msk [vmem:[#allocation2 + $0x10] sm:$0xff] %vm362, 0.0
        %366 = vst.msk [vmem:[#allocation2 + $0x18] sm:$0xff] %vm362, 0.0
        %367 = vst.msk [vmem:[#allocation2 + $0x20] sm:$0xff] %vm362, 0.0
        %368 = vst.msk [vmem:[#allocation2 + $0x28] sm:$0xff] %vm362, 0.0
        %369 = vst.msk [vmem:[#allocation2 + $0x30] sm:$0xff] %vm362, 0.0
        %370 = vst.msk [vmem:[#allocation2 + $0x38] sm:$0xff] %vm362, 0.0
        %371 = vst.msk [vmem:[#allocation2 + $0x40] sm:$0xff] %vm362, 0.0
        %372 = vst.msk [vmem:[#allocation2 + $0x48] sm:$0xff] %vm362, 0.0
        %373 = vst.msk [vmem:[#allocation2 + $0x50] sm:$0xff] %vm362, 0.0
        %374 = vst.msk [vmem:[#allocation2 + $0x58] sm:$0xff] %vm362, 0.0
        %375 = vst.msk [vmem:[#allocation2 + $0x60] sm:$0xff] %vm362, 0.0
        %376 = vst.msk [vmem:[#allocation2 + $0x68] sm:$0xff] %vm362, 0.0
        %377 = vst.msk [vmem:[#allocation2 + $0x70] sm:$0xff] %vm362, 0.0
        %378 = vst.msk [vmem:[#allocation2 + $0x78] sm:$0xff] %vm362, 0.0
        %379 = vst.msk [vmem:[#allocation2 + $0x80] sm:$0xff] %vm362, 0.0
        %380 = vst.msk [vmem:[#allocation2 + $0x88] sm:$0xff] %vm362, 0.0
        %381 = vst.msk [vmem:[#allocation2 + $0x90] sm:$0xff] %vm362, 0.0
        %382 = vst.msk [vmem:[#allocation2 + $0x98] sm:$0xff] %vm362, 0.0
        %383 = vst.msk [vmem:[#allocation2 + $0xa0] sm:$0xff] %vm362, 0.0
        %384 = vst.msk [vmem:[#allocation2 + $0xa8] sm:$0xff] %vm362, 0.0
        %385 = vst.msk [vmem:[#allocation2 + $0xb0] sm:$0xff] %vm362, 0.0
        %386 = vst.msk [vmem:[#allocation2 + $0xb8] sm:$0xff] %vm362, 0.0
        %387 = vst.msk [vmem:[#allocation2 + $0xc0] sm:$0xff] %vm362, 0.0
        %388 = vst.msk [vmem:[#allocation2 + $0xc8] sm:$0xff] %vm362, 0.0
        %389 = vst.msk [vmem:[#allocation2 + $0xd0] sm:$0xff] %vm362, 0.0
        %390 = vst.msk [vmem:[#allocation2 + $0xd8] sm:$0xff] %vm362, 0.0
        %391 = vst.msk [vmem:[#allocation2 + $0xe0] sm:$0xff] %vm362, 0.0
        %392 = vst.msk [vmem:[#allocation2 + $0xe8] sm:$0xff] %vm362, 0.0
        %393 = vst.msk [vmem:[#allocation2 + $0xf0] sm:$0xff] %vm362, 0.0
        %394 = vst.msk [vmem:[#allocation2 + $0xf8] sm:$0xff] %vm362, 0.0
        %395 = vst.msk [vmem:[#allocation2 + $0x100] sm:$0xff] %vm362, 0.0
        %396 = vst.msk [vmem:[#allocation2 + $0x108] sm:$0xff] %vm362, 0.0
        %397 = vst.msk [vmem:[#allocation2 + $0x110] sm:$0xff] %vm362, 0.0
        %398 = vst.msk [vmem:[#allocation2 + $0x118] sm:$0xff] %vm362, 0.0
        %399 = vst.msk [vmem:[#allocation2 + $0x120] sm:$0xff] %vm362, 0.0
        %400 = vst.msk [vmem:[#allocation2 + $0x128] sm:$0xff] %vm362, 0.0
        %401 = vst.msk [vmem:[#allocation2 + $0x130] sm:$0xff] %vm362, 0.0
        %402 = vst.msk [vmem:[#allocation2 + $0x138] sm:$0xff] %vm362, 0.0
        %403 = vst.msk [vmem:[#allocation2 + $0x140] sm:$0xff] %vm362, 0.0
        %404 = vst.msk [vmem:[#allocation2 + $0x148] sm:$0xff] %vm362, 0.0
        %405 = vst.msk [vmem:[#allocation2 + $0x150] sm:$0xff] %vm362, 0.0
        %406 = vst.msk [vmem:[#allocation2 + $0x158] sm:$0xff] %vm362, 0.0
        %407 = vst.msk [vmem:[#allocation2 + $0x160] sm:$0xff] %vm362, 0.0
        %408 = vst.msk [vmem:[#allocation2 + $0x168] sm:$0xff] %vm362, 0.0
        %409 = vst.msk [vmem:[#allocation2 + $0x170] sm:$0xff] %vm362, 0.0
        %410 = vst.msk [vmem:[#allocation2 + $0x178] sm:$0xff] %vm362, 0.0
        %411 = vst.msk [vmem:[#allocation2 + $0x180] sm:$0xff] %vm362, 0.0
        %412 = vst.msk [vmem:[#allocation2 + $0x188] sm:$0xff] %vm362, 0.0
        %413 = vst.msk [vmem:[#allocation2 + $0x190] sm:$0xff] %vm362, 0.0
        %414 = vst.msk [vmem:[#allocation2 + $0x198] sm:$0xff] %vm362, 0.0
        %415 = vst.msk [vmem:[#allocation2 + $0x1a0] sm:$0xff] %vm362, 0.0
        %416 = vst.msk [vmem:[#allocation2 + $0x1a8] sm:$0xff] %vm362, 0.0
        %417 = vst.msk [vmem:[#allocation2 + $0x1b0] sm:$0xff] %vm362, 0.0
        %418 = vst.msk [vmem:[#allocation2 + $0x1b8] sm:$0xff] %vm362, 0.0
        %419 = vst.msk [vmem:[#allocation2 + $0x1c0] sm:$0xff] %vm362, 0.0
        %420 = vst.msk [vmem:[#allocation2 + $0x1c8] sm:$0xff] %vm362, 0.0
        %421 = vst.msk [vmem:[#allocation2 + $0x1d0] sm:$0xff] %vm362, 0.0
        %422 = vst.msk [vmem:[#allocation2 + $0x1d8] sm:$0xff] %vm362, 0.0
        %423 = vst.msk [vmem:[#allocation2 + $0x1e0] sm:$0xff] %vm362, 0.0
        %424 = vst.msk [vmem:[#allocation2 + $0x1e8] sm:$0xff] %vm362, 0.0
        %425 = vst.msk [vmem:[#allocation2 + $0x1f0] sm:$0xff] %vm362, 0.0
        %426 = vst.msk [vmem:[#allocation2 + $0x1f8] sm:$0xff] %vm362, 0.0
        %427 = vst.msk [vmem:[#allocation2 + $0x200] sm:$0xff] %vm362, 0.0
        %428 = vst.msk [vmem:[#allocation2 + $0x208] sm:$0xff] %vm362, 0.0
        %429 = vst.msk [vmem:[#allocation2 + $0x210] sm:$0xff] %vm362, 0.0
        %430 = vst.msk [vmem:[#allocation2 + $0x218] sm:$0xff] %vm362, 0.0
        %431 = vst.msk [vmem:[#allocation2 + $0x220] sm:$0xff] %vm362, 0.0
        %432 = vst.msk [vmem:[#allocation2 + $0x228] sm:$0xff] %vm362, 0.0
        %433 = vst.msk [vmem:[#allocation2 + $0x230] sm:$0xff] %vm362, 0.0
        %434 = vst.msk [vmem:[#allocation2 + $0x238] sm:$0xff] %vm362, 0.0
        %v435 = vld [vmem:[%s346] sm:$0xff]
        %v436 = vld [vmem:[%s346 + $0x8] sm:$0xff]
        %v437 = vld [vmem:[%s346 + $0x10] sm:$0xff]
        %v438 = vld [vmem:[%s346 + $0x18] sm:$0xff]
        %v439 = vld [vmem:[%s346 + $0x20] sm:$0xff]
        %v440 = vld [vmem:[%s346 + $0x28] sm:$0xff]
        %v441 = vld [vmem:[%s346 + $0x30] sm:$0xff]
        %v442 = vld [vmem:[%s346 + $0x38] sm:$0xff]
        %v443 = vld [vmem:[%s346 + $0x40] sm:$0xff]
        %v444 = vld [vmem:[%s346 + $0x48] sm:$0xff]
        %v445 = vld [vmem:[%s346 + $0x50] sm:$0xff]
        %v446 = vld [vmem:[%s346 + $0x58] sm:$0xff]
        %v447 = vld [vmem:[%s346 + $0x60] sm:$0xff]
        %v448 = vld [vmem:[%s346 + $0x68] sm:$0xff]
        %v449 = vld [vmem:[%s346 + $0x70] sm:$0xff]
        %v450 = vld [vmem:[%s346 + $0x78] sm:$0xff]
        %v451 = vld [vmem:[%s346 + $0x80] sm:$0xff]
        %v452 = vld [vmem:[%s346 + $0x88] sm:$0xff]
        %v453 = vld [vmem:[%s346 + $0x90] sm:$0xff]
        %v454 = vld [vmem:[%s346 + $0x98] sm:$0xff]
        %v455 = vld [vmem:[%s346 + $0xa0] sm:$0xff]
        %v456 = vld [vmem:[%s346 + $0xa8] sm:$0xff]
        %v457 = vld [vmem:[%s346 + $0xb0] sm:$0xff]
        %v458 = vld [vmem:[%s346 + $0xb8] sm:$0xff]
        %v459 = vld [vmem:[%s346 + $0xc0] sm:$0xff]
        %v460 = vld [vmem:[%s346 + $0xc8] sm:$0xff]
        %v461 = vld [vmem:[%s346 + $0xd0] sm:$0xff]
        %v462 = vld [vmem:[%s346 + $0xd8] sm:$0xff]
        %v463 = vld [vmem:[%s346 + $0xe0] sm:$0xff]
        %v464 = vld [vmem:[%s346 + $0xe8] sm:$0xff]
        %v465 = vld [vmem:[%s346 + $0xf0] sm:$0xff]
        %v466 = vld [vmem:[%s346 + $0xf8] sm:$0xff]
        %s467 = scalar_lea.vmem [#allocation2], 96
        %468 = vst.msk [vmem:[%s467 + $0x4] sm:$0xff] %vm362, %v435
        %469 = vst.msk [vmem:[%s467 + $0xc] sm:$0xff] %vm362, %v436
        %470 = vst.msk [vmem:[%s467 + $0x1c] sm:$0xff] %vm362, %v437
        %471 = vst.msk [vmem:[%s467 + $0x24] sm:$0xff] %vm362, %v438
        %472 = vst.msk [vmem:[%s467 + $0x34] sm:$0xff] %vm362, %v439
        %473 = vst.msk [vmem:[%s467 + $0x3c] sm:$0xff] %vm362, %v440
        %474 = vst.msk [vmem:[%s467 + $0x4c] sm:$0xff] %vm362, %v441
        %475 = vst.msk [vmem:[%s467 + $0x54] sm:$0xff] %vm362, %v442
        %476 = vst.msk [vmem:[%s467 + $0x64] sm:$0xff] %vm362, %v443
        %477 = vst.msk [vmem:[%s467 + $0x6c] sm:$0xff] %vm362, %v444
        %478 = vst.msk [vmem:[%s467 + $0x7c] sm:$0xff] %vm362, %v445
        %479 = vst.msk [vmem:[%s467 + $0x84] sm:$0xff] %vm362, %v446
        %480 = vst.msk [vmem:[%s467 + $0x94] sm:$0xff] %vm362, %v447
        %481 = vst.msk [vmem:[%s467 + $0x9c] sm:$0xff] %vm362, %v448
        %482 = vst.msk [vmem:[%s467 + $0xac] sm:$0xff] %vm362, %v449
        %483 = vst.msk [vmem:[%s467 + $0xb4] sm:$0xff] %vm362, %v450
        %484 = vst.msk [vmem:[%s467 + $0xc4] sm:$0xff] %vm362, %v451
        %485 = vst.msk [vmem:[%s467 + $0xcc] sm:$0xff] %vm362, %v452
        %486 = vst.msk [vmem:[%s467 + $0xdc] sm:$0xff] %vm362, %v453
        %487 = vst.msk [vmem:[%s467 + $0xe4] sm:$0xff] %vm362, %v454
        %488 = vst.msk [vmem:[%s467 + $0xf4] sm:$0xff] %vm362, %v455
        %489 = vst.msk [vmem:[%s467 + $0xfc] sm:$0xff] %vm362, %v456
        %490 = vst.msk [vmem:[%s467 + $0x10c] sm:$0xff] %vm362, %v457
        %491 = vst.msk [vmem:[%s467 + $0x114] sm:$0xff] %vm362, %v458
        %492 = vst.msk [vmem:[%s467 + $0x124] sm:$0xff] %vm362, %v459
        %493 = vst.msk [vmem:[%s467 + $0x12c] sm:$0xff] %vm362, %v460
        %494 = vst.msk [vmem:[%s467 + $0x13c] sm:$0xff] %vm362, %v461
        %495 = vst.msk [vmem:[%s467 + $0x144] sm:$0xff] %vm362, %v462
        %496 = vst.msk [vmem:[%s467 + $0x154] sm:$0xff] %vm362, %v463
        %497 = vst.msk [vmem:[%s467 + $0x15c] sm:$0xff] %vm362, %v464
        %498 = vst.msk [vmem:[%s467 + $0x16c] sm:$0xff] %vm362, %v465
        %499 = vst.msk [vmem:[%s467 + $0x174] sm:$0xff] %vm362, %v466
      $region60: #{tpu_custom_call.1} parent=55 // pred_fallthru
        _
      %v500 = vld [vmem:[%s1] sm:$0xff]
      %v501 = vld [vmem:[%s1 + $0x8] sm:$0x1]
      %v502 = vld [vmem:[%s1 + $0x10] sm:$0xff]
      %v503 = vld [vmem:[%s1 + $0x18] sm:$0x1]
      %v504 = vld [vmem:[%s1 + $0x20] sm:$0xff]
      %v505 = vld [vmem:[%s1 + $0x28] sm:$0x1]
      %v506 = vld [vmem:[%s1 + $0x30] sm:$0xff]
      %v507 = vld [vmem:[%s1 + $0x38] sm:$0x1]
      %v508 = vld [vmem:[%s1 + $0x40] sm:$0xff]
      %v509 = vld [vmem:[%s1 + $0x48] sm:$0x1]
      %v510 = vld [vmem:[%s1 + $0x50] sm:$0xff]
      %v511 = vld [vmem:[%s1 + $0x58] sm:$0x1]
      %v512 = vld [vmem:[%s1 + $0x60] sm:$0xff]
      %v513 = vld [vmem:[%s1 + $0x68] sm:$0x1]
      %v514 = vld [vmem:[%s1 + $0x70] sm:$0xff]
      %v515 = vld [vmem:[%s1 + $0x78] sm:$0x1]
      %v516 = vld [vmem:[%s1 + $0x80] sm:$0xff]
      %v517 = vld [vmem:[%s1 + $0x88] sm:$0x1]
      %v518 = vld [vmem:[%s2] sm:$0x1]
      %v519 = vld [vmem:[%s3] sm:$0x1]
      %v520 = vld [vmem:[%s4] sm:$0x1]
      %v521 = vld [vmem:[%s6] sm:$0x1]
      %v522 = vld [vmem:[%s7] sm:$0x1]
      %v523 = vld [vmem:[%s8] sm:$0x1]
      %s524 = smul.u32 %s25, 8
      %s525 = smul.u32 %s524, 24
      %s526 = scalar_lea.vmem [#allocation2], %s525
      %v527 = vld [vmem:[%s526] sm:$0xff]
      %v528 = vld [vmem:[%s526 + $0x8] sm:$0xff]
      %v529 = vld [vmem:[%s526 + $0x10] sm:$0xff]
      %v530 = vld [vmem:[%s526 + $0x18] sm:$0xff]
      %v531 = vld [vmem:[%s526 + $0x20] sm:$0xff]
      %v532 = vld [vmem:[%s526 + $0x28] sm:$0xff]
      %v533 = vld [vmem:[%s526 + $0x30] sm:$0xff]
      %v534 = vld [vmem:[%s526 + $0x38] sm:$0xff]
      %v535 = vld [vmem:[%s526 + $0x40] sm:$0xff]
      %v536 = vld [vmem:[%s526 + $0x48] sm:$0xff]
      %v537 = vld [vmem:[%s526 + $0x50] sm:$0xff]
      %v538 = vld [vmem:[%s526 + $0x58] sm:$0xff]
      %v539 = vld [vmem:[%s526 + $0x60] sm:$0xff]
      %v540 = vld [vmem:[%s526 + $0x68] sm:$0xff]
      %v541 = vld [vmem:[%s526 + $0x70] sm:$0xff]
      %v542 = vld [vmem:[%s526 + $0x78] sm:$0xff]
      %v543 = vld [vmem:[%s526 + $0x80] sm:$0xff]
      %v544 = vld [vmem:[%s526 + $0x88] sm:$0xff]
      %v545 = vld [vmem:[%s526 + $0x90] sm:$0xff]
      %v546 = vld [vmem:[%s526 + $0x98] sm:$0xff]
      %v547 = vld [vmem:[%s526 + $0xa0] sm:$0xff]
      %v548 = vld [vmem:[%s526 + $0xa8] sm:$0xff]
      %v549 = vld [vmem:[%s526 + $0xb0] sm:$0xff]
      %v550 = vld [vmem:[%s526 + $0xb8] sm:$0xff]
      %v551 = vld [vmem:[%s526 + $0xc0] sm:$0xff]
      %v552 = vld [vmem:[%s526 + $0xc8] sm:$0xff]
      %v553 = vld [vmem:[%s526 + $0xd0] sm:$0xff]
      %v554 = vld [vmem:[%s526 + $0xd8] sm:$0xff]
      %v555 = vld [vmem:[%s526 + $0xe0] sm:$0xff]
      %v556 = vld [vmem:[%s526 + $0xe8] sm:$0xff]
      %v557 = vld [vmem:[%s526 + $0xf0] sm:$0xff]
      %v558 = vld [vmem:[%s526 + $0xf8] sm:$0xff]
      %v559 = vld [vmem:[%s526 + $0x100] sm:$0xff]
      %v560 = vld [vmem:[%s526 + $0x108] sm:$0xff]
      %v561 = vld [vmem:[%s526 + $0x110] sm:$0xff]
      %v562 = vld [vmem:[%s526 + $0x118] sm:$0xff]
      %v563 = vld [vmem:[%s526 + $0x120] sm:$0xff]
      %v564 = vld [vmem:[%s526 + $0x128] sm:$0xff]
      %v565 = vld [vmem:[%s526 + $0x130] sm:$0xff]
      %v566 = vld [vmem:[%s526 + $0x138] sm:$0xff]
      %v567 = vld [vmem:[%s526 + $0x140] sm:$0xff]
      %v568 = vld [vmem:[%s526 + $0x148] sm:$0xff]
      %v569 = vld [vmem:[%s526 + $0x150] sm:$0xff]
      %v570 = vld [vmem:[%s526 + $0x158] sm:$0xff]
      %v571 = vld [vmem:[%s526 + $0x160] sm:$0xff]
      %v572 = vld [vmem:[%s526 + $0x168] sm:$0xff]
      %v573 = vld [vmem:[%s526 + $0x170] sm:$0xff]
      %v574 = vld [vmem:[%s526 + $0x178] sm:$0xff]
      %v575 = vperm.slane %v500, 0
      %v576 = vmul.f32 %v527, %v575
      %v577 = vmul.f32 %v528, %v575
      %v578 = vmul.f32 %v530, %v575
      %v579 = vmul.f32 %v531, %v575
      %v580 = vmul.f32 %v533, %v575
      %v581 = vmul.f32 %v534, %v575
      %v582 = vmul.f32 %v536, %v575
      %v583 = vmul.f32 %v537, %v575
      %v584 = vmul.f32 %v539, %v575
      %v585 = vmul.f32 %v540, %v575
      %v586 = vmul.f32 %v542, %v575
      %v587 = vmul.f32 %v543, %v575
      %v588 = vmul.f32 %v545, %v575
      %v589 = vmul.f32 %v546, %v575
      %v590 = vmul.f32 %v548, %v575
      %v591 = vmul.f32 %v549, %v575
      %v592 = vadd.f32 %v576, 0.0
      %v593 = vadd.f32 %v577, 0.0
      %v594 = vadd.f32 %v578, 0.0
      %v595 = vadd.f32 %v579, 0.0
      %v596 = vadd.f32 %v580, 0.0
      %v597 = vadd.f32 %v581, 0.0
      %v598 = vadd.f32 %v582, 0.0
      %v599 = vadd.f32 %v583, 0.0
      %v600 = vadd.f32 %v584, 0.0
      %v601 = vadd.f32 %v585, 0.0
      %v602 = vadd.f32 %v586, 0.0
      %v603 = vadd.f32 %v587, 0.0
      %v604 = vadd.f32 %v588, 0.0
      %v605 = vadd.f32 %v589, 0.0
      %v606 = vadd.f32 %v590, 0.0
      %v607 = vadd.f32 %v591, 0.0
      %v608 = vperm.slane %v502, 0
      %v609 = vmul.f32 %v530, %v608
      %v610 = vmul.f32 %v531, %v608
      %v611 = vmul.f32 %v533, %v608
      %v612 = vmul.f32 %v534, %v608
      %v613 = vmul.f32 %v536, %v608
      %v614 = vmul.f32 %v537, %v608
      %v615 = vmul.f32 %v539, %v608
      %v616 = vmul.f32 %v540, %v608
      %v617 = vmul.f32 %v542, %v608
      %v618 = vmul.f32 %v543, %v608
      %v619 = vmul.f32 %v545, %v608
      %v620 = vmul.f32 %v546, %v608
      %v621 = vmul.f32 %v548, %v608
      %v622 = vmul.f32 %v549, %v608
      %v623 = vmul.f32 %v551, %v608
      %v624 = vmul.f32 %v552, %v608
      %v625 = vadd.f32 %v592, %v609
      %v626 = vadd.f32 %v593, %v610
      %v627 = vadd.f32 %v594, %v611
      %v628 = vadd.f32 %v595, %v612
      %v629 = vadd.f32 %v596, %v613
      %v630 = vadd.f32 %v597, %v614
      %v631 = vadd.f32 %v598, %v615
      %v632 = vadd.f32 %v599, %v616
      %v633 = vadd.f32 %v600, %v617
      %v634 = vadd.f32 %v601, %v618
      %v635 = vadd.f32 %v602, %v619
      %v636 = vadd.f32 %v603, %v620
      %v637 = vadd.f32 %v604, %v621
      %v638 = vadd.f32 %v605, %v622
      %v639 = vadd.f32 %v606, %v623
      %v640 = vadd.f32 %v607, %v624
      %v641 = vperm.slane %v504, 0
      %v642 = vmul.f32 %v533, %v641
      %v643 = vmul.f32 %v534, %v641
      %v644 = vmul.f32 %v536, %v641
      %v645 = vmul.f32 %v537, %v641
      %v646 = vmul.f32 %v539, %v641
      %v647 = vmul.f32 %v540, %v641
      %v648 = vmul.f32 %v542, %v641
      %v649 = vmul.f32 %v543, %v641
      %v650 = vmul.f32 %v545, %v641
      %v651 = vmul.f32 %v546, %v641
      %v652 = vmul.f32 %v548, %v641
      %v653 = vmul.f32 %v549, %v641
      %v654 = vmul.f32 %v551, %v641
      %v655 = vmul.f32 %v552, %v641
      %v656 = vmul.f32 %v554, %v641
      %v657 = vmul.f32 %v555, %v641
      %v658 = vadd.f32 %v625, %v642
      %v659 = vadd.f32 %v626, %v643
      %v660 = vadd.f32 %v627, %v644
      %v661 = vadd.f32 %v628, %v645
      %v662 = vadd.f32 %v629, %v646
      %v663 = vadd.f32 %v630, %v647
      %v664 = vadd.f32 %v631, %v648
      %v665 = vadd.f32 %v632, %v649
      %v666 = vadd.f32 %v633, %v650
      %v667 = vadd.f32 %v634, %v651
      %v668 = vadd.f32 %v635, %v652
      %v669 = vadd.f32 %v636, %v653
      %v670 = vadd.f32 %v637, %v654
      %v671 = vadd.f32 %v638, %v655
      %v672 = vadd.f32 %v639, %v656
      %v673 = vadd.f32 %v640, %v657
      %v674 = vperm.slane %v506, 0
      %v675 = vmul.f32 %v536, %v674
      %v676 = vmul.f32 %v537, %v674
      %v677 = vmul.f32 %v539, %v674
      %v678 = vmul.f32 %v540, %v674
      %v679 = vmul.f32 %v542, %v674
      %v680 = vmul.f32 %v543, %v674
      %v681 = vmul.f32 %v545, %v674
      %v682 = vmul.f32 %v546, %v674
      %v683 = vmul.f32 %v548, %v674
      %v684 = vmul.f32 %v549, %v674
      %v685 = vmul.f32 %v551, %v674
      %v686 = vmul.f32 %v552, %v674
      %v687 = vmul.f32 %v554, %v674
      %v688 = vmul.f32 %v555, %v674
      %v689 = vmul.f32 %v557, %v674
      %v690 = vmul.f32 %v558, %v674
      %v691 = vadd.f32 %v658, %v675
      %v692 = vadd.f32 %v659, %v676
      %v693 = vadd.f32 %v660, %v677
      %v694 = vadd.f32 %v661, %v678
      %v695 = vadd.f32 %v662, %v679
      %v696 = vadd.f32 %v663, %v680
      %v697 = vadd.f32 %v664, %v681
      %v698 = vadd.f32 %v665, %v682
      %v699 = vadd.f32 %v666, %v683
      %v700 = vadd.f32 %v667, %v684
      %v701 = vadd.f32 %v668, %v685
      %v702 = vadd.f32 %v669, %v686
      %v703 = vadd.f32 %v670, %v687
      %v704 = vadd.f32 %v671, %v688
      %v705 = vadd.f32 %v672, %v689
      %v706 = vadd.f32 %v673, %v690
      %v707 = vperm.slane %v508, 0
      %v708 = vmul.f32 %v539, %v707
      %v709 = vmul.f32 %v540, %v707
      %v710 = vmul.f32 %v542, %v707
      %v711 = vmul.f32 %v543, %v707
      %v712 = vmul.f32 %v545, %v707
      %v713 = vmul.f32 %v546, %v707
      %v714 = vmul.f32 %v548, %v707
      %v715 = vmul.f32 %v549, %v707
      %v716 = vmul.f32 %v551, %v707
      %v717 = vmul.f32 %v552, %v707
      %v718 = vmul.f32 %v554, %v707
      %v719 = vmul.f32 %v555, %v707
      %v720 = vmul.f32 %v557, %v707
      %v721 = vmul.f32 %v558, %v707
      %v722 = vmul.f32 %v560, %v707
      %v723 = vmul.f32 %v561, %v707
      %v724 = vadd.f32 %v691, %v708
      %v725 = vadd.f32 %v692, %v709
      %v726 = vadd.f32 %v693, %v710
      %v727 = vadd.f32 %v694, %v711
      %v728 = vadd.f32 %v695, %v712
      %v729 = vadd.f32 %v696, %v713
      %v730 = vadd.f32 %v697, %v714
      %v731 = vadd.f32 %v698, %v715
      %v732 = vadd.f32 %v699, %v716
      %v733 = vadd.f32 %v700, %v717
      %v734 = vadd.f32 %v701, %v718
      %v735 = vadd.f32 %v702, %v719
      %v736 = vadd.f32 %v703, %v720
      %v737 = vadd.f32 %v704, %v721
      %v738 = vadd.f32 %v705, %v722
      %v739 = vadd.f32 %v706, %v723
      %v740 = vperm.slane %v510, 0
      %v741 = vmul.f32 %v542, %v740
      %v742 = vmul.f32 %v543, %v740
      %v743 = vmul.f32 %v545, %v740
      %v744 = vmul.f32 %v546, %v740
      %v745 = vmul.f32 %v548, %v740
      %v746 = vmul.f32 %v549, %v740
      %v747 = vmul.f32 %v551, %v740
      %v748 = vmul.f32 %v552, %v740
      %v749 = vmul.f32 %v554, %v740
      %v750 = vmul.f32 %v555, %v740
      %v751 = vmul.f32 %v557, %v740
      %v752 = vmul.f32 %v558, %v740
      %v753 = vmul.f32 %v560, %v740
      %v754 = vmul.f32 %v561, %v740
      %v755 = vmul.f32 %v563, %v740
      %v756 = vmul.f32 %v564, %v740
      %v757 = vadd.f32 %v724, %v741
      %v758 = vadd.f32 %v725, %v742
      %v759 = vadd.f32 %v726, %v743
      %v760 = vadd.f32 %v727, %v744
      %v761 = vadd.f32 %v728, %v745
      %v762 = vadd.f32 %v729, %v746
      %v763 = vadd.f32 %v730, %v747
      %v764 = vadd.f32 %v731, %v748
      %v765 = vadd.f32 %v732, %v749
      %v766 = vadd.f32 %v733, %v750
      %v767 = vadd.f32 %v734, %v751
      %v768 = vadd.f32 %v735, %v752
      %v769 = vadd.f32 %v736, %v753
      %v770 = vadd.f32 %v737, %v754
      %v771 = vadd.f32 %v738, %v755
      %v772 = vadd.f32 %v739, %v756
      %v773 = vperm.slane %v512, 0
      %v774 = vmul.f32 %v545, %v773
      %v775 = vmul.f32 %v546, %v773
      %v776 = vmul.f32 %v548, %v773
      %v777 = vmul.f32 %v549, %v773
      %v778 = vmul.f32 %v551, %v773
      %v779 = vmul.f32 %v552, %v773
      %v780 = vmul.f32 %v554, %v773
      %v781 = vmul.f32 %v555, %v773
      %v782 = vmul.f32 %v557, %v773
      %v783 = vmul.f32 %v558, %v773
      %v784 = vmul.f32 %v560, %v773
      %v785 = vmul.f32 %v561, %v773
      %v786 = vmul.f32 %v563, %v773
      %v787 = vmul.f32 %v564, %v773
      %v788 = vmul.f32 %v566, %v773
      %v789 = vmul.f32 %v567, %v773
      %v790 = vadd.f32 %v757, %v774
      %v791 = vadd.f32 %v758, %v775
      %v792 = vadd.f32 %v759, %v776
      %v793 = vadd.f32 %v760, %v777
      %v794 = vadd.f32 %v761, %v778
      %v795 = vadd.f32 %v762, %v779
      %v796 = vadd.f32 %v763, %v780
      %v797 = vadd.f32 %v764, %v781
      %v798 = vadd.f32 %v765, %v782
      %v799 = vadd.f32 %v766, %v783
      %v800 = vadd.f32 %v767, %v784
      %v801 = vadd.f32 %v768, %v785
      %v802 = vadd.f32 %v769, %v786
      %v803 = vadd.f32 %v770, %v787
      %v804 = vadd.f32 %v771, %v788
      %v805 = vadd.f32 %v772, %v789
      %v806 = vperm.slane %v514, 0
      %v807 = vmul.f32 %v548, %v806
      %v808 = vmul.f32 %v549, %v806
      %v809 = vmul.f32 %v551, %v806
      %v810 = vmul.f32 %v552, %v806
      %v811 = vmul.f32 %v554, %v806
      %v812 = vmul.f32 %v555, %v806
      %v813 = vmul.f32 %v557, %v806
      %v814 = vmul.f32 %v558, %v806
      %v815 = vmul.f32 %v560, %v806
      %v816 = vmul.f32 %v561, %v806
      %v817 = vmul.f32 %v563, %v806
      %v818 = vmul.f32 %v564, %v806
      %v819 = vmul.f32 %v566, %v806
      %v820 = vmul.f32 %v567, %v806
      %v821 = vmul.f32 %v569, %v806
      %v822 = vmul.f32 %v570, %v806
      %v823 = vadd.f32 %v790, %v807
      %v824 = vadd.f32 %v791, %v808
      %v825 = vadd.f32 %v792, %v809
      %v826 = vadd.f32 %v793, %v810
      %v827 = vadd.f32 %v794, %v811
      %v828 = vadd.f32 %v795, %v812
      %v829 = vadd.f32 %v796, %v813
      %v830 = vadd.f32 %v797, %v814
      %v831 = vadd.f32 %v798, %v815
      %v832 = vadd.f32 %v799, %v816
      %v833 = vadd.f32 %v800, %v817
      %v834 = vadd.f32 %v801, %v818
      %v835 = vadd.f32 %v802, %v819
      %v836 = vadd.f32 %v803, %v820
      %v837 = vadd.f32 %v804, %v821
      %v838 = vadd.f32 %v805, %v822
      %v839 = vperm.slane %v516, 0
      %v840 = vmul.f32 %v551, %v839
      %v841 = vmul.f32 %v552, %v839
      %v842 = vmul.f32 %v554, %v839
      %v843 = vmul.f32 %v555, %v839
      %v844 = vmul.f32 %v557, %v839
      %v845 = vmul.f32 %v558, %v839
      %v846 = vmul.f32 %v560, %v839
      %v847 = vmul.f32 %v561, %v839
      %v848 = vmul.f32 %v563, %v839
      %v849 = vmul.f32 %v564, %v839
      %v850 = vmul.f32 %v566, %v839
      %v851 = vmul.f32 %v567, %v839
      %v852 = vmul.f32 %v569, %v839
      %v853 = vmul.f32 %v570, %v839
      %v854 = vmul.f32 %v572, %v839
      %v855 = vmul.f32 %v573, %v839
      %v856 = vadd.f32 %v823, %v840
      %v857 = vadd.f32 %v824, %v841
      %v858 = vadd.f32 %v825, %v842
      %v859 = vadd.f32 %v826, %v843
      %v860 = vadd.f32 %v827, %v844
      %v861 = vadd.f32 %v828, %v845
      %v862 = vadd.f32 %v829, %v846
      %v863 = vadd.f32 %v830, %v847
      %v864 = vadd.f32 %v831, %v848
      %v865 = vadd.f32 %v832, %v849
      %v866 = vadd.f32 %v833, %v850
      %v867 = vadd.f32 %v834, %v851
      %v868 = vadd.f32 %v835, %v852
      %v869 = vadd.f32 %v836, %v853
      %v870 = vadd.f32 %v837, %v854
      %v871 = vadd.f32 %v838, %v855
      %v872 = vperm.slane %v500, 1
      %v873 = vmul.f32 %v527, %v872
      %v874 = vmul.f32 %v528, %v872
      %v875 = vmul.f32 %v529, %v872
      %v876 = vmul.f32 %v530, %v872
      %v877 = vmul.f32 %v531, %v872
      %v878 = vmul.f32 %v532, %v872
      %v879 = vmul.f32 %v533, %v872
      %v880 = vmul.f32 %v534, %v872
      %v881 = vmul.f32 %v535, %v872
      %v882 = vmul.f32 %v536, %v872
      %v883 = vmul.f32 %v537, %v872
      %v884 = vmul.f32 %v538, %v872
      %v885 = vmul.f32 %v539, %v872
      %v886 = vmul.f32 %v540, %v872
      %v887 = vmul.f32 %v541, %v872
      %v888 = vmul.f32 %v542, %v872
      %v889 = vmul.f32 %v543, %v872
      %v890 = vmul.f32 %v544, %v872
      %v891 = vmul.f32 %v545, %v872
      %v892 = vmul.f32 %v546, %v872
      %v893 = vmul.f32 %v547, %v872
      %v894 = vmul.f32 %v548, %v872
      %v895 = vmul.f32 %v549, %v872
      %v896 = vmul.f32 %v550, %v872
      %vm921 = vcmask 1046528
      %v922 = vrot.slane %v873, 1
      %v923 = vrot.slane %v874, 1
      %v924 = vsel %vm921, %v922, %v923
      %v925 = vrot.slane %v875, 1
      %v926 = vsel %vm921, %v923, %v925
      %v927 = vrot.slane %v876, 1
      %v928 = vrot.slane %v877, 1
      %v929 = vsel %vm921, %v927, %v928
      %v930 = vrot.slane %v878, 1
      %v931 = vsel %vm921, %v928, %v930
      %v932 = vrot.slane %v879, 1
      %v933 = vrot.slane %v880, 1
      %v934 = vsel %vm921, %v932, %v933
      %v935 = vrot.slane %v881, 1
      %v936 = vsel %vm921, %v933, %v935
      %v937 = vrot.slane %v882, 1
      %v938 = vrot.slane %v883, 1
      %v939 = vsel %vm921, %v937, %v938
      %v940 = vrot.slane %v884, 1
      %v941 = vsel %vm921, %v938, %v940
      %v942 = vrot.slane %v885, 1
      %v943 = vrot.slane %v886, 1
      %v944 = vsel %vm921, %v942, %v943
      %v945 = vrot.slane %v887, 1
      %v946 = vsel %vm921, %v943, %v945
      %v947 = vrot.slane %v888, 1
      %v948 = vrot.slane %v889, 1
      %v949 = vsel %vm921, %v947, %v948
      %v950 = vrot.slane %v890, 1
      %v951 = vsel %vm921, %v948, %v950
      %v952 = vrot.slane %v891, 1
      %v953 = vrot.slane %v892, 1
      %v954 = vsel %vm921, %v952, %v953
      %v955 = vrot.slane %v893, 1
      %v956 = vsel %vm921, %v953, %v955
      %v957 = vrot.slane %v894, 1
      %v958 = vrot.slane %v895, 1
      %v959 = vsel %vm921, %v957, %v958
      %v960 = vrot.slane %v896, 1
      %v961 = vsel %vm921, %v958, %v960
      %v978 = vadd.f32 %v856, %v924
      %v979 = vadd.f32 %v857, %v926
      %v980 = vadd.f32 %v858, %v929
      %v981 = vadd.f32 %v859, %v931
      %v982 = vadd.f32 %v860, %v934
      %v983 = vadd.f32 %v861, %v936
      %v984 = vadd.f32 %v862, %v939
      %v985 = vadd.f32 %v863, %v941
      %v986 = vadd.f32 %v864, %v944
      %v987 = vadd.f32 %v865, %v946
      %v988 = vadd.f32 %v866, %v949
      %v989 = vadd.f32 %v867, %v951
      %v990 = vadd.f32 %v868, %v954
      %v991 = vadd.f32 %v869, %v956
      %v992 = vadd.f32 %v870, %v959
      %v993 = vadd.f32 %v871, %v961
      %v994 = vperm.slane %v502, 1
      %v995 = vmul.f32 %v530, %v994
      %v996 = vmul.f32 %v531, %v994
      %v997 = vmul.f32 %v532, %v994
      %v998 = vmul.f32 %v533, %v994
      %v999 = vmul.f32 %v534, %v994
      %v1000 = vmul.f32 %v535, %v994
      %v1001 = vmul.f32 %v536, %v994
      %v1002 = vmul.f32 %v537, %v994
      %v1003 = vmul.f32 %v538, %v994
      %v1004 = vmul.f32 %v539, %v994
      %v1005 = vmul.f32 %v540, %v994
      %v1006 = vmul.f32 %v541, %v994
      %v1007 = vmul.f32 %v542, %v994
      %v1008 = vmul.f32 %v543, %v994
      %v1009 = vmul.f32 %v544, %v994
      %v1010 = vmul.f32 %v545, %v994
      %v1011 = vmul.f32 %v546, %v994
      %v1012 = vmul.f32 %v547, %v994
      %v1013 = vmul.f32 %v548, %v994
      %v1014 = vmul.f32 %v549, %v994
      %v1015 = vmul.f32 %v550, %v994
      %v1016 = vmul.f32 %v551, %v994
      %v1017 = vmul.f32 %v552, %v994
      %v1018 = vmul.f32 %v553, %v994
      %v1043 = vrot.slane %v995, 1
      %v1044 = vrot.slane %v996, 1
      %v1045 = vsel %vm921, %v1043, %v1044
      %v1046 = vrot.slane %v997, 1
      %v1047 = vsel %vm921, %v1044, %v1046
      %v1048 = vrot.slane %v998, 1
      %v1049 = vrot.slane %v999, 1
      %v1050 = vsel %vm921, %v1048, %v1049
      %v1051 = vrot.slane %v1000, 1
      %v1052 = vsel %vm921, %v1049, %v1051
      %v1053 = vrot.slane %v1001, 1
      %v1054 = vrot.slane %v1002, 1
      %v1055 = vsel %vm921, %v1053, %v1054
      %v1056 = vrot.slane %v1003, 1
      %v1057 = vsel %vm921, %v1054, %v1056
      %v1058 = vrot.slane %v1004, 1
      %v1059 = vrot.slane %v1005, 1
      %v1060 = vsel %vm921, %v1058, %v1059
      %v1061 = vrot.slane %v1006, 1
      %v1062 = vsel %vm921, %v1059, %v1061
      %v1063 = vrot.slane %v1007, 1
      %v1064 = vrot.slane %v1008, 1
      %v1065 = vsel %vm921, %v1063, %v1064
      %v1066 = vrot.slane %v1009, 1
      %v1067 = vsel %vm921, %v1064, %v1066
      %v1068 = vrot.slane %v1010, 1
      %v1069 = vrot.slane %v1011, 1
      %v1070 = vsel %vm921, %v1068, %v1069
      %v1071 = vrot.slane %v1012, 1
      %v1072 = vsel %vm921, %v1069, %v1071
      %v1073 = vrot.slane %v1013, 1
      %v1074 = vrot.slane %v1014, 1
      %v1075 = vsel %vm921, %v1073, %v1074
      %v1076 = vrot.slane %v1015, 1
      %v1077 = vsel %vm921, %v1074, %v1076
      %v1078 = vrot.slane %v1016, 1
      %v1079 = vrot.slane %v1017, 1
      %v1080 = vsel %vm921, %v1078, %v1079
      %v1081 = vrot.slane %v1018, 1
      %v1082 = vsel %vm921, %v1079, %v1081
      %v1099 = vadd.f32 %v978, %v1045
      %v1100 = vadd.f32 %v979, %v1047
      %v1101 = vadd.f32 %v980, %v1050
      %v1102 = vadd.f32 %v981, %v1052
      %v1103 = vadd.f32 %v982, %v1055
      %v1104 = vadd.f32 %v983, %v1057
      %v1105 = vadd.f32 %v984, %v1060
      %v1106 = vadd.f32 %v985, %v1062
      %v1107 = vadd.f32 %v986, %v1065
      %v1108 = vadd.f32 %v987, %v1067
      %v1109 = vadd.f32 %v988, %v1070
      %v1110 = vadd.f32 %v989, %v1072
      %v1111 = vadd.f32 %v990, %v1075
      %v1112 = vadd.f32 %v991, %v1077
      %v1113 = vadd.f32 %v992, %v1080
      %v1114 = vadd.f32 %v993, %v1082
      %v1115 = vperm.slane %v504, 1
      %v1116 = vmul.f32 %v533, %v1115
      %v1117 = vmul.f32 %v534, %v1115
      %v1118 = vmul.f32 %v535, %v1115
      %v1119 = vmul.f32 %v536, %v1115
      %v1120 = vmul.f32 %v537, %v1115
      %v1121 = vmul.f32 %v538, %v1115
      %v1122 = vmul.f32 %v539, %v1115
      %v1123 = vmul.f32 %v540, %v1115
      %v1124 = vmul.f32 %v541, %v1115
      %v1125 = vmul.f32 %v542, %v1115
      %v1126 = vmul.f32 %v543, %v1115
      %v1127 = vmul.f32 %v544, %v1115
      %v1128 = vmul.f32 %v545, %v1115
      %v1129 = vmul.f32 %v546, %v1115
      %v1130 = vmul.f32 %v547, %v1115
      %v1131 = vmul.f32 %v548, %v1115
      %v1132 = vmul.f32 %v549, %v1115
      %v1133 = vmul.f32 %v550, %v1115
      %v1134 = vmul.f32 %v551, %v1115
      %v1135 = vmul.f32 %v552, %v1115
      %v1136 = vmul.f32 %v553, %v1115
      %v1137 = vmul.f32 %v554, %v1115
      %v1138 = vmul.f32 %v555, %v1115
      %v1139 = vmul.f32 %v556, %v1115
      %v1164 = vrot.slane %v1116, 1
      %v1165 = vrot.slane %v1117, 1
      %v1166 = vsel %vm921, %v1164, %v1165
      %v1167 = vrot.slane %v1118, 1
      %v1168 = vsel %vm921, %v1165, %v1167
      %v1169 = vrot.slane %v1119, 1
      %v1170 = vrot.slane %v1120, 1
      %v1171 = vsel %vm921, %v1169, %v1170
      %v1172 = vrot.slane %v1121, 1
      %v1173 = vsel %vm921, %v1170, %v1172
      %v1174 = vrot.slane %v1122, 1
      %v1175 = vrot.slane %v1123, 1
      %v1176 = vsel %vm921, %v1174, %v1175
      %v1177 = vrot.slane %v1124, 1
      %v1178 = vsel %vm921, %v1175, %v1177
      %v1179 = vrot.slane %v1125, 1
      %v1180 = vrot.slane %v1126, 1
      %v1181 = vsel %vm921, %v1179, %v1180
      %v1182 = vrot.slane %v1127, 1
      %v1183 = vsel %vm921, %v1180, %v1182
      %v1184 = vrot.slane %v1128, 1
      %v1185 = vrot.slane %v1129, 1
      %v1186 = vsel %vm921, %v1184, %v1185
      %v1187 = vrot.slane %v1130, 1
      %v1188 = vsel %vm921, %v1185, %v1187
      %v1189 = vrot.slane %v1131, 1
      %v1190 = vrot.slane %v1132, 1
      %v1191 = vsel %vm921, %v1189, %v1190
      %v1192 = vrot.slane %v1133, 1
      %v1193 = vsel %vm921, %v1190, %v1192
      %v1194 = vrot.slane %v1134, 1
      %v1195 = vrot.slane %v1135, 1
      %v1196 = vsel %vm921, %v1194, %v1195
      %v1197 = vrot.slane %v1136, 1
      %v1198 = vsel %vm921, %v1195, %v1197
      %v1199 = vrot.slane %v1137, 1
      %v1200 = vrot.slane %v1138, 1
      %v1201 = vsel %vm921, %v1199, %v1200
      %v1202 = vrot.slane %v1139, 1
      %v1203 = vsel %vm921, %v1200, %v1202
      %v1220 = vadd.f32 %v1099, %v1166
      %v1221 = vadd.f32 %v1100, %v1168
      %v1222 = vadd.f32 %v1101, %v1171
      %v1223 = vadd.f32 %v1102, %v1173
      %v1224 = vadd.f32 %v1103, %v1176
      %v1225 = vadd.f32 %v1104, %v1178
      %v1226 = vadd.f32 %v1105, %v1181
      %v1227 = vadd.f32 %v1106, %v1183
      %v1228 = vadd.f32 %v1107, %v1186
      %v1229 = vadd.f32 %v1108, %v1188
      %v1230 = vadd.f32 %v1109, %v1191
      %v1231 = vadd.f32 %v1110, %v1193
      %v1232 = vadd.f32 %v1111, %v1196
      %v1233 = vadd.f32 %v1112, %v1198
      %v1234 = vadd.f32 %v1113, %v1201
      %v1235 = vadd.f32 %v1114, %v1203
      %v1236 = vperm.slane %v506, 1
      %v1237 = vmul.f32 %v536, %v1236
      %v1238 = vmul.f32 %v537, %v1236
      %v1239 = vmul.f32 %v538, %v1236
      %v1240 = vmul.f32 %v539, %v1236
      %v1241 = vmul.f32 %v540, %v1236
      %v1242 = vmul.f32 %v541, %v1236
      %v1243 = vmul.f32 %v542, %v1236
      %v1244 = vmul.f32 %v543, %v1236
      %v1245 = vmul.f32 %v544, %v1236
      %v1246 = vmul.f32 %v545, %v1236
      %v1247 = vmul.f32 %v546, %v1236
      %v1248 = vmul.f32 %v547, %v1236
      %v1249 = vmul.f32 %v548, %v1236
      %v1250 = vmul.f32 %v549, %v1236
      %v1251 = vmul.f32 %v550, %v1236
      %v1252 = vmul.f32 %v551, %v1236
      %v1253 = vmul.f32 %v552, %v1236
      %v1254 = vmul.f32 %v553, %v1236
      %v1255 = vmul.f32 %v554, %v1236
      %v1256 = vmul.f32 %v555, %v1236
      %v1257 = vmul.f32 %v556, %v1236
      %v1258 = vmul.f32 %v557, %v1236
      %v1259 = vmul.f32 %v558, %v1236
      %v1260 = vmul.f32 %v559, %v1236
      %v1285 = vrot.slane %v1237, 1
      %v1286 = vrot.slane %v1238, 1
      %v1287 = vsel %vm921, %v1285, %v1286
      %v1288 = vrot.slane %v1239, 1
      %v1289 = vsel %vm921, %v1286, %v1288
      %v1290 = vrot.slane %v1240, 1
      %v1291 = vrot.slane %v1241, 1
      %v1292 = vsel %vm921, %v1290, %v1291
      %v1293 = vrot.slane %v1242, 1
      %v1294 = vsel %vm921, %v1291, %v1293
      %v1295 = vrot.slane %v1243, 1
      %v1296 = vrot.slane %v1244, 1
      %v1297 = vsel %vm921, %v1295, %v1296
      %v1298 = vrot.slane %v1245, 1
      %v1299 = vsel %vm921, %v1296, %v1298
      %v1300 = vrot.slane %v1246, 1
      %v1301 = vrot.slane %v1247, 1
      %v1302 = vsel %vm921, %v1300, %v1301
      %v1303 = vrot.slane %v1248, 1
      %v1304 = vsel %vm921, %v1301, %v1303
      %v1305 = vrot.slane %v1249, 1
      %v1306 = vrot.slane %v1250, 1
      %v1307 = vsel %vm921, %v1305, %v1306
      %v1308 = vrot.slane %v1251, 1
      %v1309 = vsel %vm921, %v1306, %v1308
      %v1310 = vrot.slane %v1252, 1
      %v1311 = vrot.slane %v1253, 1
      %v1312 = vsel %vm921, %v1310, %v1311
      %v1313 = vrot.slane %v1254, 1
      %v1314 = vsel %vm921, %v1311, %v1313
      %v1315 = vrot.slane %v1255, 1
      %v1316 = vrot.slane %v1256, 1
      %v1317 = vsel %vm921, %v1315, %v1316
      %v1318 = vrot.slane %v1257, 1
      %v1319 = vsel %vm921, %v1316, %v1318
      %v1320 = vrot.slane %v1258, 1
      %v1321 = vrot.slane %v1259, 1
      %v1322 = vsel %vm921, %v1320, %v1321
      %v1323 = vrot.slane %v1260, 1
      %v1324 = vsel %vm921, %v1321, %v1323
      %v1341 = vadd.f32 %v1220, %v1287
      %v1342 = vadd.f32 %v1221, %v1289
      %v1343 = vadd.f32 %v1222, %v1292
      %v1344 = vadd.f32 %v1223, %v1294
      %v1345 = vadd.f32 %v1224, %v1297
      %v1346 = vadd.f32 %v1225, %v1299
      %v1347 = vadd.f32 %v1226, %v1302
      %v1348 = vadd.f32 %v1227, %v1304
      %v1349 = vadd.f32 %v1228, %v1307
      %v1350 = vadd.f32 %v1229, %v1309
      %v1351 = vadd.f32 %v1230, %v1312
      %v1352 = vadd.f32 %v1231, %v1314
      %v1353 = vadd.f32 %v1232, %v1317
      %v1354 = vadd.f32 %v1233, %v1319
      %v1355 = vadd.f32 %v1234, %v1322
      %v1356 = vadd.f32 %v1235, %v1324
      %v1357 = vperm.slane %v508, 1
      %v1358 = vmul.f32 %v539, %v1357
      %v1359 = vmul.f32 %v540, %v1357
      %v1360 = vmul.f32 %v541, %v1357
      %v1361 = vmul.f32 %v542, %v1357
      %v1362 = vmul.f32 %v543, %v1357
      %v1363 = vmul.f32 %v544, %v1357
      %v1364 = vmul.f32 %v545, %v1357
      %v1365 = vmul.f32 %v546, %v1357
      %v1366 = vmul.f32 %v547, %v1357
      %v1367 = vmul.f32 %v548, %v1357
      %v1368 = vmul.f32 %v549, %v1357
      %v1369 = vmul.f32 %v550, %v1357
      %v1370 = vmul.f32 %v551, %v1357
      %v1371 = vmul.f32 %v552, %v1357
      %v1372 = vmul.f32 %v553, %v1357
      %v1373 = vmul.f32 %v554, %v1357
      %v1374 = vmul.f32 %v555, %v1357
      %v1375 = vmul.f32 %v556, %v1357
      %v1376 = vmul.f32 %v557, %v1357
      %v1377 = vmul.f32 %v558, %v1357
      %v1378 = vmul.f32 %v559, %v1357
      %v1379 = vmul.f32 %v560, %v1357
      %v1380 = vmul.f32 %v561, %v1357
      %v1381 = vmul.f32 %v562, %v1357
      %v1406 = vrot.slane %v1358, 1
      %v1407 = vrot.slane %v1359, 1
      %v1408 = vsel %vm921, %v1406, %v1407
      %v1409 = vrot.slane %v1360, 1
      %v1410 = vsel %vm921, %v1407, %v1409
      %v1411 = vrot.slane %v1361, 1
      %v1412 = vrot.slane %v1362, 1
      %v1413 = vsel %vm921, %v1411, %v1412
      %v1414 = vrot.slane %v1363, 1
      %v1415 = vsel %vm921, %v1412, %v1414
      %v1416 = vrot.slane %v1364, 1
      %v1417 = vrot.slane %v1365, 1
      %v1418 = vsel %vm921, %v1416, %v1417
      %v1419 = vrot.slane %v1366, 1
      %v1420 = vsel %vm921, %v1417, %v1419
      %v1421 = vrot.slane %v1367, 1
      %v1422 = vrot.slane %v1368, 1
      %v1423 = vsel %vm921, %v1421, %v1422
      %v1424 = vrot.slane %v1369, 1
      %v1425 = vsel %vm921, %v1422, %v1424
      %v1426 = vrot.slane %v1370, 1
      %v1427 = vrot.slane %v1371, 1
      %v1428 = vsel %vm921, %v1426, %v1427
      %v1429 = vrot.slane %v1372, 1
      %v1430 = vsel %vm921, %v1427, %v1429
      %v1431 = vrot.slane %v1373, 1
      %v1432 = vrot.slane %v1374, 1
      %v1433 = vsel %vm921, %v1431, %v1432
      %v1434 = vrot.slane %v1375, 1
      %v1435 = vsel %vm921, %v1432, %v1434
      %v1436 = vrot.slane %v1376, 1
      %v1437 = vrot.slane %v1377, 1
      %v1438 = vsel %vm921, %v1436, %v1437
      %v1439 = vrot.slane %v1378, 1
      %v1440 = vsel %vm921, %v1437, %v1439
      %v1441 = vrot.slane %v1379, 1
      %v1442 = vrot.slane %v1380, 1
      %v1443 = vsel %vm921, %v1441, %v1442
      %v1444 = vrot.slane %v1381, 1
      %v1445 = vsel %vm921, %v1442, %v1444
      %v1462 = vadd.f32 %v1341, %v1408
      %v1463 = vadd.f32 %v1342, %v1410
      %v1464 = vadd.f32 %v1343, %v1413
      %v1465 = vadd.f32 %v1344, %v1415
      %v1466 = vadd.f32 %v1345, %v1418
      %v1467 = vadd.f32 %v1346, %v1420
      %v1468 = vadd.f32 %v1347, %v1423
      %v1469 = vadd.f32 %v1348, %v1425
      %v1470 = vadd.f32 %v1349, %v1428
      %v1471 = vadd.f32 %v1350, %v1430
      %v1472 = vadd.f32 %v1351, %v1433
      %v1473 = vadd.f32 %v1352, %v1435
      %v1474 = vadd.f32 %v1353, %v1438
      %v1475 = vadd.f32 %v1354, %v1440
      %v1476 = vadd.f32 %v1355, %v1443
      %v1477 = vadd.f32 %v1356, %v1445
      %v1478 = vperm.slane %v510, 1
      %v1479 = vmul.f32 %v542, %v1478
      %v1480 = vmul.f32 %v543, %v1478
      %v1481 = vmul.f32 %v544, %v1478
      %v1482 = vmul.f32 %v545, %v1478
      %v1483 = vmul.f32 %v546, %v1478
      %v1484 = vmul.f32 %v547, %v1478
      %v1485 = vmul.f32 %v548, %v1478
      %v1486 = vmul.f32 %v549, %v1478
      %v1487 = vmul.f32 %v550, %v1478
      %v1488 = vmul.f32 %v551, %v1478
      %v1489 = vmul.f32 %v552, %v1478
      %v1490 = vmul.f32 %v553, %v1478
      %v1491 = vmul.f32 %v554, %v1478
      %v1492 = vmul.f32 %v555, %v1478
      %v1493 = vmul.f32 %v556, %v1478
      %v1494 = vmul.f32 %v557, %v1478
      %v1495 = vmul.f32 %v558, %v1478
      %v1496 = vmul.f32 %v559, %v1478
      %v1497 = vmul.f32 %v560, %v1478
      %v1498 = vmul.f32 %v561, %v1478
      %v1499 = vmul.f32 %v562, %v1478
      %v1500 = vmul.f32 %v563, %v1478
      %v1501 = vmul.f32 %v564, %v1478
      %v1502 = vmul.f32 %v565, %v1478
      %v1527 = vrot.slane %v1479, 1
      %v1528 = vrot.slane %v1480, 1
      %v1529 = vsel %vm921, %v1527, %v1528
      %v1530 = vrot.slane %v1481, 1
      %v1531 = vsel %vm921, %v1528, %v1530
      %v1532 = vrot.slane %v1482, 1
      %v1533 = vrot.slane %v1483, 1
      %v1534 = vsel %vm921, %v1532, %v1533
      %v1535 = vrot.slane %v1484, 1
      %v1536 = vsel %vm921, %v1533, %v1535
      %v1537 = vrot.slane %v1485, 1
      %v1538 = vrot.slane %v1486, 1
      %v1539 = vsel %vm921, %v1537, %v1538
      %v1540 = vrot.slane %v1487, 1
      %v1541 = vsel %vm921, %v1538, %v1540
      %v1542 = vrot.slane %v1488, 1
      %v1543 = vrot.slane %v1489, 1
      %v1544 = vsel %vm921, %v1542, %v1543
      %v1545 = vrot.slane %v1490, 1
      %v1546 = vsel %vm921, %v1543, %v1545
      %v1547 = vrot.slane %v1491, 1
      %v1548 = vrot.slane %v1492, 1
      %v1549 = vsel %vm921, %v1547, %v1548
      %v1550 = vrot.slane %v1493, 1
      %v1551 = vsel %vm921, %v1548, %v1550
      %v1552 = vrot.slane %v1494, 1
      %v1553 = vrot.slane %v1495, 1
      %v1554 = vsel %vm921, %v1552, %v1553
      %v1555 = vrot.slane %v1496, 1
      %v1556 = vsel %vm921, %v1553, %v1555
      %v1557 = vrot.slane %v1497, 1
      %v1558 = vrot.slane %v1498, 1
      %v1559 = vsel %vm921, %v1557, %v1558
      %v1560 = vrot.slane %v1499, 1
      %v1561 = vsel %vm921, %v1558, %v1560
      %v1562 = vrot.slane %v1500, 1
      %v1563 = vrot.slane %v1501, 1
      %v1564 = vsel %vm921, %v1562, %v1563
      %v1565 = vrot.slane %v1502, 1
      %v1566 = vsel %vm921, %v1563, %v1565
      %v1583 = vadd.f32 %v1462, %v1529
      %v1584 = vadd.f32 %v1463, %v1531
      %v1585 = vadd.f32 %v1464, %v1534
      %v1586 = vadd.f32 %v1465, %v1536
      %v1587 = vadd.f32 %v1466, %v1539
      %v1588 = vadd.f32 %v1467, %v1541
      %v1589 = vadd.f32 %v1468, %v1544
      %v1590 = vadd.f32 %v1469, %v1546
      %v1591 = vadd.f32 %v1470, %v1549
      %v1592 = vadd.f32 %v1471, %v1551
      %v1593 = vadd.f32 %v1472, %v1554
      %v1594 = vadd.f32 %v1473, %v1556
      %v1595 = vadd.f32 %v1474, %v1559
      %v1596 = vadd.f32 %v1475, %v1561
      %v1597 = vadd.f32 %v1476, %v1564
      %v1598 = vadd.f32 %v1477, %v1566
      %v1599 = vperm.slane %v512, 1
      %v1600 = vmul.f32 %v545, %v1599
      %v1601 = vmul.f32 %v546, %v1599
      %v1602 = vmul.f32 %v547, %v1599
      %v1603 = vmul.f32 %v548, %v1599
      %v1604 = vmul.f32 %v549, %v1599
      %v1605 = vmul.f32 %v550, %v1599
      %v1606 = vmul.f32 %v551, %v1599
      %v1607 = vmul.f32 %v552, %v1599
      %v1608 = vmul.f32 %v553, %v1599
      %v1609 = vmul.f32 %v554, %v1599
      %v1610 = vmul.f32 %v555, %v1599
      %v1611 = vmul.f32 %v556, %v1599
      %v1612 = vmul.f32 %v557, %v1599
      %v1613 = vmul.f32 %v558, %v1599
      %v1614 = vmul.f32 %v559, %v1599
      %v1615 = vmul.f32 %v560, %v1599
      %v1616 = vmul.f32 %v561, %v1599
      %v1617 = vmul.f32 %v562, %v1599
      %v1618 = vmul.f32 %v563, %v1599
      %v1619 = vmul.f32 %v564, %v1599
      %v1620 = vmul.f32 %v565, %v1599
      %v1621 = vmul.f32 %v566, %v1599
      %v1622 = vmul.f32 %v567, %v1599
      %v1623 = vmul.f32 %v568, %v1599
      %v1648 = vrot.slane %v1600, 1
      %v1649 = vrot.slane %v1601, 1
      %v1650 = vsel %vm921, %v1648, %v1649
      %v1651 = vrot.slane %v1602, 1
      %v1652 = vsel %vm921, %v1649, %v1651
      %v1653 = vrot.slane %v1603, 1
      %v1654 = vrot.slane %v1604, 1
      %v1655 = vsel %vm921, %v1653, %v1654
      %v1656 = vrot.slane %v1605, 1
      %v1657 = vsel %vm921, %v1654, %v1656
      %v1658 = vrot.slane %v1606, 1
      %v1659 = vrot.slane %v1607, 1
      %v1660 = vsel %vm921, %v1658, %v1659
      %v1661 = vrot.slane %v1608, 1
      %v1662 = vsel %vm921, %v1659, %v1661
      %v1663 = vrot.slane %v1609, 1
      %v1664 = vrot.slane %v1610, 1
      %v1665 = vsel %vm921, %v1663, %v1664
      %v1666 = vrot.slane %v1611, 1
      %v1667 = vsel %vm921, %v1664, %v1666
      %v1668 = vrot.slane %v1612, 1
      %v1669 = vrot.slane %v1613, 1
      %v1670 = vsel %vm921, %v1668, %v1669
      %v1671 = vrot.slane %v1614, 1
      %v1672 = vsel %vm921, %v1669, %v1671
      %v1673 = vrot.slane %v1615, 1
      %v1674 = vrot.slane %v1616, 1
      %v1675 = vsel %vm921, %v1673, %v1674
      %v1676 = vrot.slane %v1617, 1
      %v1677 = vsel %vm921, %v1674, %v1676
      %v1678 = vrot.slane %v1618, 1
      %v1679 = vrot.slane %v1619, 1
      %v1680 = vsel %vm921, %v1678, %v1679
      %v1681 = vrot.slane %v1620, 1
      %v1682 = vsel %vm921, %v1679, %v1681
      %v1683 = vrot.slane %v1621, 1
      %v1684 = vrot.slane %v1622, 1
      %v1685 = vsel %vm921, %v1683, %v1684
      %v1686 = vrot.slane %v1623, 1
      %v1687 = vsel %vm921, %v1684, %v1686
      %v1704 = vadd.f32 %v1583, %v1650
      %v1705 = vadd.f32 %v1584, %v1652
      %v1706 = vadd.f32 %v1585, %v1655
      %v1707 = vadd.f32 %v1586, %v1657
      %v1708 = vadd.f32 %v1587, %v1660
      %v1709 = vadd.f32 %v1588, %v1662
      %v1710 = vadd.f32 %v1589, %v1665
      %v1711 = vadd.f32 %v1590, %v1667
      %v1712 = vadd.f32 %v1591, %v1670
      %v1713 = vadd.f32 %v1592, %v1672
      %v1714 = vadd.f32 %v1593, %v1675
      %v1715 = vadd.f32 %v1594, %v1677
      %v1716 = vadd.f32 %v1595, %v1680
      %v1717 = vadd.f32 %v1596, %v1682
      %v1718 = vadd.f32 %v1597, %v1685
      %v1719 = vadd.f32 %v1598, %v1687
      %v1720 = vperm.slane %v514, 1
      %v1721 = vmul.f32 %v548, %v1720
      %v1722 = vmul.f32 %v549, %v1720
      %v1723 = vmul.f32 %v550, %v1720
      %v1724 = vmul.f32 %v551, %v1720
      %v1725 = vmul.f32 %v552, %v1720
      %v1726 = vmul.f32 %v553, %v1720
      %v1727 = vmul.f32 %v554, %v1720
      %v1728 = vmul.f32 %v555, %v1720
      %v1729 = vmul.f32 %v556, %v1720
      %v1730 = vmul.f32 %v557, %v1720
      %v1731 = vmul.f32 %v558, %v1720
      %v1732 = vmul.f32 %v559, %v1720
      %v1733 = vmul.f32 %v560, %v1720
      %v1734 = vmul.f32 %v561, %v1720
      %v1735 = vmul.f32 %v562, %v1720
      %v1736 = vmul.f32 %v563, %v1720
      %v1737 = vmul.f32 %v564, %v1720
      %v1738 = vmul.f32 %v565, %v1720
      %v1739 = vmul.f32 %v566, %v1720
      %v1740 = vmul.f32 %v567, %v1720
      %v1741 = vmul.f32 %v568, %v1720
      %v1742 = vmul.f32 %v569, %v1720
      %v1743 = vmul.f32 %v570, %v1720
      %v1744 = vmul.f32 %v571, %v1720
      %v1769 = vrot.slane %v1721, 1
      %v1770 = vrot.slane %v1722, 1
      %v1771 = vsel %vm921, %v1769, %v1770
      %v1772 = vrot.slane %v1723, 1
      %v1773 = vsel %vm921, %v1770, %v1772
      %v1774 = vrot.slane %v1724, 1
      %v1775 = vrot.slane %v1725, 1
      %v1776 = vsel %vm921, %v1774, %v1775
      %v1777 = vrot.slane %v1726, 1
      %v1778 = vsel %vm921, %v1775, %v1777
      %v1779 = vrot.slane %v1727, 1
      %v1780 = vrot.slane %v1728, 1
      %v1781 = vsel %vm921, %v1779, %v1780
      %v1782 = vrot.slane %v1729, 1
      %v1783 = vsel %vm921, %v1780, %v1782
      %v1784 = vrot.slane %v1730, 1
      %v1785 = vrot.slane %v1731, 1
      %v1786 = vsel %vm921, %v1784, %v1785
      %v1787 = vrot.slane %v1732, 1
      %v1788 = vsel %vm921, %v1785, %v1787
      %v1789 = vrot.slane %v1733, 1
      %v1790 = vrot.slane %v1734, 1
      %v1791 = vsel %vm921, %v1789, %v1790
      %v1792 = vrot.slane %v1735, 1
      %v1793 = vsel %vm921, %v1790, %v1792
      %v1794 = vrot.slane %v1736, 1
      %v1795 = vrot.slane %v1737, 1
      %v1796 = vsel %vm921, %v1794, %v1795
      %v1797 = vrot.slane %v1738, 1
      %v1798 = vsel %vm921, %v1795, %v1797
      %v1799 = vrot.slane %v1739, 1
      %v1800 = vrot.slane %v1740, 1
      %v1801 = vsel %vm921, %v1799, %v1800
      %v1802 = vrot.slane %v1741, 1
      %v1803 = vsel %vm921, %v1800, %v1802
      %v1804 = vrot.slane %v1742, 1
      %v1805 = vrot.slane %v1743, 1
      %v1806 = vsel %vm921, %v1804, %v1805
      %v1807 = vrot.slane %v1744, 1
      %v1808 = vsel %vm921, %v1805, %v1807
      %v1825 = vadd.f32 %v1704, %v1771
      %v1826 = vadd.f32 %v1705, %v1773
      %v1827 = vadd.f32 %v1706, %v1776
      %v1828 = vadd.f32 %v1707, %v1778
      %v1829 = vadd.f32 %v1708, %v1781
      %v1830 = vadd.f32 %v1709, %v1783
      %v1831 = vadd.f32 %v1710, %v1786
      %v1832 = vadd.f32 %v1711, %v1788
      %v1833 = vadd.f32 %v1712, %v1791
      %v1834 = vadd.f32 %v1713, %v1793
      %v1835 = vadd.f32 %v1714, %v1796
      %v1836 = vadd.f32 %v1715, %v1798
      %v1837 = vadd.f32 %v1716, %v1801
      %v1838 = vadd.f32 %v1717, %v1803
      %v1839 = vadd.f32 %v1718, %v1806
      %v1840 = vadd.f32 %v1719, %v1808
      %v1841 = vperm.slane %v516, 1
      %v1842 = vmul.f32 %v551, %v1841
      %v1843 = vmul.f32 %v552, %v1841
      %v1844 = vmul.f32 %v553, %v1841
      %v1845 = vmul.f32 %v554, %v1841
      %v1846 = vmul.f32 %v555, %v1841
      %v1847 = vmul.f32 %v556, %v1841
      %v1848 = vmul.f32 %v557, %v1841
      %v1849 = vmul.f32 %v558, %v1841
      %v1850 = vmul.f32 %v559, %v1841
      %v1851 = vmul.f32 %v560, %v1841
      %v1852 = vmul.f32 %v561, %v1841
      %v1853 = vmul.f32 %v562, %v1841
      %v1854 = vmul.f32 %v563, %v1841
      %v1855 = vmul.f32 %v564, %v1841
      %v1856 = vmul.f32 %v565, %v1841
      %v1857 = vmul.f32 %v566, %v1841
      %v1858 = vmul.f32 %v567, %v1841
      %v1859 = vmul.f32 %v568, %v1841
      %v1860 = vmul.f32 %v569, %v1841
      %v1861 = vmul.f32 %v570, %v1841
      %v1862 = vmul.f32 %v571, %v1841
      %v1863 = vmul.f32 %v572, %v1841
      %v1864 = vmul.f32 %v573, %v1841
      %v1865 = vmul.f32 %v574, %v1841
      %v1890 = vrot.slane %v1842, 1
      %v1891 = vrot.slane %v1843, 1
      %v1892 = vsel %vm921, %v1890, %v1891
      %v1893 = vrot.slane %v1844, 1
      %v1894 = vsel %vm921, %v1891, %v1893
      %v1895 = vrot.slane %v1845, 1
      %v1896 = vrot.slane %v1846, 1
      %v1897 = vsel %vm921, %v1895, %v1896
      %v1898 = vrot.slane %v1847, 1
      %v1899 = vsel %vm921, %v1896, %v1898
      %v1900 = vrot.slane %v1848, 1
      %v1901 = vrot.slane %v1849, 1
      %v1902 = vsel %vm921, %v1900, %v1901
      %v1903 = vrot.slane %v1850, 1
      %v1904 = vsel %vm921, %v1901, %v1903
      %v1905 = vrot.slane %v1851, 1
      %v1906 = vrot.slane %v1852, 1
      %v1907 = vsel %vm921, %v1905, %v1906
      %v1908 = vrot.slane %v1853, 1
      %v1909 = vsel %vm921, %v1906, %v1908
      %v1910 = vrot.slane %v1854, 1
      %v1911 = vrot.slane %v1855, 1
      %v1912 = vsel %vm921, %v1910, %v1911
      %v1913 = vrot.slane %v1856, 1
      %v1914 = vsel %vm921, %v1911, %v1913
      %v1915 = vrot.slane %v1857, 1
      %v1916 = vrot.slane %v1858, 1
      %v1917 = vsel %vm921, %v1915, %v1916
      %v1918 = vrot.slane %v1859, 1
      %v1919 = vsel %vm921, %v1916, %v1918
      %v1920 = vrot.slane %v1860, 1
      %v1921 = vrot.slane %v1861, 1
      %v1922 = vsel %vm921, %v1920, %v1921
      %v1923 = vrot.slane %v1862, 1
      %v1924 = vsel %vm921, %v1921, %v1923
      %v1925 = vrot.slane %v1863, 1
      %v1926 = vrot.slane %v1864, 1
      %v1927 = vsel %vm921, %v1925, %v1926
      %v1928 = vrot.slane %v1865, 1
      %v1929 = vsel %vm921, %v1926, %v1928
      %v1946 = vadd.f32 %v1825, %v1892
      %v1947 = vadd.f32 %v1826, %v1894
      %v1948 = vadd.f32 %v1827, %v1897
      %v1949 = vadd.f32 %v1828, %v1899
      %v1950 = vadd.f32 %v1829, %v1902
      %v1951 = vadd.f32 %v1830, %v1904
      %v1952 = vadd.f32 %v1831, %v1907
      %v1953 = vadd.f32 %v1832, %v1909
      %v1954 = vadd.f32 %v1833, %v1912
      %v1955 = vadd.f32 %v1834, %v1914
      %v1956 = vadd.f32 %v1835, %v1917
      %v1957 = vadd.f32 %v1836, %v1919
      %v1958 = vadd.f32 %v1837, %v1922
      %v1959 = vadd.f32 %v1838, %v1924
      %v1960 = vadd.f32 %v1839, %v1927
      %v1961 = vadd.f32 %v1840, %v1929
      %v1962 = vperm.slane %v500, 2
      %v1963 = vmul.f32 %v527, %v1962
      %v1964 = vmul.f32 %v528, %v1962
      %v1965 = vmul.f32 %v529, %v1962
      %v1966 = vmul.f32 %v530, %v1962
      %v1967 = vmul.f32 %v531, %v1962
      %v1968 = vmul.f32 %v532, %v1962
      %v1969 = vmul.f32 %v533, %v1962
      %v1970 = vmul.f32 %v534, %v1962
      %v1971 = vmul.f32 %v535, %v1962
      %v1972 = vmul.f32 %v536, %v1962
      %v1973 = vmul.f32 %v537, %v1962
      %v1974 = vmul.f32 %v538, %v1962
      %v1975 = vmul.f32 %v539, %v1962
      %v1976 = vmul.f32 %v540, %v1962
      %v1977 = vmul.f32 %v541, %v1962
      %v1978 = vmul.f32 %v542, %v1962
      %v1979 = vmul.f32 %v543, %v1962
      %v1980 = vmul.f32 %v544, %v1962
      %v1981 = vmul.f32 %v545, %v1962
      %v1982 = vmul.f32 %v546, %v1962
      %v1983 = vmul.f32 %v547, %v1962
      %v1984 = vmul.f32 %v548, %v1962
      %v1985 = vmul.f32 %v549, %v1962
      %v1986 = vmul.f32 %v550, %v1962
      %vm2011 = vcmask 1045504
      %v2012 = vrot.slane %v1963, 2
      %v2013 = vrot.slane %v1964, 2
      %v2014 = vsel %vm2011, %v2012, %v2013
      %v2015 = vrot.slane %v1965, 2
      %v2016 = vsel %vm2011, %v2013, %v2015
      %v2017 = vrot.slane %v1966, 2
      %v2018 = vrot.slane %v1967, 2
      %v2019 = vsel %vm2011, %v2017, %v2018
      %v2020 = vrot.slane %v1968, 2
      %v2021 = vsel %vm2011, %v2018, %v2020
      %v2022 = vrot.slane %v1969, 2
      %v2023 = vrot.slane %v1970, 2
      %v2024 = vsel %vm2011, %v2022, %v2023
      %v2025 = vrot.slane %v1971, 2
      %v2026 = vsel %vm2011, %v2023, %v2025
      %v2027 = vrot.slane %v1972, 2
      %v2028 = vrot.slane %v1973, 2
      %v2029 = vsel %vm2011, %v2027, %v2028
      %v2030 = vrot.slane %v1974, 2
      %v2031 = vsel %vm2011, %v2028, %v2030
      %v2032 = vrot.slane %v1975, 2
      %v2033 = vrot.slane %v1976, 2
      %v2034 = vsel %vm2011, %v2032, %v2033
      %v2035 = vrot.slane %v1977, 2
      %v2036 = vsel %vm2011, %v2033, %v2035
      %v2037 = vrot.slane %v1978, 2
      %v2038 = vrot.slane %v1979, 2
      %v2039 = vsel %vm2011, %v2037, %v2038
      %v2040 = vrot.slane %v1980, 2
      %v2041 = vsel %vm2011, %v2038, %v2040
      %v2042 = vrot.slane %v1981, 2
      %v2043 = vrot.slane %v1982, 2
      %v2044 = vsel %vm2011, %v2042, %v2043
      %v2045 = vrot.slane %v1983, 2
      %v2046 = vsel %vm2011, %v2043, %v2045
      %v2047 = vrot.slane %v1984, 2
      %v2048 = vrot.slane %v1985, 2
      %v2049 = vsel %vm2011, %v2047, %v2048
      %v2050 = vrot.slane %v1986, 2
      %v2051 = vsel %vm2011, %v2048, %v2050
      %v2068 = vadd.f32 %v1946, %v2014
      %v2069 = vadd.f32 %v1947, %v2016
      %v2070 = vadd.f32 %v1948, %v2019
      %v2071 = vadd.f32 %v1949, %v2021
      %v2072 = vadd.f32 %v1950, %v2024
      %v2073 = vadd.f32 %v1951, %v2026
      %v2074 = vadd.f32 %v1952, %v2029
      %v2075 = vadd.f32 %v1953, %v2031
      %v2076 = vadd.f32 %v1954, %v2034
      %v2077 = vadd.f32 %v1955, %v2036
      %v2078 = vadd.f32 %v1956, %v2039
      %v2079 = vadd.f32 %v1957, %v2041
      %v2080 = vadd.f32 %v1958, %v2044
      %v2081 = vadd.f32 %v1959, %v2046
      %v2082 = vadd.f32 %v1960, %v2049
      %v2083 = vadd.f32 %v1961, %v2051
      %v2084 = vperm.slane %v502, 2
      %v2085 = vmul.f32 %v530, %v2084
      %v2086 = vmul.f32 %v531, %v2084
      %v2087 = vmul.f32 %v532, %v2084
      %v2088 = vmul.f32 %v533, %v2084
      %v2089 = vmul.f32 %v534, %v2084
      %v2090 = vmul.f32 %v535, %v2084
      %v2091 = vmul.f32 %v536, %v2084
      %v2092 = vmul.f32 %v537, %v2084
      %v2093 = vmul.f32 %v538, %v2084
      %v2094 = vmul.f32 %v539, %v2084
      %v2095 = vmul.f32 %v540, %v2084
      %v2096 = vmul.f32 %v541, %v2084
      %v2097 = vmul.f32 %v542, %v2084
      %v2098 = vmul.f32 %v543, %v2084
      %v2099 = vmul.f32 %v544, %v2084
      %v2100 = vmul.f32 %v545, %v2084
      %v2101 = vmul.f32 %v546, %v2084
      %v2102 = vmul.f32 %v547, %v2084
      %v2103 = vmul.f32 %v548, %v2084
      %v2104 = vmul.f32 %v549, %v2084
      %v2105 = vmul.f32 %v550, %v2084
      %v2106 = vmul.f32 %v551, %v2084
      %v2107 = vmul.f32 %v552, %v2084
      %v2108 = vmul.f32 %v553, %v2084
      %v2133 = vrot.slane %v2085, 2
      %v2134 = vrot.slane %v2086, 2
      %v2135 = vsel %vm2011, %v2133, %v2134
      %v2136 = vrot.slane %v2087, 2
      %v2137 = vsel %vm2011, %v2134, %v2136
      %v2138 = vrot.slane %v2088, 2
      %v2139 = vrot.slane %v2089, 2
      %v2140 = vsel %vm2011, %v2138, %v2139
      %v2141 = vrot.slane %v2090, 2
      %v2142 = vsel %vm2011, %v2139, %v2141
      %v2143 = vrot.slane %v2091, 2
      %v2144 = vrot.slane %v2092, 2
      %v2145 = vsel %vm2011, %v2143, %v2144
      %v2146 = vrot.slane %v2093, 2
      %v2147 = vsel %vm2011, %v2144, %v2146
      %v2148 = vrot.slane %v2094, 2
      %v2149 = vrot.slane %v2095, 2
      %v2150 = vsel %vm2011, %v2148, %v2149
      %v2151 = vrot.slane %v2096, 2
      %v2152 = vsel %vm2011, %v2149, %v2151
      %v2153 = vrot.slane %v2097, 2
      %v2154 = vrot.slane %v2098, 2
      %v2155 = vsel %vm2011, %v2153, %v2154
      %v2156 = vrot.slane %v2099, 2
      %v2157 = vsel %vm2011, %v2154, %v2156
      %v2158 = vrot.slane %v2100, 2
      %v2159 = vrot.slane %v2101, 2
      %v2160 = vsel %vm2011, %v2158, %v2159
      %v2161 = vrot.slane %v2102, 2
      %v2162 = vsel %vm2011, %v2159, %v2161
      %v2163 = vrot.slane %v2103, 2
      %v2164 = vrot.slane %v2104, 2
      %v2165 = vsel %vm2011, %v2163, %v2164
      %v2166 = vrot.slane %v2105, 2
      %v2167 = vsel %vm2011, %v2164, %v2166
      %v2168 = vrot.slane %v2106, 2
      %v2169 = vrot.slane %v2107, 2
      %v2170 = vsel %vm2011, %v2168, %v2169
      %v2171 = vrot.slane %v2108, 2
      %v2172 = vsel %vm2011, %v2169, %v2171
      %v2189 = vadd.f32 %v2068, %v2135
      %v2190 = vadd.f32 %v2069, %v2137
      %v2191 = vadd.f32 %v2070, %v2140
      %v2192 = vadd.f32 %v2071, %v2142
      %v2193 = vadd.f32 %v2072, %v2145
      %v2194 = vadd.f32 %v2073, %v2147
      %v2195 = vadd.f32 %v2074, %v2150
      %v2196 = vadd.f32 %v2075, %v2152
      %v2197 = vadd.f32 %v2076, %v2155
      %v2198 = vadd.f32 %v2077, %v2157
      %v2199 = vadd.f32 %v2078, %v2160
      %v2200 = vadd.f32 %v2079, %v2162
      %v2201 = vadd.f32 %v2080, %v2165
      %v2202 = vadd.f32 %v2081, %v2167
      %v2203 = vadd.f32 %v2082, %v2170
      %v2204 = vadd.f32 %v2083, %v2172
      %v2205 = vperm.slane %v504, 2
      %v2206 = vmul.f32 %v533, %v2205
      %v2207 = vmul.f32 %v534, %v2205
      %v2208 = vmul.f32 %v535, %v2205
      %v2209 = vmul.f32 %v536, %v2205
      %v2210 = vmul.f32 %v537, %v2205
      %v2211 = vmul.f32 %v538, %v2205
      %v2212 = vmul.f32 %v539, %v2205
      %v2213 = vmul.f32 %v540, %v2205
      %v2214 = vmul.f32 %v541, %v2205
      %v2215 = vmul.f32 %v542, %v2205
      %v2216 = vmul.f32 %v543, %v2205
      %v2217 = vmul.f32 %v544, %v2205
      %v2218 = vmul.f32 %v545, %v2205
      %v2219 = vmul.f32 %v546, %v2205
      %v2220 = vmul.f32 %v547, %v2205
      %v2221 = vmul.f32 %v548, %v2205
      %v2222 = vmul.f32 %v549, %v2205
      %v2223 = vmul.f32 %v550, %v2205
      %v2224 = vmul.f32 %v551, %v2205
      %v2225 = vmul.f32 %v552, %v2205
      %v2226 = vmul.f32 %v553, %v2205
      %v2227 = vmul.f32 %v554, %v2205
      %v2228 = vmul.f32 %v555, %v2205
      %v2229 = vmul.f32 %v556, %v2205
      %v2254 = vrot.slane %v2206, 2
      %v2255 = vrot.slane %v2207, 2
      %v2256 = vsel %vm2011, %v2254, %v2255
      %v2257 = vrot.slane %v2208, 2
      %v2258 = vsel %vm2011, %v2255, %v2257
      %v2259 = vrot.slane %v2209, 2
      %v2260 = vrot.slane %v2210, 2
      %v2261 = vsel %vm2011, %v2259, %v2260
      %v2262 = vrot.slane %v2211, 2
      %v2263 = vsel %vm2011, %v2260, %v2262
      %v2264 = vrot.slane %v2212, 2
      %v2265 = vrot.slane %v2213, 2
      %v2266 = vsel %vm2011, %v2264, %v2265
      %v2267 = vrot.slane %v2214, 2
      %v2268 = vsel %vm2011, %v2265, %v2267
      %v2269 = vrot.slane %v2215, 2
      %v2270 = vrot.slane %v2216, 2
      %v2271 = vsel %vm2011, %v2269, %v2270
      %v2272 = vrot.slane %v2217, 2
      %v2273 = vsel %vm2011, %v2270, %v2272
      %v2274 = vrot.slane %v2218, 2
      %v2275 = vrot.slane %v2219, 2
      %v2276 = vsel %vm2011, %v2274, %v2275
      %v2277 = vrot.slane %v2220, 2
      %v2278 = vsel %vm2011, %v2275, %v2277
      %v2279 = vrot.slane %v2221, 2
      %v2280 = vrot.slane %v2222, 2
      %v2281 = vsel %vm2011, %v2279, %v2280
      %v2282 = vrot.slane %v2223, 2
      %v2283 = vsel %vm2011, %v2280, %v2282
      %v2284 = vrot.slane %v2224, 2
      %v2285 = vrot.slane %v2225, 2
      %v2286 = vsel %vm2011, %v2284, %v2285
      %v2287 = vrot.slane %v2226, 2
      %v2288 = vsel %vm2011, %v2285, %v2287
      %v2289 = vrot.slane %v2227, 2
      %v2290 = vrot.slane %v2228, 2
      %v2291 = vsel %vm2011, %v2289, %v2290
      %v2292 = vrot.slane %v2229, 2
      %v2293 = vsel %vm2011, %v2290, %v2292
      %v2310 = vadd.f32 %v2189, %v2256
      %v2311 = vadd.f32 %v2190, %v2258
      %v2312 = vadd.f32 %v2191, %v2261
      %v2313 = vadd.f32 %v2192, %v2263
      %v2314 = vadd.f32 %v2193, %v2266
      %v2315 = vadd.f32 %v2194, %v2268
      %v2316 = vadd.f32 %v2195, %v2271
      %v2317 = vadd.f32 %v2196, %v2273
      %v2318 = vadd.f32 %v2197, %v2276
      %v2319 = vadd.f32 %v2198, %v2278
      %v2320 = vadd.f32 %v2199, %v2281
      %v2321 = vadd.f32 %v2200, %v2283
      %v2322 = vadd.f32 %v2201, %v2286
      %v2323 = vadd.f32 %v2202, %v2288
      %v2324 = vadd.f32 %v2203, %v2291
      %v2325 = vadd.f32 %v2204, %v2293
      %v2326 = vperm.slane %v506, 2
      %v2327 = vmul.f32 %v536, %v2326
      %v2328 = vmul.f32 %v537, %v2326
      %v2329 = vmul.f32 %v538, %v2326
      %v2330 = vmul.f32 %v539, %v2326
      %v2331 = vmul.f32 %v540, %v2326
      %v2332 = vmul.f32 %v541, %v2326
      %v2333 = vmul.f32 %v542, %v2326
      %v2334 = vmul.f32 %v543, %v2326
      %v2335 = vmul.f32 %v544, %v2326
      %v2336 = vmul.f32 %v545, %v2326
      %v2337 = vmul.f32 %v546, %v2326
      %v2338 = vmul.f32 %v547, %v2326
      %v2339 = vmul.f32 %v548, %v2326
      %v2340 = vmul.f32 %v549, %v2326
      %v2341 = vmul.f32 %v550, %v2326
      %v2342 = vmul.f32 %v551, %v2326
      %v2343 = vmul.f32 %v552, %v2326
      %v2344 = vmul.f32 %v553, %v2326
      %v2345 = vmul.f32 %v554, %v2326
      %v2346 = vmul.f32 %v555, %v2326
      %v2347 = vmul.f32 %v556, %v2326
      %v2348 = vmul.f32 %v557, %v2326
      %v2349 = vmul.f32 %v558, %v2326
      %v2350 = vmul.f32 %v559, %v2326
      %v2375 = vrot.slane %v2327, 2
      %v2376 = vrot.slane %v2328, 2
      %v2377 = vsel %vm2011, %v2375, %v2376
      %v2378 = vrot.slane %v2329, 2
      %v2379 = vsel %vm2011, %v2376, %v2378
      %v2380 = vrot.slane %v2330, 2
      %v2381 = vrot.slane %v2331, 2
      %v2382 = vsel %vm2011, %v2380, %v2381
      %v2383 = vrot.slane %v2332, 2
      %v2384 = vsel %vm2011, %v2381, %v2383
      %v2385 = vrot.slane %v2333, 2
      %v2386 = vrot.slane %v2334, 2
      %v2387 = vsel %vm2011, %v2385, %v2386
      %v2388 = vrot.slane %v2335, 2
      %v2389 = vsel %vm2011, %v2386, %v2388
      %v2390 = vrot.slane %v2336, 2
      %v2391 = vrot.slane %v2337, 2
      %v2392 = vsel %vm2011, %v2390, %v2391
      %v2393 = vrot.slane %v2338, 2
      %v2394 = vsel %vm2011, %v2391, %v2393
      %v2395 = vrot.slane %v2339, 2
      %v2396 = vrot.slane %v2340, 2
      %v2397 = vsel %vm2011, %v2395, %v2396
      %v2398 = vrot.slane %v2341, 2
      %v2399 = vsel %vm2011, %v2396, %v2398
      %v2400 = vrot.slane %v2342, 2
      %v2401 = vrot.slane %v2343, 2
      %v2402 = vsel %vm2011, %v2400, %v2401
      %v2403 = vrot.slane %v2344, 2
      %v2404 = vsel %vm2011, %v2401, %v2403
      %v2405 = vrot.slane %v2345, 2
      %v2406 = vrot.slane %v2346, 2
      %v2407 = vsel %vm2011, %v2405, %v2406
      %v2408 = vrot.slane %v2347, 2
      %v2409 = vsel %vm2011, %v2406, %v2408
      %v2410 = vrot.slane %v2348, 2
      %v2411 = vrot.slane %v2349, 2
      %v2412 = vsel %vm2011, %v2410, %v2411
      %v2413 = vrot.slane %v2350, 2
      %v2414 = vsel %vm2011, %v2411, %v2413
      %v2431 = vadd.f32 %v2310, %v2377
      %v2432 = vadd.f32 %v2311, %v2379
      %v2433 = vadd.f32 %v2312, %v2382
      %v2434 = vadd.f32 %v2313, %v2384
      %v2435 = vadd.f32 %v2314, %v2387
      %v2436 = vadd.f32 %v2315, %v2389
      %v2437 = vadd.f32 %v2316, %v2392
      %v2438 = vadd.f32 %v2317, %v2394
      %v2439 = vadd.f32 %v2318, %v2397
      %v2440 = vadd.f32 %v2319, %v2399
      %v2441 = vadd.f32 %v2320, %v2402
      %v2442 = vadd.f32 %v2321, %v2404
      %v2443 = vadd.f32 %v2322, %v2407
      %v2444 = vadd.f32 %v2323, %v2409
      %v2445 = vadd.f32 %v2324, %v2412
      %v2446 = vadd.f32 %v2325, %v2414
      %v2447 = vperm.slane %v508, 2
      %v2448 = vmul.f32 %v539, %v2447
      %v2449 = vmul.f32 %v540, %v2447
      %v2450 = vmul.f32 %v541, %v2447
      %v2451 = vmul.f32 %v542, %v2447
      %v2452 = vmul.f32 %v543, %v2447
      %v2453 = vmul.f32 %v544, %v2447
      %v2454 = vmul.f32 %v545, %v2447
      %v2455 = vmul.f32 %v546, %v2447
      %v2456 = vmul.f32 %v547, %v2447
      %v2457 = vmul.f32 %v548, %v2447
      %v2458 = vmul.f32 %v549, %v2447
      %v2459 = vmul.f32 %v550, %v2447
      %v2460 = vmul.f32 %v551, %v2447
      %v2461 = vmul.f32 %v552, %v2447
      %v2462 = vmul.f32 %v553, %v2447
      %v2463 = vmul.f32 %v554, %v2447
      %v2464 = vmul.f32 %v555, %v2447
      %v2465 = vmul.f32 %v556, %v2447
      %v2466 = vmul.f32 %v557, %v2447
      %v2467 = vmul.f32 %v558, %v2447
      %v2468 = vmul.f32 %v559, %v2447
      %v2469 = vmul.f32 %v560, %v2447
      %v2470 = vmul.f32 %v561, %v2447
      %v2471 = vmul.f32 %v562, %v2447
      %v2496 = vrot.slane %v2448, 2
      %v2497 = vrot.slane %v2449, 2
      %v2498 = vsel %vm2011, %v2496, %v2497
      %v2499 = vrot.slane %v2450, 2
      %v2500 = vsel %vm2011, %v2497, %v2499
      %v2501 = vrot.slane %v2451, 2
      %v2502 = vrot.slane %v2452, 2
      %v2503 = vsel %vm2011, %v2501, %v2502
      %v2504 = vrot.slane %v2453, 2
      %v2505 = vsel %vm2011, %v2502, %v2504
      %v2506 = vrot.slane %v2454, 2
      %v2507 = vrot.slane %v2455, 2
      %v2508 = vsel %vm2011, %v2506, %v2507
      %v2509 = vrot.slane %v2456, 2
      %v2510 = vsel %vm2011, %v2507, %v2509
      %v2511 = vrot.slane %v2457, 2
      %v2512 = vrot.slane %v2458, 2
      %v2513 = vsel %vm2011, %v2511, %v2512
      %v2514 = vrot.slane %v2459, 2
      %v2515 = vsel %vm2011, %v2512, %v2514
      %v2516 = vrot.slane %v2460, 2
      %v2517 = vrot.slane %v2461, 2
      %v2518 = vsel %vm2011, %v2516, %v2517
      %v2519 = vrot.slane %v2462, 2
      %v2520 = vsel %vm2011, %v2517, %v2519
      %v2521 = vrot.slane %v2463, 2
      %v2522 = vrot.slane %v2464, 2
      %v2523 = vsel %vm2011, %v2521, %v2522
      %v2524 = vrot.slane %v2465, 2
      %v2525 = vsel %vm2011, %v2522, %v2524
      %v2526 = vrot.slane %v2466, 2
      %v2527 = vrot.slane %v2467, 2
      %v2528 = vsel %vm2011, %v2526, %v2527
      %v2529 = vrot.slane %v2468, 2
      %v2530 = vsel %vm2011, %v2527, %v2529
      %v2531 = vrot.slane %v2469, 2
      %v2532 = vrot.slane %v2470, 2
      %v2533 = vsel %vm2011, %v2531, %v2532
      %v2534 = vrot.slane %v2471, 2
      %v2535 = vsel %vm2011, %v2532, %v2534
      %v2552 = vadd.f32 %v2431, %v2498
      %v2553 = vadd.f32 %v2432, %v2500
      %v2554 = vadd.f32 %v2433, %v2503
      %v2555 = vadd.f32 %v2434, %v2505
      %v2556 = vadd.f32 %v2435, %v2508
      %v2557 = vadd.f32 %v2436, %v2510
      %v2558 = vadd.f32 %v2437, %v2513
      %v2559 = vadd.f32 %v2438, %v2515
      %v2560 = vadd.f32 %v2439, %v2518
      %v2561 = vadd.f32 %v2440, %v2520
      %v2562 = vadd.f32 %v2441, %v2523
      %v2563 = vadd.f32 %v2442, %v2525
      %v2564 = vadd.f32 %v2443, %v2528
      %v2565 = vadd.f32 %v2444, %v2530
      %v2566 = vadd.f32 %v2445, %v2533
      %v2567 = vadd.f32 %v2446, %v2535
      %v2568 = vperm.slane %v510, 2
      %v2569 = vmul.f32 %v542, %v2568
      %v2570 = vmul.f32 %v543, %v2568
      %v2571 = vmul.f32 %v544, %v2568
      %v2572 = vmul.f32 %v545, %v2568
      %v2573 = vmul.f32 %v546, %v2568
      %v2574 = vmul.f32 %v547, %v2568
      %v2575 = vmul.f32 %v548, %v2568
      %v2576 = vmul.f32 %v549, %v2568
      %v2577 = vmul.f32 %v550, %v2568
      %v2578 = vmul.f32 %v551, %v2568
      %v2579 = vmul.f32 %v552, %v2568
      %v2580 = vmul.f32 %v553, %v2568
      %v2581 = vmul.f32 %v554, %v2568
      %v2582 = vmul.f32 %v555, %v2568
      %v2583 = vmul.f32 %v556, %v2568
      %v2584 = vmul.f32 %v557, %v2568
      %v2585 = vmul.f32 %v558, %v2568
      %v2586 = vmul.f32 %v559, %v2568
      %v2587 = vmul.f32 %v560, %v2568
      %v2588 = vmul.f32 %v561, %v2568
      %v2589 = vmul.f32 %v562, %v2568
      %v2590 = vmul.f32 %v563, %v2568
      %v2591 = vmul.f32 %v564, %v2568
      %v2592 = vmul.f32 %v565, %v2568
      %v2617 = vrot.slane %v2569, 2
      %v2618 = vrot.slane %v2570, 2
      %v2619 = vsel %vm2011, %v2617, %v2618
      %v2620 = vrot.slane %v2571, 2
      %v2621 = vsel %vm2011, %v2618, %v2620
      %v2622 = vrot.slane %v2572, 2
      %v2623 = vrot.slane %v2573, 2
      %v2624 = vsel %vm2011, %v2622, %v2623
      %v2625 = vrot.slane %v2574, 2
      %v2626 = vsel %vm2011, %v2623, %v2625
      %v2627 = vrot.slane %v2575, 2
      %v2628 = vrot.slane %v2576, 2
      %v2629 = vsel %vm2011, %v2627, %v2628
      %v2630 = vrot.slane %v2577, 2
      %v2631 = vsel %vm2011, %v2628, %v2630
      %v2632 = vrot.slane %v2578, 2
      %v2633 = vrot.slane %v2579, 2
      %v2634 = vsel %vm2011, %v2632, %v2633
      %v2635 = vrot.slane %v2580, 2
      %v2636 = vsel %vm2011, %v2633, %v2635
      %v2637 = vrot.slane %v2581, 2
      %v2638 = vrot.slane %v2582, 2
      %v2639 = vsel %vm2011, %v2637, %v2638
      %v2640 = vrot.slane %v2583, 2
      %v2641 = vsel %vm2011, %v2638, %v2640
      %v2642 = vrot.slane %v2584, 2
      %v2643 = vrot.slane %v2585, 2
      %v2644 = vsel %vm2011, %v2642, %v2643
      %v2645 = vrot.slane %v2586, 2
      %v2646 = vsel %vm2011, %v2643, %v2645
      %v2647 = vrot.slane %v2587, 2
      %v2648 = vrot.slane %v2588, 2
      %v2649 = vsel %vm2011, %v2647, %v2648
      %v2650 = vrot.slane %v2589, 2
      %v2651 = vsel %vm2011, %v2648, %v2650
      %v2652 = vrot.slane %v2590, 2
      %v2653 = vrot.slane %v2591, 2
      %v2654 = vsel %vm2011, %v2652, %v2653
      %v2655 = vrot.slane %v2592, 2
      %v2656 = vsel %vm2011, %v2653, %v2655
      %v2673 = vadd.f32 %v2552, %v2619
      %v2674 = vadd.f32 %v2553, %v2621
      %v2675 = vadd.f32 %v2554, %v2624
      %v2676 = vadd.f32 %v2555, %v2626
      %v2677 = vadd.f32 %v2556, %v2629
      %v2678 = vadd.f32 %v2557, %v2631
      %v2679 = vadd.f32 %v2558, %v2634
      %v2680 = vadd.f32 %v2559, %v2636
      %v2681 = vadd.f32 %v2560, %v2639
      %v2682 = vadd.f32 %v2561, %v2641
      %v2683 = vadd.f32 %v2562, %v2644
      %v2684 = vadd.f32 %v2563, %v2646
      %v2685 = vadd.f32 %v2564, %v2649
      %v2686 = vadd.f32 %v2565, %v2651
      %v2687 = vadd.f32 %v2566, %v2654
      %v2688 = vadd.f32 %v2567, %v2656
      %v2689 = vperm.slane %v512, 2
      %v2690 = vmul.f32 %v545, %v2689
      %v2691 = vmul.f32 %v546, %v2689
      %v2692 = vmul.f32 %v547, %v2689
      %v2693 = vmul.f32 %v548, %v2689
      %v2694 = vmul.f32 %v549, %v2689
      %v2695 = vmul.f32 %v550, %v2689
      %v2696 = vmul.f32 %v551, %v2689
      %v2697 = vmul.f32 %v552, %v2689
      %v2698 = vmul.f32 %v553, %v2689
      %v2699 = vmul.f32 %v554, %v2689
      %v2700 = vmul.f32 %v555, %v2689
      %v2701 = vmul.f32 %v556, %v2689
      %v2702 = vmul.f32 %v557, %v2689
      %v2703 = vmul.f32 %v558, %v2689
      %v2704 = vmul.f32 %v559, %v2689
      %v2705 = vmul.f32 %v560, %v2689
      %v2706 = vmul.f32 %v561, %v2689
      %v2707 = vmul.f32 %v562, %v2689
      %v2708 = vmul.f32 %v563, %v2689
      %v2709 = vmul.f32 %v564, %v2689
      %v2710 = vmul.f32 %v565, %v2689
      %v2711 = vmul.f32 %v566, %v2689
      %v2712 = vmul.f32 %v567, %v2689
      %v2713 = vmul.f32 %v568, %v2689
      %v2738 = vrot.slane %v2690, 2
      %v2739 = vrot.slane %v2691, 2
      %v2740 = vsel %vm2011, %v2738, %v2739
      %v2741 = vrot.slane %v2692, 2
      %v2742 = vsel %vm2011, %v2739, %v2741
      %v2743 = vrot.slane %v2693, 2
      %v2744 = vrot.slane %v2694, 2
      %v2745 = vsel %vm2011, %v2743, %v2744
      %v2746 = vrot.slane %v2695, 2
      %v2747 = vsel %vm2011, %v2744, %v2746
      %v2748 = vrot.slane %v2696, 2
      %v2749 = vrot.slane %v2697, 2
      %v2750 = vsel %vm2011, %v2748, %v2749
      %v2751 = vrot.slane %v2698, 2
      %v2752 = vsel %vm2011, %v2749, %v2751
      %v2753 = vrot.slane %v2699, 2
      %v2754 = vrot.slane %v2700, 2
      %v2755 = vsel %vm2011, %v2753, %v2754
      %v2756 = vrot.slane %v2701, 2
      %v2757 = vsel %vm2011, %v2754, %v2756
      %v2758 = vrot.slane %v2702, 2
      %v2759 = vrot.slane %v2703, 2
      %v2760 = vsel %vm2011, %v2758, %v2759
      %v2761 = vrot.slane %v2704, 2
      %v2762 = vsel %vm2011, %v2759, %v2761
      %v2763 = vrot.slane %v2705, 2
      %v2764 = vrot.slane %v2706, 2
      %v2765 = vsel %vm2011, %v2763, %v2764
      %v2766 = vrot.slane %v2707, 2
      %v2767 = vsel %vm2011, %v2764, %v2766
      %v2768 = vrot.slane %v2708, 2
      %v2769 = vrot.slane %v2709, 2
      %v2770 = vsel %vm2011, %v2768, %v2769
      %v2771 = vrot.slane %v2710, 2
      %v2772 = vsel %vm2011, %v2769, %v2771
      %v2773 = vrot.slane %v2711, 2
      %v2774 = vrot.slane %v2712, 2
      %v2775 = vsel %vm2011, %v2773, %v2774
      %v2776 = vrot.slane %v2713, 2
      %v2777 = vsel %vm2011, %v2774, %v2776
      %v2794 = vadd.f32 %v2673, %v2740
      %v2795 = vadd.f32 %v2674, %v2742
      %v2796 = vadd.f32 %v2675, %v2745
      %v2797 = vadd.f32 %v2676, %v2747
      %v2798 = vadd.f32 %v2677, %v2750
      %v2799 = vadd.f32 %v2678, %v2752
      %v2800 = vadd.f32 %v2679, %v2755
      %v2801 = vadd.f32 %v2680, %v2757
      %v2802 = vadd.f32 %v2681, %v2760
      %v2803 = vadd.f32 %v2682, %v2762
      %v2804 = vadd.f32 %v2683, %v2765
      %v2805 = vadd.f32 %v2684, %v2767
      %v2806 = vadd.f32 %v2685, %v2770
      %v2807 = vadd.f32 %v2686, %v2772
      %v2808 = vadd.f32 %v2687, %v2775
      %v2809 = vadd.f32 %v2688, %v2777
      %v2810 = vperm.slane %v514, 2
      %v2811 = vmul.f32 %v548, %v2810
      %v2812 = vmul.f32 %v549, %v2810
      %v2813 = vmul.f32 %v550, %v2810
      %v2814 = vmul.f32 %v551, %v2810
      %v2815 = vmul.f32 %v552, %v2810
      %v2816 = vmul.f32 %v553, %v2810
      %v2817 = vmul.f32 %v554, %v2810
      %v2818 = vmul.f32 %v555, %v2810
      %v2819 = vmul.f32 %v556, %v2810
      %v2820 = vmul.f32 %v557, %v2810
      %v2821 = vmul.f32 %v558, %v2810
      %v2822 = vmul.f32 %v559, %v2810
      %v2823 = vmul.f32 %v560, %v2810
      %v2824 = vmul.f32 %v561, %v2810
      %v2825 = vmul.f32 %v562, %v2810
      %v2826 = vmul.f32 %v563, %v2810
      %v2827 = vmul.f32 %v564, %v2810
      %v2828 = vmul.f32 %v565, %v2810
      %v2829 = vmul.f32 %v566, %v2810
      %v2830 = vmul.f32 %v567, %v2810
      %v2831 = vmul.f32 %v568, %v2810
      %v2832 = vmul.f32 %v569, %v2810
      %v2833 = vmul.f32 %v570, %v2810
      %v2834 = vmul.f32 %v571, %v2810
      %v2859 = vrot.slane %v2811, 2
      %v2860 = vrot.slane %v2812, 2
      %v2861 = vsel %vm2011, %v2859, %v2860
      %v2862 = vrot.slane %v2813, 2
      %v2863 = vsel %vm2011, %v2860, %v2862
      %v2864 = vrot.slane %v2814, 2
      %v2865 = vrot.slane %v2815, 2
      %v2866 = vsel %vm2011, %v2864, %v2865
      %v2867 = vrot.slane %v2816, 2
      %v2868 = vsel %vm2011, %v2865, %v2867
      %v2869 = vrot.slane %v2817, 2
      %v2870 = vrot.slane %v2818, 2
      %v2871 = vsel %vm2011, %v2869, %v2870
      %v2872 = vrot.slane %v2819, 2
      %v2873 = vsel %vm2011, %v2870, %v2872
      %v2874 = vrot.slane %v2820, 2
      %v2875 = vrot.slane %v2821, 2
      %v2876 = vsel %vm2011, %v2874, %v2875
      %v2877 = vrot.slane %v2822, 2
      %v2878 = vsel %vm2011, %v2875, %v2877
      %v2879 = vrot.slane %v2823, 2
      %v2880 = vrot.slane %v2824, 2
      %v2881 = vsel %vm2011, %v2879, %v2880
      %v2882 = vrot.slane %v2825, 2
      %v2883 = vsel %vm2011, %v2880, %v2882
      %v2884 = vrot.slane %v2826, 2
      %v2885 = vrot.slane %v2827, 2
      %v2886 = vsel %vm2011, %v2884, %v2885
      %v2887 = vrot.slane %v2828, 2
      %v2888 = vsel %vm2011, %v2885, %v2887
      %v2889 = vrot.slane %v2829, 2
      %v2890 = vrot.slane %v2830, 2
      %v2891 = vsel %vm2011, %v2889, %v2890
      %v2892 = vrot.slane %v2831, 2
      %v2893 = vsel %vm2011, %v2890, %v2892
      %v2894 = vrot.slane %v2832, 2
      %v2895 = vrot.slane %v2833, 2
      %v2896 = vsel %vm2011, %v2894, %v2895
      %v2897 = vrot.slane %v2834, 2
      %v2898 = vsel %vm2011, %v2895, %v2897
      %v2915 = vadd.f32 %v2794, %v2861
      %v2916 = vadd.f32 %v2795, %v2863
      %v2917 = vadd.f32 %v2796, %v2866
      %v2918 = vadd.f32 %v2797, %v2868
      %v2919 = vadd.f32 %v2798, %v2871
      %v2920 = vadd.f32 %v2799, %v2873
      %v2921 = vadd.f32 %v2800, %v2876
      %v2922 = vadd.f32 %v2801, %v2878
      %v2923 = vadd.f32 %v2802, %v2881
      %v2924 = vadd.f32 %v2803, %v2883
      %v2925 = vadd.f32 %v2804, %v2886
      %v2926 = vadd.f32 %v2805, %v2888
      %v2927 = vadd.f32 %v2806, %v2891
      %v2928 = vadd.f32 %v2807, %v2893
      %v2929 = vadd.f32 %v2808, %v2896
      %v2930 = vadd.f32 %v2809, %v2898
      %v2931 = vperm.slane %v516, 2
      %v2932 = vmul.f32 %v551, %v2931
      %v2933 = vmul.f32 %v552, %v2931
      %v2934 = vmul.f32 %v553, %v2931
      %v2935 = vmul.f32 %v554, %v2931
      %v2936 = vmul.f32 %v555, %v2931
      %v2937 = vmul.f32 %v556, %v2931
      %v2938 = vmul.f32 %v557, %v2931
      %v2939 = vmul.f32 %v558, %v2931
      %v2940 = vmul.f32 %v559, %v2931
      %v2941 = vmul.f32 %v560, %v2931
      %v2942 = vmul.f32 %v561, %v2931
      %v2943 = vmul.f32 %v562, %v2931
      %v2944 = vmul.f32 %v563, %v2931
      %v2945 = vmul.f32 %v564, %v2931
      %v2946 = vmul.f32 %v565, %v2931
      %v2947 = vmul.f32 %v566, %v2931
      %v2948 = vmul.f32 %v567, %v2931
      %v2949 = vmul.f32 %v568, %v2931
      %v2950 = vmul.f32 %v569, %v2931
      %v2951 = vmul.f32 %v570, %v2931
      %v2952 = vmul.f32 %v571, %v2931
      %v2953 = vmul.f32 %v572, %v2931
      %v2954 = vmul.f32 %v573, %v2931
      %v2955 = vmul.f32 %v574, %v2931
      %v2980 = vrot.slane %v2932, 2
      %v2981 = vrot.slane %v2933, 2
      %v2982 = vsel %vm2011, %v2980, %v2981
      %v2983 = vrot.slane %v2934, 2
      %v2984 = vsel %vm2011, %v2981, %v2983
      %v2985 = vrot.slane %v2935, 2
      %v2986 = vrot.slane %v2936, 2
      %v2987 = vsel %vm2011, %v2985, %v2986
      %v2988 = vrot.slane %v2937, 2
      %v2989 = vsel %vm2011, %v2986, %v2988
      %v2990 = vrot.slane %v2938, 2
      %v2991 = vrot.slane %v2939, 2
      %v2992 = vsel %vm2011, %v2990, %v2991
      %v2993 = vrot.slane %v2940, 2
      %v2994 = vsel %vm2011, %v2991, %v2993
      %v2995 = vrot.slane %v2941, 2
      %v2996 = vrot.slane %v2942, 2
      %v2997 = vsel %vm2011, %v2995, %v2996
      %v2998 = vrot.slane %v2943, 2
      %v2999 = vsel %vm2011, %v2996, %v2998
      %v3000 = vrot.slane %v2944, 2
      %v3001 = vrot.slane %v2945, 2
      %v3002 = vsel %vm2011, %v3000, %v3001
      %v3003 = vrot.slane %v2946, 2
      %v3004 = vsel %vm2011, %v3001, %v3003
      %v3005 = vrot.slane %v2947, 2
      %v3006 = vrot.slane %v2948, 2
      %v3007 = vsel %vm2011, %v3005, %v3006
      %v3008 = vrot.slane %v2949, 2
      %v3009 = vsel %vm2011, %v3006, %v3008
      %v3010 = vrot.slane %v2950, 2
      %v3011 = vrot.slane %v2951, 2
      %v3012 = vsel %vm2011, %v3010, %v3011
      %v3013 = vrot.slane %v2952, 2
      %v3014 = vsel %vm2011, %v3011, %v3013
      %v3015 = vrot.slane %v2953, 2
      %v3016 = vrot.slane %v2954, 2
      %v3017 = vsel %vm2011, %v3015, %v3016
      %v3018 = vrot.slane %v2955, 2
      %v3019 = vsel %vm2011, %v3016, %v3018
      %v3036 = vadd.f32 %v2915, %v2982
      %v3037 = vadd.f32 %v2916, %v2984
      %v3038 = vadd.f32 %v2917, %v2987
      %v3039 = vadd.f32 %v2918, %v2989
      %v3040 = vadd.f32 %v2919, %v2992
      %v3041 = vadd.f32 %v2920, %v2994
      %v3042 = vadd.f32 %v2921, %v2997
      %v3043 = vadd.f32 %v2922, %v2999
      %v3044 = vadd.f32 %v2923, %v3002
      %v3045 = vadd.f32 %v2924, %v3004
      %v3046 = vadd.f32 %v2925, %v3007
      %v3047 = vadd.f32 %v2926, %v3009
      %v3048 = vadd.f32 %v2927, %v3012
      %v3049 = vadd.f32 %v2928, %v3014
      %v3050 = vadd.f32 %v2929, %v3017
      %v3051 = vadd.f32 %v2930, %v3019
      %v3052 = vperm.slane %v500, 3
      %v3053 = vmul.f32 %v527, %v3052
      %v3054 = vmul.f32 %v528, %v3052
      %v3055 = vmul.f32 %v529, %v3052
      %v3056 = vmul.f32 %v530, %v3052
      %v3057 = vmul.f32 %v531, %v3052
      %v3058 = vmul.f32 %v532, %v3052
      %v3059 = vmul.f32 %v533, %v3052
      %v3060 = vmul.f32 %v534, %v3052
      %v3061 = vmul.f32 %v535, %v3052
      %v3062 = vmul.f32 %v536, %v3052
      %v3063 = vmul.f32 %v537, %v3052
      %v3064 = vmul.f32 %v538, %v3052
      %v3065 = vmul.f32 %v539, %v3052
      %v3066 = vmul.f32 %v540, %v3052
      %v3067 = vmul.f32 %v541, %v3052
      %v3068 = vmul.f32 %v542, %v3052
      %v3069 = vmul.f32 %v543, %v3052
      %v3070 = vmul.f32 %v544, %v3052
      %v3071 = vmul.f32 %v545, %v3052
      %v3072 = vmul.f32 %v546, %v3052
      %v3073 = vmul.f32 %v547, %v3052
      %v3074 = vmul.f32 %v548, %v3052
      %v3075 = vmul.f32 %v549, %v3052
      %v3076 = vmul.f32 %v550, %v3052
      %vm3101 = vcmask 1044480
      %v3102 = vrot.slane %v3053, 3
      %v3103 = vrot.slane %v3054, 3
      %v3104 = vsel %vm3101, %v3102, %v3103
      %v3105 = vrot.slane %v3055, 3
      %v3106 = vsel %vm3101, %v3103, %v3105
      %v3107 = vrot.slane %v3056, 3
      %v3108 = vrot.slane %v3057, 3
      %v3109 = vsel %vm3101, %v3107, %v3108
      %v3110 = vrot.slane %v3058, 3
      %v3111 = vsel %vm3101, %v3108, %v3110
      %v3112 = vrot.slane %v3059, 3
      %v3113 = vrot.slane %v3060, 3
      %v3114 = vsel %vm3101, %v3112, %v3113
      %v3115 = vrot.slane %v3061, 3
      %v3116 = vsel %vm3101, %v3113, %v3115
      %v3117 = vrot.slane %v3062, 3
      %v3118 = vrot.slane %v3063, 3
      %v3119 = vsel %vm3101, %v3117, %v3118
      %v3120 = vrot.slane %v3064, 3
      %v3121 = vsel %vm3101, %v3118, %v3120
      %v3122 = vrot.slane %v3065, 3
      %v3123 = vrot.slane %v3066, 3
      %v3124 = vsel %vm3101, %v3122, %v3123
      %v3125 = vrot.slane %v3067, 3
      %v3126 = vsel %vm3101, %v3123, %v3125
      %v3127 = vrot.slane %v3068, 3
      %v3128 = vrot.slane %v3069, 3
      %v3129 = vsel %vm3101, %v3127, %v3128
      %v3130 = vrot.slane %v3070, 3
      %v3131 = vsel %vm3101, %v3128, %v3130
      %v3132 = vrot.slane %v3071, 3
      %v3133 = vrot.slane %v3072, 3
      %v3134 = vsel %vm3101, %v3132, %v3133
      %v3135 = vrot.slane %v3073, 3
      %v3136 = vsel %vm3101, %v3133, %v3135
      %v3137 = vrot.slane %v3074, 3
      %v3138 = vrot.slane %v3075, 3
      %v3139 = vsel %vm3101, %v3137, %v3138
      %v3140 = vrot.slane %v3076, 3
      %v3141 = vsel %vm3101, %v3138, %v3140
      %v3158 = vadd.f32 %v3036, %v3104
      %v3159 = vadd.f32 %v3037, %v3106
      %v3160 = vadd.f32 %v3038, %v3109
      %v3161 = vadd.f32 %v3039, %v3111
      %v3162 = vadd.f32 %v3040, %v3114
      %v3163 = vadd.f32 %v3041, %v3116
      %v3164 = vadd.f32 %v3042, %v3119
      %v3165 = vadd.f32 %v3043, %v3121
      %v3166 = vadd.f32 %v3044, %v3124
      %v3167 = vadd.f32 %v3045, %v3126
      %v3168 = vadd.f32 %v3046, %v3129
      %v3169 = vadd.f32 %v3047, %v3131
      %v3170 = vadd.f32 %v3048, %v3134
      %v3171 = vadd.f32 %v3049, %v3136
      %v3172 = vadd.f32 %v3050, %v3139
      %v3173 = vadd.f32 %v3051, %v3141
      %v3174 = vperm.slane %v502, 3
      %v3175 = vmul.f32 %v530, %v3174
      %v3176 = vmul.f32 %v531, %v3174
      %v3177 = vmul.f32 %v532, %v3174
      %v3178 = vmul.f32 %v533, %v3174
      %v3179 = vmul.f32 %v534, %v3174
      %v3180 = vmul.f32 %v535, %v3174
      %v3181 = vmul.f32 %v536, %v3174
      %v3182 = vmul.f32 %v537, %v3174
      %v3183 = vmul.f32 %v538, %v3174
      %v3184 = vmul.f32 %v539, %v3174
      %v3185 = vmul.f32 %v540, %v3174
      %v3186 = vmul.f32 %v541, %v3174
      %v3187 = vmul.f32 %v542, %v3174
      %v3188 = vmul.f32 %v543, %v3174
      %v3189 = vmul.f32 %v544, %v3174
      %v3190 = vmul.f32 %v545, %v3174
      %v3191 = vmul.f32 %v546, %v3174
      %v3192 = vmul.f32 %v547, %v3174
      %v3193 = vmul.f32 %v548, %v3174
      %v3194 = vmul.f32 %v549, %v3174
      %v3195 = vmul.f32 %v550, %v3174
      %v3196 = vmul.f32 %v551, %v3174
      %v3197 = vmul.f32 %v552, %v3174
      %v3198 = vmul.f32 %v553, %v3174
      %v3223 = vrot.slane %v3175, 3
      %v3224 = vrot.slane %v3176, 3
      %v3225 = vsel %vm3101, %v3223, %v3224
      %v3226 = vrot.slane %v3177, 3
      %v3227 = vsel %vm3101, %v3224, %v3226
      %v3228 = vrot.slane %v3178, 3
      %v3229 = vrot.slane %v3179, 3
      %v3230 = vsel %vm3101, %v3228, %v3229
      %v3231 = vrot.slane %v3180, 3
      %v3232 = vsel %vm3101, %v3229, %v3231
      %v3233 = vrot.slane %v3181, 3
      %v3234 = vrot.slane %v3182, 3
      %v3235 = vsel %vm3101, %v3233, %v3234
      %v3236 = vrot.slane %v3183, 3
      %v3237 = vsel %vm3101, %v3234, %v3236
      %v3238 = vrot.slane %v3184, 3
      %v3239 = vrot.slane %v3185, 3
      %v3240 = vsel %vm3101, %v3238, %v3239
      %v3241 = vrot.slane %v3186, 3
      %v3242 = vsel %vm3101, %v3239, %v3241
      %v3243 = vrot.slane %v3187, 3
      %v3244 = vrot.slane %v3188, 3
      %v3245 = vsel %vm3101, %v3243, %v3244
      %v3246 = vrot.slane %v3189, 3
      %v3247 = vsel %vm3101, %v3244, %v3246
      %v3248 = vrot.slane %v3190, 3
      %v3249 = vrot.slane %v3191, 3
      %v3250 = vsel %vm3101, %v3248, %v3249
      %v3251 = vrot.slane %v3192, 3
      %v3252 = vsel %vm3101, %v3249, %v3251
      %v3253 = vrot.slane %v3193, 3
      %v3254 = vrot.slane %v3194, 3
      %v3255 = vsel %vm3101, %v3253, %v3254
      %v3256 = vrot.slane %v3195, 3
      %v3257 = vsel %vm3101, %v3254, %v3256
      %v3258 = vrot.slane %v3196, 3
      %v3259 = vrot.slane %v3197, 3
      %v3260 = vsel %vm3101, %v3258, %v3259
      %v3261 = vrot.slane %v3198, 3
      %v3262 = vsel %vm3101, %v3259, %v3261
      %v3279 = vadd.f32 %v3158, %v3225
      %v3280 = vadd.f32 %v3159, %v3227
      %v3281 = vadd.f32 %v3160, %v3230
      %v3282 = vadd.f32 %v3161, %v3232
      %v3283 = vadd.f32 %v3162, %v3235
      %v3284 = vadd.f32 %v3163, %v3237
      %v3285 = vadd.f32 %v3164, %v3240
      %v3286 = vadd.f32 %v3165, %v3242
      %v3287 = vadd.f32 %v3166, %v3245
      %v3288 = vadd.f32 %v3167, %v3247
      %v3289 = vadd.f32 %v3168, %v3250
      %v3290 = vadd.f32 %v3169, %v3252
      %v3291 = vadd.f32 %v3170, %v3255
      %v3292 = vadd.f32 %v3171, %v3257
      %v3293 = vadd.f32 %v3172, %v3260
      %v3294 = vadd.f32 %v3173, %v3262
      %v3295 = vperm.slane %v504, 3
      %v3296 = vmul.f32 %v533, %v3295
      %v3297 = vmul.f32 %v534, %v3295
      %v3298 = vmul.f32 %v535, %v3295
      %v3299 = vmul.f32 %v536, %v3295
      %v3300 = vmul.f32 %v537, %v3295
      %v3301 = vmul.f32 %v538, %v3295
      %v3302 = vmul.f32 %v539, %v3295
      %v3303 = vmul.f32 %v540, %v3295
      %v3304 = vmul.f32 %v541, %v3295
      %v3305 = vmul.f32 %v542, %v3295
      %v3306 = vmul.f32 %v543, %v3295
      %v3307 = vmul.f32 %v544, %v3295
      %v3308 = vmul.f32 %v545, %v3295
      %v3309 = vmul.f32 %v546, %v3295
      %v3310 = vmul.f32 %v547, %v3295
      %v3311 = vmul.f32 %v548, %v3295
      %v3312 = vmul.f32 %v549, %v3295
      %v3313 = vmul.f32 %v550, %v3295
      %v3314 = vmul.f32 %v551, %v3295
      %v3315 = vmul.f32 %v552, %v3295
      %v3316 = vmul.f32 %v553, %v3295
      %v3317 = vmul.f32 %v554, %v3295
      %v3318 = vmul.f32 %v555, %v3295
      %v3319 = vmul.f32 %v556, %v3295
      %v3344 = vrot.slane %v3296, 3
      %v3345 = vrot.slane %v3297, 3
      %v3346 = vsel %vm3101, %v3344, %v3345
      %v3347 = vrot.slane %v3298, 3
      %v3348 = vsel %vm3101, %v3345, %v3347
      %v3349 = vrot.slane %v3299, 3
      %v3350 = vrot.slane %v3300, 3
      %v3351 = vsel %vm3101, %v3349, %v3350
      %v3352 = vrot.slane %v3301, 3
      %v3353 = vsel %vm3101, %v3350, %v3352
      %v3354 = vrot.slane %v3302, 3
      %v3355 = vrot.slane %v3303, 3
      %v3356 = vsel %vm3101, %v3354, %v3355
      %v3357 = vrot.slane %v3304, 3
      %v3358 = vsel %vm3101, %v3355, %v3357
      %v3359 = vrot.slane %v3305, 3
      %v3360 = vrot.slane %v3306, 3
      %v3361 = vsel %vm3101, %v3359, %v3360
      %v3362 = vrot.slane %v3307, 3
      %v3363 = vsel %vm3101, %v3360, %v3362
      %v3364 = vrot.slane %v3308, 3
      %v3365 = vrot.slane %v3309, 3
      %v3366 = vsel %vm3101, %v3364, %v3365
      %v3367 = vrot.slane %v3310, 3
      %v3368 = vsel %vm3101, %v3365, %v3367
      %v3369 = vrot.slane %v3311, 3
      %v3370 = vrot.slane %v3312, 3
      %v3371 = vsel %vm3101, %v3369, %v3370
      %v3372 = vrot.slane %v3313, 3
      %v3373 = vsel %vm3101, %v3370, %v3372
      %v3374 = vrot.slane %v3314, 3
      %v3375 = vrot.slane %v3315, 3
      %v3376 = vsel %vm3101, %v3374, %v3375
      %v3377 = vrot.slane %v3316, 3
      %v3378 = vsel %vm3101, %v3375, %v3377
      %v3379 = vrot.slane %v3317, 3
      %v3380 = vrot.slane %v3318, 3
      %v3381 = vsel %vm3101, %v3379, %v3380
      %v3382 = vrot.slane %v3319, 3
      %v3383 = vsel %vm3101, %v3380, %v3382
      %v3400 = vadd.f32 %v3279, %v3346
      %v3401 = vadd.f32 %v3280, %v3348
      %v3402 = vadd.f32 %v3281, %v3351
      %v3403 = vadd.f32 %v3282, %v3353
      %v3404 = vadd.f32 %v3283, %v3356
      %v3405 = vadd.f32 %v3284, %v3358
      %v3406 = vadd.f32 %v3285, %v3361
      %v3407 = vadd.f32 %v3286, %v3363
      %v3408 = vadd.f32 %v3287, %v3366
      %v3409 = vadd.f32 %v3288, %v3368
      %v3410 = vadd.f32 %v3289, %v3371
      %v3411 = vadd.f32 %v3290, %v3373
      %v3412 = vadd.f32 %v3291, %v3376
      %v3413 = vadd.f32 %v3292, %v3378
      %v3414 = vadd.f32 %v3293, %v3381
      %v3415 = vadd.f32 %v3294, %v3383
      %v3416 = vperm.slane %v506, 3
      %v3417 = vmul.f32 %v536, %v3416
      %v3418 = vmul.f32 %v537, %v3416
      %v3419 = vmul.f32 %v538, %v3416
      %v3420 = vmul.f32 %v539, %v3416
      %v3421 = vmul.f32 %v540, %v3416
      %v3422 = vmul.f32 %v541, %v3416
      %v3423 = vmul.f32 %v542, %v3416
      %v3424 = vmul.f32 %v543, %v3416
      %v3425 = vmul.f32 %v544, %v3416
      %v3426 = vmul.f32 %v545, %v3416
      %v3427 = vmul.f32 %v546, %v3416
      %v3428 = vmul.f32 %v547, %v3416
      %v3429 = vmul.f32 %v548, %v3416
      %v3430 = vmul.f32 %v549, %v3416
      %v3431 = vmul.f32 %v550, %v3416
      %v3432 = vmul.f32 %v551, %v3416
      %v3433 = vmul.f32 %v552, %v3416
      %v3434 = vmul.f32 %v553, %v3416
      %v3435 = vmul.f32 %v554, %v3416
      %v3436 = vmul.f32 %v555, %v3416
      %v3437 = vmul.f32 %v556, %v3416
      %v3438 = vmul.f32 %v557, %v3416
      %v3439 = vmul.f32 %v558, %v3416
      %v3440 = vmul.f32 %v559, %v3416
      %v3465 = vrot.slane %v3417, 3
      %v3466 = vrot.slane %v3418, 3
      %v3467 = vsel %vm3101, %v3465, %v3466
      %v3468 = vrot.slane %v3419, 3
      %v3469 = vsel %vm3101, %v3466, %v3468
      %v3470 = vrot.slane %v3420, 3
      %v3471 = vrot.slane %v3421, 3
      %v3472 = vsel %vm3101, %v3470, %v3471
      %v3473 = vrot.slane %v3422, 3
      %v3474 = vsel %vm3101, %v3471, %v3473
      %v3475 = vrot.slane %v3423, 3
      %v3476 = vrot.slane %v3424, 3
      %v3477 = vsel %vm3101, %v3475, %v3476
      %v3478 = vrot.slane %v3425, 3
      %v3479 = vsel %vm3101, %v3476, %v3478
      %v3480 = vrot.slane %v3426, 3
      %v3481 = vrot.slane %v3427, 3
      %v3482 = vsel %vm3101, %v3480, %v3481
      %v3483 = vrot.slane %v3428, 3
      %v3484 = vsel %vm3101, %v3481, %v3483
      %v3485 = vrot.slane %v3429, 3
      %v3486 = vrot.slane %v3430, 3
      %v3487 = vsel %vm3101, %v3485, %v3486
      %v3488 = vrot.slane %v3431, 3
      %v3489 = vsel %vm3101, %v3486, %v3488
      %v3490 = vrot.slane %v3432, 3
      %v3491 = vrot.slane %v3433, 3
      %v3492 = vsel %vm3101, %v3490, %v3491
      %v3493 = vrot.slane %v3434, 3
      %v3494 = vsel %vm3101, %v3491, %v3493
      %v3495 = vrot.slane %v3435, 3
      %v3496 = vrot.slane %v3436, 3
      %v3497 = vsel %vm3101, %v3495, %v3496
      %v3498 = vrot.slane %v3437, 3
      %v3499 = vsel %vm3101, %v3496, %v3498
      %v3500 = vrot.slane %v3438, 3
      %v3501 = vrot.slane %v3439, 3
      %v3502 = vsel %vm3101, %v3500, %v3501
      %v3503 = vrot.slane %v3440, 3
      %v3504 = vsel %vm3101, %v3501, %v3503
      %v3521 = vadd.f32 %v3400, %v3467
      %v3522 = vadd.f32 %v3401, %v3469
      %v3523 = vadd.f32 %v3402, %v3472
      %v3524 = vadd.f32 %v3403, %v3474
      %v3525 = vadd.f32 %v3404, %v3477
      %v3526 = vadd.f32 %v3405, %v3479
      %v3527 = vadd.f32 %v3406, %v3482
      %v3528 = vadd.f32 %v3407, %v3484
      %v3529 = vadd.f32 %v3408, %v3487
      %v3530 = vadd.f32 %v3409, %v3489
      %v3531 = vadd.f32 %v3410, %v3492
      %v3532 = vadd.f32 %v3411, %v3494
      %v3533 = vadd.f32 %v3412, %v3497
      %v3534 = vadd.f32 %v3413, %v3499
      %v3535 = vadd.f32 %v3414, %v3502
      %v3536 = vadd.f32 %v3415, %v3504
      %v3537 = vperm.slane %v508, 3
      %v3538 = vmul.f32 %v539, %v3537
      %v3539 = vmul.f32 %v540, %v3537
      %v3540 = vmul.f32 %v541, %v3537
      %v3541 = vmul.f32 %v542, %v3537
      %v3542 = vmul.f32 %v543, %v3537
      %v3543 = vmul.f32 %v544, %v3537
      %v3544 = vmul.f32 %v545, %v3537
      %v3545 = vmul.f32 %v546, %v3537
      %v3546 = vmul.f32 %v547, %v3537
      %v3547 = vmul.f32 %v548, %v3537
      %v3548 = vmul.f32 %v549, %v3537
      %v3549 = vmul.f32 %v550, %v3537
      %v3550 = vmul.f32 %v551, %v3537
      %v3551 = vmul.f32 %v552, %v3537
      %v3552 = vmul.f32 %v553, %v3537
      %v3553 = vmul.f32 %v554, %v3537
      %v3554 = vmul.f32 %v555, %v3537
      %v3555 = vmul.f32 %v556, %v3537
      %v3556 = vmul.f32 %v557, %v3537
      %v3557 = vmul.f32 %v558, %v3537
      %v3558 = vmul.f32 %v559, %v3537
      %v3559 = vmul.f32 %v560, %v3537
      %v3560 = vmul.f32 %v561, %v3537
      %v3561 = vmul.f32 %v562, %v3537
      %v3586 = vrot.slane %v3538, 3
      %v3587 = vrot.slane %v3539, 3
      %v3588 = vsel %vm3101, %v3586, %v3587
      %v3589 = vrot.slane %v3540, 3
      %v3590 = vsel %vm3101, %v3587, %v3589
      %v3591 = vrot.slane %v3541, 3
      %v3592 = vrot.slane %v3542, 3
      %v3593 = vsel %vm3101, %v3591, %v3592
      %v3594 = vrot.slane %v3543, 3
      %v3595 = vsel %vm3101, %v3592, %v3594
      %v3596 = vrot.slane %v3544, 3
      %v3597 = vrot.slane %v3545, 3
      %v3598 = vsel %vm3101, %v3596, %v3597
      %v3599 = vrot.slane %v3546, 3
      %v3600 = vsel %vm3101, %v3597, %v3599
      %v3601 = vrot.slane %v3547, 3
      %v3602 = vrot.slane %v3548, 3
      %v3603 = vsel %vm3101, %v3601, %v3602
      %v3604 = vrot.slane %v3549, 3
      %v3605 = vsel %vm3101, %v3602, %v3604
      %v3606 = vrot.slane %v3550, 3
      %v3607 = vrot.slane %v3551, 3
      %v3608 = vsel %vm3101, %v3606, %v3607
      %v3609 = vrot.slane %v3552, 3
      %v3610 = vsel %vm3101, %v3607, %v3609
      %v3611 = vrot.slane %v3553, 3
      %v3612 = vrot.slane %v3554, 3
      %v3613 = vsel %vm3101, %v3611, %v3612
      %v3614 = vrot.slane %v3555, 3
      %v3615 = vsel %vm3101, %v3612, %v3614
      %v3616 = vrot.slane %v3556, 3
      %v3617 = vrot.slane %v3557, 3
      %v3618 = vsel %vm3101, %v3616, %v3617
      %v3619 = vrot.slane %v3558, 3
      %v3620 = vsel %vm3101, %v3617, %v3619
      %v3621 = vrot.slane %v3559, 3
      %v3622 = vrot.slane %v3560, 3
      %v3623 = vsel %vm3101, %v3621, %v3622
      %v3624 = vrot.slane %v3561, 3
      %v3625 = vsel %vm3101, %v3622, %v3624
      %v3642 = vadd.f32 %v3521, %v3588
      %v3643 = vadd.f32 %v3522, %v3590
      %v3644 = vadd.f32 %v3523, %v3593
      %v3645 = vadd.f32 %v3524, %v3595
      %v3646 = vadd.f32 %v3525, %v3598
      %v3647 = vadd.f32 %v3526, %v3600
      %v3648 = vadd.f32 %v3527, %v3603
      %v3649 = vadd.f32 %v3528, %v3605
      %v3650 = vadd.f32 %v3529, %v3608
      %v3651 = vadd.f32 %v3530, %v3610
      %v3652 = vadd.f32 %v3531, %v3613
      %v3653 = vadd.f32 %v3532, %v3615
      %v3654 = vadd.f32 %v3533, %v3618
      %v3655 = vadd.f32 %v3534, %v3620
      %v3656 = vadd.f32 %v3535, %v3623
      %v3657 = vadd.f32 %v3536, %v3625
      %v3658 = vperm.slane %v510, 3
      %v3659 = vmul.f32 %v542, %v3658
      %v3660 = vmul.f32 %v543, %v3658
      %v3661 = vmul.f32 %v544, %v3658
      %v3662 = vmul.f32 %v545, %v3658
      %v3663 = vmul.f32 %v546, %v3658
      %v3664 = vmul.f32 %v547, %v3658
      %v3665 = vmul.f32 %v548, %v3658
      %v3666 = vmul.f32 %v549, %v3658
      %v3667 = vmul.f32 %v550, %v3658
      %v3668 = vmul.f32 %v551, %v3658
      %v3669 = vmul.f32 %v552, %v3658
      %v3670 = vmul.f32 %v553, %v3658
      %v3671 = vmul.f32 %v554, %v3658
      %v3672 = vmul.f32 %v555, %v3658
      %v3673 = vmul.f32 %v556, %v3658
      %v3674 = vmul.f32 %v557, %v3658
      %v3675 = vmul.f32 %v558, %v3658
      %v3676 = vmul.f32 %v559, %v3658
      %v3677 = vmul.f32 %v560, %v3658
      %v3678 = vmul.f32 %v561, %v3658
      %v3679 = vmul.f32 %v562, %v3658
      %v3680 = vmul.f32 %v563, %v3658
      %v3681 = vmul.f32 %v564, %v3658
      %v3682 = vmul.f32 %v565, %v3658
      %v3707 = vrot.slane %v3659, 3
      %v3708 = vrot.slane %v3660, 3
      %v3709 = vsel %vm3101, %v3707, %v3708
      %v3710 = vrot.slane %v3661, 3
      %v3711 = vsel %vm3101, %v3708, %v3710
      %v3712 = vrot.slane %v3662, 3
      %v3713 = vrot.slane %v3663, 3
      %v3714 = vsel %vm3101, %v3712, %v3713
      %v3715 = vrot.slane %v3664, 3
      %v3716 = vsel %vm3101, %v3713, %v3715
      %v3717 = vrot.slane %v3665, 3
      %v3718 = vrot.slane %v3666, 3
      %v3719 = vsel %vm3101, %v3717, %v3718
      %v3720 = vrot.slane %v3667, 3
      %v3721 = vsel %vm3101, %v3718, %v3720
      %v3722 = vrot.slane %v3668, 3
      %v3723 = vrot.slane %v3669, 3
      %v3724 = vsel %vm3101, %v3722, %v3723
      %v3725 = vrot.slane %v3670, 3
      %v3726 = vsel %vm3101, %v3723, %v3725
      %v3727 = vrot.slane %v3671, 3
      %v3728 = vrot.slane %v3672, 3
      %v3729 = vsel %vm3101, %v3727, %v3728
      %v3730 = vrot.slane %v3673, 3
      %v3731 = vsel %vm3101, %v3728, %v3730
      %v3732 = vrot.slane %v3674, 3
      %v3733 = vrot.slane %v3675, 3
      %v3734 = vsel %vm3101, %v3732, %v3733
      %v3735 = vrot.slane %v3676, 3
      %v3736 = vsel %vm3101, %v3733, %v3735
      %v3737 = vrot.slane %v3677, 3
      %v3738 = vrot.slane %v3678, 3
      %v3739 = vsel %vm3101, %v3737, %v3738
      %v3740 = vrot.slane %v3679, 3
      %v3741 = vsel %vm3101, %v3738, %v3740
      %v3742 = vrot.slane %v3680, 3
      %v3743 = vrot.slane %v3681, 3
      %v3744 = vsel %vm3101, %v3742, %v3743
      %v3745 = vrot.slane %v3682, 3
      %v3746 = vsel %vm3101, %v3743, %v3745
      %v3763 = vadd.f32 %v3642, %v3709
      %v3764 = vadd.f32 %v3643, %v3711
      %v3765 = vadd.f32 %v3644, %v3714
      %v3766 = vadd.f32 %v3645, %v3716
      %v3767 = vadd.f32 %v3646, %v3719
      %v3768 = vadd.f32 %v3647, %v3721
      %v3769 = vadd.f32 %v3648, %v3724
      %v3770 = vadd.f32 %v3649, %v3726
      %v3771 = vadd.f32 %v3650, %v3729
      %v3772 = vadd.f32 %v3651, %v3731
      %v3773 = vadd.f32 %v3652, %v3734
      %v3774 = vadd.f32 %v3653, %v3736
      %v3775 = vadd.f32 %v3654, %v3739
      %v3776 = vadd.f32 %v3655, %v3741
      %v3777 = vadd.f32 %v3656, %v3744
      %v3778 = vadd.f32 %v3657, %v3746
      %v3779 = vperm.slane %v512, 3
      %v3780 = vmul.f32 %v545, %v3779
      %v3781 = vmul.f32 %v546, %v3779
      %v3782 = vmul.f32 %v547, %v3779
      %v3783 = vmul.f32 %v548, %v3779
      %v3784 = vmul.f32 %v549, %v3779
      %v3785 = vmul.f32 %v550, %v3779
      %v3786 = vmul.f32 %v551, %v3779
      %v3787 = vmul.f32 %v552, %v3779
      %v3788 = vmul.f32 %v553, %v3779
      %v3789 = vmul.f32 %v554, %v3779
      %v3790 = vmul.f32 %v555, %v3779
      %v3791 = vmul.f32 %v556, %v3779
      %v3792 = vmul.f32 %v557, %v3779
      %v3793 = vmul.f32 %v558, %v3779
      %v3794 = vmul.f32 %v559, %v3779
      %v3795 = vmul.f32 %v560, %v3779
      %v3796 = vmul.f32 %v561, %v3779
      %v3797 = vmul.f32 %v562, %v3779
      %v3798 = vmul.f32 %v563, %v3779
      %v3799 = vmul.f32 %v564, %v3779
      %v3800 = vmul.f32 %v565, %v3779
      %v3801 = vmul.f32 %v566, %v3779
      %v3802 = vmul.f32 %v567, %v3779
      %v3803 = vmul.f32 %v568, %v3779
      %v3828 = vrot.slane %v3780, 3
      %v3829 = vrot.slane %v3781, 3
      %v3830 = vsel %vm3101, %v3828, %v3829
      %v3831 = vrot.slane %v3782, 3
      %v3832 = vsel %vm3101, %v3829, %v3831
      %v3833 = vrot.slane %v3783, 3
      %v3834 = vrot.slane %v3784, 3
      %v3835 = vsel %vm3101, %v3833, %v3834
      %v3836 = vrot.slane %v3785, 3
      %v3837 = vsel %vm3101, %v3834, %v3836
      %v3838 = vrot.slane %v3786, 3
      %v3839 = vrot.slane %v3787, 3
      %v3840 = vsel %vm3101, %v3838, %v3839
      %v3841 = vrot.slane %v3788, 3
      %v3842 = vsel %vm3101, %v3839, %v3841
      %v3843 = vrot.slane %v3789, 3
      %v3844 = vrot.slane %v3790, 3
      %v3845 = vsel %vm3101, %v3843, %v3844
      %v3846 = vrot.slane %v3791, 3
      %v3847 = vsel %vm3101, %v3844, %v3846
      %v3848 = vrot.slane %v3792, 3
      %v3849 = vrot.slane %v3793, 3
      %v3850 = vsel %vm3101, %v3848, %v3849
      %v3851 = vrot.slane %v3794, 3
      %v3852 = vsel %vm3101, %v3849, %v3851
      %v3853 = vrot.slane %v3795, 3
      %v3854 = vrot.slane %v3796, 3
      %v3855 = vsel %vm3101, %v3853, %v3854
      %v3856 = vrot.slane %v3797, 3
      %v3857 = vsel %vm3101, %v3854, %v3856
      %v3858 = vrot.slane %v3798, 3
      %v3859 = vrot.slane %v3799, 3
      %v3860 = vsel %vm3101, %v3858, %v3859
      %v3861 = vrot.slane %v3800, 3
      %v3862 = vsel %vm3101, %v3859, %v3861
      %v3863 = vrot.slane %v3801, 3
      %v3864 = vrot.slane %v3802, 3
      %v3865 = vsel %vm3101, %v3863, %v3864
      %v3866 = vrot.slane %v3803, 3
      %v3867 = vsel %vm3101, %v3864, %v3866
      %v3884 = vadd.f32 %v3763, %v3830
      %v3885 = vadd.f32 %v3764, %v3832
      %v3886 = vadd.f32 %v3765, %v3835
      %v3887 = vadd.f32 %v3766, %v3837
      %v3888 = vadd.f32 %v3767, %v3840
      %v3889 = vadd.f32 %v3768, %v3842
      %v3890 = vadd.f32 %v3769, %v3845
      %v3891 = vadd.f32 %v3770, %v3847
      %v3892 = vadd.f32 %v3771, %v3850
      %v3893 = vadd.f32 %v3772, %v3852
      %v3894 = vadd.f32 %v3773, %v3855
      %v3895 = vadd.f32 %v3774, %v3857
      %v3896 = vadd.f32 %v3775, %v3860
      %v3897 = vadd.f32 %v3776, %v3862
      %v3898 = vadd.f32 %v3777, %v3865
      %v3899 = vadd.f32 %v3778, %v3867
      %v3900 = vperm.slane %v514, 3
      %v3901 = vmul.f32 %v548, %v3900
      %v3902 = vmul.f32 %v549, %v3900
      %v3903 = vmul.f32 %v550, %v3900
      %v3904 = vmul.f32 %v551, %v3900
      %v3905 = vmul.f32 %v552, %v3900
      %v3906 = vmul.f32 %v553, %v3900
      %v3907 = vmul.f32 %v554, %v3900
      %v3908 = vmul.f32 %v555, %v3900
      %v3909 = vmul.f32 %v556, %v3900
      %v3910 = vmul.f32 %v557, %v3900
      %v3911 = vmul.f32 %v558, %v3900
      %v3912 = vmul.f32 %v559, %v3900
      %v3913 = vmul.f32 %v560, %v3900
      %v3914 = vmul.f32 %v561, %v3900
      %v3915 = vmul.f32 %v562, %v3900
      %v3916 = vmul.f32 %v563, %v3900
      %v3917 = vmul.f32 %v564, %v3900
      %v3918 = vmul.f32 %v565, %v3900
      %v3919 = vmul.f32 %v566, %v3900
      %v3920 = vmul.f32 %v567, %v3900
      %v3921 = vmul.f32 %v568, %v3900
      %v3922 = vmul.f32 %v569, %v3900
      %v3923 = vmul.f32 %v570, %v3900
      %v3924 = vmul.f32 %v571, %v3900
      %v3949 = vrot.slane %v3901, 3
      %v3950 = vrot.slane %v3902, 3
      %v3951 = vsel %vm3101, %v3949, %v3950
      %v3952 = vrot.slane %v3903, 3
      %v3953 = vsel %vm3101, %v3950, %v3952
      %v3954 = vrot.slane %v3904, 3
      %v3955 = vrot.slane %v3905, 3
      %v3956 = vsel %vm3101, %v3954, %v3955
      %v3957 = vrot.slane %v3906, 3
      %v3958 = vsel %vm3101, %v3955, %v3957
      %v3959 = vrot.slane %v3907, 3
      %v3960 = vrot.slane %v3908, 3
      %v3961 = vsel %vm3101, %v3959, %v3960
      %v3962 = vrot.slane %v3909, 3
      %v3963 = vsel %vm3101, %v3960, %v3962
      %v3964 = vrot.slane %v3910, 3
      %v3965 = vrot.slane %v3911, 3
      %v3966 = vsel %vm3101, %v3964, %v3965
      %v3967 = vrot.slane %v3912, 3
      %v3968 = vsel %vm3101, %v3965, %v3967
      %v3969 = vrot.slane %v3913, 3
      %v3970 = vrot.slane %v3914, 3
      %v3971 = vsel %vm3101, %v3969, %v3970
      %v3972 = vrot.slane %v3915, 3
      %v3973 = vsel %vm3101, %v3970, %v3972
      %v3974 = vrot.slane %v3916, 3
      %v3975 = vrot.slane %v3917, 3
      %v3976 = vsel %vm3101, %v3974, %v3975
      %v3977 = vrot.slane %v3918, 3
      %v3978 = vsel %vm3101, %v3975, %v3977
      %v3979 = vrot.slane %v3919, 3
      %v3980 = vrot.slane %v3920, 3
      %v3981 = vsel %vm3101, %v3979, %v3980
      %v3982 = vrot.slane %v3921, 3
      %v3983 = vsel %vm3101, %v3980, %v3982
      %v3984 = vrot.slane %v3922, 3
      %v3985 = vrot.slane %v3923, 3
      %v3986 = vsel %vm3101, %v3984, %v3985
      %v3987 = vrot.slane %v3924, 3
      %v3988 = vsel %vm3101, %v3985, %v3987
      %v4005 = vadd.f32 %v3884, %v3951
      %v4006 = vadd.f32 %v3885, %v3953
      %v4007 = vadd.f32 %v3886, %v3956
      %v4008 = vadd.f32 %v3887, %v3958
      %v4009 = vadd.f32 %v3888, %v3961
      %v4010 = vadd.f32 %v3889, %v3963
      %v4011 = vadd.f32 %v3890, %v3966
      %v4012 = vadd.f32 %v3891, %v3968
      %v4013 = vadd.f32 %v3892, %v3971
      %v4014 = vadd.f32 %v3893, %v3973
      %v4015 = vadd.f32 %v3894, %v3976
      %v4016 = vadd.f32 %v3895, %v3978
      %v4017 = vadd.f32 %v3896, %v3981
      %v4018 = vadd.f32 %v3897, %v3983
      %v4019 = vadd.f32 %v3898, %v3986
      %v4020 = vadd.f32 %v3899, %v3988
      %v4021 = vperm.slane %v516, 3
      %v4022 = vmul.f32 %v551, %v4021
      %v4023 = vmul.f32 %v552, %v4021
      %v4024 = vmul.f32 %v553, %v4021
      %v4025 = vmul.f32 %v554, %v4021
      %v4026 = vmul.f32 %v555, %v4021
      %v4027 = vmul.f32 %v556, %v4021
      %v4028 = vmul.f32 %v557, %v4021
      %v4029 = vmul.f32 %v558, %v4021
      %v4030 = vmul.f32 %v559, %v4021
      %v4031 = vmul.f32 %v560, %v4021
      %v4032 = vmul.f32 %v561, %v4021
      %v4033 = vmul.f32 %v562, %v4021
      %v4034 = vmul.f32 %v563, %v4021
      %v4035 = vmul.f32 %v564, %v4021
      %v4036 = vmul.f32 %v565, %v4021
      %v4037 = vmul.f32 %v566, %v4021
      %v4038 = vmul.f32 %v567, %v4021
      %v4039 = vmul.f32 %v568, %v4021
      %v4040 = vmul.f32 %v569, %v4021
      %v4041 = vmul.f32 %v570, %v4021
      %v4042 = vmul.f32 %v571, %v4021
      %v4043 = vmul.f32 %v572, %v4021
      %v4044 = vmul.f32 %v573, %v4021
      %v4045 = vmul.f32 %v574, %v4021
      %v4070 = vrot.slane %v4022, 3
      %v4071 = vrot.slane %v4023, 3
      %v4072 = vsel %vm3101, %v4070, %v4071
      %v4073 = vrot.slane %v4024, 3
      %v4074 = vsel %vm3101, %v4071, %v4073
      %v4075 = vrot.slane %v4025, 3
      %v4076 = vrot.slane %v4026, 3
      %v4077 = vsel %vm3101, %v4075, %v4076
      %v4078 = vrot.slane %v4027, 3
      %v4079 = vsel %vm3101, %v4076, %v4078
      %v4080 = vrot.slane %v4028, 3
      %v4081 = vrot.slane %v4029, 3
      %v4082 = vsel %vm3101, %v4080, %v4081
      %v4083 = vrot.slane %v4030, 3
      %v4084 = vsel %vm3101, %v4081, %v4083
      %v4085 = vrot.slane %v4031, 3
      %v4086 = vrot.slane %v4032, 3
      %v4087 = vsel %vm3101, %v4085, %v4086
      %v4088 = vrot.slane %v4033, 3
      %v4089 = vsel %vm3101, %v4086, %v4088
      %v4090 = vrot.slane %v4034, 3
      %v4091 = vrot.slane %v4035, 3
      %v4092 = vsel %vm3101, %v4090, %v4091
      %v4093 = vrot.slane %v4036, 3
      %v4094 = vsel %vm3101, %v4091, %v4093
      %v4095 = vrot.slane %v4037, 3
      %v4096 = vrot.slane %v4038, 3
      %v4097 = vsel %vm3101, %v4095, %v4096
      %v4098 = vrot.slane %v4039, 3
      %v4099 = vsel %vm3101, %v4096, %v4098
      %v4100 = vrot.slane %v4040, 3
      %v4101 = vrot.slane %v4041, 3
      %v4102 = vsel %vm3101, %v4100, %v4101
      %v4103 = vrot.slane %v4042, 3
      %v4104 = vsel %vm3101, %v4101, %v4103
      %v4105 = vrot.slane %v4043, 3
      %v4106 = vrot.slane %v4044, 3
      %v4107 = vsel %vm3101, %v4105, %v4106
      %v4108 = vrot.slane %v4045, 3
      %v4109 = vsel %vm3101, %v4106, %v4108
      %v4126 = vadd.f32 %v4005, %v4072
      %v4127 = vadd.f32 %v4006, %v4074
      %v4128 = vadd.f32 %v4007, %v4077
      %v4129 = vadd.f32 %v4008, %v4079
      %v4130 = vadd.f32 %v4009, %v4082
      %v4131 = vadd.f32 %v4010, %v4084
      %v4132 = vadd.f32 %v4011, %v4087
      %v4133 = vadd.f32 %v4012, %v4089
      %v4134 = vadd.f32 %v4013, %v4092
      %v4135 = vadd.f32 %v4014, %v4094
      %v4136 = vadd.f32 %v4015, %v4097
      %v4137 = vadd.f32 %v4016, %v4099
      %v4138 = vadd.f32 %v4017, %v4102
      %v4139 = vadd.f32 %v4018, %v4104
      %v4140 = vadd.f32 %v4019, %v4107
      %v4141 = vadd.f32 %v4020, %v4109
      %v4142 = vperm.slane %v500, 4
      %v4143 = vmul.f32 %v527, %v4142
      %v4144 = vmul.f32 %v528, %v4142
      %v4145 = vmul.f32 %v529, %v4142
      %v4146 = vmul.f32 %v530, %v4142
      %v4147 = vmul.f32 %v531, %v4142
      %v4148 = vmul.f32 %v532, %v4142
      %v4149 = vmul.f32 %v533, %v4142
      %v4150 = vmul.f32 %v534, %v4142
      %v4151 = vmul.f32 %v535, %v4142
      %v4152 = vmul.f32 %v536, %v4142
      %v4153 = vmul.f32 %v537, %v4142
      %v4154 = vmul.f32 %v538, %v4142
      %v4155 = vmul.f32 %v539, %v4142
      %v4156 = vmul.f32 %v540, %v4142
      %v4157 = vmul.f32 %v541, %v4142
      %v4158 = vmul.f32 %v542, %v4142
      %v4159 = vmul.f32 %v543, %v4142
      %v4160 = vmul.f32 %v544, %v4142
      %v4161 = vmul.f32 %v545, %v4142
      %v4162 = vmul.f32 %v546, %v4142
      %v4163 = vmul.f32 %v547, %v4142
      %v4164 = vmul.f32 %v548, %v4142
      %v4165 = vmul.f32 %v549, %v4142
      %v4166 = vmul.f32 %v550, %v4142
      %vm4191 = vcmask 1043456
      %v4192 = vrot.slane %v4143, 4
      %v4193 = vrot.slane %v4144, 4
      %v4194 = vsel %vm4191, %v4192, %v4193
      %v4195 = vrot.slane %v4145, 4
      %v4196 = vsel %vm4191, %v4193, %v4195
      %v4197 = vrot.slane %v4146, 4
      %v4198 = vrot.slane %v4147, 4
      %v4199 = vsel %vm4191, %v4197, %v4198
      %v4200 = vrot.slane %v4148, 4
      %v4201 = vsel %vm4191, %v4198, %v4200
      %v4202 = vrot.slane %v4149, 4
      %v4203 = vrot.slane %v4150, 4
      %v4204 = vsel %vm4191, %v4202, %v4203
      %v4205 = vrot.slane %v4151, 4
      %v4206 = vsel %vm4191, %v4203, %v4205
      %v4207 = vrot.slane %v4152, 4
      %v4208 = vrot.slane %v4153, 4
      %v4209 = vsel %vm4191, %v4207, %v4208
      %v4210 = vrot.slane %v4154, 4
      %v4211 = vsel %vm4191, %v4208, %v4210
      %v4212 = vrot.slane %v4155, 4
      %v4213 = vrot.slane %v4156, 4
      %v4214 = vsel %vm4191, %v4212, %v4213
      %v4215 = vrot.slane %v4157, 4
      %v4216 = vsel %vm4191, %v4213, %v4215
      %v4217 = vrot.slane %v4158, 4
      %v4218 = vrot.slane %v4159, 4
      %v4219 = vsel %vm4191, %v4217, %v4218
      %v4220 = vrot.slane %v4160, 4
      %v4221 = vsel %vm4191, %v4218, %v4220
      %v4222 = vrot.slane %v4161, 4
      %v4223 = vrot.slane %v4162, 4
      %v4224 = vsel %vm4191, %v4222, %v4223
      %v4225 = vrot.slane %v4163, 4
      %v4226 = vsel %vm4191, %v4223, %v4225
      %v4227 = vrot.slane %v4164, 4
      %v4228 = vrot.slane %v4165, 4
      %v4229 = vsel %vm4191, %v4227, %v4228
      %v4230 = vrot.slane %v4166, 4
      %v4231 = vsel %vm4191, %v4228, %v4230
      %v4248 = vadd.f32 %v4126, %v4194
      %v4249 = vadd.f32 %v4127, %v4196
      %v4250 = vadd.f32 %v4128, %v4199
      %v4251 = vadd.f32 %v4129, %v4201
      %v4252 = vadd.f32 %v4130, %v4204
      %v4253 = vadd.f32 %v4131, %v4206
      %v4254 = vadd.f32 %v4132, %v4209
      %v4255 = vadd.f32 %v4133, %v4211
      %v4256 = vadd.f32 %v4134, %v4214
      %v4257 = vadd.f32 %v4135, %v4216
      %v4258 = vadd.f32 %v4136, %v4219
      %v4259 = vadd.f32 %v4137, %v4221
      %v4260 = vadd.f32 %v4138, %v4224
      %v4261 = vadd.f32 %v4139, %v4226
      %v4262 = vadd.f32 %v4140, %v4229
      %v4263 = vadd.f32 %v4141, %v4231
      %v4264 = vperm.slane %v502, 4
      %v4265 = vmul.f32 %v530, %v4264
      %v4266 = vmul.f32 %v531, %v4264
      %v4267 = vmul.f32 %v532, %v4264
      %v4268 = vmul.f32 %v533, %v4264
      %v4269 = vmul.f32 %v534, %v4264
      %v4270 = vmul.f32 %v535, %v4264
      %v4271 = vmul.f32 %v536, %v4264
      %v4272 = vmul.f32 %v537, %v4264
      %v4273 = vmul.f32 %v538, %v4264
      %v4274 = vmul.f32 %v539, %v4264
      %v4275 = vmul.f32 %v540, %v4264
      %v4276 = vmul.f32 %v541, %v4264
      %v4277 = vmul.f32 %v542, %v4264
      %v4278 = vmul.f32 %v543, %v4264
      %v4279 = vmul.f32 %v544, %v4264
      %v4280 = vmul.f32 %v545, %v4264
      %v4281 = vmul.f32 %v546, %v4264
      %v4282 = vmul.f32 %v547, %v4264
      %v4283 = vmul.f32 %v548, %v4264
      %v4284 = vmul.f32 %v549, %v4264
      %v4285 = vmul.f32 %v550, %v4264
      %v4286 = vmul.f32 %v551, %v4264
      %v4287 = vmul.f32 %v552, %v4264
      %v4288 = vmul.f32 %v553, %v4264
      %v4313 = vrot.slane %v4265, 4
      %v4314 = vrot.slane %v4266, 4
      %v4315 = vsel %vm4191, %v4313, %v4314
      %v4316 = vrot.slane %v4267, 4
      %v4317 = vsel %vm4191, %v4314, %v4316
      %v4318 = vrot.slane %v4268, 4
      %v4319 = vrot.slane %v4269, 4
      %v4320 = vsel %vm4191, %v4318, %v4319
      %v4321 = vrot.slane %v4270, 4
      %v4322 = vsel %vm4191, %v4319, %v4321
      %v4323 = vrot.slane %v4271, 4
      %v4324 = vrot.slane %v4272, 4
      %v4325 = vsel %vm4191, %v4323, %v4324
      %v4326 = vrot.slane %v4273, 4
      %v4327 = vsel %vm4191, %v4324, %v4326
      %v4328 = vrot.slane %v4274, 4
      %v4329 = vrot.slane %v4275, 4
      %v4330 = vsel %vm4191, %v4328, %v4329
      %v4331 = vrot.slane %v4276, 4
      %v4332 = vsel %vm4191, %v4329, %v4331
      %v4333 = vrot.slane %v4277, 4
      %v4334 = vrot.slane %v4278, 4
      %v4335 = vsel %vm4191, %v4333, %v4334
      %v4336 = vrot.slane %v4279, 4
      %v4337 = vsel %vm4191, %v4334, %v4336
      %v4338 = vrot.slane %v4280, 4
      %v4339 = vrot.slane %v4281, 4
      %v4340 = vsel %vm4191, %v4338, %v4339
      %v4341 = vrot.slane %v4282, 4
      %v4342 = vsel %vm4191, %v4339, %v4341
      %v4343 = vrot.slane %v4283, 4
      %v4344 = vrot.slane %v4284, 4
      %v4345 = vsel %vm4191, %v4343, %v4344
      %v4346 = vrot.slane %v4285, 4
      %v4347 = vsel %vm4191, %v4344, %v4346
      %v4348 = vrot.slane %v4286, 4
      %v4349 = vrot.slane %v4287, 4
      %v4350 = vsel %vm4191, %v4348, %v4349
      %v4351 = vrot.slane %v4288, 4
      %v4352 = vsel %vm4191, %v4349, %v4351
      %v4369 = vadd.f32 %v4248, %v4315
      %v4370 = vadd.f32 %v4249, %v4317
      %v4371 = vadd.f32 %v4250, %v4320
      %v4372 = vadd.f32 %v4251, %v4322
      %v4373 = vadd.f32 %v4252, %v4325
      %v4374 = vadd.f32 %v4253, %v4327
      %v4375 = vadd.f32 %v4254, %v4330
      %v4376 = vadd.f32 %v4255, %v4332
      %v4377 = vadd.f32 %v4256, %v4335
      %v4378 = vadd.f32 %v4257, %v4337
      %v4379 = vadd.f32 %v4258, %v4340
      %v4380 = vadd.f32 %v4259, %v4342
      %v4381 = vadd.f32 %v4260, %v4345
      %v4382 = vadd.f32 %v4261, %v4347
      %v4383 = vadd.f32 %v4262, %v4350
      %v4384 = vadd.f32 %v4263, %v4352
      %v4385 = vperm.slane %v504, 4
      %v4386 = vmul.f32 %v533, %v4385
      %v4387 = vmul.f32 %v534, %v4385
      %v4388 = vmul.f32 %v535, %v4385
      %v4389 = vmul.f32 %v536, %v4385
      %v4390 = vmul.f32 %v537, %v4385
      %v4391 = vmul.f32 %v538, %v4385
      %v4392 = vmul.f32 %v539, %v4385
      %v4393 = vmul.f32 %v540, %v4385
      %v4394 = vmul.f32 %v541, %v4385
      %v4395 = vmul.f32 %v542, %v4385
      %v4396 = vmul.f32 %v543, %v4385
      %v4397 = vmul.f32 %v544, %v4385
      %v4398 = vmul.f32 %v545, %v4385
      %v4399 = vmul.f32 %v546, %v4385
      %v4400 = vmul.f32 %v547, %v4385
      %v4401 = vmul.f32 %v548, %v4385
      %v4402 = vmul.f32 %v549, %v4385
      %v4403 = vmul.f32 %v550, %v4385
      %v4404 = vmul.f32 %v551, %v4385
      %v4405 = vmul.f32 %v552, %v4385
      %v4406 = vmul.f32 %v553, %v4385
      %v4407 = vmul.f32 %v554, %v4385
      %v4408 = vmul.f32 %v555, %v4385
      %v4409 = vmul.f32 %v556, %v4385
      %v4434 = vrot.slane %v4386, 4
      %v4435 = vrot.slane %v4387, 4
      %v4436 = vsel %vm4191, %v4434, %v4435
      %v4437 = vrot.slane %v4388, 4
      %v4438 = vsel %vm4191, %v4435, %v4437
      %v4439 = vrot.slane %v4389, 4
      %v4440 = vrot.slane %v4390, 4
      %v4441 = vsel %vm4191, %v4439, %v4440
      %v4442 = vrot.slane %v4391, 4
      %v4443 = vsel %vm4191, %v4440, %v4442
      %v4444 = vrot.slane %v4392, 4
      %v4445 = vrot.slane %v4393, 4
      %v4446 = vsel %vm4191, %v4444, %v4445
      %v4447 = vrot.slane %v4394, 4
      %v4448 = vsel %vm4191, %v4445, %v4447
      %v4449 = vrot.slane %v4395, 4
      %v4450 = vrot.slane %v4396, 4
      %v4451 = vsel %vm4191, %v4449, %v4450
      %v4452 = vrot.slane %v4397, 4
      %v4453 = vsel %vm4191, %v4450, %v4452
      %v4454 = vrot.slane %v4398, 4
      %v4455 = vrot.slane %v4399, 4
      %v4456 = vsel %vm4191, %v4454, %v4455
      %v4457 = vrot.slane %v4400, 4
      %v4458 = vsel %vm4191, %v4455, %v4457
      %v4459 = vrot.slane %v4401, 4
      %v4460 = vrot.slane %v4402, 4
      %v4461 = vsel %vm4191, %v4459, %v4460
      %v4462 = vrot.slane %v4403, 4
      %v4463 = vsel %vm4191, %v4460, %v4462
      %v4464 = vrot.slane %v4404, 4
      %v4465 = vrot.slane %v4405, 4
      %v4466 = vsel %vm4191, %v4464, %v4465
      %v4467 = vrot.slane %v4406, 4
      %v4468 = vsel %vm4191, %v4465, %v4467
      %v4469 = vrot.slane %v4407, 4
      %v4470 = vrot.slane %v4408, 4
      %v4471 = vsel %vm4191, %v4469, %v4470
      %v4472 = vrot.slane %v4409, 4
      %v4473 = vsel %vm4191, %v4470, %v4472
      %v4490 = vadd.f32 %v4369, %v4436
      %v4491 = vadd.f32 %v4370, %v4438
      %v4492 = vadd.f32 %v4371, %v4441
      %v4493 = vadd.f32 %v4372, %v4443
      %v4494 = vadd.f32 %v4373, %v4446
      %v4495 = vadd.f32 %v4374, %v4448
      %v4496 = vadd.f32 %v4375, %v4451
      %v4497 = vadd.f32 %v4376, %v4453
      %v4498 = vadd.f32 %v4377, %v4456
      %v4499 = vadd.f32 %v4378, %v4458
      %v4500 = vadd.f32 %v4379, %v4461
      %v4501 = vadd.f32 %v4380, %v4463
      %v4502 = vadd.f32 %v4381, %v4466
      %v4503 = vadd.f32 %v4382, %v4468
      %v4504 = vadd.f32 %v4383, %v4471
      %v4505 = vadd.f32 %v4384, %v4473
      %v4506 = vperm.slane %v506, 4
      %v4507 = vmul.f32 %v536, %v4506
      %v4508 = vmul.f32 %v537, %v4506
      %v4509 = vmul.f32 %v538, %v4506
      %v4510 = vmul.f32 %v539, %v4506
      %v4511 = vmul.f32 %v540, %v4506
      %v4512 = vmul.f32 %v541, %v4506
      %v4513 = vmul.f32 %v542, %v4506
      %v4514 = vmul.f32 %v543, %v4506
      %v4515 = vmul.f32 %v544, %v4506
      %v4516 = vmul.f32 %v545, %v4506
      %v4517 = vmul.f32 %v546, %v4506
      %v4518 = vmul.f32 %v547, %v4506
      %v4519 = vmul.f32 %v548, %v4506
      %v4520 = vmul.f32 %v549, %v4506
      %v4521 = vmul.f32 %v550, %v4506
      %v4522 = vmul.f32 %v551, %v4506
      %v4523 = vmul.f32 %v552, %v4506
      %v4524 = vmul.f32 %v553, %v4506
      %v4525 = vmul.f32 %v554, %v4506
      %v4526 = vmul.f32 %v555, %v4506
      %v4527 = vmul.f32 %v556, %v4506
      %v4528 = vmul.f32 %v557, %v4506
      %v4529 = vmul.f32 %v558, %v4506
      %v4530 = vmul.f32 %v559, %v4506
      %v4555 = vrot.slane %v4507, 4
      %v4556 = vrot.slane %v4508, 4
      %v4557 = vsel %vm4191, %v4555, %v4556
      %v4558 = vrot.slane %v4509, 4
      %v4559 = vsel %vm4191, %v4556, %v4558
      %v4560 = vrot.slane %v4510, 4
      %v4561 = vrot.slane %v4511, 4
      %v4562 = vsel %vm4191, %v4560, %v4561
      %v4563 = vrot.slane %v4512, 4
      %v4564 = vsel %vm4191, %v4561, %v4563
      %v4565 = vrot.slane %v4513, 4
      %v4566 = vrot.slane %v4514, 4
      %v4567 = vsel %vm4191, %v4565, %v4566
      %v4568 = vrot.slane %v4515, 4
      %v4569 = vsel %vm4191, %v4566, %v4568
      %v4570 = vrot.slane %v4516, 4
      %v4571 = vrot.slane %v4517, 4
      %v4572 = vsel %vm4191, %v4570, %v4571
      %v4573 = vrot.slane %v4518, 4
      %v4574 = vsel %vm4191, %v4571, %v4573
      %v4575 = vrot.slane %v4519, 4
      %v4576 = vrot.slane %v4520, 4
      %v4577 = vsel %vm4191, %v4575, %v4576
      %v4578 = vrot.slane %v4521, 4
      %v4579 = vsel %vm4191, %v4576, %v4578
      %v4580 = vrot.slane %v4522, 4
      %v4581 = vrot.slane %v4523, 4
      %v4582 = vsel %vm4191, %v4580, %v4581
      %v4583 = vrot.slane %v4524, 4
      %v4584 = vsel %vm4191, %v4581, %v4583
      %v4585 = vrot.slane %v4525, 4
      %v4586 = vrot.slane %v4526, 4
      %v4587 = vsel %vm4191, %v4585, %v4586
      %v4588 = vrot.slane %v4527, 4
      %v4589 = vsel %vm4191, %v4586, %v4588
      %v4590 = vrot.slane %v4528, 4
      %v4591 = vrot.slane %v4529, 4
      %v4592 = vsel %vm4191, %v4590, %v4591
      %v4593 = vrot.slane %v4530, 4
      %v4594 = vsel %vm4191, %v4591, %v4593
      %v4611 = vadd.f32 %v4490, %v4557
      %v4612 = vadd.f32 %v4491, %v4559
      %v4613 = vadd.f32 %v4492, %v4562
      %v4614 = vadd.f32 %v4493, %v4564
      %v4615 = vadd.f32 %v4494, %v4567
      %v4616 = vadd.f32 %v4495, %v4569
      %v4617 = vadd.f32 %v4496, %v4572
      %v4618 = vadd.f32 %v4497, %v4574
      %v4619 = vadd.f32 %v4498, %v4577
      %v4620 = vadd.f32 %v4499, %v4579
      %v4621 = vadd.f32 %v4500, %v4582
      %v4622 = vadd.f32 %v4501, %v4584
      %v4623 = vadd.f32 %v4502, %v4587
      %v4624 = vadd.f32 %v4503, %v4589
      %v4625 = vadd.f32 %v4504, %v4592
      %v4626 = vadd.f32 %v4505, %v4594
      %v4627 = vperm.slane %v508, 4
      %v4628 = vmul.f32 %v539, %v4627
      %v4629 = vmul.f32 %v540, %v4627
      %v4630 = vmul.f32 %v541, %v4627
      %v4631 = vmul.f32 %v542, %v4627
      %v4632 = vmul.f32 %v543, %v4627
      %v4633 = vmul.f32 %v544, %v4627
      %v4634 = vmul.f32 %v545, %v4627
      %v4635 = vmul.f32 %v546, %v4627
      %v4636 = vmul.f32 %v547, %v4627
      %v4637 = vmul.f32 %v548, %v4627
      %v4638 = vmul.f32 %v549, %v4627
      %v4639 = vmul.f32 %v550, %v4627
      %v4640 = vmul.f32 %v551, %v4627
      %v4641 = vmul.f32 %v552, %v4627
      %v4642 = vmul.f32 %v553, %v4627
      %v4643 = vmul.f32 %v554, %v4627
      %v4644 = vmul.f32 %v555, %v4627
      %v4645 = vmul.f32 %v556, %v4627
      %v4646 = vmul.f32 %v557, %v4627
      %v4647 = vmul.f32 %v558, %v4627
      %v4648 = vmul.f32 %v559, %v4627
      %v4649 = vmul.f32 %v560, %v4627
      %v4650 = vmul.f32 %v561, %v4627
      %v4651 = vmul.f32 %v562, %v4627
      %v4676 = vrot.slane %v4628, 4
      %v4677 = vrot.slane %v4629, 4
      %v4678 = vsel %vm4191, %v4676, %v4677
      %v4679 = vrot.slane %v4630, 4
      %v4680 = vsel %vm4191, %v4677, %v4679
      %v4681 = vrot.slane %v4631, 4
      %v4682 = vrot.slane %v4632, 4
      %v4683 = vsel %vm4191, %v4681, %v4682
      %v4684 = vrot.slane %v4633, 4
      %v4685 = vsel %vm4191, %v4682, %v4684
      %v4686 = vrot.slane %v4634, 4
      %v4687 = vrot.slane %v4635, 4
      %v4688 = vsel %vm4191, %v4686, %v4687
      %v4689 = vrot.slane %v4636, 4
      %v4690 = vsel %vm4191, %v4687, %v4689
      %v4691 = vrot.slane %v4637, 4
      %v4692 = vrot.slane %v4638, 4
      %v4693 = vsel %vm4191, %v4691, %v4692
      %v4694 = vrot.slane %v4639, 4
      %v4695 = vsel %vm4191, %v4692, %v4694
      %v4696 = vrot.slane %v4640, 4
      %v4697 = vrot.slane %v4641, 4
      %v4698 = vsel %vm4191, %v4696, %v4697
      %v4699 = vrot.slane %v4642, 4
      %v4700 = vsel %vm4191, %v4697, %v4699
      %v4701 = vrot.slane %v4643, 4
      %v4702 = vrot.slane %v4644, 4
      %v4703 = vsel %vm4191, %v4701, %v4702
      %v4704 = vrot.slane %v4645, 4
      %v4705 = vsel %vm4191, %v4702, %v4704
      %v4706 = vrot.slane %v4646, 4
      %v4707 = vrot.slane %v4647, 4
      %v4708 = vsel %vm4191, %v4706, %v4707
      %v4709 = vrot.slane %v4648, 4
      %v4710 = vsel %vm4191, %v4707, %v4709
      %v4711 = vrot.slane %v4649, 4
      %v4712 = vrot.slane %v4650, 4
      %v4713 = vsel %vm4191, %v4711, %v4712
      %v4714 = vrot.slane %v4651, 4
      %v4715 = vsel %vm4191, %v4712, %v4714
      %v4732 = vadd.f32 %v4611, %v4678
      %v4733 = vadd.f32 %v4612, %v4680
      %v4734 = vadd.f32 %v4613, %v4683
      %v4735 = vadd.f32 %v4614, %v4685
      %v4736 = vadd.f32 %v4615, %v4688
      %v4737 = vadd.f32 %v4616, %v4690
      %v4738 = vadd.f32 %v4617, %v4693
      %v4739 = vadd.f32 %v4618, %v4695
      %v4740 = vadd.f32 %v4619, %v4698
      %v4741 = vadd.f32 %v4620, %v4700
      %v4742 = vadd.f32 %v4621, %v4703
      %v4743 = vadd.f32 %v4622, %v4705
      %v4744 = vadd.f32 %v4623, %v4708
      %v4745 = vadd.f32 %v4624, %v4710
      %v4746 = vadd.f32 %v4625, %v4713
      %v4747 = vadd.f32 %v4626, %v4715
      %v4748 = vperm.slane %v510, 4
      %v4749 = vmul.f32 %v542, %v4748
      %v4750 = vmul.f32 %v543, %v4748
      %v4751 = vmul.f32 %v544, %v4748
      %v4752 = vmul.f32 %v545, %v4748
      %v4753 = vmul.f32 %v546, %v4748
      %v4754 = vmul.f32 %v547, %v4748
      %v4755 = vmul.f32 %v548, %v4748
      %v4756 = vmul.f32 %v549, %v4748
      %v4757 = vmul.f32 %v550, %v4748
      %v4758 = vmul.f32 %v551, %v4748
      %v4759 = vmul.f32 %v552, %v4748
      %v4760 = vmul.f32 %v553, %v4748
      %v4761 = vmul.f32 %v554, %v4748
      %v4762 = vmul.f32 %v555, %v4748
      %v4763 = vmul.f32 %v556, %v4748
      %v4764 = vmul.f32 %v557, %v4748
      %v4765 = vmul.f32 %v558, %v4748
      %v4766 = vmul.f32 %v559, %v4748
      %v4767 = vmul.f32 %v560, %v4748
      %v4768 = vmul.f32 %v561, %v4748
      %v4769 = vmul.f32 %v562, %v4748
      %v4770 = vmul.f32 %v563, %v4748
      %v4771 = vmul.f32 %v564, %v4748
      %v4772 = vmul.f32 %v565, %v4748
      %v4797 = vrot.slane %v4749, 4
      %v4798 = vrot.slane %v4750, 4
      %v4799 = vsel %vm4191, %v4797, %v4798
      %v4800 = vrot.slane %v4751, 4
      %v4801 = vsel %vm4191, %v4798, %v4800
      %v4802 = vrot.slane %v4752, 4
      %v4803 = vrot.slane %v4753, 4
      %v4804 = vsel %vm4191, %v4802, %v4803
      %v4805 = vrot.slane %v4754, 4
      %v4806 = vsel %vm4191, %v4803, %v4805
      %v4807 = vrot.slane %v4755, 4
      %v4808 = vrot.slane %v4756, 4
      %v4809 = vsel %vm4191, %v4807, %v4808
      %v4810 = vrot.slane %v4757, 4
      %v4811 = vsel %vm4191, %v4808, %v4810
      %v4812 = vrot.slane %v4758, 4
      %v4813 = vrot.slane %v4759, 4
      %v4814 = vsel %vm4191, %v4812, %v4813
      %v4815 = vrot.slane %v4760, 4
      %v4816 = vsel %vm4191, %v4813, %v4815
      %v4817 = vrot.slane %v4761, 4
      %v4818 = vrot.slane %v4762, 4
      %v4819 = vsel %vm4191, %v4817, %v4818
      %v4820 = vrot.slane %v4763, 4
      %v4821 = vsel %vm4191, %v4818, %v4820
      %v4822 = vrot.slane %v4764, 4
      %v4823 = vrot.slane %v4765, 4
      %v4824 = vsel %vm4191, %v4822, %v4823
      %v4825 = vrot.slane %v4766, 4
      %v4826 = vsel %vm4191, %v4823, %v4825
      %v4827 = vrot.slane %v4767, 4
      %v4828 = vrot.slane %v4768, 4
      %v4829 = vsel %vm4191, %v4827, %v4828
      %v4830 = vrot.slane %v4769, 4
      %v4831 = vsel %vm4191, %v4828, %v4830
      %v4832 = vrot.slane %v4770, 4
      %v4833 = vrot.slane %v4771, 4
      %v4834 = vsel %vm4191, %v4832, %v4833
      %v4835 = vrot.slane %v4772, 4
      %v4836 = vsel %vm4191, %v4833, %v4835
      %v4853 = vadd.f32 %v4732, %v4799
      %v4854 = vadd.f32 %v4733, %v4801
      %v4855 = vadd.f32 %v4734, %v4804
      %v4856 = vadd.f32 %v4735, %v4806
      %v4857 = vadd.f32 %v4736, %v4809
      %v4858 = vadd.f32 %v4737, %v4811
      %v4859 = vadd.f32 %v4738, %v4814
      %v4860 = vadd.f32 %v4739, %v4816
      %v4861 = vadd.f32 %v4740, %v4819
      %v4862 = vadd.f32 %v4741, %v4821
      %v4863 = vadd.f32 %v4742, %v4824
      %v4864 = vadd.f32 %v4743, %v4826
      %v4865 = vadd.f32 %v4744, %v4829
      %v4866 = vadd.f32 %v4745, %v4831
      %v4867 = vadd.f32 %v4746, %v4834
      %v4868 = vadd.f32 %v4747, %v4836
      %v4869 = vperm.slane %v512, 4
      %v4870 = vmul.f32 %v545, %v4869
      %v4871 = vmul.f32 %v546, %v4869
      %v4872 = vmul.f32 %v547, %v4869
      %v4873 = vmul.f32 %v548, %v4869
      %v4874 = vmul.f32 %v549, %v4869
      %v4875 = vmul.f32 %v550, %v4869
      %v4876 = vmul.f32 %v551, %v4869
      %v4877 = vmul.f32 %v552, %v4869
      %v4878 = vmul.f32 %v553, %v4869
      %v4879 = vmul.f32 %v554, %v4869
      %v4880 = vmul.f32 %v555, %v4869
      %v4881 = vmul.f32 %v556, %v4869
      %v4882 = vmul.f32 %v557, %v4869
      %v4883 = vmul.f32 %v558, %v4869
      %v4884 = vmul.f32 %v559, %v4869
      %v4885 = vmul.f32 %v560, %v4869
      %v4886 = vmul.f32 %v561, %v4869
      %v4887 = vmul.f32 %v562, %v4869
      %v4888 = vmul.f32 %v563, %v4869
      %v4889 = vmul.f32 %v564, %v4869
      %v4890 = vmul.f32 %v565, %v4869
      %v4891 = vmul.f32 %v566, %v4869
      %v4892 = vmul.f32 %v567, %v4869
      %v4893 = vmul.f32 %v568, %v4869
      %v4918 = vrot.slane %v4870, 4
      %v4919 = vrot.slane %v4871, 4
      %v4920 = vsel %vm4191, %v4918, %v4919
      %v4921 = vrot.slane %v4872, 4
      %v4922 = vsel %vm4191, %v4919, %v4921
      %v4923 = vrot.slane %v4873, 4
      %v4924 = vrot.slane %v4874, 4
      %v4925 = vsel %vm4191, %v4923, %v4924
      %v4926 = vrot.slane %v4875, 4
      %v4927 = vsel %vm4191, %v4924, %v4926
      %v4928 = vrot.slane %v4876, 4
      %v4929 = vrot.slane %v4877, 4
      %v4930 = vsel %vm4191, %v4928, %v4929
      %v4931 = vrot.slane %v4878, 4
      %v4932 = vsel %vm4191, %v4929, %v4931
      %v4933 = vrot.slane %v4879, 4
      %v4934 = vrot.slane %v4880, 4
      %v4935 = vsel %vm4191, %v4933, %v4934
      %v4936 = vrot.slane %v4881, 4
      %v4937 = vsel %vm4191, %v4934, %v4936
      %v4938 = vrot.slane %v4882, 4
      %v4939 = vrot.slane %v4883, 4
      %v4940 = vsel %vm4191, %v4938, %v4939
      %v4941 = vrot.slane %v4884, 4
      %v4942 = vsel %vm4191, %v4939, %v4941
      %v4943 = vrot.slane %v4885, 4
      %v4944 = vrot.slane %v4886, 4
      %v4945 = vsel %vm4191, %v4943, %v4944
      %v4946 = vrot.slane %v4887, 4
      %v4947 = vsel %vm4191, %v4944, %v4946
      %v4948 = vrot.slane %v4888, 4
      %v4949 = vrot.slane %v4889, 4
      %v4950 = vsel %vm4191, %v4948, %v4949
      %v4951 = vrot.slane %v4890, 4
      %v4952 = vsel %vm4191, %v4949, %v4951
      %v4953 = vrot.slane %v4891, 4
      %v4954 = vrot.slane %v4892, 4
      %v4955 = vsel %vm4191, %v4953, %v4954
      %v4956 = vrot.slane %v4893, 4
      %v4957 = vsel %vm4191, %v4954, %v4956
      %v4974 = vadd.f32 %v4853, %v4920
      %v4975 = vadd.f32 %v4854, %v4922
      %v4976 = vadd.f32 %v4855, %v4925
      %v4977 = vadd.f32 %v4856, %v4927
      %v4978 = vadd.f32 %v4857, %v4930
      %v4979 = vadd.f32 %v4858, %v4932
      %v4980 = vadd.f32 %v4859, %v4935
      %v4981 = vadd.f32 %v4860, %v4937
      %v4982 = vadd.f32 %v4861, %v4940
      %v4983 = vadd.f32 %v4862, %v4942
      %v4984 = vadd.f32 %v4863, %v4945
      %v4985 = vadd.f32 %v4864, %v4947
      %v4986 = vadd.f32 %v4865, %v4950
      %v4987 = vadd.f32 %v4866, %v4952
      %v4988 = vadd.f32 %v4867, %v4955
      %v4989 = vadd.f32 %v4868, %v4957
      %v4990 = vperm.slane %v514, 4
      %v4991 = vmul.f32 %v548, %v4990
      %v4992 = vmul.f32 %v549, %v4990
      %v4993 = vmul.f32 %v550, %v4990
      %v4994 = vmul.f32 %v551, %v4990
      %v4995 = vmul.f32 %v552, %v4990
      %v4996 = vmul.f32 %v553, %v4990
      %v4997 = vmul.f32 %v554, %v4990
      %v4998 = vmul.f32 %v555, %v4990
      %v4999 = vmul.f32 %v556, %v4990
      %v5000 = vmul.f32 %v557, %v4990
      %v5001 = vmul.f32 %v558, %v4990
      %v5002 = vmul.f32 %v559, %v4990
      %v5003 = vmul.f32 %v560, %v4990
      %v5004 = vmul.f32 %v561, %v4990
      %v5005 = vmul.f32 %v562, %v4990
      %v5006 = vmul.f32 %v563, %v4990
      %v5007 = vmul.f32 %v564, %v4990
      %v5008 = vmul.f32 %v565, %v4990
      %v5009 = vmul.f32 %v566, %v4990
      %v5010 = vmul.f32 %v567, %v4990
      %v5011 = vmul.f32 %v568, %v4990
      %v5012 = vmul.f32 %v569, %v4990
      %v5013 = vmul.f32 %v570, %v4990
      %v5014 = vmul.f32 %v571, %v4990
      %v5039 = vrot.slane %v4991, 4
      %v5040 = vrot.slane %v4992, 4
      %v5041 = vsel %vm4191, %v5039, %v5040
      %v5042 = vrot.slane %v4993, 4
      %v5043 = vsel %vm4191, %v5040, %v5042
      %v5044 = vrot.slane %v4994, 4
      %v5045 = vrot.slane %v4995, 4
      %v5046 = vsel %vm4191, %v5044, %v5045
      %v5047 = vrot.slane %v4996, 4
      %v5048 = vsel %vm4191, %v5045, %v5047
      %v5049 = vrot.slane %v4997, 4
      %v5050 = vrot.slane %v4998, 4
      %v5051 = vsel %vm4191, %v5049, %v5050
      %v5052 = vrot.slane %v4999, 4
      %v5053 = vsel %vm4191, %v5050, %v5052
      %v5054 = vrot.slane %v5000, 4
      %v5055 = vrot.slane %v5001, 4
      %v5056 = vsel %vm4191, %v5054, %v5055
      %v5057 = vrot.slane %v5002, 4
      %v5058 = vsel %vm4191, %v5055, %v5057
      %v5059 = vrot.slane %v5003, 4
      %v5060 = vrot.slane %v5004, 4
      %v5061 = vsel %vm4191, %v5059, %v5060
      %v5062 = vrot.slane %v5005, 4
      %v5063 = vsel %vm4191, %v5060, %v5062
      %v5064 = vrot.slane %v5006, 4
      %v5065 = vrot.slane %v5007, 4
      %v5066 = vsel %vm4191, %v5064, %v5065
      %v5067 = vrot.slane %v5008, 4
      %v5068 = vsel %vm4191, %v5065, %v5067
      %v5069 = vrot.slane %v5009, 4
      %v5070 = vrot.slane %v5010, 4
      %v5071 = vsel %vm4191, %v5069, %v5070
      %v5072 = vrot.slane %v5011, 4
      %v5073 = vsel %vm4191, %v5070, %v5072
      %v5074 = vrot.slane %v5012, 4
      %v5075 = vrot.slane %v5013, 4
      %v5076 = vsel %vm4191, %v5074, %v5075
      %v5077 = vrot.slane %v5014, 4
      %v5078 = vsel %vm4191, %v5075, %v5077
      %v5095 = vadd.f32 %v4974, %v5041
      %v5096 = vadd.f32 %v4975, %v5043
      %v5097 = vadd.f32 %v4976, %v5046
      %v5098 = vadd.f32 %v4977, %v5048
      %v5099 = vadd.f32 %v4978, %v5051
      %v5100 = vadd.f32 %v4979, %v5053
      %v5101 = vadd.f32 %v4980, %v5056
      %v5102 = vadd.f32 %v4981, %v5058
      %v5103 = vadd.f32 %v4982, %v5061
      %v5104 = vadd.f32 %v4983, %v5063
      %v5105 = vadd.f32 %v4984, %v5066
      %v5106 = vadd.f32 %v4985, %v5068
      %v5107 = vadd.f32 %v4986, %v5071
      %v5108 = vadd.f32 %v4987, %v5073
      %v5109 = vadd.f32 %v4988, %v5076
      %v5110 = vadd.f32 %v4989, %v5078
      %v5111 = vperm.slane %v516, 4
      %v5112 = vmul.f32 %v551, %v5111
      %v5113 = vmul.f32 %v552, %v5111
      %v5114 = vmul.f32 %v553, %v5111
      %v5115 = vmul.f32 %v554, %v5111
      %v5116 = vmul.f32 %v555, %v5111
      %v5117 = vmul.f32 %v556, %v5111
      %v5118 = vmul.f32 %v557, %v5111
      %v5119 = vmul.f32 %v558, %v5111
      %v5120 = vmul.f32 %v559, %v5111
      %v5121 = vmul.f32 %v560, %v5111
      %v5122 = vmul.f32 %v561, %v5111
      %v5123 = vmul.f32 %v562, %v5111
      %v5124 = vmul.f32 %v563, %v5111
      %v5125 = vmul.f32 %v564, %v5111
      %v5126 = vmul.f32 %v565, %v5111
      %v5127 = vmul.f32 %v566, %v5111
      %v5128 = vmul.f32 %v567, %v5111
      %v5129 = vmul.f32 %v568, %v5111
      %v5130 = vmul.f32 %v569, %v5111
      %v5131 = vmul.f32 %v570, %v5111
      %v5132 = vmul.f32 %v571, %v5111
      %v5133 = vmul.f32 %v572, %v5111
      %v5134 = vmul.f32 %v573, %v5111
      %v5135 = vmul.f32 %v574, %v5111
      %v5160 = vrot.slane %v5112, 4
      %v5161 = vrot.slane %v5113, 4
      %v5162 = vsel %vm4191, %v5160, %v5161
      %v5163 = vrot.slane %v5114, 4
      %v5164 = vsel %vm4191, %v5161, %v5163
      %v5165 = vrot.slane %v5115, 4
      %v5166 = vrot.slane %v5116, 4
      %v5167 = vsel %vm4191, %v5165, %v5166
      %v5168 = vrot.slane %v5117, 4
      %v5169 = vsel %vm4191, %v5166, %v5168
      %v5170 = vrot.slane %v5118, 4
      %v5171 = vrot.slane %v5119, 4
      %v5172 = vsel %vm4191, %v5170, %v5171
      %v5173 = vrot.slane %v5120, 4
      %v5174 = vsel %vm4191, %v5171, %v5173
      %v5175 = vrot.slane %v5121, 4
      %v5176 = vrot.slane %v5122, 4
      %v5177 = vsel %vm4191, %v5175, %v5176
      %v5178 = vrot.slane %v5123, 4
      %v5179 = vsel %vm4191, %v5176, %v5178
      %v5180 = vrot.slane %v5124, 4
      %v5181 = vrot.slane %v5125, 4
      %v5182 = vsel %vm4191, %v5180, %v5181
      %v5183 = vrot.slane %v5126, 4
      %v5184 = vsel %vm4191, %v5181, %v5183
      %v5185 = vrot.slane %v5127, 4
      %v5186 = vrot.slane %v5128, 4
      %v5187 = vsel %vm4191, %v5185, %v5186
      %v5188 = vrot.slane %v5129, 4
      %v5189 = vsel %vm4191, %v5186, %v5188
      %v5190 = vrot.slane %v5130, 4
      %v5191 = vrot.slane %v5131, 4
      %v5192 = vsel %vm4191, %v5190, %v5191
      %v5193 = vrot.slane %v5132, 4
      %v5194 = vsel %vm4191, %v5191, %v5193
      %v5195 = vrot.slane %v5133, 4
      %v5196 = vrot.slane %v5134, 4
      %v5197 = vsel %vm4191, %v5195, %v5196
      %v5198 = vrot.slane %v5135, 4
      %v5199 = vsel %vm4191, %v5196, %v5198
      %v5216 = vadd.f32 %v5095, %v5162
      %v5217 = vadd.f32 %v5096, %v5164
      %v5218 = vadd.f32 %v5097, %v5167
      %v5219 = vadd.f32 %v5098, %v5169
      %v5220 = vadd.f32 %v5099, %v5172
      %v5221 = vadd.f32 %v5100, %v5174
      %v5222 = vadd.f32 %v5101, %v5177
      %v5223 = vadd.f32 %v5102, %v5179
      %v5224 = vadd.f32 %v5103, %v5182
      %v5225 = vadd.f32 %v5104, %v5184
      %v5226 = vadd.f32 %v5105, %v5187
      %v5227 = vadd.f32 %v5106, %v5189
      %v5228 = vadd.f32 %v5107, %v5192
      %v5229 = vadd.f32 %v5108, %v5194
      %v5230 = vadd.f32 %v5109, %v5197
      %v5231 = vadd.f32 %v5110, %v5199
      %v5232 = vperm.slane %v500, 5
      %v5233 = vmul.f32 %v527, %v5232
      %v5234 = vmul.f32 %v528, %v5232
      %v5235 = vmul.f32 %v529, %v5232
      %v5236 = vmul.f32 %v530, %v5232
      %v5237 = vmul.f32 %v531, %v5232
      %v5238 = vmul.f32 %v532, %v5232
      %v5239 = vmul.f32 %v533, %v5232
      %v5240 = vmul.f32 %v534, %v5232
      %v5241 = vmul.f32 %v535, %v5232
      %v5242 = vmul.f32 %v536, %v5232
      %v5243 = vmul.f32 %v537, %v5232
      %v5244 = vmul.f32 %v538, %v5232
      %v5245 = vmul.f32 %v539, %v5232
      %v5246 = vmul.f32 %v540, %v5232
      %v5247 = vmul.f32 %v541, %v5232
      %v5248 = vmul.f32 %v542, %v5232
      %v5249 = vmul.f32 %v543, %v5232
      %v5250 = vmul.f32 %v544, %v5232
      %v5251 = vmul.f32 %v545, %v5232
      %v5252 = vmul.f32 %v546, %v5232
      %v5253 = vmul.f32 %v547, %v5232
      %v5254 = vmul.f32 %v548, %v5232
      %v5255 = vmul.f32 %v549, %v5232
      %v5256 = vmul.f32 %v550, %v5232
      %vm5281 = vcmask 1042432
      %v5282 = vrot.slane %v5233, 5
      %v5283 = vrot.slane %v5234, 5
      %v5284 = vsel %vm5281, %v5282, %v5283
      %v5285 = vrot.slane %v5235, 5
      %v5286 = vsel %vm5281, %v5283, %v5285
      %v5287 = vrot.slane %v5236, 5
      %v5288 = vrot.slane %v5237, 5
      %v5289 = vsel %vm5281, %v5287, %v5288
      %v5290 = vrot.slane %v5238, 5
      %v5291 = vsel %vm5281, %v5288, %v5290
      %v5292 = vrot.slane %v5239, 5
      %v5293 = vrot.slane %v5240, 5
      %v5294 = vsel %vm5281, %v5292, %v5293
      %v5295 = vrot.slane %v5241, 5
      %v5296 = vsel %vm5281, %v5293, %v5295
      %v5297 = vrot.slane %v5242, 5
      %v5298 = vrot.slane %v5243, 5
      %v5299 = vsel %vm5281, %v5297, %v5298
      %v5300 = vrot.slane %v5244, 5
      %v5301 = vsel %vm5281, %v5298, %v5300
      %v5302 = vrot.slane %v5245, 5
      %v5303 = vrot.slane %v5246, 5
      %v5304 = vsel %vm5281, %v5302, %v5303
      %v5305 = vrot.slane %v5247, 5
      %v5306 = vsel %vm5281, %v5303, %v5305
      %v5307 = vrot.slane %v5248, 5
      %v5308 = vrot.slane %v5249, 5
      %v5309 = vsel %vm5281, %v5307, %v5308
      %v5310 = vrot.slane %v5250, 5
      %v5311 = vsel %vm5281, %v5308, %v5310
      %v5312 = vrot.slane %v5251, 5
      %v5313 = vrot.slane %v5252, 5
      %v5314 = vsel %vm5281, %v5312, %v5313
      %v5315 = vrot.slane %v5253, 5
      %v5316 = vsel %vm5281, %v5313, %v5315
      %v5317 = vrot.slane %v5254, 5
      %v5318 = vrot.slane %v5255, 5
      %v5319 = vsel %vm5281, %v5317, %v5318
      %v5320 = vrot.slane %v5256, 5
      %v5321 = vsel %vm5281, %v5318, %v5320
      %v5338 = vadd.f32 %v5216, %v5284
      %v5339 = vadd.f32 %v5217, %v5286
      %v5340 = vadd.f32 %v5218, %v5289
      %v5341 = vadd.f32 %v5219, %v5291
      %v5342 = vadd.f32 %v5220, %v5294
      %v5343 = vadd.f32 %v5221, %v5296
      %v5344 = vadd.f32 %v5222, %v5299
      %v5345 = vadd.f32 %v5223, %v5301
      %v5346 = vadd.f32 %v5224, %v5304
      %v5347 = vadd.f32 %v5225, %v5306
      %v5348 = vadd.f32 %v5226, %v5309
      %v5349 = vadd.f32 %v5227, %v5311
      %v5350 = vadd.f32 %v5228, %v5314
      %v5351 = vadd.f32 %v5229, %v5316
      %v5352 = vadd.f32 %v5230, %v5319
      %v5353 = vadd.f32 %v5231, %v5321
      %v5354 = vperm.slane %v502, 5
      %v5355 = vmul.f32 %v530, %v5354
      %v5356 = vmul.f32 %v531, %v5354
      %v5357 = vmul.f32 %v532, %v5354
      %v5358 = vmul.f32 %v533, %v5354
      %v5359 = vmul.f32 %v534, %v5354
      %v5360 = vmul.f32 %v535, %v5354
      %v5361 = vmul.f32 %v536, %v5354
      %v5362 = vmul.f32 %v537, %v5354
      %v5363 = vmul.f32 %v538, %v5354
      %v5364 = vmul.f32 %v539, %v5354
      %v5365 = vmul.f32 %v540, %v5354
      %v5366 = vmul.f32 %v541, %v5354
      %v5367 = vmul.f32 %v542, %v5354
      %v5368 = vmul.f32 %v543, %v5354
      %v5369 = vmul.f32 %v544, %v5354
      %v5370 = vmul.f32 %v545, %v5354
      %v5371 = vmul.f32 %v546, %v5354
      %v5372 = vmul.f32 %v547, %v5354
      %v5373 = vmul.f32 %v548, %v5354
      %v5374 = vmul.f32 %v549, %v5354
      %v5375 = vmul.f32 %v550, %v5354
      %v5376 = vmul.f32 %v551, %v5354
      %v5377 = vmul.f32 %v552, %v5354
      %v5378 = vmul.f32 %v553, %v5354
      %v5403 = vrot.slane %v5355, 5
      %v5404 = vrot.slane %v5356, 5
      %v5405 = vsel %vm5281, %v5403, %v5404
      %v5406 = vrot.slane %v5357, 5
      %v5407 = vsel %vm5281, %v5404, %v5406
      %v5408 = vrot.slane %v5358, 5
      %v5409 = vrot.slane %v5359, 5
      %v5410 = vsel %vm5281, %v5408, %v5409
      %v5411 = vrot.slane %v5360, 5
      %v5412 = vsel %vm5281, %v5409, %v5411
      %v5413 = vrot.slane %v5361, 5
      %v5414 = vrot.slane %v5362, 5
      %v5415 = vsel %vm5281, %v5413, %v5414
      %v5416 = vrot.slane %v5363, 5
      %v5417 = vsel %vm5281, %v5414, %v5416
      %v5418 = vrot.slane %v5364, 5
      %v5419 = vrot.slane %v5365, 5
      %v5420 = vsel %vm5281, %v5418, %v5419
      %v5421 = vrot.slane %v5366, 5
      %v5422 = vsel %vm5281, %v5419, %v5421
      %v5423 = vrot.slane %v5367, 5
      %v5424 = vrot.slane %v5368, 5
      %v5425 = vsel %vm5281, %v5423, %v5424
      %v5426 = vrot.slane %v5369, 5
      %v5427 = vsel %vm5281, %v5424, %v5426
      %v5428 = vrot.slane %v5370, 5
      %v5429 = vrot.slane %v5371, 5
      %v5430 = vsel %vm5281, %v5428, %v5429
      %v5431 = vrot.slane %v5372, 5
      %v5432 = vsel %vm5281, %v5429, %v5431
      %v5433 = vrot.slane %v5373, 5
      %v5434 = vrot.slane %v5374, 5
      %v5435 = vsel %vm5281, %v5433, %v5434
      %v5436 = vrot.slane %v5375, 5
      %v5437 = vsel %vm5281, %v5434, %v5436
      %v5438 = vrot.slane %v5376, 5
      %v5439 = vrot.slane %v5377, 5
      %v5440 = vsel %vm5281, %v5438, %v5439
      %v5441 = vrot.slane %v5378, 5
      %v5442 = vsel %vm5281, %v5439, %v5441
      %v5459 = vadd.f32 %v5338, %v5405
      %v5460 = vadd.f32 %v5339, %v5407
      %v5461 = vadd.f32 %v5340, %v5410
      %v5462 = vadd.f32 %v5341, %v5412
      %v5463 = vadd.f32 %v5342, %v5415
      %v5464 = vadd.f32 %v5343, %v5417
      %v5465 = vadd.f32 %v5344, %v5420
      %v5466 = vadd.f32 %v5345, %v5422
      %v5467 = vadd.f32 %v5346, %v5425
      %v5468 = vadd.f32 %v5347, %v5427
      %v5469 = vadd.f32 %v5348, %v5430
      %v5470 = vadd.f32 %v5349, %v5432
      %v5471 = vadd.f32 %v5350, %v5435
      %v5472 = vadd.f32 %v5351, %v5437
      %v5473 = vadd.f32 %v5352, %v5440
      %v5474 = vadd.f32 %v5353, %v5442
      %v5475 = vperm.slane %v504, 5
      %v5476 = vmul.f32 %v533, %v5475
      %v5477 = vmul.f32 %v534, %v5475
      %v5478 = vmul.f32 %v535, %v5475
      %v5479 = vmul.f32 %v536, %v5475
      %v5480 = vmul.f32 %v537, %v5475
      %v5481 = vmul.f32 %v538, %v5475
      %v5482 = vmul.f32 %v539, %v5475
      %v5483 = vmul.f32 %v540, %v5475
      %v5484 = vmul.f32 %v541, %v5475
      %v5485 = vmul.f32 %v542, %v5475
      %v5486 = vmul.f32 %v543, %v5475
      %v5487 = vmul.f32 %v544, %v5475
      %v5488 = vmul.f32 %v545, %v5475
      %v5489 = vmul.f32 %v546, %v5475
      %v5490 = vmul.f32 %v547, %v5475
      %v5491 = vmul.f32 %v548, %v5475
      %v5492 = vmul.f32 %v549, %v5475
      %v5493 = vmul.f32 %v550, %v5475
      %v5494 = vmul.f32 %v551, %v5475
      %v5495 = vmul.f32 %v552, %v5475
      %v5496 = vmul.f32 %v553, %v5475
      %v5497 = vmul.f32 %v554, %v5475
      %v5498 = vmul.f32 %v555, %v5475
      %v5499 = vmul.f32 %v556, %v5475
      %v5524 = vrot.slane %v5476, 5
      %v5525 = vrot.slane %v5477, 5
      %v5526 = vsel %vm5281, %v5524, %v5525
      %v5527 = vrot.slane %v5478, 5
      %v5528 = vsel %vm5281, %v5525, %v5527
      %v5529 = vrot.slane %v5479, 5
      %v5530 = vrot.slane %v5480, 5
      %v5531 = vsel %vm5281, %v5529, %v5530
      %v5532 = vrot.slane %v5481, 5
      %v5533 = vsel %vm5281, %v5530, %v5532
      %v5534 = vrot.slane %v5482, 5
      %v5535 = vrot.slane %v5483, 5
      %v5536 = vsel %vm5281, %v5534, %v5535
      %v5537 = vrot.slane %v5484, 5
      %v5538 = vsel %vm5281, %v5535, %v5537
      %v5539 = vrot.slane %v5485, 5
      %v5540 = vrot.slane %v5486, 5
      %v5541 = vsel %vm5281, %v5539, %v5540
      %v5542 = vrot.slane %v5487, 5
      %v5543 = vsel %vm5281, %v5540, %v5542
      %v5544 = vrot.slane %v5488, 5
      %v5545 = vrot.slane %v5489, 5
      %v5546 = vsel %vm5281, %v5544, %v5545
      %v5547 = vrot.slane %v5490, 5
      %v5548 = vsel %vm5281, %v5545, %v5547
      %v5549 = vrot.slane %v5491, 5
      %v5550 = vrot.slane %v5492, 5
      %v5551 = vsel %vm5281, %v5549, %v5550
      %v5552 = vrot.slane %v5493, 5
      %v5553 = vsel %vm5281, %v5550, %v5552
      %v5554 = vrot.slane %v5494, 5
      %v5555 = vrot.slane %v5495, 5
      %v5556 = vsel %vm5281, %v5554, %v5555
      %v5557 = vrot.slane %v5496, 5
      %v5558 = vsel %vm5281, %v5555, %v5557
      %v5559 = vrot.slane %v5497, 5
      %v5560 = vrot.slane %v5498, 5
      %v5561 = vsel %vm5281, %v5559, %v5560
      %v5562 = vrot.slane %v5499, 5
      %v5563 = vsel %vm5281, %v5560, %v5562
      %v5580 = vadd.f32 %v5459, %v5526
      %v5581 = vadd.f32 %v5460, %v5528
      %v5582 = vadd.f32 %v5461, %v5531
      %v5583 = vadd.f32 %v5462, %v5533
      %v5584 = vadd.f32 %v5463, %v5536
      %v5585 = vadd.f32 %v5464, %v5538
      %v5586 = vadd.f32 %v5465, %v5541
      %v5587 = vadd.f32 %v5466, %v5543
      %v5588 = vadd.f32 %v5467, %v5546
      %v5589 = vadd.f32 %v5468, %v5548
      %v5590 = vadd.f32 %v5469, %v5551
      %v5591 = vadd.f32 %v5470, %v5553
      %v5592 = vadd.f32 %v5471, %v5556
      %v5593 = vadd.f32 %v5472, %v5558
      %v5594 = vadd.f32 %v5473, %v5561
      %v5595 = vadd.f32 %v5474, %v5563
      %v5596 = vperm.slane %v506, 5
      %v5597 = vmul.f32 %v536, %v5596
      %v5598 = vmul.f32 %v537, %v5596
      %v5599 = vmul.f32 %v538, %v5596
      %v5600 = vmul.f32 %v539, %v5596
      %v5601 = vmul.f32 %v540, %v5596
      %v5602 = vmul.f32 %v541, %v5596
      %v5603 = vmul.f32 %v542, %v5596
      %v5604 = vmul.f32 %v543, %v5596
      %v5605 = vmul.f32 %v544, %v5596
      %v5606 = vmul.f32 %v545, %v5596
      %v5607 = vmul.f32 %v546, %v5596
      %v5608 = vmul.f32 %v547, %v5596
      %v5609 = vmul.f32 %v548, %v5596
      %v5610 = vmul.f32 %v549, %v5596
      %v5611 = vmul.f32 %v550, %v5596
      %v5612 = vmul.f32 %v551, %v5596
      %v5613 = vmul.f32 %v552, %v5596
      %v5614 = vmul.f32 %v553, %v5596
      %v5615 = vmul.f32 %v554, %v5596
      %v5616 = vmul.f32 %v555, %v5596
      %v5617 = vmul.f32 %v556, %v5596
      %v5618 = vmul.f32 %v557, %v5596
      %v5619 = vmul.f32 %v558, %v5596
      %v5620 = vmul.f32 %v559, %v5596
      %v5645 = vrot.slane %v5597, 5
      %v5646 = vrot.slane %v5598, 5
      %v5647 = vsel %vm5281, %v5645, %v5646
      %v5648 = vrot.slane %v5599, 5
      %v5649 = vsel %vm5281, %v5646, %v5648
      %v5650 = vrot.slane %v5600, 5
      %v5651 = vrot.slane %v5601, 5
      %v5652 = vsel %vm5281, %v5650, %v5651
      %v5653 = vrot.slane %v5602, 5
      %v5654 = vsel %vm5281, %v5651, %v5653
      %v5655 = vrot.slane %v5603, 5
      %v5656 = vrot.slane %v5604, 5
      %v5657 = vsel %vm5281, %v5655, %v5656
      %v5658 = vrot.slane %v5605, 5
      %v5659 = vsel %vm5281, %v5656, %v5658
      %v5660 = vrot.slane %v5606, 5
      %v5661 = vrot.slane %v5607, 5
      %v5662 = vsel %vm5281, %v5660, %v5661
      %v5663 = vrot.slane %v5608, 5
      %v5664 = vsel %vm5281, %v5661, %v5663
      %v5665 = vrot.slane %v5609, 5
      %v5666 = vrot.slane %v5610, 5
      %v5667 = vsel %vm5281, %v5665, %v5666
      %v5668 = vrot.slane %v5611, 5
      %v5669 = vsel %vm5281, %v5666, %v5668
      %v5670 = vrot.slane %v5612, 5
      %v5671 = vrot.slane %v5613, 5
      %v5672 = vsel %vm5281, %v5670, %v5671
      %v5673 = vrot.slane %v5614, 5
      %v5674 = vsel %vm5281, %v5671, %v5673
      %v5675 = vrot.slane %v5615, 5
      %v5676 = vrot.slane %v5616, 5
      %v5677 = vsel %vm5281, %v5675, %v5676
      %v5678 = vrot.slane %v5617, 5
      %v5679 = vsel %vm5281, %v5676, %v5678
      %v5680 = vrot.slane %v5618, 5
      %v5681 = vrot.slane %v5619, 5
      %v5682 = vsel %vm5281, %v5680, %v5681
      %v5683 = vrot.slane %v5620, 5
      %v5684 = vsel %vm5281, %v5681, %v5683
      %v5701 = vadd.f32 %v5580, %v5647
      %v5702 = vadd.f32 %v5581, %v5649
      %v5703 = vadd.f32 %v5582, %v5652
      %v5704 = vadd.f32 %v5583, %v5654
      %v5705 = vadd.f32 %v5584, %v5657
      %v5706 = vadd.f32 %v5585, %v5659
      %v5707 = vadd.f32 %v5586, %v5662
      %v5708 = vadd.f32 %v5587, %v5664
      %v5709 = vadd.f32 %v5588, %v5667
      %v5710 = vadd.f32 %v5589, %v5669
      %v5711 = vadd.f32 %v5590, %v5672
      %v5712 = vadd.f32 %v5591, %v5674
      %v5713 = vadd.f32 %v5592, %v5677
      %v5714 = vadd.f32 %v5593, %v5679
      %v5715 = vadd.f32 %v5594, %v5682
      %v5716 = vadd.f32 %v5595, %v5684
      %v5717 = vperm.slane %v508, 5
      %v5718 = vmul.f32 %v539, %v5717
      %v5719 = vmul.f32 %v540, %v5717
      %v5720 = vmul.f32 %v541, %v5717
      %v5721 = vmul.f32 %v542, %v5717
      %v5722 = vmul.f32 %v543, %v5717
      %v5723 = vmul.f32 %v544, %v5717
      %v5724 = vmul.f32 %v545, %v5717
      %v5725 = vmul.f32 %v546, %v5717
      %v5726 = vmul.f32 %v547, %v5717
      %v5727 = vmul.f32 %v548, %v5717
      %v5728 = vmul.f32 %v549, %v5717
      %v5729 = vmul.f32 %v550, %v5717
      %v5730 = vmul.f32 %v551, %v5717
      %v5731 = vmul.f32 %v552, %v5717
      %v5732 = vmul.f32 %v553, %v5717
      %v5733 = vmul.f32 %v554, %v5717
      %v5734 = vmul.f32 %v555, %v5717
      %v5735 = vmul.f32 %v556, %v5717
      %v5736 = vmul.f32 %v557, %v5717
      %v5737 = vmul.f32 %v558, %v5717
      %v5738 = vmul.f32 %v559, %v5717
      %v5739 = vmul.f32 %v560, %v5717
      %v5740 = vmul.f32 %v561, %v5717
      %v5741 = vmul.f32 %v562, %v5717
      %v5766 = vrot.slane %v5718, 5
      %v5767 = vrot.slane %v5719, 5
      %v5768 = vsel %vm5281, %v5766, %v5767
      %v5769 = vrot.slane %v5720, 5
      %v5770 = vsel %vm5281, %v5767, %v5769
      %v5771 = vrot.slane %v5721, 5
      %v5772 = vrot.slane %v5722, 5
      %v5773 = vsel %vm5281, %v5771, %v5772
      %v5774 = vrot.slane %v5723, 5
      %v5775 = vsel %vm5281, %v5772, %v5774
      %v5776 = vrot.slane %v5724, 5
      %v5777 = vrot.slane %v5725, 5
      %v5778 = vsel %vm5281, %v5776, %v5777
      %v5779 = vrot.slane %v5726, 5
      %v5780 = vsel %vm5281, %v5777, %v5779
      %v5781 = vrot.slane %v5727, 5
      %v5782 = vrot.slane %v5728, 5
      %v5783 = vsel %vm5281, %v5781, %v5782
      %v5784 = vrot.slane %v5729, 5
      %v5785 = vsel %vm5281, %v5782, %v5784
      %v5786 = vrot.slane %v5730, 5
      %v5787 = vrot.slane %v5731, 5
      %v5788 = vsel %vm5281, %v5786, %v5787
      %v5789 = vrot.slane %v5732, 5
      %v5790 = vsel %vm5281, %v5787, %v5789
      %v5791 = vrot.slane %v5733, 5
      %v5792 = vrot.slane %v5734, 5
      %v5793 = vsel %vm5281, %v5791, %v5792
      %v5794 = vrot.slane %v5735, 5
      %v5795 = vsel %vm5281, %v5792, %v5794
      %v5796 = vrot.slane %v5736, 5
      %v5797 = vrot.slane %v5737, 5
      %v5798 = vsel %vm5281, %v5796, %v5797
      %v5799 = vrot.slane %v5738, 5
      %v5800 = vsel %vm5281, %v5797, %v5799
      %v5801 = vrot.slane %v5739, 5
      %v5802 = vrot.slane %v5740, 5
      %v5803 = vsel %vm5281, %v5801, %v5802
      %v5804 = vrot.slane %v5741, 5
      %v5805 = vsel %vm5281, %v5802, %v5804
      %v5822 = vadd.f32 %v5701, %v5768
      %v5823 = vadd.f32 %v5702, %v5770
      %v5824 = vadd.f32 %v5703, %v5773
      %v5825 = vadd.f32 %v5704, %v5775
      %v5826 = vadd.f32 %v5705, %v5778
      %v5827 = vadd.f32 %v5706, %v5780
      %v5828 = vadd.f32 %v5707, %v5783
      %v5829 = vadd.f32 %v5708, %v5785
      %v5830 = vadd.f32 %v5709, %v5788
      %v5831 = vadd.f32 %v5710, %v5790
      %v5832 = vadd.f32 %v5711, %v5793
      %v5833 = vadd.f32 %v5712, %v5795
      %v5834 = vadd.f32 %v5713, %v5798
      %v5835 = vadd.f32 %v5714, %v5800
      %v5836 = vadd.f32 %v5715, %v5803
      %v5837 = vadd.f32 %v5716, %v5805
      %v5838 = vperm.slane %v510, 5
      %v5839 = vmul.f32 %v542, %v5838
      %v5840 = vmul.f32 %v543, %v5838
      %v5841 = vmul.f32 %v544, %v5838
      %v5842 = vmul.f32 %v545, %v5838
      %v5843 = vmul.f32 %v546, %v5838
      %v5844 = vmul.f32 %v547, %v5838
      %v5845 = vmul.f32 %v548, %v5838
      %v5846 = vmul.f32 %v549, %v5838
      %v5847 = vmul.f32 %v550, %v5838
      %v5848 = vmul.f32 %v551, %v5838
      %v5849 = vmul.f32 %v552, %v5838
      %v5850 = vmul.f32 %v553, %v5838
      %v5851 = vmul.f32 %v554, %v5838
      %v5852 = vmul.f32 %v555, %v5838
      %v5853 = vmul.f32 %v556, %v5838
      %v5854 = vmul.f32 %v557, %v5838
      %v5855 = vmul.f32 %v558, %v5838
      %v5856 = vmul.f32 %v559, %v5838
      %v5857 = vmul.f32 %v560, %v5838
      %v5858 = vmul.f32 %v561, %v5838
      %v5859 = vmul.f32 %v562, %v5838
      %v5860 = vmul.f32 %v563, %v5838
      %v5861 = vmul.f32 %v564, %v5838
      %v5862 = vmul.f32 %v565, %v5838
      %v5887 = vrot.slane %v5839, 5
      %v5888 = vrot.slane %v5840, 5
      %v5889 = vsel %vm5281, %v5887, %v5888
      %v5890 = vrot.slane %v5841, 5
      %v5891 = vsel %vm5281, %v5888, %v5890
      %v5892 = vrot.slane %v5842, 5
      %v5893 = vrot.slane %v5843, 5
      %v5894 = vsel %vm5281, %v5892, %v5893
      %v5895 = vrot.slane %v5844, 5
      %v5896 = vsel %vm5281, %v5893, %v5895
      %v5897 = vrot.slane %v5845, 5
      %v5898 = vrot.slane %v5846, 5
      %v5899 = vsel %vm5281, %v5897, %v5898
      %v5900 = vrot.slane %v5847, 5
      %v5901 = vsel %vm5281, %v5898, %v5900
      %v5902 = vrot.slane %v5848, 5
      %v5903 = vrot.slane %v5849, 5
      %v5904 = vsel %vm5281, %v5902, %v5903
      %v5905 = vrot.slane %v5850, 5
      %v5906 = vsel %vm5281, %v5903, %v5905
      %v5907 = vrot.slane %v5851, 5
      %v5908 = vrot.slane %v5852, 5
      %v5909 = vsel %vm5281, %v5907, %v5908
      %v5910 = vrot.slane %v5853, 5
      %v5911 = vsel %vm5281, %v5908, %v5910
      %v5912 = vrot.slane %v5854, 5
      %v5913 = vrot.slane %v5855, 5
      %v5914 = vsel %vm5281, %v5912, %v5913
      %v5915 = vrot.slane %v5856, 5
      %v5916 = vsel %vm5281, %v5913, %v5915
      %v5917 = vrot.slane %v5857, 5
      %v5918 = vrot.slane %v5858, 5
      %v5919 = vsel %vm5281, %v5917, %v5918
      %v5920 = vrot.slane %v5859, 5
      %v5921 = vsel %vm5281, %v5918, %v5920
      %v5922 = vrot.slane %v5860, 5
      %v5923 = vrot.slane %v5861, 5
      %v5924 = vsel %vm5281, %v5922, %v5923
      %v5925 = vrot.slane %v5862, 5
      %v5926 = vsel %vm5281, %v5923, %v5925
      %v5943 = vadd.f32 %v5822, %v5889
      %v5944 = vadd.f32 %v5823, %v5891
      %v5945 = vadd.f32 %v5824, %v5894
      %v5946 = vadd.f32 %v5825, %v5896
      %v5947 = vadd.f32 %v5826, %v5899
      %v5948 = vadd.f32 %v5827, %v5901
      %v5949 = vadd.f32 %v5828, %v5904
      %v5950 = vadd.f32 %v5829, %v5906
      %v5951 = vadd.f32 %v5830, %v5909
      %v5952 = vadd.f32 %v5831, %v5911
      %v5953 = vadd.f32 %v5832, %v5914
      %v5954 = vadd.f32 %v5833, %v5916
      %v5955 = vadd.f32 %v5834, %v5919
      %v5956 = vadd.f32 %v5835, %v5921
      %v5957 = vadd.f32 %v5836, %v5924
      %v5958 = vadd.f32 %v5837, %v5926
      %v5959 = vperm.slane %v512, 5
      %v5960 = vmul.f32 %v545, %v5959
      %v5961 = vmul.f32 %v546, %v5959
      %v5962 = vmul.f32 %v547, %v5959
      %v5963 = vmul.f32 %v548, %v5959
      %v5964 = vmul.f32 %v549, %v5959
      %v5965 = vmul.f32 %v550, %v5959
      %v5966 = vmul.f32 %v551, %v5959
      %v5967 = vmul.f32 %v552, %v5959
      %v5968 = vmul.f32 %v553, %v5959
      %v5969 = vmul.f32 %v554, %v5959
      %v5970 = vmul.f32 %v555, %v5959
      %v5971 = vmul.f32 %v556, %v5959
      %v5972 = vmul.f32 %v557, %v5959
      %v5973 = vmul.f32 %v558, %v5959
      %v5974 = vmul.f32 %v559, %v5959
      %v5975 = vmul.f32 %v560, %v5959
      %v5976 = vmul.f32 %v561, %v5959
      %v5977 = vmul.f32 %v562, %v5959
      %v5978 = vmul.f32 %v563, %v5959
      %v5979 = vmul.f32 %v564, %v5959
      %v5980 = vmul.f32 %v565, %v5959
      %v5981 = vmul.f32 %v566, %v5959
      %v5982 = vmul.f32 %v567, %v5959
      %v5983 = vmul.f32 %v568, %v5959
      %v6008 = vrot.slane %v5960, 5
      %v6009 = vrot.slane %v5961, 5
      %v6010 = vsel %vm5281, %v6008, %v6009
      %v6011 = vrot.slane %v5962, 5
      %v6012 = vsel %vm5281, %v6009, %v6011
      %v6013 = vrot.slane %v5963, 5
      %v6014 = vrot.slane %v5964, 5
      %v6015 = vsel %vm5281, %v6013, %v6014
      %v6016 = vrot.slane %v5965, 5
      %v6017 = vsel %vm5281, %v6014, %v6016
      %v6018 = vrot.slane %v5966, 5
      %v6019 = vrot.slane %v5967, 5
      %v6020 = vsel %vm5281, %v6018, %v6019
      %v6021 = vrot.slane %v5968, 5
      %v6022 = vsel %vm5281, %v6019, %v6021
      %v6023 = vrot.slane %v5969, 5
      %v6024 = vrot.slane %v5970, 5
      %v6025 = vsel %vm5281, %v6023, %v6024
      %v6026 = vrot.slane %v5971, 5
      %v6027 = vsel %vm5281, %v6024, %v6026
      %v6028 = vrot.slane %v5972, 5
      %v6029 = vrot.slane %v5973, 5
      %v6030 = vsel %vm5281, %v6028, %v6029
      %v6031 = vrot.slane %v5974, 5
      %v6032 = vsel %vm5281, %v6029, %v6031
      %v6033 = vrot.slane %v5975, 5
      %v6034 = vrot.slane %v5976, 5
      %v6035 = vsel %vm5281, %v6033, %v6034
      %v6036 = vrot.slane %v5977, 5
      %v6037 = vsel %vm5281, %v6034, %v6036
      %v6038 = vrot.slane %v5978, 5
      %v6039 = vrot.slane %v5979, 5
      %v6040 = vsel %vm5281, %v6038, %v6039
      %v6041 = vrot.slane %v5980, 5
      %v6042 = vsel %vm5281, %v6039, %v6041
      %v6043 = vrot.slane %v5981, 5
      %v6044 = vrot.slane %v5982, 5
      %v6045 = vsel %vm5281, %v6043, %v6044
      %v6046 = vrot.slane %v5983, 5
      %v6047 = vsel %vm5281, %v6044, %v6046
      %v6064 = vadd.f32 %v5943, %v6010
      %v6065 = vadd.f32 %v5944, %v6012
      %v6066 = vadd.f32 %v5945, %v6015
      %v6067 = vadd.f32 %v5946, %v6017
      %v6068 = vadd.f32 %v5947, %v6020
      %v6069 = vadd.f32 %v5948, %v6022
      %v6070 = vadd.f32 %v5949, %v6025
      %v6071 = vadd.f32 %v5950, %v6027
      %v6072 = vadd.f32 %v5951, %v6030
      %v6073 = vadd.f32 %v5952, %v6032
      %v6074 = vadd.f32 %v5953, %v6035
      %v6075 = vadd.f32 %v5954, %v6037
      %v6076 = vadd.f32 %v5955, %v6040
      %v6077 = vadd.f32 %v5956, %v6042
      %v6078 = vadd.f32 %v5957, %v6045
      %v6079 = vadd.f32 %v5958, %v6047
      %v6080 = vperm.slane %v514, 5
      %v6081 = vmul.f32 %v548, %v6080
      %v6082 = vmul.f32 %v549, %v6080
      %v6083 = vmul.f32 %v550, %v6080
      %v6084 = vmul.f32 %v551, %v6080
      %v6085 = vmul.f32 %v552, %v6080
      %v6086 = vmul.f32 %v553, %v6080
      %v6087 = vmul.f32 %v554, %v6080
      %v6088 = vmul.f32 %v555, %v6080
      %v6089 = vmul.f32 %v556, %v6080
      %v6090 = vmul.f32 %v557, %v6080
      %v6091 = vmul.f32 %v558, %v6080
      %v6092 = vmul.f32 %v559, %v6080
      %v6093 = vmul.f32 %v560, %v6080
      %v6094 = vmul.f32 %v561, %v6080
      %v6095 = vmul.f32 %v562, %v6080
      %v6096 = vmul.f32 %v563, %v6080
      %v6097 = vmul.f32 %v564, %v6080
      %v6098 = vmul.f32 %v565, %v6080
      %v6099 = vmul.f32 %v566, %v6080
      %v6100 = vmul.f32 %v567, %v6080
      %v6101 = vmul.f32 %v568, %v6080
      %v6102 = vmul.f32 %v569, %v6080
      %v6103 = vmul.f32 %v570, %v6080
      %v6104 = vmul.f32 %v571, %v6080
      %v6129 = vrot.slane %v6081, 5
      %v6130 = vrot.slane %v6082, 5
      %v6131 = vsel %vm5281, %v6129, %v6130
      %v6132 = vrot.slane %v6083, 5
      %v6133 = vsel %vm5281, %v6130, %v6132
      %v6134 = vrot.slane %v6084, 5
      %v6135 = vrot.slane %v6085, 5
      %v6136 = vsel %vm5281, %v6134, %v6135
      %v6137 = vrot.slane %v6086, 5
      %v6138 = vsel %vm5281, %v6135, %v6137
      %v6139 = vrot.slane %v6087, 5
      %v6140 = vrot.slane %v6088, 5
      %v6141 = vsel %vm5281, %v6139, %v6140
      %v6142 = vrot.slane %v6089, 5
      %v6143 = vsel %vm5281, %v6140, %v6142
      %v6144 = vrot.slane %v6090, 5
      %v6145 = vrot.slane %v6091, 5
      %v6146 = vsel %vm5281, %v6144, %v6145
      %v6147 = vrot.slane %v6092, 5
      %v6148 = vsel %vm5281, %v6145, %v6147
      %v6149 = vrot.slane %v6093, 5
      %v6150 = vrot.slane %v6094, 5
      %v6151 = vsel %vm5281, %v6149, %v6150
      %v6152 = vrot.slane %v6095, 5
      %v6153 = vsel %vm5281, %v6150, %v6152
      %v6154 = vrot.slane %v6096, 5
      %v6155 = vrot.slane %v6097, 5
      %v6156 = vsel %vm5281, %v6154, %v6155
      %v6157 = vrot.slane %v6098, 5
      %v6158 = vsel %vm5281, %v6155, %v6157
      %v6159 = vrot.slane %v6099, 5
      %v6160 = vrot.slane %v6100, 5
      %v6161 = vsel %vm5281, %v6159, %v6160
      %v6162 = vrot.slane %v6101, 5
      %v6163 = vsel %vm5281, %v6160, %v6162
      %v6164 = vrot.slane %v6102, 5
      %v6165 = vrot.slane %v6103, 5
      %v6166 = vsel %vm5281, %v6164, %v6165
      %v6167 = vrot.slane %v6104, 5
      %v6168 = vsel %vm5281, %v6165, %v6167
      %v6185 = vadd.f32 %v6064, %v6131
      %v6186 = vadd.f32 %v6065, %v6133
      %v6187 = vadd.f32 %v6066, %v6136
      %v6188 = vadd.f32 %v6067, %v6138
      %v6189 = vadd.f32 %v6068, %v6141
      %v6190 = vadd.f32 %v6069, %v6143
      %v6191 = vadd.f32 %v6070, %v6146
      %v6192 = vadd.f32 %v6071, %v6148
      %v6193 = vadd.f32 %v6072, %v6151
      %v6194 = vadd.f32 %v6073, %v6153
      %v6195 = vadd.f32 %v6074, %v6156
      %v6196 = vadd.f32 %v6075, %v6158
      %v6197 = vadd.f32 %v6076, %v6161
      %v6198 = vadd.f32 %v6077, %v6163
      %v6199 = vadd.f32 %v6078, %v6166
      %v6200 = vadd.f32 %v6079, %v6168
      %v6201 = vperm.slane %v516, 5
      %v6202 = vmul.f32 %v551, %v6201
      %v6203 = vmul.f32 %v552, %v6201
      %v6204 = vmul.f32 %v553, %v6201
      %v6205 = vmul.f32 %v554, %v6201
      %v6206 = vmul.f32 %v555, %v6201
      %v6207 = vmul.f32 %v556, %v6201
      %v6208 = vmul.f32 %v557, %v6201
      %v6209 = vmul.f32 %v558, %v6201
      %v6210 = vmul.f32 %v559, %v6201
      %v6211 = vmul.f32 %v560, %v6201
      %v6212 = vmul.f32 %v561, %v6201
      %v6213 = vmul.f32 %v562, %v6201
      %v6214 = vmul.f32 %v563, %v6201
      %v6215 = vmul.f32 %v564, %v6201
      %v6216 = vmul.f32 %v565, %v6201
      %v6217 = vmul.f32 %v566, %v6201
      %v6218 = vmul.f32 %v567, %v6201
      %v6219 = vmul.f32 %v568, %v6201
      %v6220 = vmul.f32 %v569, %v6201
      %v6221 = vmul.f32 %v570, %v6201
      %v6222 = vmul.f32 %v571, %v6201
      %v6223 = vmul.f32 %v572, %v6201
      %v6224 = vmul.f32 %v573, %v6201
      %v6225 = vmul.f32 %v574, %v6201
      %v6250 = vrot.slane %v6202, 5
      %v6251 = vrot.slane %v6203, 5
      %v6252 = vsel %vm5281, %v6250, %v6251
      %v6253 = vrot.slane %v6204, 5
      %v6254 = vsel %vm5281, %v6251, %v6253
      %v6255 = vrot.slane %v6205, 5
      %v6256 = vrot.slane %v6206, 5
      %v6257 = vsel %vm5281, %v6255, %v6256
      %v6258 = vrot.slane %v6207, 5
      %v6259 = vsel %vm5281, %v6256, %v6258
      %v6260 = vrot.slane %v6208, 5
      %v6261 = vrot.slane %v6209, 5
      %v6262 = vsel %vm5281, %v6260, %v6261
      %v6263 = vrot.slane %v6210, 5
      %v6264 = vsel %vm5281, %v6261, %v6263
      %v6265 = vrot.slane %v6211, 5
      %v6266 = vrot.slane %v6212, 5
      %v6267 = vsel %vm5281, %v6265, %v6266
      %v6268 = vrot.slane %v6213, 5
      %v6269 = vsel %vm5281, %v6266, %v6268
      %v6270 = vrot.slane %v6214, 5
      %v6271 = vrot.slane %v6215, 5
      %v6272 = vsel %vm5281, %v6270, %v6271
      %v6273 = vrot.slane %v6216, 5
      %v6274 = vsel %vm5281, %v6271, %v6273
      %v6275 = vrot.slane %v6217, 5
      %v6276 = vrot.slane %v6218, 5
      %v6277 = vsel %vm5281, %v6275, %v6276
      %v6278 = vrot.slane %v6219, 5
      %v6279 = vsel %vm5281, %v6276, %v6278
      %v6280 = vrot.slane %v6220, 5
      %v6281 = vrot.slane %v6221, 5
      %v6282 = vsel %vm5281, %v6280, %v6281
      %v6283 = vrot.slane %v6222, 5
      %v6284 = vsel %vm5281, %v6281, %v6283
      %v6285 = vrot.slane %v6223, 5
      %v6286 = vrot.slane %v6224, 5
      %v6287 = vsel %vm5281, %v6285, %v6286
      %v6288 = vrot.slane %v6225, 5
      %v6289 = vsel %vm5281, %v6286, %v6288
      %v6306 = vadd.f32 %v6185, %v6252
      %v6307 = vadd.f32 %v6186, %v6254
      %v6308 = vadd.f32 %v6187, %v6257
      %v6309 = vadd.f32 %v6188, %v6259
      %v6310 = vadd.f32 %v6189, %v6262
      %v6311 = vadd.f32 %v6190, %v6264
      %v6312 = vadd.f32 %v6191, %v6267
      %v6313 = vadd.f32 %v6192, %v6269
      %v6314 = vadd.f32 %v6193, %v6272
      %v6315 = vadd.f32 %v6194, %v6274
      %v6316 = vadd.f32 %v6195, %v6277
      %v6317 = vadd.f32 %v6196, %v6279
      %v6318 = vadd.f32 %v6197, %v6282
      %v6319 = vadd.f32 %v6198, %v6284
      %v6320 = vadd.f32 %v6199, %v6287
      %v6321 = vadd.f32 %v6200, %v6289
      %v6322 = vperm.slane %v500, 6
      %v6323 = vmul.f32 %v527, %v6322
      %v6324 = vmul.f32 %v528, %v6322
      %v6325 = vmul.f32 %v529, %v6322
      %v6326 = vmul.f32 %v530, %v6322
      %v6327 = vmul.f32 %v531, %v6322
      %v6328 = vmul.f32 %v532, %v6322
      %v6329 = vmul.f32 %v533, %v6322
      %v6330 = vmul.f32 %v534, %v6322
      %v6331 = vmul.f32 %v535, %v6322
      %v6332 = vmul.f32 %v536, %v6322
      %v6333 = vmul.f32 %v537, %v6322
      %v6334 = vmul.f32 %v538, %v6322
      %v6335 = vmul.f32 %v539, %v6322
      %v6336 = vmul.f32 %v540, %v6322
      %v6337 = vmul.f32 %v541, %v6322
      %v6338 = vmul.f32 %v542, %v6322
      %v6339 = vmul.f32 %v543, %v6322
      %v6340 = vmul.f32 %v544, %v6322
      %v6341 = vmul.f32 %v545, %v6322
      %v6342 = vmul.f32 %v546, %v6322
      %v6343 = vmul.f32 %v547, %v6322
      %v6344 = vmul.f32 %v548, %v6322
      %v6345 = vmul.f32 %v549, %v6322
      %v6346 = vmul.f32 %v550, %v6322
      %vm6371 = vcmask 1041408
      %v6372 = vrot.slane %v6323, 6
      %v6373 = vrot.slane %v6324, 6
      %v6374 = vsel %vm6371, %v6372, %v6373
      %v6375 = vrot.slane %v6325, 6
      %v6376 = vsel %vm6371, %v6373, %v6375
      %v6377 = vrot.slane %v6326, 6
      %v6378 = vrot.slane %v6327, 6
      %v6379 = vsel %vm6371, %v6377, %v6378
      %v6380 = vrot.slane %v6328, 6
      %v6381 = vsel %vm6371, %v6378, %v6380
      %v6382 = vrot.slane %v6329, 6
      %v6383 = vrot.slane %v6330, 6
      %v6384 = vsel %vm6371, %v6382, %v6383
      %v6385 = vrot.slane %v6331, 6
      %v6386 = vsel %vm6371, %v6383, %v6385
      %v6387 = vrot.slane %v6332, 6
      %v6388 = vrot.slane %v6333, 6
      %v6389 = vsel %vm6371, %v6387, %v6388
      %v6390 = vrot.slane %v6334, 6
      %v6391 = vsel %vm6371, %v6388, %v6390
      %v6392 = vrot.slane %v6335, 6
      %v6393 = vrot.slane %v6336, 6
      %v6394 = vsel %vm6371, %v6392, %v6393
      %v6395 = vrot.slane %v6337, 6
      %v6396 = vsel %vm6371, %v6393, %v6395
      %v6397 = vrot.slane %v6338, 6
      %v6398 = vrot.slane %v6339, 6
      %v6399 = vsel %vm6371, %v6397, %v6398
      %v6400 = vrot.slane %v6340, 6
      %v6401 = vsel %vm6371, %v6398, %v6400
      %v6402 = vrot.slane %v6341, 6
      %v6403 = vrot.slane %v6342, 6
      %v6404 = vsel %vm6371, %v6402, %v6403
      %v6405 = vrot.slane %v6343, 6
      %v6406 = vsel %vm6371, %v6403, %v6405
      %v6407 = vrot.slane %v6344, 6
      %v6408 = vrot.slane %v6345, 6
      %v6409 = vsel %vm6371, %v6407, %v6408
      %v6410 = vrot.slane %v6346, 6
      %v6411 = vsel %vm6371, %v6408, %v6410
      %v6428 = vadd.f32 %v6306, %v6374
      %v6429 = vadd.f32 %v6307, %v6376
      %v6430 = vadd.f32 %v6308, %v6379
      %v6431 = vadd.f32 %v6309, %v6381
      %v6432 = vadd.f32 %v6310, %v6384
      %v6433 = vadd.f32 %v6311, %v6386
      %v6434 = vadd.f32 %v6312, %v6389
      %v6435 = vadd.f32 %v6313, %v6391
      %v6436 = vadd.f32 %v6314, %v6394
      %v6437 = vadd.f32 %v6315, %v6396
      %v6438 = vadd.f32 %v6316, %v6399
      %v6439 = vadd.f32 %v6317, %v6401
      %v6440 = vadd.f32 %v6318, %v6404
      %v6441 = vadd.f32 %v6319, %v6406
      %v6442 = vadd.f32 %v6320, %v6409
      %v6443 = vadd.f32 %v6321, %v6411
      %v6444 = vperm.slane %v502, 6
      %v6445 = vmul.f32 %v530, %v6444
      %v6446 = vmul.f32 %v531, %v6444
      %v6447 = vmul.f32 %v532, %v6444
      %v6448 = vmul.f32 %v533, %v6444
      %v6449 = vmul.f32 %v534, %v6444
      %v6450 = vmul.f32 %v535, %v6444
      %v6451 = vmul.f32 %v536, %v6444
      %v6452 = vmul.f32 %v537, %v6444
      %v6453 = vmul.f32 %v538, %v6444
      %v6454 = vmul.f32 %v539, %v6444
      %v6455 = vmul.f32 %v540, %v6444
      %v6456 = vmul.f32 %v541, %v6444
      %v6457 = vmul.f32 %v542, %v6444
      %v6458 = vmul.f32 %v543, %v6444
      %v6459 = vmul.f32 %v544, %v6444
      %v6460 = vmul.f32 %v545, %v6444
      %v6461 = vmul.f32 %v546, %v6444
      %v6462 = vmul.f32 %v547, %v6444
      %v6463 = vmul.f32 %v548, %v6444
      %v6464 = vmul.f32 %v549, %v6444
      %v6465 = vmul.f32 %v550, %v6444
      %v6466 = vmul.f32 %v551, %v6444
      %v6467 = vmul.f32 %v552, %v6444
      %v6468 = vmul.f32 %v553, %v6444
      %v6493 = vrot.slane %v6445, 6
      %v6494 = vrot.slane %v6446, 6
      %v6495 = vsel %vm6371, %v6493, %v6494
      %v6496 = vrot.slane %v6447, 6
      %v6497 = vsel %vm6371, %v6494, %v6496
      %v6498 = vrot.slane %v6448, 6
      %v6499 = vrot.slane %v6449, 6
      %v6500 = vsel %vm6371, %v6498, %v6499
      %v6501 = vrot.slane %v6450, 6
      %v6502 = vsel %vm6371, %v6499, %v6501
      %v6503 = vrot.slane %v6451, 6
      %v6504 = vrot.slane %v6452, 6
      %v6505 = vsel %vm6371, %v6503, %v6504
      %v6506 = vrot.slane %v6453, 6
      %v6507 = vsel %vm6371, %v6504, %v6506
      %v6508 = vrot.slane %v6454, 6
      %v6509 = vrot.slane %v6455, 6
      %v6510 = vsel %vm6371, %v6508, %v6509
      %v6511 = vrot.slane %v6456, 6
      %v6512 = vsel %vm6371, %v6509, %v6511
      %v6513 = vrot.slane %v6457, 6
      %v6514 = vrot.slane %v6458, 6
      %v6515 = vsel %vm6371, %v6513, %v6514
      %v6516 = vrot.slane %v6459, 6
      %v6517 = vsel %vm6371, %v6514, %v6516
      %v6518 = vrot.slane %v6460, 6
      %v6519 = vrot.slane %v6461, 6
      %v6520 = vsel %vm6371, %v6518, %v6519
      %v6521 = vrot.slane %v6462, 6
      %v6522 = vsel %vm6371, %v6519, %v6521
      %v6523 = vrot.slane %v6463, 6
      %v6524 = vrot.slane %v6464, 6
      %v6525 = vsel %vm6371, %v6523, %v6524
      %v6526 = vrot.slane %v6465, 6
      %v6527 = vsel %vm6371, %v6524, %v6526
      %v6528 = vrot.slane %v6466, 6
      %v6529 = vrot.slane %v6467, 6
      %v6530 = vsel %vm6371, %v6528, %v6529
      %v6531 = vrot.slane %v6468, 6
      %v6532 = vsel %vm6371, %v6529, %v6531
      %v6549 = vadd.f32 %v6428, %v6495
      %v6550 = vadd.f32 %v6429, %v6497
      %v6551 = vadd.f32 %v6430, %v6500
      %v6552 = vadd.f32 %v6431, %v6502
      %v6553 = vadd.f32 %v6432, %v6505
      %v6554 = vadd.f32 %v6433, %v6507
      %v6555 = vadd.f32 %v6434, %v6510
      %v6556 = vadd.f32 %v6435, %v6512
      %v6557 = vadd.f32 %v6436, %v6515
      %v6558 = vadd.f32 %v6437, %v6517
      %v6559 = vadd.f32 %v6438, %v6520
      %v6560 = vadd.f32 %v6439, %v6522
      %v6561 = vadd.f32 %v6440, %v6525
      %v6562 = vadd.f32 %v6441, %v6527
      %v6563 = vadd.f32 %v6442, %v6530
      %v6564 = vadd.f32 %v6443, %v6532
      %v6565 = vperm.slane %v504, 6
      %v6566 = vmul.f32 %v533, %v6565
      %v6567 = vmul.f32 %v534, %v6565
      %v6568 = vmul.f32 %v535, %v6565
      %v6569 = vmul.f32 %v536, %v6565
      %v6570 = vmul.f32 %v537, %v6565
      %v6571 = vmul.f32 %v538, %v6565
      %v6572 = vmul.f32 %v539, %v6565
      %v6573 = vmul.f32 %v540, %v6565
      %v6574 = vmul.f32 %v541, %v6565
      %v6575 = vmul.f32 %v542, %v6565
      %v6576 = vmul.f32 %v543, %v6565
      %v6577 = vmul.f32 %v544, %v6565
      %v6578 = vmul.f32 %v545, %v6565
      %v6579 = vmul.f32 %v546, %v6565
      %v6580 = vmul.f32 %v547, %v6565
      %v6581 = vmul.f32 %v548, %v6565
      %v6582 = vmul.f32 %v549, %v6565
      %v6583 = vmul.f32 %v550, %v6565
      %v6584 = vmul.f32 %v551, %v6565
      %v6585 = vmul.f32 %v552, %v6565
      %v6586 = vmul.f32 %v553, %v6565
      %v6587 = vmul.f32 %v554, %v6565
      %v6588 = vmul.f32 %v555, %v6565
      %v6589 = vmul.f32 %v556, %v6565
      %v6614 = vrot.slane %v6566, 6
      %v6615 = vrot.slane %v6567, 6
      %v6616 = vsel %vm6371, %v6614, %v6615
      %v6617 = vrot.slane %v6568, 6
      %v6618 = vsel %vm6371, %v6615, %v6617
      %v6619 = vrot.slane %v6569, 6
      %v6620 = vrot.slane %v6570, 6
      %v6621 = vsel %vm6371, %v6619, %v6620
      %v6622 = vrot.slane %v6571, 6
      %v6623 = vsel %vm6371, %v6620, %v6622
      %v6624 = vrot.slane %v6572, 6
      %v6625 = vrot.slane %v6573, 6
      %v6626 = vsel %vm6371, %v6624, %v6625
      %v6627 = vrot.slane %v6574, 6
      %v6628 = vsel %vm6371, %v6625, %v6627
      %v6629 = vrot.slane %v6575, 6
      %v6630 = vrot.slane %v6576, 6
      %v6631 = vsel %vm6371, %v6629, %v6630
      %v6632 = vrot.slane %v6577, 6
      %v6633 = vsel %vm6371, %v6630, %v6632
      %v6634 = vrot.slane %v6578, 6
      %v6635 = vrot.slane %v6579, 6
      %v6636 = vsel %vm6371, %v6634, %v6635
      %v6637 = vrot.slane %v6580, 6
      %v6638 = vsel %vm6371, %v6635, %v6637
      %v6639 = vrot.slane %v6581, 6
      %v6640 = vrot.slane %v6582, 6
      %v6641 = vsel %vm6371, %v6639, %v6640
      %v6642 = vrot.slane %v6583, 6
      %v6643 = vsel %vm6371, %v6640, %v6642
      %v6644 = vrot.slane %v6584, 6
      %v6645 = vrot.slane %v6585, 6
      %v6646 = vsel %vm6371, %v6644, %v6645
      %v6647 = vrot.slane %v6586, 6
      %v6648 = vsel %vm6371, %v6645, %v6647
      %v6649 = vrot.slane %v6587, 6
      %v6650 = vrot.slane %v6588, 6
      %v6651 = vsel %vm6371, %v6649, %v6650
      %v6652 = vrot.slane %v6589, 6
      %v6653 = vsel %vm6371, %v6650, %v6652
      %v6670 = vadd.f32 %v6549, %v6616
      %v6671 = vadd.f32 %v6550, %v6618
      %v6672 = vadd.f32 %v6551, %v6621
      %v6673 = vadd.f32 %v6552, %v6623
      %v6674 = vadd.f32 %v6553, %v6626
      %v6675 = vadd.f32 %v6554, %v6628
      %v6676 = vadd.f32 %v6555, %v6631
      %v6677 = vadd.f32 %v6556, %v6633
      %v6678 = vadd.f32 %v6557, %v6636
      %v6679 = vadd.f32 %v6558, %v6638
      %v6680 = vadd.f32 %v6559, %v6641
      %v6681 = vadd.f32 %v6560, %v6643
      %v6682 = vadd.f32 %v6561, %v6646
      %v6683 = vadd.f32 %v6562, %v6648
      %v6684 = vadd.f32 %v6563, %v6651
      %v6685 = vadd.f32 %v6564, %v6653
      %v6686 = vperm.slane %v506, 6
      %v6687 = vmul.f32 %v536, %v6686
      %v6688 = vmul.f32 %v537, %v6686
      %v6689 = vmul.f32 %v538, %v6686
      %v6690 = vmul.f32 %v539, %v6686
      %v6691 = vmul.f32 %v540, %v6686
      %v6692 = vmul.f32 %v541, %v6686
      %v6693 = vmul.f32 %v542, %v6686
      %v6694 = vmul.f32 %v543, %v6686
      %v6695 = vmul.f32 %v544, %v6686
      %v6696 = vmul.f32 %v545, %v6686
      %v6697 = vmul.f32 %v546, %v6686
      %v6698 = vmul.f32 %v547, %v6686
      %v6699 = vmul.f32 %v548, %v6686
      %v6700 = vmul.f32 %v549, %v6686
      %v6701 = vmul.f32 %v550, %v6686
      %v6702 = vmul.f32 %v551, %v6686
      %v6703 = vmul.f32 %v552, %v6686
      %v6704 = vmul.f32 %v553, %v6686
      %v6705 = vmul.f32 %v554, %v6686
      %v6706 = vmul.f32 %v555, %v6686
      %v6707 = vmul.f32 %v556, %v6686
      %v6708 = vmul.f32 %v557, %v6686
      %v6709 = vmul.f32 %v558, %v6686
      %v6710 = vmul.f32 %v559, %v6686
      %v6735 = vrot.slane %v6687, 6
      %v6736 = vrot.slane %v6688, 6
      %v6737 = vsel %vm6371, %v6735, %v6736
      %v6738 = vrot.slane %v6689, 6
      %v6739 = vsel %vm6371, %v6736, %v6738
      %v6740 = vrot.slane %v6690, 6
      %v6741 = vrot.slane %v6691, 6
      %v6742 = vsel %vm6371, %v6740, %v6741
      %v6743 = vrot.slane %v6692, 6
      %v6744 = vsel %vm6371, %v6741, %v6743
      %v6745 = vrot.slane %v6693, 6
      %v6746 = vrot.slane %v6694, 6
      %v6747 = vsel %vm6371, %v6745, %v6746
      %v6748 = vrot.slane %v6695, 6
      %v6749 = vsel %vm6371, %v6746, %v6748
      %v6750 = vrot.slane %v6696, 6
      %v6751 = vrot.slane %v6697, 6
      %v6752 = vsel %vm6371, %v6750, %v6751
      %v6753 = vrot.slane %v6698, 6
      %v6754 = vsel %vm6371, %v6751, %v6753
      %v6755 = vrot.slane %v6699, 6
      %v6756 = vrot.slane %v6700, 6
      %v6757 = vsel %vm6371, %v6755, %v6756
      %v6758 = vrot.slane %v6701, 6
      %v6759 = vsel %vm6371, %v6756, %v6758
      %v6760 = vrot.slane %v6702, 6
      %v6761 = vrot.slane %v6703, 6
      %v6762 = vsel %vm6371, %v6760, %v6761
      %v6763 = vrot.slane %v6704, 6
      %v6764 = vsel %vm6371, %v6761, %v6763
      %v6765 = vrot.slane %v6705, 6
      %v6766 = vrot.slane %v6706, 6
      %v6767 = vsel %vm6371, %v6765, %v6766
      %v6768 = vrot.slane %v6707, 6
      %v6769 = vsel %vm6371, %v6766, %v6768
      %v6770 = vrot.slane %v6708, 6
      %v6771 = vrot.slane %v6709, 6
      %v6772 = vsel %vm6371, %v6770, %v6771
      %v6773 = vrot.slane %v6710, 6
      %v6774 = vsel %vm6371, %v6771, %v6773
      %v6791 = vadd.f32 %v6670, %v6737
      %v6792 = vadd.f32 %v6671, %v6739
      %v6793 = vadd.f32 %v6672, %v6742
      %v6794 = vadd.f32 %v6673, %v6744
      %v6795 = vadd.f32 %v6674, %v6747
      %v6796 = vadd.f32 %v6675, %v6749
      %v6797 = vadd.f32 %v6676, %v6752
      %v6798 = vadd.f32 %v6677, %v6754
      %v6799 = vadd.f32 %v6678, %v6757
      %v6800 = vadd.f32 %v6679, %v6759
      %v6801 = vadd.f32 %v6680, %v6762
      %v6802 = vadd.f32 %v6681, %v6764
      %v6803 = vadd.f32 %v6682, %v6767
      %v6804 = vadd.f32 %v6683, %v6769
      %v6805 = vadd.f32 %v6684, %v6772
      %v6806 = vadd.f32 %v6685, %v6774
      %v6807 = vperm.slane %v508, 6
      %v6808 = vmul.f32 %v539, %v6807
      %v6809 = vmul.f32 %v540, %v6807
      %v6810 = vmul.f32 %v541, %v6807
      %v6811 = vmul.f32 %v542, %v6807
      %v6812 = vmul.f32 %v543, %v6807
      %v6813 = vmul.f32 %v544, %v6807
      %v6814 = vmul.f32 %v545, %v6807
      %v6815 = vmul.f32 %v546, %v6807
      %v6816 = vmul.f32 %v547, %v6807
      %v6817 = vmul.f32 %v548, %v6807
      %v6818 = vmul.f32 %v549, %v6807
      %v6819 = vmul.f32 %v550, %v6807
      %v6820 = vmul.f32 %v551, %v6807
      %v6821 = vmul.f32 %v552, %v6807
      %v6822 = vmul.f32 %v553, %v6807
      %v6823 = vmul.f32 %v554, %v6807
      %v6824 = vmul.f32 %v555, %v6807
      %v6825 = vmul.f32 %v556, %v6807
      %v6826 = vmul.f32 %v557, %v6807
      %v6827 = vmul.f32 %v558, %v6807
      %v6828 = vmul.f32 %v559, %v6807
      %v6829 = vmul.f32 %v560, %v6807
      %v6830 = vmul.f32 %v561, %v6807
      %v6831 = vmul.f32 %v562, %v6807
      %v6856 = vrot.slane %v6808, 6
      %v6857 = vrot.slane %v6809, 6
      %v6858 = vsel %vm6371, %v6856, %v6857
      %v6859 = vrot.slane %v6810, 6
      %v6860 = vsel %vm6371, %v6857, %v6859
      %v6861 = vrot.slane %v6811, 6
      %v6862 = vrot.slane %v6812, 6
      %v6863 = vsel %vm6371, %v6861, %v6862
      %v6864 = vrot.slane %v6813, 6
      %v6865 = vsel %vm6371, %v6862, %v6864
      %v6866 = vrot.slane %v6814, 6
      %v6867 = vrot.slane %v6815, 6
      %v6868 = vsel %vm6371, %v6866, %v6867
      %v6869 = vrot.slane %v6816, 6
      %v6870 = vsel %vm6371, %v6867, %v6869
      %v6871 = vrot.slane %v6817, 6
      %v6872 = vrot.slane %v6818, 6
      %v6873 = vsel %vm6371, %v6871, %v6872
      %v6874 = vrot.slane %v6819, 6
      %v6875 = vsel %vm6371, %v6872, %v6874
      %v6876 = vrot.slane %v6820, 6
      %v6877 = vrot.slane %v6821, 6
      %v6878 = vsel %vm6371, %v6876, %v6877
      %v6879 = vrot.slane %v6822, 6
      %v6880 = vsel %vm6371, %v6877, %v6879
      %v6881 = vrot.slane %v6823, 6
      %v6882 = vrot.slane %v6824, 6
      %v6883 = vsel %vm6371, %v6881, %v6882
      %v6884 = vrot.slane %v6825, 6
      %v6885 = vsel %vm6371, %v6882, %v6884
      %v6886 = vrot.slane %v6826, 6
      %v6887 = vrot.slane %v6827, 6
      %v6888 = vsel %vm6371, %v6886, %v6887
      %v6889 = vrot.slane %v6828, 6
      %v6890 = vsel %vm6371, %v6887, %v6889
      %v6891 = vrot.slane %v6829, 6
      %v6892 = vrot.slane %v6830, 6
      %v6893 = vsel %vm6371, %v6891, %v6892
      %v6894 = vrot.slane %v6831, 6
      %v6895 = vsel %vm6371, %v6892, %v6894
      %v6912 = vadd.f32 %v6791, %v6858
      %v6913 = vadd.f32 %v6792, %v6860
      %v6914 = vadd.f32 %v6793, %v6863
      %v6915 = vadd.f32 %v6794, %v6865
      %v6916 = vadd.f32 %v6795, %v6868
      %v6917 = vadd.f32 %v6796, %v6870
      %v6918 = vadd.f32 %v6797, %v6873
      %v6919 = vadd.f32 %v6798, %v6875
      %v6920 = vadd.f32 %v6799, %v6878
      %v6921 = vadd.f32 %v6800, %v6880
      %v6922 = vadd.f32 %v6801, %v6883
      %v6923 = vadd.f32 %v6802, %v6885
      %v6924 = vadd.f32 %v6803, %v6888
      %v6925 = vadd.f32 %v6804, %v6890
      %v6926 = vadd.f32 %v6805, %v6893
      %v6927 = vadd.f32 %v6806, %v6895
      %v6928 = vperm.slane %v510, 6
      %v6929 = vmul.f32 %v542, %v6928
      %v6930 = vmul.f32 %v543, %v6928
      %v6931 = vmul.f32 %v544, %v6928
      %v6932 = vmul.f32 %v545, %v6928
      %v6933 = vmul.f32 %v546, %v6928
      %v6934 = vmul.f32 %v547, %v6928
      %v6935 = vmul.f32 %v548, %v6928
      %v6936 = vmul.f32 %v549, %v6928
      %v6937 = vmul.f32 %v550, %v6928
      %v6938 = vmul.f32 %v551, %v6928
      %v6939 = vmul.f32 %v552, %v6928
      %v6940 = vmul.f32 %v553, %v6928
      %v6941 = vmul.f32 %v554, %v6928
      %v6942 = vmul.f32 %v555, %v6928
      %v6943 = vmul.f32 %v556, %v6928
      %v6944 = vmul.f32 %v557, %v6928
      %v6945 = vmul.f32 %v558, %v6928
      %v6946 = vmul.f32 %v559, %v6928
      %v6947 = vmul.f32 %v560, %v6928
      %v6948 = vmul.f32 %v561, %v6928
      %v6949 = vmul.f32 %v562, %v6928
      %v6950 = vmul.f32 %v563, %v6928
      %v6951 = vmul.f32 %v564, %v6928
      %v6952 = vmul.f32 %v565, %v6928
      %v6977 = vrot.slane %v6929, 6
      %v6978 = vrot.slane %v6930, 6
      %v6979 = vsel %vm6371, %v6977, %v6978
      %v6980 = vrot.slane %v6931, 6
      %v6981 = vsel %vm6371, %v6978, %v6980
      %v6982 = vrot.slane %v6932, 6
      %v6983 = vrot.slane %v6933, 6
      %v6984 = vsel %vm6371, %v6982, %v6983
      %v6985 = vrot.slane %v6934, 6
      %v6986 = vsel %vm6371, %v6983, %v6985
      %v6987 = vrot.slane %v6935, 6
      %v6988 = vrot.slane %v6936, 6
      %v6989 = vsel %vm6371, %v6987, %v6988
      %v6990 = vrot.slane %v6937, 6
      %v6991 = vsel %vm6371, %v6988, %v6990
      %v6992 = vrot.slane %v6938, 6
      %v6993 = vrot.slane %v6939, 6
      %v6994 = vsel %vm6371, %v6992, %v6993
      %v6995 = vrot.slane %v6940, 6
      %v6996 = vsel %vm6371, %v6993, %v6995
      %v6997 = vrot.slane %v6941, 6
      %v6998 = vrot.slane %v6942, 6
      %v6999 = vsel %vm6371, %v6997, %v6998
      %v7000 = vrot.slane %v6943, 6
      %v7001 = vsel %vm6371, %v6998, %v7000
      %v7002 = vrot.slane %v6944, 6
      %v7003 = vrot.slane %v6945, 6
      %v7004 = vsel %vm6371, %v7002, %v7003
      %v7005 = vrot.slane %v6946, 6
      %v7006 = vsel %vm6371, %v7003, %v7005
      %v7007 = vrot.slane %v6947, 6
      %v7008 = vrot.slane %v6948, 6
      %v7009 = vsel %vm6371, %v7007, %v7008
      %v7010 = vrot.slane %v6949, 6
      %v7011 = vsel %vm6371, %v7008, %v7010
      %v7012 = vrot.slane %v6950, 6
      %v7013 = vrot.slane %v6951, 6
      %v7014 = vsel %vm6371, %v7012, %v7013
      %v7015 = vrot.slane %v6952, 6
      %v7016 = vsel %vm6371, %v7013, %v7015
      %v7033 = vadd.f32 %v6912, %v6979
      %v7034 = vadd.f32 %v6913, %v6981
      %v7035 = vadd.f32 %v6914, %v6984
      %v7036 = vadd.f32 %v6915, %v6986
      %v7037 = vadd.f32 %v6916, %v6989
      %v7038 = vadd.f32 %v6917, %v6991
      %v7039 = vadd.f32 %v6918, %v6994
      %v7040 = vadd.f32 %v6919, %v6996
      %v7041 = vadd.f32 %v6920, %v6999
      %v7042 = vadd.f32 %v6921, %v7001
      %v7043 = vadd.f32 %v6922, %v7004
      %v7044 = vadd.f32 %v6923, %v7006
      %v7045 = vadd.f32 %v6924, %v7009
      %v7046 = vadd.f32 %v6925, %v7011
      %v7047 = vadd.f32 %v6926, %v7014
      %v7048 = vadd.f32 %v6927, %v7016
      %v7049 = vperm.slane %v512, 6
      %v7050 = vmul.f32 %v545, %v7049
      %v7051 = vmul.f32 %v546, %v7049
      %v7052 = vmul.f32 %v547, %v7049
      %v7053 = vmul.f32 %v548, %v7049
      %v7054 = vmul.f32 %v549, %v7049
      %v7055 = vmul.f32 %v550, %v7049
      %v7056 = vmul.f32 %v551, %v7049
      %v7057 = vmul.f32 %v552, %v7049
      %v7058 = vmul.f32 %v553, %v7049
      %v7059 = vmul.f32 %v554, %v7049
      %v7060 = vmul.f32 %v555, %v7049
      %v7061 = vmul.f32 %v556, %v7049
      %v7062 = vmul.f32 %v557, %v7049
      %v7063 = vmul.f32 %v558, %v7049
      %v7064 = vmul.f32 %v559, %v7049
      %v7065 = vmul.f32 %v560, %v7049
      %v7066 = vmul.f32 %v561, %v7049
      %v7067 = vmul.f32 %v562, %v7049
      %v7068 = vmul.f32 %v563, %v7049
      %v7069 = vmul.f32 %v564, %v7049
      %v7070 = vmul.f32 %v565, %v7049
      %v7071 = vmul.f32 %v566, %v7049
      %v7072 = vmul.f32 %v567, %v7049
      %v7073 = vmul.f32 %v568, %v7049
      %v7098 = vrot.slane %v7050, 6
      %v7099 = vrot.slane %v7051, 6
      %v7100 = vsel %vm6371, %v7098, %v7099
      %v7101 = vrot.slane %v7052, 6
      %v7102 = vsel %vm6371, %v7099, %v7101
      %v7103 = vrot.slane %v7053, 6
      %v7104 = vrot.slane %v7054, 6
      %v7105 = vsel %vm6371, %v7103, %v7104
      %v7106 = vrot.slane %v7055, 6
      %v7107 = vsel %vm6371, %v7104, %v7106
      %v7108 = vrot.slane %v7056, 6
      %v7109 = vrot.slane %v7057, 6
      %v7110 = vsel %vm6371, %v7108, %v7109
      %v7111 = vrot.slane %v7058, 6
      %v7112 = vsel %vm6371, %v7109, %v7111
      %v7113 = vrot.slane %v7059, 6
      %v7114 = vrot.slane %v7060, 6
      %v7115 = vsel %vm6371, %v7113, %v7114
      %v7116 = vrot.slane %v7061, 6
      %v7117 = vsel %vm6371, %v7114, %v7116
      %v7118 = vrot.slane %v7062, 6
      %v7119 = vrot.slane %v7063, 6
      %v7120 = vsel %vm6371, %v7118, %v7119
      %v7121 = vrot.slane %v7064, 6
      %v7122 = vsel %vm6371, %v7119, %v7121
      %v7123 = vrot.slane %v7065, 6
      %v7124 = vrot.slane %v7066, 6
      %v7125 = vsel %vm6371, %v7123, %v7124
      %v7126 = vrot.slane %v7067, 6
      %v7127 = vsel %vm6371, %v7124, %v7126
      %v7128 = vrot.slane %v7068, 6
      %v7129 = vrot.slane %v7069, 6
      %v7130 = vsel %vm6371, %v7128, %v7129
      %v7131 = vrot.slane %v7070, 6
      %v7132 = vsel %vm6371, %v7129, %v7131
      %v7133 = vrot.slane %v7071, 6
      %v7134 = vrot.slane %v7072, 6
      %v7135 = vsel %vm6371, %v7133, %v7134
      %v7136 = vrot.slane %v7073, 6
      %v7137 = vsel %vm6371, %v7134, %v7136
      %v7154 = vadd.f32 %v7033, %v7100
      %v7155 = vadd.f32 %v7034, %v7102
      %v7156 = vadd.f32 %v7035, %v7105
      %v7157 = vadd.f32 %v7036, %v7107
      %v7158 = vadd.f32 %v7037, %v7110
      %v7159 = vadd.f32 %v7038, %v7112
      %v7160 = vadd.f32 %v7039, %v7115
      %v7161 = vadd.f32 %v7040, %v7117
      %v7162 = vadd.f32 %v7041, %v7120
      %v7163 = vadd.f32 %v7042, %v7122
      %v7164 = vadd.f32 %v7043, %v7125
      %v7165 = vadd.f32 %v7044, %v7127
      %v7166 = vadd.f32 %v7045, %v7130
      %v7167 = vadd.f32 %v7046, %v7132
      %v7168 = vadd.f32 %v7047, %v7135
      %v7169 = vadd.f32 %v7048, %v7137
      %v7170 = vperm.slane %v514, 6
      %v7171 = vmul.f32 %v548, %v7170
      %v7172 = vmul.f32 %v549, %v7170
      %v7173 = vmul.f32 %v550, %v7170
      %v7174 = vmul.f32 %v551, %v7170
      %v7175 = vmul.f32 %v552, %v7170
      %v7176 = vmul.f32 %v553, %v7170
      %v7177 = vmul.f32 %v554, %v7170
      %v7178 = vmul.f32 %v555, %v7170
      %v7179 = vmul.f32 %v556, %v7170
      %v7180 = vmul.f32 %v557, %v7170
      %v7181 = vmul.f32 %v558, %v7170
      %v7182 = vmul.f32 %v559, %v7170
      %v7183 = vmul.f32 %v560, %v7170
      %v7184 = vmul.f32 %v561, %v7170
      %v7185 = vmul.f32 %v562, %v7170
      %v7186 = vmul.f32 %v563, %v7170
      %v7187 = vmul.f32 %v564, %v7170
      %v7188 = vmul.f32 %v565, %v7170
      %v7189 = vmul.f32 %v566, %v7170
      %v7190 = vmul.f32 %v567, %v7170
      %v7191 = vmul.f32 %v568, %v7170
      %v7192 = vmul.f32 %v569, %v7170
      %v7193 = vmul.f32 %v570, %v7170
      %v7194 = vmul.f32 %v571, %v7170
      %v7219 = vrot.slane %v7171, 6
      %v7220 = vrot.slane %v7172, 6
      %v7221 = vsel %vm6371, %v7219, %v7220
      %v7222 = vrot.slane %v7173, 6
      %v7223 = vsel %vm6371, %v7220, %v7222
      %v7224 = vrot.slane %v7174, 6
      %v7225 = vrot.slane %v7175, 6
      %v7226 = vsel %vm6371, %v7224, %v7225
      %v7227 = vrot.slane %v7176, 6
      %v7228 = vsel %vm6371, %v7225, %v7227
      %v7229 = vrot.slane %v7177, 6
      %v7230 = vrot.slane %v7178, 6
      %v7231 = vsel %vm6371, %v7229, %v7230
      %v7232 = vrot.slane %v7179, 6
      %v7233 = vsel %vm6371, %v7230, %v7232
      %v7234 = vrot.slane %v7180, 6
      %v7235 = vrot.slane %v7181, 6
      %v7236 = vsel %vm6371, %v7234, %v7235
      %v7237 = vrot.slane %v7182, 6
      %v7238 = vsel %vm6371, %v7235, %v7237
      %v7239 = vrot.slane %v7183, 6
      %v7240 = vrot.slane %v7184, 6
      %v7241 = vsel %vm6371, %v7239, %v7240
      %v7242 = vrot.slane %v7185, 6
      %v7243 = vsel %vm6371, %v7240, %v7242
      %v7244 = vrot.slane %v7186, 6
      %v7245 = vrot.slane %v7187, 6
      %v7246 = vsel %vm6371, %v7244, %v7245
      %v7247 = vrot.slane %v7188, 6
      %v7248 = vsel %vm6371, %v7245, %v7247
      %v7249 = vrot.slane %v7189, 6
      %v7250 = vrot.slane %v7190, 6
      %v7251 = vsel %vm6371, %v7249, %v7250
      %v7252 = vrot.slane %v7191, 6
      %v7253 = vsel %vm6371, %v7250, %v7252
      %v7254 = vrot.slane %v7192, 6
      %v7255 = vrot.slane %v7193, 6
      %v7256 = vsel %vm6371, %v7254, %v7255
      %v7257 = vrot.slane %v7194, 6
      %v7258 = vsel %vm6371, %v7255, %v7257
      %v7275 = vadd.f32 %v7154, %v7221
      %v7276 = vadd.f32 %v7155, %v7223
      %v7277 = vadd.f32 %v7156, %v7226
      %v7278 = vadd.f32 %v7157, %v7228
      %v7279 = vadd.f32 %v7158, %v7231
      %v7280 = vadd.f32 %v7159, %v7233
      %v7281 = vadd.f32 %v7160, %v7236
      %v7282 = vadd.f32 %v7161, %v7238
      %v7283 = vadd.f32 %v7162, %v7241
      %v7284 = vadd.f32 %v7163, %v7243
      %v7285 = vadd.f32 %v7164, %v7246
      %v7286 = vadd.f32 %v7165, %v7248
      %v7287 = vadd.f32 %v7166, %v7251
      %v7288 = vadd.f32 %v7167, %v7253
      %v7289 = vadd.f32 %v7168, %v7256
      %v7290 = vadd.f32 %v7169, %v7258
      %v7291 = vperm.slane %v516, 6
      %v7292 = vmul.f32 %v551, %v7291
      %v7293 = vmul.f32 %v552, %v7291
      %v7294 = vmul.f32 %v553, %v7291
      %v7295 = vmul.f32 %v554, %v7291
      %v7296 = vmul.f32 %v555, %v7291
      %v7297 = vmul.f32 %v556, %v7291
      %v7298 = vmul.f32 %v557, %v7291
      %v7299 = vmul.f32 %v558, %v7291
      %v7300 = vmul.f32 %v559, %v7291
      %v7301 = vmul.f32 %v560, %v7291
      %v7302 = vmul.f32 %v561, %v7291
      %v7303 = vmul.f32 %v562, %v7291
      %v7304 = vmul.f32 %v563, %v7291
      %v7305 = vmul.f32 %v564, %v7291
      %v7306 = vmul.f32 %v565, %v7291
      %v7307 = vmul.f32 %v566, %v7291
      %v7308 = vmul.f32 %v567, %v7291
      %v7309 = vmul.f32 %v568, %v7291
      %v7310 = vmul.f32 %v569, %v7291
      %v7311 = vmul.f32 %v570, %v7291
      %v7312 = vmul.f32 %v571, %v7291
      %v7313 = vmul.f32 %v572, %v7291
      %v7314 = vmul.f32 %v573, %v7291
      %v7315 = vmul.f32 %v574, %v7291
      %v7340 = vrot.slane %v7292, 6
      %v7341 = vrot.slane %v7293, 6
      %v7342 = vsel %vm6371, %v7340, %v7341
      %v7343 = vrot.slane %v7294, 6
      %v7344 = vsel %vm6371, %v7341, %v7343
      %v7345 = vrot.slane %v7295, 6
      %v7346 = vrot.slane %v7296, 6
      %v7347 = vsel %vm6371, %v7345, %v7346
      %v7348 = vrot.slane %v7297, 6
      %v7349 = vsel %vm6371, %v7346, %v7348
      %v7350 = vrot.slane %v7298, 6
      %v7351 = vrot.slane %v7299, 6
      %v7352 = vsel %vm6371, %v7350, %v7351
      %v7353 = vrot.slane %v7300, 6
      %v7354 = vsel %vm6371, %v7351, %v7353
      %v7355 = vrot.slane %v7301, 6
      %v7356 = vrot.slane %v7302, 6
      %v7357 = vsel %vm6371, %v7355, %v7356
      %v7358 = vrot.slane %v7303, 6
      %v7359 = vsel %vm6371, %v7356, %v7358
      %v7360 = vrot.slane %v7304, 6
      %v7361 = vrot.slane %v7305, 6
      %v7362 = vsel %vm6371, %v7360, %v7361
      %v7363 = vrot.slane %v7306, 6
      %v7364 = vsel %vm6371, %v7361, %v7363
      %v7365 = vrot.slane %v7307, 6
      %v7366 = vrot.slane %v7308, 6
      %v7367 = vsel %vm6371, %v7365, %v7366
      %v7368 = vrot.slane %v7309, 6
      %v7369 = vsel %vm6371, %v7366, %v7368
      %v7370 = vrot.slane %v7310, 6
      %v7371 = vrot.slane %v7311, 6
      %v7372 = vsel %vm6371, %v7370, %v7371
      %v7373 = vrot.slane %v7312, 6
      %v7374 = vsel %vm6371, %v7371, %v7373
      %v7375 = vrot.slane %v7313, 6
      %v7376 = vrot.slane %v7314, 6
      %v7377 = vsel %vm6371, %v7375, %v7376
      %v7378 = vrot.slane %v7315, 6
      %v7379 = vsel %vm6371, %v7376, %v7378
      %v7396 = vadd.f32 %v7275, %v7342
      %v7397 = vadd.f32 %v7276, %v7344
      %v7398 = vadd.f32 %v7277, %v7347
      %v7399 = vadd.f32 %v7278, %v7349
      %v7400 = vadd.f32 %v7279, %v7352
      %v7401 = vadd.f32 %v7280, %v7354
      %v7402 = vadd.f32 %v7281, %v7357
      %v7403 = vadd.f32 %v7282, %v7359
      %v7404 = vadd.f32 %v7283, %v7362
      %v7405 = vadd.f32 %v7284, %v7364
      %v7406 = vadd.f32 %v7285, %v7367
      %v7407 = vadd.f32 %v7286, %v7369
      %v7408 = vadd.f32 %v7287, %v7372
      %v7409 = vadd.f32 %v7288, %v7374
      %v7410 = vadd.f32 %v7289, %v7377
      %v7411 = vadd.f32 %v7290, %v7379
      %v7412 = vperm.slane %v500, 7
      %v7413 = vmul.f32 %v527, %v7412
      %v7414 = vmul.f32 %v528, %v7412
      %v7415 = vmul.f32 %v529, %v7412
      %v7416 = vmul.f32 %v530, %v7412
      %v7417 = vmul.f32 %v531, %v7412
      %v7418 = vmul.f32 %v532, %v7412
      %v7419 = vmul.f32 %v533, %v7412
      %v7420 = vmul.f32 %v534, %v7412
      %v7421 = vmul.f32 %v535, %v7412
      %v7422 = vmul.f32 %v536, %v7412
      %v7423 = vmul.f32 %v537, %v7412
      %v7424 = vmul.f32 %v538, %v7412
      %v7425 = vmul.f32 %v539, %v7412
      %v7426 = vmul.f32 %v540, %v7412
      %v7427 = vmul.f32 %v541, %v7412
      %v7428 = vmul.f32 %v542, %v7412
      %v7429 = vmul.f32 %v543, %v7412
      %v7430 = vmul.f32 %v544, %v7412
      %v7431 = vmul.f32 %v545, %v7412
      %v7432 = vmul.f32 %v546, %v7412
      %v7433 = vmul.f32 %v547, %v7412
      %v7434 = vmul.f32 %v548, %v7412
      %v7435 = vmul.f32 %v549, %v7412
      %v7436 = vmul.f32 %v550, %v7412
      %vm7461 = vcmask 1040384
      %v7462 = vrot.slane %v7413, 7
      %v7463 = vrot.slane %v7414, 7
      %v7464 = vsel %vm7461, %v7462, %v7463
      %v7465 = vrot.slane %v7415, 7
      %v7466 = vsel %vm7461, %v7463, %v7465
      %v7467 = vrot.slane %v7416, 7
      %v7468 = vrot.slane %v7417, 7
      %v7469 = vsel %vm7461, %v7467, %v7468
      %v7470 = vrot.slane %v7418, 7
      %v7471 = vsel %vm7461, %v7468, %v7470
      %v7472 = vrot.slane %v7419, 7
      %v7473 = vrot.slane %v7420, 7
      %v7474 = vsel %vm7461, %v7472, %v7473
      %v7475 = vrot.slane %v7421, 7
      %v7476 = vsel %vm7461, %v7473, %v7475
      %v7477 = vrot.slane %v7422, 7
      %v7478 = vrot.slane %v7423, 7
      %v7479 = vsel %vm7461, %v7477, %v7478
      %v7480 = vrot.slane %v7424, 7
      %v7481 = vsel %vm7461, %v7478, %v7480
      %v7482 = vrot.slane %v7425, 7
      %v7483 = vrot.slane %v7426, 7
      %v7484 = vsel %vm7461, %v7482, %v7483
      %v7485 = vrot.slane %v7427, 7
      %v7486 = vsel %vm7461, %v7483, %v7485
      %v7487 = vrot.slane %v7428, 7
      %v7488 = vrot.slane %v7429, 7
      %v7489 = vsel %vm7461, %v7487, %v7488
      %v7490 = vrot.slane %v7430, 7
      %v7491 = vsel %vm7461, %v7488, %v7490
      %v7492 = vrot.slane %v7431, 7
      %v7493 = vrot.slane %v7432, 7
      %v7494 = vsel %vm7461, %v7492, %v7493
      %v7495 = vrot.slane %v7433, 7
      %v7496 = vsel %vm7461, %v7493, %v7495
      %v7497 = vrot.slane %v7434, 7
      %v7498 = vrot.slane %v7435, 7
      %v7499 = vsel %vm7461, %v7497, %v7498
      %v7500 = vrot.slane %v7436, 7
      %v7501 = vsel %vm7461, %v7498, %v7500
      %v7518 = vadd.f32 %v7396, %v7464
      %v7519 = vadd.f32 %v7397, %v7466
      %v7520 = vadd.f32 %v7398, %v7469
      %v7521 = vadd.f32 %v7399, %v7471
      %v7522 = vadd.f32 %v7400, %v7474
      %v7523 = vadd.f32 %v7401, %v7476
      %v7524 = vadd.f32 %v7402, %v7479
      %v7525 = vadd.f32 %v7403, %v7481
      %v7526 = vadd.f32 %v7404, %v7484
      %v7527 = vadd.f32 %v7405, %v7486
      %v7528 = vadd.f32 %v7406, %v7489
      %v7529 = vadd.f32 %v7407, %v7491
      %v7530 = vadd.f32 %v7408, %v7494
      %v7531 = vadd.f32 %v7409, %v7496
      %v7532 = vadd.f32 %v7410, %v7499
      %v7533 = vadd.f32 %v7411, %v7501
      %v7534 = vperm.slane %v502, 7
      %v7535 = vmul.f32 %v530, %v7534
      %v7536 = vmul.f32 %v531, %v7534
      %v7537 = vmul.f32 %v532, %v7534
      %v7538 = vmul.f32 %v533, %v7534
      %v7539 = vmul.f32 %v534, %v7534
      %v7540 = vmul.f32 %v535, %v7534
      %v7541 = vmul.f32 %v536, %v7534
      %v7542 = vmul.f32 %v537, %v7534
      %v7543 = vmul.f32 %v538, %v7534
      %v7544 = vmul.f32 %v539, %v7534
      %v7545 = vmul.f32 %v540, %v7534
      %v7546 = vmul.f32 %v541, %v7534
      %v7547 = vmul.f32 %v542, %v7534
      %v7548 = vmul.f32 %v543, %v7534
      %v7549 = vmul.f32 %v544, %v7534
      %v7550 = vmul.f32 %v545, %v7534
      %v7551 = vmul.f32 %v546, %v7534
      %v7552 = vmul.f32 %v547, %v7534
      %v7553 = vmul.f32 %v548, %v7534
      %v7554 = vmul.f32 %v549, %v7534
      %v7555 = vmul.f32 %v550, %v7534
      %v7556 = vmul.f32 %v551, %v7534
      %v7557 = vmul.f32 %v552, %v7534
      %v7558 = vmul.f32 %v553, %v7534
      %v7583 = vrot.slane %v7535, 7
      %v7584 = vrot.slane %v7536, 7
      %v7585 = vsel %vm7461, %v7583, %v7584
      %v7586 = vrot.slane %v7537, 7
      %v7587 = vsel %vm7461, %v7584, %v7586
      %v7588 = vrot.slane %v7538, 7
      %v7589 = vrot.slane %v7539, 7
      %v7590 = vsel %vm7461, %v7588, %v7589
      %v7591 = vrot.slane %v7540, 7
      %v7592 = vsel %vm7461, %v7589, %v7591
      %v7593 = vrot.slane %v7541, 7
      %v7594 = vrot.slane %v7542, 7
      %v7595 = vsel %vm7461, %v7593, %v7594
      %v7596 = vrot.slane %v7543, 7
      %v7597 = vsel %vm7461, %v7594, %v7596
      %v7598 = vrot.slane %v7544, 7
      %v7599 = vrot.slane %v7545, 7
      %v7600 = vsel %vm7461, %v7598, %v7599
      %v7601 = vrot.slane %v7546, 7
      %v7602 = vsel %vm7461, %v7599, %v7601
      %v7603 = vrot.slane %v7547, 7
      %v7604 = vrot.slane %v7548, 7
      %v7605 = vsel %vm7461, %v7603, %v7604
      %v7606 = vrot.slane %v7549, 7
      %v7607 = vsel %vm7461, %v7604, %v7606
      %v7608 = vrot.slane %v7550, 7
      %v7609 = vrot.slane %v7551, 7
      %v7610 = vsel %vm7461, %v7608, %v7609
      %v7611 = vrot.slane %v7552, 7
      %v7612 = vsel %vm7461, %v7609, %v7611
      %v7613 = vrot.slane %v7553, 7
      %v7614 = vrot.slane %v7554, 7
      %v7615 = vsel %vm7461, %v7613, %v7614
      %v7616 = vrot.slane %v7555, 7
      %v7617 = vsel %vm7461, %v7614, %v7616
      %v7618 = vrot.slane %v7556, 7
      %v7619 = vrot.slane %v7557, 7
      %v7620 = vsel %vm7461, %v7618, %v7619
      %v7621 = vrot.slane %v7558, 7
      %v7622 = vsel %vm7461, %v7619, %v7621
      %v7639 = vadd.f32 %v7518, %v7585
      %v7640 = vadd.f32 %v7519, %v7587
      %v7641 = vadd.f32 %v7520, %v7590
      %v7642 = vadd.f32 %v7521, %v7592
      %v7643 = vadd.f32 %v7522, %v7595
      %v7644 = vadd.f32 %v7523, %v7597
      %v7645 = vadd.f32 %v7524, %v7600
      %v7646 = vadd.f32 %v7525, %v7602
      %v7647 = vadd.f32 %v7526, %v7605
      %v7648 = vadd.f32 %v7527, %v7607
      %v7649 = vadd.f32 %v7528, %v7610
      %v7650 = vadd.f32 %v7529, %v7612
      %v7651 = vadd.f32 %v7530, %v7615
      %v7652 = vadd.f32 %v7531, %v7617
      %v7653 = vadd.f32 %v7532, %v7620
      %v7654 = vadd.f32 %v7533, %v7622
      %v7655 = vperm.slane %v504, 7
      %v7656 = vmul.f32 %v533, %v7655
      %v7657 = vmul.f32 %v534, %v7655
      %v7658 = vmul.f32 %v535, %v7655
      %v7659 = vmul.f32 %v536, %v7655
      %v7660 = vmul.f32 %v537, %v7655
      %v7661 = vmul.f32 %v538, %v7655
      %v7662 = vmul.f32 %v539, %v7655
      %v7663 = vmul.f32 %v540, %v7655
      %v7664 = vmul.f32 %v541, %v7655
      %v7665 = vmul.f32 %v542, %v7655
      %v7666 = vmul.f32 %v543, %v7655
      %v7667 = vmul.f32 %v544, %v7655
      %v7668 = vmul.f32 %v545, %v7655
      %v7669 = vmul.f32 %v546, %v7655
      %v7670 = vmul.f32 %v547, %v7655
      %v7671 = vmul.f32 %v548, %v7655
      %v7672 = vmul.f32 %v549, %v7655
      %v7673 = vmul.f32 %v550, %v7655
      %v7674 = vmul.f32 %v551, %v7655
      %v7675 = vmul.f32 %v552, %v7655
      %v7676 = vmul.f32 %v553, %v7655
      %v7677 = vmul.f32 %v554, %v7655
      %v7678 = vmul.f32 %v555, %v7655
      %v7679 = vmul.f32 %v556, %v7655
      %v7704 = vrot.slane %v7656, 7
      %v7705 = vrot.slane %v7657, 7
      %v7706 = vsel %vm7461, %v7704, %v7705
      %v7707 = vrot.slane %v7658, 7
      %v7708 = vsel %vm7461, %v7705, %v7707
      %v7709 = vrot.slane %v7659, 7
      %v7710 = vrot.slane %v7660, 7
      %v7711 = vsel %vm7461, %v7709, %v7710
      %v7712 = vrot.slane %v7661, 7
      %v7713 = vsel %vm7461, %v7710, %v7712
      %v7714 = vrot.slane %v7662, 7
      %v7715 = vrot.slane %v7663, 7
      %v7716 = vsel %vm7461, %v7714, %v7715
      %v7717 = vrot.slane %v7664, 7
      %v7718 = vsel %vm7461, %v7715, %v7717
      %v7719 = vrot.slane %v7665, 7
      %v7720 = vrot.slane %v7666, 7
      %v7721 = vsel %vm7461, %v7719, %v7720
      %v7722 = vrot.slane %v7667, 7
      %v7723 = vsel %vm7461, %v7720, %v7722
      %v7724 = vrot.slane %v7668, 7
      %v7725 = vrot.slane %v7669, 7
      %v7726 = vsel %vm7461, %v7724, %v7725
      %v7727 = vrot.slane %v7670, 7
      %v7728 = vsel %vm7461, %v7725, %v7727
      %v7729 = vrot.slane %v7671, 7
      %v7730 = vrot.slane %v7672, 7
      %v7731 = vsel %vm7461, %v7729, %v7730
      %v7732 = vrot.slane %v7673, 7
      %v7733 = vsel %vm7461, %v7730, %v7732
      %v7734 = vrot.slane %v7674, 7
      %v7735 = vrot.slane %v7675, 7
      %v7736 = vsel %vm7461, %v7734, %v7735
      %v7737 = vrot.slane %v7676, 7
      %v7738 = vsel %vm7461, %v7735, %v7737
      %v7739 = vrot.slane %v7677, 7
      %v7740 = vrot.slane %v7678, 7
      %v7741 = vsel %vm7461, %v7739, %v7740
      %v7742 = vrot.slane %v7679, 7
      %v7743 = vsel %vm7461, %v7740, %v7742
      %v7760 = vadd.f32 %v7639, %v7706
      %v7761 = vadd.f32 %v7640, %v7708
      %v7762 = vadd.f32 %v7641, %v7711
      %v7763 = vadd.f32 %v7642, %v7713
      %v7764 = vadd.f32 %v7643, %v7716
      %v7765 = vadd.f32 %v7644, %v7718
      %v7766 = vadd.f32 %v7645, %v7721
      %v7767 = vadd.f32 %v7646, %v7723
      %v7768 = vadd.f32 %v7647, %v7726
      %v7769 = vadd.f32 %v7648, %v7728
      %v7770 = vadd.f32 %v7649, %v7731
      %v7771 = vadd.f32 %v7650, %v7733
      %v7772 = vadd.f32 %v7651, %v7736
      %v7773 = vadd.f32 %v7652, %v7738
      %v7774 = vadd.f32 %v7653, %v7741
      %v7775 = vadd.f32 %v7654, %v7743
      %v7776 = vperm.slane %v506, 7
      %v7777 = vmul.f32 %v536, %v7776
      %v7778 = vmul.f32 %v537, %v7776
      %v7779 = vmul.f32 %v538, %v7776
      %v7780 = vmul.f32 %v539, %v7776
      %v7781 = vmul.f32 %v540, %v7776
      %v7782 = vmul.f32 %v541, %v7776
      %v7783 = vmul.f32 %v542, %v7776
      %v7784 = vmul.f32 %v543, %v7776
      %v7785 = vmul.f32 %v544, %v7776
      %v7786 = vmul.f32 %v545, %v7776
      %v7787 = vmul.f32 %v546, %v7776
      %v7788 = vmul.f32 %v547, %v7776
      %v7789 = vmul.f32 %v548, %v7776
      %v7790 = vmul.f32 %v549, %v7776
      %v7791 = vmul.f32 %v550, %v7776
      %v7792 = vmul.f32 %v551, %v7776
      %v7793 = vmul.f32 %v552, %v7776
      %v7794 = vmul.f32 %v553, %v7776
      %v7795 = vmul.f32 %v554, %v7776
      %v7796 = vmul.f32 %v555, %v7776
      %v7797 = vmul.f32 %v556, %v7776
      %v7798 = vmul.f32 %v557, %v7776
      %v7799 = vmul.f32 %v558, %v7776
      %v7800 = vmul.f32 %v559, %v7776
      %v7825 = vrot.slane %v7777, 7
      %v7826 = vrot.slane %v7778, 7
      %v7827 = vsel %vm7461, %v7825, %v7826
      %v7828 = vrot.slane %v7779, 7
      %v7829 = vsel %vm7461, %v7826, %v7828
      %v7830 = vrot.slane %v7780, 7
      %v7831 = vrot.slane %v7781, 7
      %v7832 = vsel %vm7461, %v7830, %v7831
      %v7833 = vrot.slane %v7782, 7
      %v7834 = vsel %vm7461, %v7831, %v7833
      %v7835 = vrot.slane %v7783, 7
      %v7836 = vrot.slane %v7784, 7
      %v7837 = vsel %vm7461, %v7835, %v7836
      %v7838 = vrot.slane %v7785, 7
      %v7839 = vsel %vm7461, %v7836, %v7838
      %v7840 = vrot.slane %v7786, 7
      %v7841 = vrot.slane %v7787, 7
      %v7842 = vsel %vm7461, %v7840, %v7841
      %v7843 = vrot.slane %v7788, 7
      %v7844 = vsel %vm7461, %v7841, %v7843
      %v7845 = vrot.slane %v7789, 7
      %v7846 = vrot.slane %v7790, 7
      %v7847 = vsel %vm7461, %v7845, %v7846
      %v7848 = vrot.slane %v7791, 7
      %v7849 = vsel %vm7461, %v7846, %v7848
      %v7850 = vrot.slane %v7792, 7
      %v7851 = vrot.slane %v7793, 7
      %v7852 = vsel %vm7461, %v7850, %v7851
      %v7853 = vrot.slane %v7794, 7
      %v7854 = vsel %vm7461, %v7851, %v7853
      %v7855 = vrot.slane %v7795, 7
      %v7856 = vrot.slane %v7796, 7
      %v7857 = vsel %vm7461, %v7855, %v7856
      %v7858 = vrot.slane %v7797, 7
      %v7859 = vsel %vm7461, %v7856, %v7858
      %v7860 = vrot.slane %v7798, 7
      %v7861 = vrot.slane %v7799, 7
      %v7862 = vsel %vm7461, %v7860, %v7861
      %v7863 = vrot.slane %v7800, 7
      %v7864 = vsel %vm7461, %v7861, %v7863
      %v7881 = vadd.f32 %v7760, %v7827
      %v7882 = vadd.f32 %v7761, %v7829
      %v7883 = vadd.f32 %v7762, %v7832
      %v7884 = vadd.f32 %v7763, %v7834
      %v7885 = vadd.f32 %v7764, %v7837
      %v7886 = vadd.f32 %v7765, %v7839
      %v7887 = vadd.f32 %v7766, %v7842
      %v7888 = vadd.f32 %v7767, %v7844
      %v7889 = vadd.f32 %v7768, %v7847
      %v7890 = vadd.f32 %v7769, %v7849
      %v7891 = vadd.f32 %v7770, %v7852
      %v7892 = vadd.f32 %v7771, %v7854
      %v7893 = vadd.f32 %v7772, %v7857
      %v7894 = vadd.f32 %v7773, %v7859
      %v7895 = vadd.f32 %v7774, %v7862
      %v7896 = vadd.f32 %v7775, %v7864
      %v7897 = vperm.slane %v508, 7
      %v7898 = vmul.f32 %v539, %v7897
      %v7899 = vmul.f32 %v540, %v7897
      %v7900 = vmul.f32 %v541, %v7897
      %v7901 = vmul.f32 %v542, %v7897
      %v7902 = vmul.f32 %v543, %v7897
      %v7903 = vmul.f32 %v544, %v7897
      %v7904 = vmul.f32 %v545, %v7897
      %v7905 = vmul.f32 %v546, %v7897
      %v7906 = vmul.f32 %v547, %v7897
      %v7907 = vmul.f32 %v548, %v7897
      %v7908 = vmul.f32 %v549, %v7897
      %v7909 = vmul.f32 %v550, %v7897
      %v7910 = vmul.f32 %v551, %v7897
      %v7911 = vmul.f32 %v552, %v7897
      %v7912 = vmul.f32 %v553, %v7897
      %v7913 = vmul.f32 %v554, %v7897
      %v7914 = vmul.f32 %v555, %v7897
      %v7915 = vmul.f32 %v556, %v7897
      %v7916 = vmul.f32 %v557, %v7897
      %v7917 = vmul.f32 %v558, %v7897
      %v7918 = vmul.f32 %v559, %v7897
      %v7919 = vmul.f32 %v560, %v7897
      %v7920 = vmul.f32 %v561, %v7897
      %v7921 = vmul.f32 %v562, %v7897
      %v7946 = vrot.slane %v7898, 7
      %v7947 = vrot.slane %v7899, 7
      %v7948 = vsel %vm7461, %v7946, %v7947
      %v7949 = vrot.slane %v7900, 7
      %v7950 = vsel %vm7461, %v7947, %v7949
      %v7951 = vrot.slane %v7901, 7
      %v7952 = vrot.slane %v7902, 7
      %v7953 = vsel %vm7461, %v7951, %v7952
      %v7954 = vrot.slane %v7903, 7
      %v7955 = vsel %vm7461, %v7952, %v7954
      %v7956 = vrot.slane %v7904, 7
      %v7957 = vrot.slane %v7905, 7
      %v7958 = vsel %vm7461, %v7956, %v7957
      %v7959 = vrot.slane %v7906, 7
      %v7960 = vsel %vm7461, %v7957, %v7959
      %v7961 = vrot.slane %v7907, 7
      %v7962 = vrot.slane %v7908, 7
      %v7963 = vsel %vm7461, %v7961, %v7962
      %v7964 = vrot.slane %v7909, 7
      %v7965 = vsel %vm7461, %v7962, %v7964
      %v7966 = vrot.slane %v7910, 7
      %v7967 = vrot.slane %v7911, 7
      %v7968 = vsel %vm7461, %v7966, %v7967
      %v7969 = vrot.slane %v7912, 7
      %v7970 = vsel %vm7461, %v7967, %v7969
      %v7971 = vrot.slane %v7913, 7
      %v7972 = vrot.slane %v7914, 7
      %v7973 = vsel %vm7461, %v7971, %v7972
      %v7974 = vrot.slane %v7915, 7
      %v7975 = vsel %vm7461, %v7972, %v7974
      %v7976 = vrot.slane %v7916, 7
      %v7977 = vrot.slane %v7917, 7
      %v7978 = vsel %vm7461, %v7976, %v7977
      %v7979 = vrot.slane %v7918, 7
      %v7980 = vsel %vm7461, %v7977, %v7979
      %v7981 = vrot.slane %v7919, 7
      %v7982 = vrot.slane %v7920, 7
      %v7983 = vsel %vm7461, %v7981, %v7982
      %v7984 = vrot.slane %v7921, 7
      %v7985 = vsel %vm7461, %v7982, %v7984
      %v8002 = vadd.f32 %v7881, %v7948
      %v8003 = vadd.f32 %v7882, %v7950
      %v8004 = vadd.f32 %v7883, %v7953
      %v8005 = vadd.f32 %v7884, %v7955
      %v8006 = vadd.f32 %v7885, %v7958
      %v8007 = vadd.f32 %v7886, %v7960
      %v8008 = vadd.f32 %v7887, %v7963
      %v8009 = vadd.f32 %v7888, %v7965
      %v8010 = vadd.f32 %v7889, %v7968
      %v8011 = vadd.f32 %v7890, %v7970
      %v8012 = vadd.f32 %v7891, %v7973
      %v8013 = vadd.f32 %v7892, %v7975
      %v8014 = vadd.f32 %v7893, %v7978
      %v8015 = vadd.f32 %v7894, %v7980
      %v8016 = vadd.f32 %v7895, %v7983
      %v8017 = vadd.f32 %v7896, %v7985
      %v8018 = vperm.slane %v510, 7
      %v8019 = vmul.f32 %v542, %v8018
      %v8020 = vmul.f32 %v543, %v8018
      %v8021 = vmul.f32 %v544, %v8018
      %v8022 = vmul.f32 %v545, %v8018
      %v8023 = vmul.f32 %v546, %v8018
      %v8024 = vmul.f32 %v547, %v8018
      %v8025 = vmul.f32 %v548, %v8018
      %v8026 = vmul.f32 %v549, %v8018
      %v8027 = vmul.f32 %v550, %v8018
      %v8028 = vmul.f32 %v551, %v8018
      %v8029 = vmul.f32 %v552, %v8018
      %v8030 = vmul.f32 %v553, %v8018
      %v8031 = vmul.f32 %v554, %v8018
      %v8032 = vmul.f32 %v555, %v8018
      %v8033 = vmul.f32 %v556, %v8018
      %v8034 = vmul.f32 %v557, %v8018
      %v8035 = vmul.f32 %v558, %v8018
      %v8036 = vmul.f32 %v559, %v8018
      %v8037 = vmul.f32 %v560, %v8018
      %v8038 = vmul.f32 %v561, %v8018
      %v8039 = vmul.f32 %v562, %v8018
      %v8040 = vmul.f32 %v563, %v8018
      %v8041 = vmul.f32 %v564, %v8018
      %v8042 = vmul.f32 %v565, %v8018
      %v8067 = vrot.slane %v8019, 7
      %v8068 = vrot.slane %v8020, 7
      %v8069 = vsel %vm7461, %v8067, %v8068
      %v8070 = vrot.slane %v8021, 7
      %v8071 = vsel %vm7461, %v8068, %v8070
      %v8072 = vrot.slane %v8022, 7
      %v8073 = vrot.slane %v8023, 7
      %v8074 = vsel %vm7461, %v8072, %v8073
      %v8075 = vrot.slane %v8024, 7
      %v8076 = vsel %vm7461, %v8073, %v8075
      %v8077 = vrot.slane %v8025, 7
      %v8078 = vrot.slane %v8026, 7
      %v8079 = vsel %vm7461, %v8077, %v8078
      %v8080 = vrot.slane %v8027, 7
      %v8081 = vsel %vm7461, %v8078, %v8080
      %v8082 = vrot.slane %v8028, 7
      %v8083 = vrot.slane %v8029, 7
      %v8084 = vsel %vm7461, %v8082, %v8083
      %v8085 = vrot.slane %v8030, 7
      %v8086 = vsel %vm7461, %v8083, %v8085
      %v8087 = vrot.slane %v8031, 7
      %v8088 = vrot.slane %v8032, 7
      %v8089 = vsel %vm7461, %v8087, %v8088
      %v8090 = vrot.slane %v8033, 7
      %v8091 = vsel %vm7461, %v8088, %v8090
      %v8092 = vrot.slane %v8034, 7
      %v8093 = vrot.slane %v8035, 7
      %v8094 = vsel %vm7461, %v8092, %v8093
      %v8095 = vrot.slane %v8036, 7
      %v8096 = vsel %vm7461, %v8093, %v8095
      %v8097 = vrot.slane %v8037, 7
      %v8098 = vrot.slane %v8038, 7
      %v8099 = vsel %vm7461, %v8097, %v8098
      %v8100 = vrot.slane %v8039, 7
      %v8101 = vsel %vm7461, %v8098, %v8100
      %v8102 = vrot.slane %v8040, 7
      %v8103 = vrot.slane %v8041, 7
      %v8104 = vsel %vm7461, %v8102, %v8103
      %v8105 = vrot.slane %v8042, 7
      %v8106 = vsel %vm7461, %v8103, %v8105
      %v8123 = vadd.f32 %v8002, %v8069
      %v8124 = vadd.f32 %v8003, %v8071
      %v8125 = vadd.f32 %v8004, %v8074
      %v8126 = vadd.f32 %v8005, %v8076
      %v8127 = vadd.f32 %v8006, %v8079
      %v8128 = vadd.f32 %v8007, %v8081
      %v8129 = vadd.f32 %v8008, %v8084
      %v8130 = vadd.f32 %v8009, %v8086
      %v8131 = vadd.f32 %v8010, %v8089
      %v8132 = vadd.f32 %v8011, %v8091
      %v8133 = vadd.f32 %v8012, %v8094
      %v8134 = vadd.f32 %v8013, %v8096
      %v8135 = vadd.f32 %v8014, %v8099
      %v8136 = vadd.f32 %v8015, %v8101
      %v8137 = vadd.f32 %v8016, %v8104
      %v8138 = vadd.f32 %v8017, %v8106
      %v8139 = vperm.slane %v512, 7
      %v8140 = vmul.f32 %v545, %v8139
      %v8141 = vmul.f32 %v546, %v8139
      %v8142 = vmul.f32 %v547, %v8139
      %v8143 = vmul.f32 %v548, %v8139
      %v8144 = vmul.f32 %v549, %v8139
      %v8145 = vmul.f32 %v550, %v8139
      %v8146 = vmul.f32 %v551, %v8139
      %v8147 = vmul.f32 %v552, %v8139
      %v8148 = vmul.f32 %v553, %v8139
      %v8149 = vmul.f32 %v554, %v8139
      %v8150 = vmul.f32 %v555, %v8139
      %v8151 = vmul.f32 %v556, %v8139
      %v8152 = vmul.f32 %v557, %v8139
      %v8153 = vmul.f32 %v558, %v8139
      %v8154 = vmul.f32 %v559, %v8139
      %v8155 = vmul.f32 %v560, %v8139
      %v8156 = vmul.f32 %v561, %v8139
      %v8157 = vmul.f32 %v562, %v8139
      %v8158 = vmul.f32 %v563, %v8139
      %v8159 = vmul.f32 %v564, %v8139
      %v8160 = vmul.f32 %v565, %v8139
      %v8161 = vmul.f32 %v566, %v8139
      %v8162 = vmul.f32 %v567, %v8139
      %v8163 = vmul.f32 %v568, %v8139
      %v8188 = vrot.slane %v8140, 7
      %v8189 = vrot.slane %v8141, 7
      %v8190 = vsel %vm7461, %v8188, %v8189
      %v8191 = vrot.slane %v8142, 7
      %v8192 = vsel %vm7461, %v8189, %v8191
      %v8193 = vrot.slane %v8143, 7
      %v8194 = vrot.slane %v8144, 7
      %v8195 = vsel %vm7461, %v8193, %v8194
      %v8196 = vrot.slane %v8145, 7
      %v8197 = vsel %vm7461, %v8194, %v8196
      %v8198 = vrot.slane %v8146, 7
      %v8199 = vrot.slane %v8147, 7
      %v8200 = vsel %vm7461, %v8198, %v8199
      %v8201 = vrot.slane %v8148, 7
      %v8202 = vsel %vm7461, %v8199, %v8201
      %v8203 = vrot.slane %v8149, 7
      %v8204 = vrot.slane %v8150, 7
      %v8205 = vsel %vm7461, %v8203, %v8204
      %v8206 = vrot.slane %v8151, 7
      %v8207 = vsel %vm7461, %v8204, %v8206
      %v8208 = vrot.slane %v8152, 7
      %v8209 = vrot.slane %v8153, 7
      %v8210 = vsel %vm7461, %v8208, %v8209
      %v8211 = vrot.slane %v8154, 7
      %v8212 = vsel %vm7461, %v8209, %v8211
      %v8213 = vrot.slane %v8155, 7
      %v8214 = vrot.slane %v8156, 7
      %v8215 = vsel %vm7461, %v8213, %v8214
      %v8216 = vrot.slane %v8157, 7
      %v8217 = vsel %vm7461, %v8214, %v8216
      %v8218 = vrot.slane %v8158, 7
      %v8219 = vrot.slane %v8159, 7
      %v8220 = vsel %vm7461, %v8218, %v8219
      %v8221 = vrot.slane %v8160, 7
      %v8222 = vsel %vm7461, %v8219, %v8221
      %v8223 = vrot.slane %v8161, 7
      %v8224 = vrot.slane %v8162, 7
      %v8225 = vsel %vm7461, %v8223, %v8224
      %v8226 = vrot.slane %v8163, 7
      %v8227 = vsel %vm7461, %v8224, %v8226
      %v8244 = vadd.f32 %v8123, %v8190
      %v8245 = vadd.f32 %v8124, %v8192
      %v8246 = vadd.f32 %v8125, %v8195
      %v8247 = vadd.f32 %v8126, %v8197
      %v8248 = vadd.f32 %v8127, %v8200
      %v8249 = vadd.f32 %v8128, %v8202
      %v8250 = vadd.f32 %v8129, %v8205
      %v8251 = vadd.f32 %v8130, %v8207
      %v8252 = vadd.f32 %v8131, %v8210
      %v8253 = vadd.f32 %v8132, %v8212
      %v8254 = vadd.f32 %v8133, %v8215
      %v8255 = vadd.f32 %v8134, %v8217
      %v8256 = vadd.f32 %v8135, %v8220
      %v8257 = vadd.f32 %v8136, %v8222
      %v8258 = vadd.f32 %v8137, %v8225
      %v8259 = vadd.f32 %v8138, %v8227
      %v8260 = vperm.slane %v514, 7
      %v8261 = vmul.f32 %v548, %v8260
      %v8262 = vmul.f32 %v549, %v8260
      %v8263 = vmul.f32 %v550, %v8260
      %v8264 = vmul.f32 %v551, %v8260
      %v8265 = vmul.f32 %v552, %v8260
      %v8266 = vmul.f32 %v553, %v8260
      %v8267 = vmul.f32 %v554, %v8260
      %v8268 = vmul.f32 %v555, %v8260
      %v8269 = vmul.f32 %v556, %v8260
      %v8270 = vmul.f32 %v557, %v8260
      %v8271 = vmul.f32 %v558, %v8260
      %v8272 = vmul.f32 %v559, %v8260
      %v8273 = vmul.f32 %v560, %v8260
      %v8274 = vmul.f32 %v561, %v8260
      %v8275 = vmul.f32 %v562, %v8260
      %v8276 = vmul.f32 %v563, %v8260
      %v8277 = vmul.f32 %v564, %v8260
      %v8278 = vmul.f32 %v565, %v8260
      %v8279 = vmul.f32 %v566, %v8260
      %v8280 = vmul.f32 %v567, %v8260
      %v8281 = vmul.f32 %v568, %v8260
      %v8282 = vmul.f32 %v569, %v8260
      %v8283 = vmul.f32 %v570, %v8260
      %v8284 = vmul.f32 %v571, %v8260
      %v8309 = vrot.slane %v8261, 7
      %v8310 = vrot.slane %v8262, 7
      %v8311 = vsel %vm7461, %v8309, %v8310
      %v8312 = vrot.slane %v8263, 7
      %v8313 = vsel %vm7461, %v8310, %v8312
      %v8314 = vrot.slane %v8264, 7
      %v8315 = vrot.slane %v8265, 7
      %v8316 = vsel %vm7461, %v8314, %v8315
      %v8317 = vrot.slane %v8266, 7
      %v8318 = vsel %vm7461, %v8315, %v8317
      %v8319 = vrot.slane %v8267, 7
      %v8320 = vrot.slane %v8268, 7
      %v8321 = vsel %vm7461, %v8319, %v8320
      %v8322 = vrot.slane %v8269, 7
      %v8323 = vsel %vm7461, %v8320, %v8322
      %v8324 = vrot.slane %v8270, 7
      %v8325 = vrot.slane %v8271, 7
      %v8326 = vsel %vm7461, %v8324, %v8325
      %v8327 = vrot.slane %v8272, 7
      %v8328 = vsel %vm7461, %v8325, %v8327
      %v8329 = vrot.slane %v8273, 7
      %v8330 = vrot.slane %v8274, 7
      %v8331 = vsel %vm7461, %v8329, %v8330
      %v8332 = vrot.slane %v8275, 7
      %v8333 = vsel %vm7461, %v8330, %v8332
      %v8334 = vrot.slane %v8276, 7
      %v8335 = vrot.slane %v8277, 7
      %v8336 = vsel %vm7461, %v8334, %v8335
      %v8337 = vrot.slane %v8278, 7
      %v8338 = vsel %vm7461, %v8335, %v8337
      %v8339 = vrot.slane %v8279, 7
      %v8340 = vrot.slane %v8280, 7
      %v8341 = vsel %vm7461, %v8339, %v8340
      %v8342 = vrot.slane %v8281, 7
      %v8343 = vsel %vm7461, %v8340, %v8342
      %v8344 = vrot.slane %v8282, 7
      %v8345 = vrot.slane %v8283, 7
      %v8346 = vsel %vm7461, %v8344, %v8345
      %v8347 = vrot.slane %v8284, 7
      %v8348 = vsel %vm7461, %v8345, %v8347
      %v8365 = vadd.f32 %v8244, %v8311
      %v8366 = vadd.f32 %v8245, %v8313
      %v8367 = vadd.f32 %v8246, %v8316
      %v8368 = vadd.f32 %v8247, %v8318
      %v8369 = vadd.f32 %v8248, %v8321
      %v8370 = vadd.f32 %v8249, %v8323
      %v8371 = vadd.f32 %v8250, %v8326
      %v8372 = vadd.f32 %v8251, %v8328
      %v8373 = vadd.f32 %v8252, %v8331
      %v8374 = vadd.f32 %v8253, %v8333
      %v8375 = vadd.f32 %v8254, %v8336
      %v8376 = vadd.f32 %v8255, %v8338
      %v8377 = vadd.f32 %v8256, %v8341
      %v8378 = vadd.f32 %v8257, %v8343
      %v8379 = vadd.f32 %v8258, %v8346
      %v8380 = vadd.f32 %v8259, %v8348
      %v8381 = vperm.slane %v516, 7
      %v8382 = vmul.f32 %v551, %v8381
      %v8383 = vmul.f32 %v552, %v8381
      %v8384 = vmul.f32 %v553, %v8381
      %v8385 = vmul.f32 %v554, %v8381
      %v8386 = vmul.f32 %v555, %v8381
      %v8387 = vmul.f32 %v556, %v8381
      %v8388 = vmul.f32 %v557, %v8381
      %v8389 = vmul.f32 %v558, %v8381
      %v8390 = vmul.f32 %v559, %v8381
      %v8391 = vmul.f32 %v560, %v8381
      %v8392 = vmul.f32 %v561, %v8381
      %v8393 = vmul.f32 %v562, %v8381
      %v8394 = vmul.f32 %v563, %v8381
      %v8395 = vmul.f32 %v564, %v8381
      %v8396 = vmul.f32 %v565, %v8381
      %v8397 = vmul.f32 %v566, %v8381
      %v8398 = vmul.f32 %v567, %v8381
      %v8399 = vmul.f32 %v568, %v8381
      %v8400 = vmul.f32 %v569, %v8381
      %v8401 = vmul.f32 %v570, %v8381
      %v8402 = vmul.f32 %v571, %v8381
      %v8403 = vmul.f32 %v572, %v8381
      %v8404 = vmul.f32 %v573, %v8381
      %v8405 = vmul.f32 %v574, %v8381
      %v8430 = vrot.slane %v8382, 7
      %v8431 = vrot.slane %v8383, 7
      %v8432 = vsel %vm7461, %v8430, %v8431
      %v8433 = vrot.slane %v8384, 7
      %v8434 = vsel %vm7461, %v8431, %v8433
      %v8435 = vrot.slane %v8385, 7
      %v8436 = vrot.slane %v8386, 7
      %v8437 = vsel %vm7461, %v8435, %v8436
      %v8438 = vrot.slane %v8387, 7
      %v8439 = vsel %vm7461, %v8436, %v8438
      %v8440 = vrot.slane %v8388, 7
      %v8441 = vrot.slane %v8389, 7
      %v8442 = vsel %vm7461, %v8440, %v8441
      %v8443 = vrot.slane %v8390, 7
      %v8444 = vsel %vm7461, %v8441, %v8443
      %v8445 = vrot.slane %v8391, 7
      %v8446 = vrot.slane %v8392, 7
      %v8447 = vsel %vm7461, %v8445, %v8446
      %v8448 = vrot.slane %v8393, 7
      %v8449 = vsel %vm7461, %v8446, %v8448
      %v8450 = vrot.slane %v8394, 7
      %v8451 = vrot.slane %v8395, 7
      %v8452 = vsel %vm7461, %v8450, %v8451
      %v8453 = vrot.slane %v8396, 7
      %v8454 = vsel %vm7461, %v8451, %v8453
      %v8455 = vrot.slane %v8397, 7
      %v8456 = vrot.slane %v8398, 7
      %v8457 = vsel %vm7461, %v8455, %v8456
      %v8458 = vrot.slane %v8399, 7
      %v8459 = vsel %vm7461, %v8456, %v8458
      %v8460 = vrot.slane %v8400, 7
      %v8461 = vrot.slane %v8401, 7
      %v8462 = vsel %vm7461, %v8460, %v8461
      %v8463 = vrot.slane %v8402, 7
      %v8464 = vsel %vm7461, %v8461, %v8463
      %v8465 = vrot.slane %v8403, 7
      %v8466 = vrot.slane %v8404, 7
      %v8467 = vsel %vm7461, %v8465, %v8466
      %v8468 = vrot.slane %v8405, 7
      %v8469 = vsel %vm7461, %v8466, %v8468
      %v8486 = vadd.f32 %v8365, %v8432
      %v8487 = vadd.f32 %v8366, %v8434
      %v8488 = vadd.f32 %v8367, %v8437
      %v8489 = vadd.f32 %v8368, %v8439
      %v8490 = vadd.f32 %v8369, %v8442
      %v8491 = vadd.f32 %v8370, %v8444
      %v8492 = vadd.f32 %v8371, %v8447
      %v8493 = vadd.f32 %v8372, %v8449
      %v8494 = vadd.f32 %v8373, %v8452
      %v8495 = vadd.f32 %v8374, %v8454
      %v8496 = vadd.f32 %v8375, %v8457
      %v8497 = vadd.f32 %v8376, %v8459
      %v8498 = vadd.f32 %v8377, %v8462
      %v8499 = vadd.f32 %v8378, %v8464
      %v8500 = vadd.f32 %v8379, %v8467
      %v8501 = vadd.f32 %v8380, %v8469
      %v8502 = vperm.slane %v501, 0
      %v8503 = vmul.f32 %v528, %v8502
      %v8504 = vmul.f32 %v529, %v8502
      %v8505 = vmul.f32 %v531, %v8502
      %v8506 = vmul.f32 %v532, %v8502
      %v8507 = vmul.f32 %v534, %v8502
      %v8508 = vmul.f32 %v535, %v8502
      %v8509 = vmul.f32 %v537, %v8502
      %v8510 = vmul.f32 %v538, %v8502
      %v8511 = vmul.f32 %v540, %v8502
      %v8512 = vmul.f32 %v541, %v8502
      %v8513 = vmul.f32 %v543, %v8502
      %v8514 = vmul.f32 %v544, %v8502
      %v8515 = vmul.f32 %v546, %v8502
      %v8516 = vmul.f32 %v547, %v8502
      %v8517 = vmul.f32 %v549, %v8502
      %v8518 = vmul.f32 %v550, %v8502
      %v8519 = vadd.f32 %v8486, %v8503
      %v8520 = vadd.f32 %v8487, %v8504
      %v8521 = vadd.f32 %v8488, %v8505
      %v8522 = vadd.f32 %v8489, %v8506
      %v8523 = vadd.f32 %v8490, %v8507
      %v8524 = vadd.f32 %v8491, %v8508
      %v8525 = vadd.f32 %v8492, %v8509
      %v8526 = vadd.f32 %v8493, %v8510
      %v8527 = vadd.f32 %v8494, %v8511
      %v8528 = vadd.f32 %v8495, %v8512
      %v8529 = vadd.f32 %v8496, %v8513
      %v8530 = vadd.f32 %v8497, %v8514
      %v8531 = vadd.f32 %v8498, %v8515
      %v8532 = vadd.f32 %v8499, %v8516
      %v8533 = vadd.f32 %v8500, %v8517
      %v8534 = vadd.f32 %v8501, %v8518
      %v8535 = vperm.slane %v503, 0
      %v8536 = vmul.f32 %v531, %v8535
      %v8537 = vmul.f32 %v532, %v8535
      %v8538 = vmul.f32 %v534, %v8535
      %v8539 = vmul.f32 %v535, %v8535
      %v8540 = vmul.f32 %v537, %v8535
      %v8541 = vmul.f32 %v538, %v8535
      %v8542 = vmul.f32 %v540, %v8535
      %v8543 = vmul.f32 %v541, %v8535
      %v8544 = vmul.f32 %v543, %v8535
      %v8545 = vmul.f32 %v544, %v8535
      %v8546 = vmul.f32 %v546, %v8535
      %v8547 = vmul.f32 %v547, %v8535
      %v8548 = vmul.f32 %v549, %v8535
      %v8549 = vmul.f32 %v550, %v8535
      %v8550 = vmul.f32 %v552, %v8535
      %v8551 = vmul.f32 %v553, %v8535
      %v8552 = vadd.f32 %v8519, %v8536
      %v8553 = vadd.f32 %v8520, %v8537
      %v8554 = vadd.f32 %v8521, %v8538
      %v8555 = vadd.f32 %v8522, %v8539
      %v8556 = vadd.f32 %v8523, %v8540
      %v8557 = vadd.f32 %v8524, %v8541
      %v8558 = vadd.f32 %v8525, %v8542
      %v8559 = vadd.f32 %v8526, %v8543
      %v8560 = vadd.f32 %v8527, %v8544
      %v8561 = vadd.f32 %v8528, %v8545
      %v8562 = vadd.f32 %v8529, %v8546
      %v8563 = vadd.f32 %v8530, %v8547
      %v8564 = vadd.f32 %v8531, %v8548
      %v8565 = vadd.f32 %v8532, %v8549
      %v8566 = vadd.f32 %v8533, %v8550
      %v8567 = vadd.f32 %v8534, %v8551
      %v8568 = vperm.slane %v505, 0
      %v8569 = vmul.f32 %v534, %v8568
      %v8570 = vmul.f32 %v535, %v8568
      %v8571 = vmul.f32 %v537, %v8568
      %v8572 = vmul.f32 %v538, %v8568
      %v8573 = vmul.f32 %v540, %v8568
      %v8574 = vmul.f32 %v541, %v8568
      %v8575 = vmul.f32 %v543, %v8568
      %v8576 = vmul.f32 %v544, %v8568
      %v8577 = vmul.f32 %v546, %v8568
      %v8578 = vmul.f32 %v547, %v8568
      %v8579 = vmul.f32 %v549, %v8568
      %v8580 = vmul.f32 %v550, %v8568
      %v8581 = vmul.f32 %v552, %v8568
      %v8582 = vmul.f32 %v553, %v8568
      %v8583 = vmul.f32 %v555, %v8568
      %v8584 = vmul.f32 %v556, %v8568
      %v8585 = vadd.f32 %v8552, %v8569
      %v8586 = vadd.f32 %v8553, %v8570
      %v8587 = vadd.f32 %v8554, %v8571
      %v8588 = vadd.f32 %v8555, %v8572
      %v8589 = vadd.f32 %v8556, %v8573
      %v8590 = vadd.f32 %v8557, %v8574
      %v8591 = vadd.f32 %v8558, %v8575
      %v8592 = vadd.f32 %v8559, %v8576
      %v8593 = vadd.f32 %v8560, %v8577
      %v8594 = vadd.f32 %v8561, %v8578
      %v8595 = vadd.f32 %v8562, %v8579
      %v8596 = vadd.f32 %v8563, %v8580
      %v8597 = vadd.f32 %v8564, %v8581
      %v8598 = vadd.f32 %v8565, %v8582
      %v8599 = vadd.f32 %v8566, %v8583
      %v8600 = vadd.f32 %v8567, %v8584
      %v8601 = vperm.slane %v507, 0
      %v8602 = vmul.f32 %v537, %v8601
      %v8603 = vmul.f32 %v538, %v8601
      %v8604 = vmul.f32 %v540, %v8601
      %v8605 = vmul.f32 %v541, %v8601
      %v8606 = vmul.f32 %v543, %v8601
      %v8607 = vmul.f32 %v544, %v8601
      %v8608 = vmul.f32 %v546, %v8601
      %v8609 = vmul.f32 %v547, %v8601
      %v8610 = vmul.f32 %v549, %v8601
      %v8611 = vmul.f32 %v550, %v8601
      %v8612 = vmul.f32 %v552, %v8601
      %v8613 = vmul.f32 %v553, %v8601
      %v8614 = vmul.f32 %v555, %v8601
      %v8615 = vmul.f32 %v556, %v8601
      %v8616 = vmul.f32 %v558, %v8601
      %v8617 = vmul.f32 %v559, %v8601
      %v8618 = vadd.f32 %v8585, %v8602
      %v8619 = vadd.f32 %v8586, %v8603
      %v8620 = vadd.f32 %v8587, %v8604
      %v8621 = vadd.f32 %v8588, %v8605
      %v8622 = vadd.f32 %v8589, %v8606
      %v8623 = vadd.f32 %v8590, %v8607
      %v8624 = vadd.f32 %v8591, %v8608
      %v8625 = vadd.f32 %v8592, %v8609
      %v8626 = vadd.f32 %v8593, %v8610
      %v8627 = vadd.f32 %v8594, %v8611
      %v8628 = vadd.f32 %v8595, %v8612
      %v8629 = vadd.f32 %v8596, %v8613
      %v8630 = vadd.f32 %v8597, %v8614
      %v8631 = vadd.f32 %v8598, %v8615
      %v8632 = vadd.f32 %v8599, %v8616
      %v8633 = vadd.f32 %v8600, %v8617
      %v8634 = vperm.slane %v509, 0
      %v8635 = vmul.f32 %v540, %v8634
      %v8636 = vmul.f32 %v541, %v8634
      %v8637 = vmul.f32 %v543, %v8634
      %v8638 = vmul.f32 %v544, %v8634
      %v8639 = vmul.f32 %v546, %v8634
      %v8640 = vmul.f32 %v547, %v8634
      %v8641 = vmul.f32 %v549, %v8634
      %v8642 = vmul.f32 %v550, %v8634
      %v8643 = vmul.f32 %v552, %v8634
      %v8644 = vmul.f32 %v553, %v8634
      %v8645 = vmul.f32 %v555, %v8634
      %v8646 = vmul.f32 %v556, %v8634
      %v8647 = vmul.f32 %v558, %v8634
      %v8648 = vmul.f32 %v559, %v8634
      %v8649 = vmul.f32 %v561, %v8634
      %v8650 = vmul.f32 %v562, %v8634
      %v8651 = vadd.f32 %v8618, %v8635
      %v8652 = vadd.f32 %v8619, %v8636
      %v8653 = vadd.f32 %v8620, %v8637
      %v8654 = vadd.f32 %v8621, %v8638
      %v8655 = vadd.f32 %v8622, %v8639
      %v8656 = vadd.f32 %v8623, %v8640
      %v8657 = vadd.f32 %v8624, %v8641
      %v8658 = vadd.f32 %v8625, %v8642
      %v8659 = vadd.f32 %v8626, %v8643
      %v8660 = vadd.f32 %v8627, %v8644
      %v8661 = vadd.f32 %v8628, %v8645
      %v8662 = vadd.f32 %v8629, %v8646
      %v8663 = vadd.f32 %v8630, %v8647
      %v8664 = vadd.f32 %v8631, %v8648
      %v8665 = vadd.f32 %v8632, %v8649
      %v8666 = vadd.f32 %v8633, %v8650
      %v8667 = vperm.slane %v511, 0
      %v8668 = vmul.f32 %v543, %v8667
      %v8669 = vmul.f32 %v544, %v8667
      %v8670 = vmul.f32 %v546, %v8667
      %v8671 = vmul.f32 %v547, %v8667
      %v8672 = vmul.f32 %v549, %v8667
      %v8673 = vmul.f32 %v550, %v8667
      %v8674 = vmul.f32 %v552, %v8667
      %v8675 = vmul.f32 %v553, %v8667
      %v8676 = vmul.f32 %v555, %v8667
      %v8677 = vmul.f32 %v556, %v8667
      %v8678 = vmul.f32 %v558, %v8667
      %v8679 = vmul.f32 %v559, %v8667
      %v8680 = vmul.f32 %v561, %v8667
      %v8681 = vmul.f32 %v562, %v8667
      %v8682 = vmul.f32 %v564, %v8667
      %v8683 = vmul.f32 %v565, %v8667
      %v8684 = vadd.f32 %v8651, %v8668
      %v8685 = vadd.f32 %v8652, %v8669
      %v8686 = vadd.f32 %v8653, %v8670
      %v8687 = vadd.f32 %v8654, %v8671
      %v8688 = vadd.f32 %v8655, %v8672
      %v8689 = vadd.f32 %v8656, %v8673
      %v8690 = vadd.f32 %v8657, %v8674
      %v8691 = vadd.f32 %v8658, %v8675
      %v8692 = vadd.f32 %v8659, %v8676
      %v8693 = vadd.f32 %v8660, %v8677
      %v8694 = vadd.f32 %v8661, %v8678
      %v8695 = vadd.f32 %v8662, %v8679
      %v8696 = vadd.f32 %v8663, %v8680
      %v8697 = vadd.f32 %v8664, %v8681
      %v8698 = vadd.f32 %v8665, %v8682
      %v8699 = vadd.f32 %v8666, %v8683
      %v8700 = vperm.slane %v513, 0
      %v8701 = vmul.f32 %v546, %v8700
      %v8702 = vmul.f32 %v547, %v8700
      %v8703 = vmul.f32 %v549, %v8700
      %v8704 = vmul.f32 %v550, %v8700
      %v8705 = vmul.f32 %v552, %v8700
      %v8706 = vmul.f32 %v553, %v8700
      %v8707 = vmul.f32 %v555, %v8700
      %v8708 = vmul.f32 %v556, %v8700
      %v8709 = vmul.f32 %v558, %v8700
      %v8710 = vmul.f32 %v559, %v8700
      %v8711 = vmul.f32 %v561, %v8700
      %v8712 = vmul.f32 %v562, %v8700
      %v8713 = vmul.f32 %v564, %v8700
      %v8714 = vmul.f32 %v565, %v8700
      %v8715 = vmul.f32 %v567, %v8700
      %v8716 = vmul.f32 %v568, %v8700
      %v8717 = vadd.f32 %v8684, %v8701
      %v8718 = vadd.f32 %v8685, %v8702
      %v8719 = vadd.f32 %v8686, %v8703
      %v8720 = vadd.f32 %v8687, %v8704
      %v8721 = vadd.f32 %v8688, %v8705
      %v8722 = vadd.f32 %v8689, %v8706
      %v8723 = vadd.f32 %v8690, %v8707
      %v8724 = vadd.f32 %v8691, %v8708
      %v8725 = vadd.f32 %v8692, %v8709
      %v8726 = vadd.f32 %v8693, %v8710
      %v8727 = vadd.f32 %v8694, %v8711
      %v8728 = vadd.f32 %v8695, %v8712
      %v8729 = vadd.f32 %v8696, %v8713
      %v8730 = vadd.f32 %v8697, %v8714
      %v8731 = vadd.f32 %v8698, %v8715
      %v8732 = vadd.f32 %v8699, %v8716
      %v8733 = vperm.slane %v515, 0
      %v8734 = vmul.f32 %v549, %v8733
      %v8735 = vmul.f32 %v550, %v8733
      %v8736 = vmul.f32 %v552, %v8733
      %v8737 = vmul.f32 %v553, %v8733
      %v8738 = vmul.f32 %v555, %v8733
      %v8739 = vmul.f32 %v556, %v8733
      %v8740 = vmul.f32 %v558, %v8733
      %v8741 = vmul.f32 %v559, %v8733
      %v8742 = vmul.f32 %v561, %v8733
      %v8743 = vmul.f32 %v562, %v8733
      %v8744 = vmul.f32 %v564, %v8733
      %v8745 = vmul.f32 %v565, %v8733
      %v8746 = vmul.f32 %v567, %v8733
      %v8747 = vmul.f32 %v568, %v8733
      %v8748 = vmul.f32 %v570, %v8733
      %v8749 = vmul.f32 %v571, %v8733
      %v8750 = vadd.f32 %v8717, %v8734
      %v8751 = vadd.f32 %v8718, %v8735
      %v8752 = vadd.f32 %v8719, %v8736
      %v8753 = vadd.f32 %v8720, %v8737
      %v8754 = vadd.f32 %v8721, %v8738
      %v8755 = vadd.f32 %v8722, %v8739
      %v8756 = vadd.f32 %v8723, %v8740
      %v8757 = vadd.f32 %v8724, %v8741
      %v8758 = vadd.f32 %v8725, %v8742
      %v8759 = vadd.f32 %v8726, %v8743
      %v8760 = vadd.f32 %v8727, %v8744
      %v8761 = vadd.f32 %v8728, %v8745
      %v8762 = vadd.f32 %v8729, %v8746
      %v8763 = vadd.f32 %v8730, %v8747
      %v8764 = vadd.f32 %v8731, %v8748
      %v8765 = vadd.f32 %v8732, %v8749
      %v8766 = vperm.slane %v517, 0
      %v8767 = vmul.f32 %v552, %v8766
      %v8768 = vmul.f32 %v553, %v8766
      %v8769 = vmul.f32 %v555, %v8766
      %v8770 = vmul.f32 %v556, %v8766
      %v8771 = vmul.f32 %v558, %v8766
      %v8772 = vmul.f32 %v559, %v8766
      %v8773 = vmul.f32 %v561, %v8766
      %v8774 = vmul.f32 %v562, %v8766
      %v8775 = vmul.f32 %v564, %v8766
      %v8776 = vmul.f32 %v565, %v8766
      %v8777 = vmul.f32 %v567, %v8766
      %v8778 = vmul.f32 %v568, %v8766
      %v8779 = vmul.f32 %v570, %v8766
      %v8780 = vmul.f32 %v571, %v8766
      %v8781 = vmul.f32 %v573, %v8766
      %v8782 = vmul.f32 %v574, %v8766
      %v8783 = vadd.f32 %v8750, %v8767
      %v8784 = vadd.f32 %v8751, %v8768
      %v8785 = vadd.f32 %v8752, %v8769
      %v8786 = vadd.f32 %v8753, %v8770
      %v8787 = vadd.f32 %v8754, %v8771
      %v8788 = vadd.f32 %v8755, %v8772
      %v8789 = vadd.f32 %v8756, %v8773
      %v8790 = vadd.f32 %v8757, %v8774
      %v8791 = vadd.f32 %v8758, %v8775
      %v8792 = vadd.f32 %v8759, %v8776
      %v8793 = vadd.f32 %v8760, %v8777
      %v8794 = vadd.f32 %v8761, %v8778
      %v8795 = vadd.f32 %v8762, %v8779
      %v8796 = vadd.f32 %v8763, %v8780
      %v8797 = vadd.f32 %v8764, %v8781
      %v8798 = vadd.f32 %v8765, %v8782
      %v8800 = vperm.slane %v518, 0
      %v8802 = vadd.f32 %v8783, %v8800
      %v8803 = vadd.f32 %v8784, %v8800
      %v8804 = vadd.f32 %v8785, %v8800
      %v8805 = vadd.f32 %v8786, %v8800
      %v8806 = vadd.f32 %v8787, %v8800
      %v8807 = vadd.f32 %v8788, %v8800
      %v8808 = vadd.f32 %v8789, %v8800
      %v8809 = vadd.f32 %v8790, %v8800
      %v8810 = vadd.f32 %v8791, %v8800
      %v8811 = vadd.f32 %v8792, %v8800
      %v8812 = vadd.f32 %v8793, %v8800
      %v8813 = vadd.f32 %v8794, %v8800
      %v8814 = vadd.f32 %v8795, %v8800
      %v8815 = vadd.f32 %v8796, %v8800
      %v8816 = vadd.f32 %v8797, %v8800
      %v8817 = vadd.f32 %v8798, %v8800
      %v8818 = vmul.f32 %v8802, 0.5
      %v8819 = vmul.f32 %v8803, 0.5
      %v8820 = vmul.f32 %v8804, 0.5
      %v8821 = vmul.f32 %v8805, 0.5
      %v8822 = vmul.f32 %v8806, 0.5
      %v8823 = vmul.f32 %v8807, 0.5
      %v8824 = vmul.f32 %v8808, 0.5
      %v8825 = vmul.f32 %v8809, 0.5
      %v8826 = vmul.f32 %v8810, 0.5
      %v8827 = vmul.f32 %v8811, 0.5
      %v8828 = vmul.f32 %v8812, 0.5
      %v8829 = vmul.f32 %v8813, 0.5
      %v8830 = vmul.f32 %v8814, 0.5
      %v8831 = vmul.f32 %v8815, 0.5
      %v8832 = vmul.f32 %v8816, 0.5
      %v8833 = vmul.f32 %v8817, 0.5
      %v8834 = vrcp.pop 1.4142135
      %v8835 = vmul.f32 1.4142135, %v8834
      %v8836 = vsub.f32 1.0, %v8835
      %v8837 = vmul.f32 %v8834, %v8836
      %v8838 = vadd.f32 %v8834, %v8837
      %vm8839 = vweird.f32 %v8834
      %v8840 = vsel %vm8839, %v8834, %v8838
      %v8841 = vmul.f32 %v8802, %v8840
      %v8842 = vmul.f32 %v8803, %v8840
      %v8843 = vmul.f32 %v8804, %v8840
      %v8844 = vmul.f32 %v8805, %v8840
      %v8845 = vmul.f32 %v8806, %v8840
      %v8846 = vmul.f32 %v8807, %v8840
      %v8847 = vmul.f32 %v8808, %v8840
      %v8848 = vmul.f32 %v8809, %v8840
      %v8849 = vmul.f32 %v8810, %v8840
      %v8850 = vmul.f32 %v8811, %v8840
      %v8851 = vmul.f32 %v8812, %v8840
      %v8852 = vmul.f32 %v8813, %v8840
      %v8853 = vmul.f32 %v8814, %v8840
      %v8854 = vmul.f32 %v8815, %v8840
      %v8855 = vmul.f32 %v8816, %v8840
      %v8856 = vmul.f32 %v8817, %v8840
      %v8857 = vmul.f32 %v8841, %v8841
      %v8858 = vmin.f32 16.0, %v8857
      %v8859 = vmul.f32 %v8858, 2.1237322e-06
      %v8860 = vadd.f32 %v8859, 0.00028619796
      %v8861 = vmul.f32 %v8858, %v8860
      %v8862 = vadd.f32 %v8861, 0.0036580483
      %v8863 = vmul.f32 %v8858, %v8862
      %v8864 = vadd.f32 %v8863, 0.05243302
      %v8865 = vmul.f32 %v8858, %v8864
      %v8866 = vadd.f32 %v8865, 0.18741608
      %v8867 = vmul.f32 %v8858, %v8866
      %v8868 = vadd.f32 %v8867, 1.1283791
      %v8869 = vmul.f32 %v8841, %v8868
      %v8870 = vmul.f32 %v8858, 3.8918573e-05
      %v8871 = vadd.f32 %v8870, 0.001143296
      %v8872 = vmul.f32 %v8858, %v8871
      %v8873 = vadd.f32 %v8872, 0.014752088
      %v8874 = vmul.f32 %v8858, %v8873
      %v8875 = vadd.f32 %v8874, 0.112945676
      %v8876 = vmul.f32 %v8858, %v8875
      %v8877 = vadd.f32 %v8876, 0.4994258
      %v8878 = vmul.f32 %v8858, %v8877
      %v8879 = vadd.f32 %v8878, 1.0
      %v8880 = vrcp.pop %v8879
      %v8881 = vmul.f32 %v8879, %v8880
      %v8882 = vsub.f32 1.0, %v8881
      %v8883 = vmul.f32 %v8880, %v8882
      %v8884 = vadd.f32 %v8880, %v8883
      %vm8885 = vweird.f32 %v8879
      %vm8886 = vweird.f32 %v8880
      %vm8887 = vmor %vm8885, %vm8886
      %v8888 = vsel %vm8887, %v8880, %v8884
      %v8889 = vand.u32 2147483647, %v8879
      %vm8890 = vcmp.eq.f32.partialorder %v8889, 8.507059e+37
      %v8891 = vand.u32 %v8879, 2147483648
      %v8892 = vor.u32 1.1754944e-38, %v8891
      %v8893 = vsel %vm8890, %v8892, %v8888
      %v8894 = vmul.f32 %v8869, %v8893
      %v8895 = vmin.f32 %v8894, 1.0
      %v8896 = vmax.f32 %v8895, -1.0
      %v8897 = vmul.f32 %v8842, %v8842
      %v8898 = vmin.f32 16.0, %v8897
      %v8899 = vmul.f32 %v8898, 2.1237322e-06
      %v8900 = vadd.f32 %v8899, 0.00028619796
      %v8901 = vmul.f32 %v8898, %v8900
      %v8902 = vadd.f32 %v8901, 0.0036580483
      %v8903 = vmul.f32 %v8898, %v8902
      %v8904 = vadd.f32 %v8903, 0.05243302
      %v8905 = vmul.f32 %v8898, %v8904
      %v8906 = vadd.f32 %v8905, 0.18741608
      %v8907 = vmul.f32 %v8898, %v8906
      %v8908 = vadd.f32 %v8907, 1.1283791
      %v8909 = vmul.f32 %v8842, %v8908
      %v8910 = vmul.f32 %v8898, 3.8918573e-05
      %v8911 = vadd.f32 %v8910, 0.001143296
      %v8912 = vmul.f32 %v8898, %v8911
      %v8913 = vadd.f32 %v8912, 0.014752088
      %v8914 = vmul.f32 %v8898, %v8913
      %v8915 = vadd.f32 %v8914, 0.112945676
      %v8916 = vmul.f32 %v8898, %v8915
      %v8917 = vadd.f32 %v8916, 0.4994258
      %v8918 = vmul.f32 %v8898, %v8917
      %v8919 = vadd.f32 %v8918, 1.0
      %v8920 = vrcp.pop %v8919
      %v8921 = vmul.f32 %v8919, %v8920
      %v8922 = vsub.f32 1.0, %v8921
      %v8923 = vmul.f32 %v8920, %v8922
      %v8924 = vadd.f32 %v8920, %v8923
      %vm8925 = vweird.f32 %v8919
      %vm8926 = vweird.f32 %v8920
      %vm8927 = vmor %vm8925, %vm8926
      %v8928 = vsel %vm8927, %v8920, %v8924
      %v8929 = vand.u32 2147483647, %v8919
      %vm8930 = vcmp.eq.f32.partialorder %v8929, 8.507059e+37
      %v8931 = vand.u32 %v8919, 2147483648
      %v8932 = vor.u32 1.1754944e-38, %v8931
      %v8933 = vsel %vm8930, %v8932, %v8928
      %v8934 = vmul.f32 %v8909, %v8933
      %v8935 = vmin.f32 %v8934, 1.0
      %v8936 = vmax.f32 %v8935, -1.0
      %v8937 = vmul.f32 %v8843, %v8843
      %v8938 = vmin.f32 16.0, %v8937
      %v8939 = vmul.f32 %v8938, 2.1237322e-06
      %v8940 = vadd.f32 %v8939, 0.00028619796
      %v8941 = vmul.f32 %v8938, %v8940
      %v8942 = vadd.f32 %v8941, 0.0036580483
      %v8943 = vmul.f32 %v8938, %v8942
      %v8944 = vadd.f32 %v8943, 0.05243302
      %v8945 = vmul.f32 %v8938, %v8944
      %v8946 = vadd.f32 %v8945, 0.18741608
      %v8947 = vmul.f32 %v8938, %v8946
      %v8948 = vadd.f32 %v8947, 1.1283791
      %v8949 = vmul.f32 %v8843, %v8948
      %v8950 = vmul.f32 %v8938, 3.8918573e-05
      %v8951 = vadd.f32 %v8950, 0.001143296
      %v8952 = vmul.f32 %v8938, %v8951
      %v8953 = vadd.f32 %v8952, 0.014752088
      %v8954 = vmul.f32 %v8938, %v8953
      %v8955 = vadd.f32 %v8954, 0.112945676
      %v8956 = vmul.f32 %v8938, %v8955
      %v8957 = vadd.f32 %v8956, 0.4994258
      %v8958 = vmul.f32 %v8938, %v8957
      %v8959 = vadd.f32 %v8958, 1.0
      %v8960 = vrcp.pop %v8959
      %v8961 = vmul.f32 %v8959, %v8960
      %v8962 = vsub.f32 1.0, %v8961
      %v8963 = vmul.f32 %v8960, %v8962
      %v8964 = vadd.f32 %v8960, %v8963
      %vm8965 = vweird.f32 %v8959
      %vm8966 = vweird.f32 %v8960
      %vm8967 = vmor %vm8965, %vm8966
      %v8968 = vsel %vm8967, %v8960, %v8964
      %v8969 = vand.u32 2147483647, %v8959
      %vm8970 = vcmp.eq.f32.partialorder %v8969, 8.507059e+37
      %v8971 = vand.u32 %v8959, 2147483648
      %v8972 = vor.u32 1.1754944e-38, %v8971
      %v8973 = vsel %vm8970, %v8972, %v8968
      %v8974 = vmul.f32 %v8949, %v8973
      %v8975 = vmin.f32 %v8974, 1.0
      %v8976 = vmax.f32 %v8975, -1.0
      %v8977 = vmul.f32 %v8844, %v8844
      %v8978 = vmin.f32 16.0, %v8977
      %v8979 = vmul.f32 %v8978, 2.1237322e-06
      %v8980 = vadd.f32 %v8979, 0.00028619796
      %v8981 = vmul.f32 %v8978, %v8980
      %v8982 = vadd.f32 %v8981, 0.0036580483
      %v8983 = vmul.f32 %v8978, %v8982
      %v8984 = vadd.f32 %v8983, 0.05243302
      %v8985 = vmul.f32 %v8978, %v8984
      %v8986 = vadd.f32 %v8985, 0.18741608
      %v8987 = vmul.f32 %v8978, %v8986
      %v8988 = vadd.f32 %v8987, 1.1283791
      %v8989 = vmul.f32 %v8844, %v8988
      %v8990 = vmul.f32 %v8978, 3.8918573e-05
      %v8991 = vadd.f32 %v8990, 0.001143296
      %v8992 = vmul.f32 %v8978, %v8991
      %v8993 = vadd.f32 %v8992, 0.014752088
      %v8994 = vmul.f32 %v8978, %v8993
      %v8995 = vadd.f32 %v8994, 0.112945676
      %v8996 = vmul.f32 %v8978, %v8995
      %v8997 = vadd.f32 %v8996, 0.4994258
      %v8998 = vmul.f32 %v8978, %v8997
      %v8999 = vadd.f32 %v8998, 1.0
      %v9000 = vrcp.pop %v8999
      %v9001 = vmul.f32 %v8999, %v9000
      %v9002 = vsub.f32 1.0, %v9001
      %v9003 = vmul.f32 %v9000, %v9002
      %v9004 = vadd.f32 %v9000, %v9003
      %vm9005 = vweird.f32 %v8999
      %vm9006 = vweird.f32 %v9000
      %vm9007 = vmor %vm9005, %vm9006
      %v9008 = vsel %vm9007, %v9000, %v9004
      %v9009 = vand.u32 2147483647, %v8999
      %vm9010 = vcmp.eq.f32.partialorder %v9009, 8.507059e+37
      %v9011 = vand.u32 %v8999, 2147483648
      %v9012 = vor.u32 1.1754944e-38, %v9011
      %v9013 = vsel %vm9010, %v9012, %v9008
      %v9014 = vmul.f32 %v8989, %v9013
      %v9015 = vmin.f32 %v9014, 1.0
      %v9016 = vmax.f32 %v9015, -1.0
      %v9017 = vmul.f32 %v8845, %v8845
      %v9018 = vmin.f32 16.0, %v9017
      %v9019 = vmul.f32 %v9018, 2.1237322e-06
      %v9020 = vadd.f32 %v9019, 0.00028619796
      %v9021 = vmul.f32 %v9018, %v9020
      %v9022 = vadd.f32 %v9021, 0.0036580483
      %v9023 = vmul.f32 %v9018, %v9022
      %v9024 = vadd.f32 %v9023, 0.05243302
      %v9025 = vmul.f32 %v9018, %v9024
      %v9026 = vadd.f32 %v9025, 0.18741608
      %v9027 = vmul.f32 %v9018, %v9026
      %v9028 = vadd.f32 %v9027, 1.1283791
      %v9029 = vmul.f32 %v8845, %v9028
      %v9030 = vmul.f32 %v9018, 3.8918573e-05
      %v9031 = vadd.f32 %v9030, 0.001143296
      %v9032 = vmul.f32 %v9018, %v9031
      %v9033 = vadd.f32 %v9032, 0.014752088
      %v9034 = vmul.f32 %v9018, %v9033
      %v9035 = vadd.f32 %v9034, 0.112945676
      %v9036 = vmul.f32 %v9018, %v9035
      %v9037 = vadd.f32 %v9036, 0.4994258
      %v9038 = vmul.f32 %v9018, %v9037
      %v9039 = vadd.f32 %v9038, 1.0
      %v9040 = vrcp.pop %v9039
      %v9041 = vmul.f32 %v9039, %v9040
      %v9042 = vsub.f32 1.0, %v9041
      %v9043 = vmul.f32 %v9040, %v9042
      %v9044 = vadd.f32 %v9040, %v9043
      %vm9045 = vweird.f32 %v9039
      %vm9046 = vweird.f32 %v9040
      %vm9047 = vmor %vm9045, %vm9046
      %v9048 = vsel %vm9047, %v9040, %v9044
      %v9049 = vand.u32 2147483647, %v9039
      %vm9050 = vcmp.eq.f32.partialorder %v9049, 8.507059e+37
      %v9051 = vand.u32 %v9039, 2147483648
      %v9052 = vor.u32 1.1754944e-38, %v9051
      %v9053 = vsel %vm9050, %v9052, %v9048
      %v9054 = vmul.f32 %v9029, %v9053
      %v9055 = vmin.f32 %v9054, 1.0
      %v9056 = vmax.f32 %v9055, -1.0
      %v9057 = vmul.f32 %v8846, %v8846
      %v9058 = vmin.f32 16.0, %v9057
      %v9059 = vmul.f32 %v9058, 2.1237322e-06
      %v9060 = vadd.f32 %v9059, 0.00028619796
      %v9061 = vmul.f32 %v9058, %v9060
      %v9062 = vadd.f32 %v9061, 0.0036580483
      %v9063 = vmul.f32 %v9058, %v9062
      %v9064 = vadd.f32 %v9063, 0.05243302
      %v9065 = vmul.f32 %v9058, %v9064
      %v9066 = vadd.f32 %v9065, 0.18741608
      %v9067 = vmul.f32 %v9058, %v9066
      %v9068 = vadd.f32 %v9067, 1.1283791
      %v9069 = vmul.f32 %v8846, %v9068
      %v9070 = vmul.f32 %v9058, 3.8918573e-05
      %v9071 = vadd.f32 %v9070, 0.001143296
      %v9072 = vmul.f32 %v9058, %v9071
      %v9073 = vadd.f32 %v9072, 0.014752088
      %v9074 = vmul.f32 %v9058, %v9073
      %v9075 = vadd.f32 %v9074, 0.112945676
      %v9076 = vmul.f32 %v9058, %v9075
      %v9077 = vadd.f32 %v9076, 0.4994258
      %v9078 = vmul.f32 %v9058, %v9077
      %v9079 = vadd.f32 %v9078, 1.0
      %v9080 = vrcp.pop %v9079
      %v9081 = vmul.f32 %v9079, %v9080
      %v9082 = vsub.f32 1.0, %v9081
      %v9083 = vmul.f32 %v9080, %v9082
      %v9084 = vadd.f32 %v9080, %v9083
      %vm9085 = vweird.f32 %v9079
      %vm9086 = vweird.f32 %v9080
      %vm9087 = vmor %vm9085, %vm9086
      %v9088 = vsel %vm9087, %v9080, %v9084
      %v9089 = vand.u32 2147483647, %v9079
      %vm9090 = vcmp.eq.f32.partialorder %v9089, 8.507059e+37
      %v9091 = vand.u32 %v9079, 2147483648
      %v9092 = vor.u32 1.1754944e-38, %v9091
      %v9093 = vsel %vm9090, %v9092, %v9088
      %v9094 = vmul.f32 %v9069, %v9093
      %v9095 = vmin.f32 %v9094, 1.0
      %v9096 = vmax.f32 %v9095, -1.0
      %v9097 = vmul.f32 %v8847, %v8847
      %v9098 = vmin.f32 16.0, %v9097
      %v9099 = vmul.f32 %v9098, 2.1237322e-06
      %v9100 = vadd.f32 %v9099, 0.00028619796
      %v9101 = vmul.f32 %v9098, %v9100
      %v9102 = vadd.f32 %v9101, 0.0036580483
      %v9103 = vmul.f32 %v9098, %v9102
      %v9104 = vadd.f32 %v9103, 0.05243302
      %v9105 = vmul.f32 %v9098, %v9104
      %v9106 = vadd.f32 %v9105, 0.18741608
      %v9107 = vmul.f32 %v9098, %v9106
      %v9108 = vadd.f32 %v9107, 1.1283791
      %v9109 = vmul.f32 %v8847, %v9108
      %v9110 = vmul.f32 %v9098, 3.8918573e-05
      %v9111 = vadd.f32 %v9110, 0.001143296
      %v9112 = vmul.f32 %v9098, %v9111
      %v9113 = vadd.f32 %v9112, 0.014752088
      %v9114 = vmul.f32 %v9098, %v9113
      %v9115 = vadd.f32 %v9114, 0.112945676
      %v9116 = vmul.f32 %v9098, %v9115
      %v9117 = vadd.f32 %v9116, 0.4994258
      %v9118 = vmul.f32 %v9098, %v9117
      %v9119 = vadd.f32 %v9118, 1.0
      %v9120 = vrcp.pop %v9119
      %v9121 = vmul.f32 %v9119, %v9120
      %v9122 = vsub.f32 1.0, %v9121
      %v9123 = vmul.f32 %v9120, %v9122
      %v9124 = vadd.f32 %v9120, %v9123
      %vm9125 = vweird.f32 %v9119
      %vm9126 = vweird.f32 %v9120
      %vm9127 = vmor %vm9125, %vm9126
      %v9128 = vsel %vm9127, %v9120, %v9124
      %v9129 = vand.u32 2147483647, %v9119
      %vm9130 = vcmp.eq.f32.partialorder %v9129, 8.507059e+37
      %v9131 = vand.u32 %v9119, 2147483648
      %v9132 = vor.u32 1.1754944e-38, %v9131
      %v9133 = vsel %vm9130, %v9132, %v9128
      %v9134 = vmul.f32 %v9109, %v9133
      %v9135 = vmin.f32 %v9134, 1.0
      %v9136 = vmax.f32 %v9135, -1.0
      %v9137 = vmul.f32 %v8848, %v8848
      %v9138 = vmin.f32 16.0, %v9137
      %v9139 = vmul.f32 %v9138, 2.1237322e-06
      %v9140 = vadd.f32 %v9139, 0.00028619796
      %v9141 = vmul.f32 %v9138, %v9140
      %v9142 = vadd.f32 %v9141, 0.0036580483
      %v9143 = vmul.f32 %v9138, %v9142
      %v9144 = vadd.f32 %v9143, 0.05243302
      %v9145 = vmul.f32 %v9138, %v9144
      %v9146 = vadd.f32 %v9145, 0.18741608
      %v9147 = vmul.f32 %v9138, %v9146
      %v9148 = vadd.f32 %v9147, 1.1283791
      %v9149 = vmul.f32 %v8848, %v9148
      %v9150 = vmul.f32 %v9138, 3.8918573e-05
      %v9151 = vadd.f32 %v9150, 0.001143296
      %v9152 = vmul.f32 %v9138, %v9151
      %v9153 = vadd.f32 %v9152, 0.014752088
      %v9154 = vmul.f32 %v9138, %v9153
      %v9155 = vadd.f32 %v9154, 0.112945676
      %v9156 = vmul.f32 %v9138, %v9155
      %v9157 = vadd.f32 %v9156, 0.4994258
      %v9158 = vmul.f32 %v9138, %v9157
      %v9159 = vadd.f32 %v9158, 1.0
      %v9160 = vrcp.pop %v9159
      %v9161 = vmul.f32 %v9159, %v9160
      %v9162 = vsub.f32 1.0, %v9161
      %v9163 = vmul.f32 %v9160, %v9162
      %v9164 = vadd.f32 %v9160, %v9163
      %vm9165 = vweird.f32 %v9159
      %vm9166 = vweird.f32 %v9160
      %vm9167 = vmor %vm9165, %vm9166
      %v9168 = vsel %vm9167, %v9160, %v9164
      %v9169 = vand.u32 2147483647, %v9159
      %vm9170 = vcmp.eq.f32.partialorder %v9169, 8.507059e+37
      %v9171 = vand.u32 %v9159, 2147483648
      %v9172 = vor.u32 1.1754944e-38, %v9171
      %v9173 = vsel %vm9170, %v9172, %v9168
      %v9174 = vmul.f32 %v9149, %v9173
      %v9175 = vmin.f32 %v9174, 1.0
      %v9176 = vmax.f32 %v9175, -1.0
      %v9177 = vmul.f32 %v8849, %v8849
      %v9178 = vmin.f32 16.0, %v9177
      %v9179 = vmul.f32 %v9178, 2.1237322e-06
      %v9180 = vadd.f32 %v9179, 0.00028619796
      %v9181 = vmul.f32 %v9178, %v9180
      %v9182 = vadd.f32 %v9181, 0.0036580483
      %v9183 = vmul.f32 %v9178, %v9182
      %v9184 = vadd.f32 %v9183, 0.05243302
      %v9185 = vmul.f32 %v9178, %v9184
      %v9186 = vadd.f32 %v9185, 0.18741608
      %v9187 = vmul.f32 %v9178, %v9186
      %v9188 = vadd.f32 %v9187, 1.1283791
      %v9189 = vmul.f32 %v8849, %v9188
      %v9190 = vmul.f32 %v9178, 3.8918573e-05
      %v9191 = vadd.f32 %v9190, 0.001143296
      %v9192 = vmul.f32 %v9178, %v9191
      %v9193 = vadd.f32 %v9192, 0.014752088
      %v9194 = vmul.f32 %v9178, %v9193
      %v9195 = vadd.f32 %v9194, 0.112945676
      %v9196 = vmul.f32 %v9178, %v9195
      %v9197 = vadd.f32 %v9196, 0.4994258
      %v9198 = vmul.f32 %v9178, %v9197
      %v9199 = vadd.f32 %v9198, 1.0
      %v9200 = vrcp.pop %v9199
      %v9201 = vmul.f32 %v9199, %v9200
      %v9202 = vsub.f32 1.0, %v9201
      %v9203 = vmul.f32 %v9200, %v9202
      %v9204 = vadd.f32 %v9200, %v9203
      %vm9205 = vweird.f32 %v9199
      %vm9206 = vweird.f32 %v9200
      %vm9207 = vmor %vm9205, %vm9206
      %v9208 = vsel %vm9207, %v9200, %v9204
      %v9209 = vand.u32 2147483647, %v9199
      %vm9210 = vcmp.eq.f32.partialorder %v9209, 8.507059e+37
      %v9211 = vand.u32 %v9199, 2147483648
      %v9212 = vor.u32 1.1754944e-38, %v9211
      %v9213 = vsel %vm9210, %v9212, %v9208
      %v9214 = vmul.f32 %v9189, %v9213
      %v9215 = vmin.f32 %v9214, 1.0
      %v9216 = vmax.f32 %v9215, -1.0
      %v9217 = vmul.f32 %v8850, %v8850
      %v9218 = vmin.f32 16.0, %v9217
      %v9219 = vmul.f32 %v9218, 2.1237322e-06
      %v9220 = vadd.f32 %v9219, 0.00028619796
      %v9221 = vmul.f32 %v9218, %v9220
      %v9222 = vadd.f32 %v9221, 0.0036580483
      %v9223 = vmul.f32 %v9218, %v9222
      %v9224 = vadd.f32 %v9223, 0.05243302
      %v9225 = vmul.f32 %v9218, %v9224
      %v9226 = vadd.f32 %v9225, 0.18741608
      %v9227 = vmul.f32 %v9218, %v9226
      %v9228 = vadd.f32 %v9227, 1.1283791
      %v9229 = vmul.f32 %v8850, %v9228
      %v9230 = vmul.f32 %v9218, 3.8918573e-05
      %v9231 = vadd.f32 %v9230, 0.001143296
      %v9232 = vmul.f32 %v9218, %v9231
      %v9233 = vadd.f32 %v9232, 0.014752088
      %v9234 = vmul.f32 %v9218, %v9233
      %v9235 = vadd.f32 %v9234, 0.112945676
      %v9236 = vmul.f32 %v9218, %v9235
      %v9237 = vadd.f32 %v9236, 0.4994258
      %v9238 = vmul.f32 %v9218, %v9237
      %v9239 = vadd.f32 %v9238, 1.0
      %v9240 = vrcp.pop %v9239
      %v9241 = vmul.f32 %v9239, %v9240
      %v9242 = vsub.f32 1.0, %v9241
      %v9243 = vmul.f32 %v9240, %v9242
      %v9244 = vadd.f32 %v9240, %v9243
      %vm9245 = vweird.f32 %v9239
      %vm9246 = vweird.f32 %v9240
      %vm9247 = vmor %vm9245, %vm9246
      %v9248 = vsel %vm9247, %v9240, %v9244
      %v9249 = vand.u32 2147483647, %v9239
      %vm9250 = vcmp.eq.f32.partialorder %v9249, 8.507059e+37
      %v9251 = vand.u32 %v9239, 2147483648
      %v9252 = vor.u32 1.1754944e-38, %v9251
      %v9253 = vsel %vm9250, %v9252, %v9248
      %v9254 = vmul.f32 %v9229, %v9253
      %v9255 = vmin.f32 %v9254, 1.0
      %v9256 = vmax.f32 %v9255, -1.0
      %v9257 = vmul.f32 %v8851, %v8851
      %v9258 = vmin.f32 16.0, %v9257
      %v9259 = vmul.f32 %v9258, 2.1237322e-06
      %v9260 = vadd.f32 %v9259, 0.00028619796
      %v9261 = vmul.f32 %v9258, %v9260
      %v9262 = vadd.f32 %v9261, 0.0036580483
      %v9263 = vmul.f32 %v9258, %v9262
      %v9264 = vadd.f32 %v9263, 0.05243302
      %v9265 = vmul.f32 %v9258, %v9264
      %v9266 = vadd.f32 %v9265, 0.18741608
      %v9267 = vmul.f32 %v9258, %v9266
      %v9268 = vadd.f32 %v9267, 1.1283791
      %v9269 = vmul.f32 %v8851, %v9268
      %v9270 = vmul.f32 %v9258, 3.8918573e-05
      %v9271 = vadd.f32 %v9270, 0.001143296
      %v9272 = vmul.f32 %v9258, %v9271
      %v9273 = vadd.f32 %v9272, 0.014752088
      %v9274 = vmul.f32 %v9258, %v9273
      %v9275 = vadd.f32 %v9274, 0.112945676
      %v9276 = vmul.f32 %v9258, %v9275
      %v9277 = vadd.f32 %v9276, 0.4994258
      %v9278 = vmul.f32 %v9258, %v9277
      %v9279 = vadd.f32 %v9278, 1.0
      %v9280 = vrcp.pop %v9279
      %v9281 = vmul.f32 %v9279, %v9280
      %v9282 = vsub.f32 1.0, %v9281
      %v9283 = vmul.f32 %v9280, %v9282
      %v9284 = vadd.f32 %v9280, %v9283
      %vm9285 = vweird.f32 %v9279
      %vm9286 = vweird.f32 %v9280
      %vm9287 = vmor %vm9285, %vm9286
      %v9288 = vsel %vm9287, %v9280, %v9284
      %v9289 = vand.u32 2147483647, %v9279
      %vm9290 = vcmp.eq.f32.partialorder %v9289, 8.507059e+37
      %v9291 = vand.u32 %v9279, 2147483648
      %v9292 = vor.u32 1.1754944e-38, %v9291
      %v9293 = vsel %vm9290, %v9292, %v9288
      %v9294 = vmul.f32 %v9269, %v9293
      %v9295 = vmin.f32 %v9294, 1.0
      %v9296 = vmax.f32 %v9295, -1.0
      %v9297 = vmul.f32 %v8852, %v8852
      %v9298 = vmin.f32 16.0, %v9297
      %v9299 = vmul.f32 %v9298, 2.1237322e-06
      %v9300 = vadd.f32 %v9299, 0.00028619796
      %v9301 = vmul.f32 %v9298, %v9300
      %v9302 = vadd.f32 %v9301, 0.0036580483
      %v9303 = vmul.f32 %v9298, %v9302
      %v9304 = vadd.f32 %v9303, 0.05243302
      %v9305 = vmul.f32 %v9298, %v9304
      %v9306 = vadd.f32 %v9305, 0.18741608
      %v9307 = vmul.f32 %v9298, %v9306
      %v9308 = vadd.f32 %v9307, 1.1283791
      %v9309 = vmul.f32 %v8852, %v9308
      %v9310 = vmul.f32 %v9298, 3.8918573e-05
      %v9311 = vadd.f32 %v9310, 0.001143296
      %v9312 = vmul.f32 %v9298, %v9311
      %v9313 = vadd.f32 %v9312, 0.014752088
      %v9314 = vmul.f32 %v9298, %v9313
      %v9315 = vadd.f32 %v9314, 0.112945676
      %v9316 = vmul.f32 %v9298, %v9315
      %v9317 = vadd.f32 %v9316, 0.4994258
      %v9318 = vmul.f32 %v9298, %v9317
      %v9319 = vadd.f32 %v9318, 1.0
      %v9320 = vrcp.pop %v9319
      %v9321 = vmul.f32 %v9319, %v9320
      %v9322 = vsub.f32 1.0, %v9321
      %v9323 = vmul.f32 %v9320, %v9322
      %v9324 = vadd.f32 %v9320, %v9323
      %vm9325 = vweird.f32 %v9319
      %vm9326 = vweird.f32 %v9320
      %vm9327 = vmor %vm9325, %vm9326
      %v9328 = vsel %vm9327, %v9320, %v9324
      %v9329 = vand.u32 2147483647, %v9319
      %vm9330 = vcmp.eq.f32.partialorder %v9329, 8.507059e+37
      %v9331 = vand.u32 %v9319, 2147483648
      %v9332 = vor.u32 1.1754944e-38, %v9331
      %v9333 = vsel %vm9330, %v9332, %v9328
      %v9334 = vmul.f32 %v9309, %v9333
      %v9335 = vmin.f32 %v9334, 1.0
      %v9336 = vmax.f32 %v9335, -1.0
      %v9337 = vmul.f32 %v8853, %v8853
      %v9338 = vmin.f32 16.0, %v9337
      %v9339 = vmul.f32 %v9338, 2.1237322e-06
      %v9340 = vadd.f32 %v9339, 0.00028619796
      %v9341 = vmul.f32 %v9338, %v9340
      %v9342 = vadd.f32 %v9341, 0.0036580483
      %v9343 = vmul.f32 %v9338, %v9342
      %v9344 = vadd.f32 %v9343, 0.05243302
      %v9345 = vmul.f32 %v9338, %v9344
      %v9346 = vadd.f32 %v9345, 0.18741608
      %v9347 = vmul.f32 %v9338, %v9346
      %v9348 = vadd.f32 %v9347, 1.1283791
      %v9349 = vmul.f32 %v8853, %v9348
      %v9350 = vmul.f32 %v9338, 3.8918573e-05
      %v9351 = vadd.f32 %v9350, 0.001143296
      %v9352 = vmul.f32 %v9338, %v9351
      %v9353 = vadd.f32 %v9352, 0.014752088
      %v9354 = vmul.f32 %v9338, %v9353
      %v9355 = vadd.f32 %v9354, 0.112945676
      %v9356 = vmul.f32 %v9338, %v9355
      %v9357 = vadd.f32 %v9356, 0.4994258
      %v9358 = vmul.f32 %v9338, %v9357
      %v9359 = vadd.f32 %v9358, 1.0
      %v9360 = vrcp.pop %v9359
      %v9361 = vmul.f32 %v9359, %v9360
      %v9362 = vsub.f32 1.0, %v9361
      %v9363 = vmul.f32 %v9360, %v9362
      %v9364 = vadd.f32 %v9360, %v9363
      %vm9365 = vweird.f32 %v9359
      %vm9366 = vweird.f32 %v9360
      %vm9367 = vmor %vm9365, %vm9366
      %v9368 = vsel %vm9367, %v9360, %v9364
      %v9369 = vand.u32 2147483647, %v9359
      %vm9370 = vcmp.eq.f32.partialorder %v9369, 8.507059e+37
      %v9371 = vand.u32 %v9359, 2147483648
      %v9372 = vor.u32 1.1754944e-38, %v9371
      %v9373 = vsel %vm9370, %v9372, %v9368
      %v9374 = vmul.f32 %v9349, %v9373
      %v9375 = vmin.f32 %v9374, 1.0
      %v9376 = vmax.f32 %v9375, -1.0
      %v9377 = vmul.f32 %v8854, %v8854
      %v9378 = vmin.f32 16.0, %v9377
      %v9379 = vmul.f32 %v9378, 2.1237322e-06
      %v9380 = vadd.f32 %v9379, 0.00028619796
      %v9381 = vmul.f32 %v9378, %v9380
      %v9382 = vadd.f32 %v9381, 0.0036580483
      %v9383 = vmul.f32 %v9378, %v9382
      %v9384 = vadd.f32 %v9383, 0.05243302
      %v9385 = vmul.f32 %v9378, %v9384
      %v9386 = vadd.f32 %v9385, 0.18741608
      %v9387 = vmul.f32 %v9378, %v9386
      %v9388 = vadd.f32 %v9387, 1.1283791
      %v9389 = vmul.f32 %v8854, %v9388
      %v9390 = vmul.f32 %v9378, 3.8918573e-05
      %v9391 = vadd.f32 %v9390, 0.001143296
      %v9392 = vmul.f32 %v9378, %v9391
      %v9393 = vadd.f32 %v9392, 0.014752088
      %v9394 = vmul.f32 %v9378, %v9393
      %v9395 = vadd.f32 %v9394, 0.112945676
      %v9396 = vmul.f32 %v9378, %v9395
      %v9397 = vadd.f32 %v9396, 0.4994258
      %v9398 = vmul.f32 %v9378, %v9397
      %v9399 = vadd.f32 %v9398, 1.0
      %v9400 = vrcp.pop %v9399
      %v9401 = vmul.f32 %v9399, %v9400
      %v9402 = vsub.f32 1.0, %v9401
      %v9403 = vmul.f32 %v9400, %v9402
      %v9404 = vadd.f32 %v9400, %v9403
      %vm9405 = vweird.f32 %v9399
      %vm9406 = vweird.f32 %v9400
      %vm9407 = vmor %vm9405, %vm9406
      %v9408 = vsel %vm9407, %v9400, %v9404
      %v9409 = vand.u32 2147483647, %v9399
      %vm9410 = vcmp.eq.f32.partialorder %v9409, 8.507059e+37
      %v9411 = vand.u32 %v9399, 2147483648
      %v9412 = vor.u32 1.1754944e-38, %v9411
      %v9413 = vsel %vm9410, %v9412, %v9408
      %v9414 = vmul.f32 %v9389, %v9413
      %v9415 = vmin.f32 %v9414, 1.0
      %v9416 = vmax.f32 %v9415, -1.0
      %v9417 = vmul.f32 %v8855, %v8855
      %v9418 = vmin.f32 16.0, %v9417
      %v9419 = vmul.f32 %v9418, 2.1237322e-06
      %v9420 = vadd.f32 %v9419, 0.00028619796
      %v9421 = vmul.f32 %v9418, %v9420
      %v9422 = vadd.f32 %v9421, 0.0036580483
      %v9423 = vmul.f32 %v9418, %v9422
      %v9424 = vadd.f32 %v9423, 0.05243302
      %v9425 = vmul.f32 %v9418, %v9424
      %v9426 = vadd.f32 %v9425, 0.18741608
      %v9427 = vmul.f32 %v9418, %v9426
      %v9428 = vadd.f32 %v9427, 1.1283791
      %v9429 = vmul.f32 %v8855, %v9428
      %v9430 = vmul.f32 %v9418, 3.8918573e-05
      %v9431 = vadd.f32 %v9430, 0.001143296
      %v9432 = vmul.f32 %v9418, %v9431
      %v9433 = vadd.f32 %v9432, 0.014752088
      %v9434 = vmul.f32 %v9418, %v9433
      %v9435 = vadd.f32 %v9434, 0.112945676
      %v9436 = vmul.f32 %v9418, %v9435
      %v9437 = vadd.f32 %v9436, 0.4994258
      %v9438 = vmul.f32 %v9418, %v9437
      %v9439 = vadd.f32 %v9438, 1.0
      %v9440 = vrcp.pop %v9439
      %v9441 = vmul.f32 %v9439, %v9440
      %v9442 = vsub.f32 1.0, %v9441
      %v9443 = vmul.f32 %v9440, %v9442
      %v9444 = vadd.f32 %v9440, %v9443
      %vm9445 = vweird.f32 %v9439
      %vm9446 = vweird.f32 %v9440
      %vm9447 = vmor %vm9445, %vm9446
      %v9448 = vsel %vm9447, %v9440, %v9444
      %v9449 = vand.u32 2147483647, %v9439
      %vm9450 = vcmp.eq.f32.partialorder %v9449, 8.507059e+37
      %v9451 = vand.u32 %v9439, 2147483648
      %v9452 = vor.u32 1.1754944e-38, %v9451
      %v9453 = vsel %vm9450, %v9452, %v9448
      %v9454 = vmul.f32 %v9429, %v9453
      %v9455 = vmin.f32 %v9454, 1.0
      %v9456 = vmax.f32 %v9455, -1.0
      %v9457 = vmul.f32 %v8856, %v8856
      %v9458 = vmin.f32 16.0, %v9457
      %v9459 = vmul.f32 %v9458, 2.1237322e-06
      %v9460 = vadd.f32 %v9459, 0.00028619796
      %v9461 = vmul.f32 %v9458, %v9460
      %v9462 = vadd.f32 %v9461, 0.0036580483
      %v9463 = vmul.f32 %v9458, %v9462
      %v9464 = vadd.f32 %v9463, 0.05243302
      %v9465 = vmul.f32 %v9458, %v9464
      %v9466 = vadd.f32 %v9465, 0.18741608
      %v9467 = vmul.f32 %v9458, %v9466
      %v9468 = vadd.f32 %v9467, 1.1283791
      %v9469 = vmul.f32 %v8856, %v9468
      %v9470 = vmul.f32 %v9458, 3.8918573e-05
      %v9471 = vadd.f32 %v9470, 0.001143296
      %v9472 = vmul.f32 %v9458, %v9471
      %v9473 = vadd.f32 %v9472, 0.014752088
      %v9474 = vmul.f32 %v9458, %v9473
      %v9475 = vadd.f32 %v9474, 0.112945676
      %v9476 = vmul.f32 %v9458, %v9475
      %v9477 = vadd.f32 %v9476, 0.4994258
      %v9478 = vmul.f32 %v9458, %v9477
      %v9479 = vadd.f32 %v9478, 1.0
      %v9480 = vrcp.pop %v9479
      %v9481 = vmul.f32 %v9479, %v9480
      %v9482 = vsub.f32 1.0, %v9481
      %v9483 = vmul.f32 %v9480, %v9482
      %v9484 = vadd.f32 %v9480, %v9483
      %vm9485 = vweird.f32 %v9479
      %vm9486 = vweird.f32 %v9480
      %vm9487 = vmor %vm9485, %vm9486
      %v9488 = vsel %vm9487, %v9480, %v9484
      %v9489 = vand.u32 2147483647, %v9479
      %vm9490 = vcmp.eq.f32.partialorder %v9489, 8.507059e+37
      %v9491 = vand.u32 %v9479, 2147483648
      %v9492 = vor.u32 1.1754944e-38, %v9491
      %v9493 = vsel %vm9490, %v9492, %v9488
      %v9494 = vmul.f32 %v9469, %v9493
      %v9495 = vmin.f32 %v9494, 1.0
      %v9496 = vmax.f32 %v9495, -1.0
      %v9497 = vadd.f32 %v8896, 1.0
      %v9498 = vadd.f32 %v8936, 1.0
      %v9499 = vadd.f32 %v8976, 1.0
      %v9500 = vadd.f32 %v9016, 1.0
      %v9501 = vadd.f32 %v9056, 1.0
      %v9502 = vadd.f32 %v9096, 1.0
      %v9503 = vadd.f32 %v9136, 1.0
      %v9504 = vadd.f32 %v9176, 1.0
      %v9505 = vadd.f32 %v9216, 1.0
      %v9506 = vadd.f32 %v9256, 1.0
      %v9507 = vadd.f32 %v9296, 1.0
      %v9508 = vadd.f32 %v9336, 1.0
      %v9509 = vadd.f32 %v9376, 1.0
      %v9510 = vadd.f32 %v9416, 1.0
      %v9511 = vadd.f32 %v9456, 1.0
      %v9512 = vadd.f32 %v9496, 1.0
      %v9513 = vmul.f32 %v8818, %v9497
      %v9514 = vmul.f32 %v8819, %v9498
      %v9515 = vmul.f32 %v8820, %v9499
      %v9516 = vmul.f32 %v8821, %v9500
      %v9517 = vmul.f32 %v8822, %v9501
      %v9518 = vmul.f32 %v8823, %v9502
      %v9519 = vmul.f32 %v8824, %v9503
      %v9520 = vmul.f32 %v8825, %v9504
      %v9521 = vmul.f32 %v8826, %v9505
      %v9522 = vmul.f32 %v8827, %v9506
      %v9523 = vmul.f32 %v8828, %v9507
      %v9524 = vmul.f32 %v8829, %v9508
      %v9525 = vmul.f32 %v8830, %v9509
      %v9526 = vmul.f32 %v8831, %v9510
      %v9527 = vmul.f32 %v8832, %v9511
      %v9528 = vmul.f32 %v8833, %v9512
      %v9530 = vperm.slane %v519, 0
      %v9532 = vmul.f32 %v9513, %v9530
      %v9533 = vmul.f32 %v9514, %v9530
      %v9534 = vmul.f32 %v9515, %v9530
      %v9535 = vmul.f32 %v9516, %v9530
      %v9536 = vmul.f32 %v9517, %v9530
      %v9537 = vmul.f32 %v9518, %v9530
      %v9538 = vmul.f32 %v9519, %v9530
      %v9539 = vmul.f32 %v9520, %v9530
      %v9540 = vmul.f32 %v9521, %v9530
      %v9541 = vmul.f32 %v9522, %v9530
      %v9542 = vmul.f32 %v9523, %v9530
      %v9543 = vmul.f32 %v9524, %v9530
      %v9544 = vmul.f32 %v9525, %v9530
      %v9545 = vmul.f32 %v9526, %v9530
      %v9546 = vmul.f32 %v9527, %v9530
      %v9547 = vmul.f32 %v9528, %v9530
      %v9549 = vperm.slane %v520, 0
      %v9551 = vadd.f32 %v9532, %v9549
      %v9552 = vadd.f32 %v9533, %v9549
      %v9553 = vadd.f32 %v9534, %v9549
      %v9554 = vadd.f32 %v9535, %v9549
      %v9555 = vadd.f32 %v9536, %v9549
      %v9556 = vadd.f32 %v9537, %v9549
      %v9557 = vadd.f32 %v9538, %v9549
      %v9558 = vadd.f32 %v9539, %v9549
      %v9559 = vadd.f32 %v9540, %v9549
      %v9560 = vadd.f32 %v9541, %v9549
      %v9561 = vadd.f32 %v9542, %v9549
      %v9562 = vadd.f32 %v9543, %v9549
      %v9563 = vadd.f32 %v9544, %v9549
      %v9564 = vadd.f32 %v9545, %v9549
      %v9565 = vadd.f32 %v9546, %v9549
      %v9566 = vadd.f32 %v9547, %v9549
      %v9583 = vrot.slane %v9551, 4
      %v9584 = vrot.slane %v9552, 4
      %v9585 = vsel %vm4191, %v9583, %v9584
      %v9586 = vrot.slane %v9553, 4
      %v9587 = vrot.slane %v9554, 4
      %v9588 = vsel %vm4191, %v9586, %v9587
      %v9589 = vrot.slane %v9555, 4
      %v9590 = vrot.slane %v9556, 4
      %v9591 = vsel %vm4191, %v9589, %v9590
      %v9592 = vrot.slane %v9557, 4
      %v9593 = vrot.slane %v9558, 4
      %v9594 = vsel %vm4191, %v9592, %v9593
      %v9595 = vrot.slane %v9559, 4
      %v9596 = vrot.slane %v9560, 4
      %v9597 = vsel %vm4191, %v9595, %v9596
      %v9598 = vrot.slane %v9561, 4
      %v9599 = vrot.slane %v9562, 4
      %v9600 = vsel %vm4191, %v9598, %v9599
      %v9601 = vrot.slane %v9563, 4
      %v9602 = vrot.slane %v9564, 4
      %v9603 = vsel %vm4191, %v9601, %v9602
      %v9604 = vrot.slane %v9565, 4
      %v9605 = vrot.slane %v9566, 4
      %v9606 = vsel %vm4191, %v9604, %v9605
      %v9631 = vadd.f32 %v539, %v9583
      %v9632 = vadd.f32 %v540, %v9585
      %v9633 = vadd.f32 %v541, %v9584
      %v9634 = vadd.f32 %v542, %v9586
      %v9635 = vadd.f32 %v543, %v9588
      %v9636 = vadd.f32 %v544, %v9587
      %v9637 = vadd.f32 %v545, %v9589
      %v9638 = vadd.f32 %v546, %v9591
      %v9639 = vadd.f32 %v547, %v9590
      %v9640 = vadd.f32 %v548, %v9592
      %v9641 = vadd.f32 %v549, %v9594
      %v9642 = vadd.f32 %v550, %v9593
      %v9643 = vadd.f32 %v551, %v9595
      %v9644 = vadd.f32 %v552, %v9597
      %v9645 = vadd.f32 %v553, %v9596
      %v9646 = vadd.f32 %v554, %v9598
      %v9647 = vadd.f32 %v555, %v9600
      %v9648 = vadd.f32 %v556, %v9599
      %v9649 = vadd.f32 %v557, %v9601
      %v9650 = vadd.f32 %v558, %v9603
      %v9651 = vadd.f32 %v559, %v9602
      %v9652 = vadd.f32 %v560, %v9604
      %v9653 = vadd.f32 %v561, %v9606
      %v9654 = vadd.f32 %v562, %v9605
      %v9679 = vrot.slane %v9631, 4
      %v9680 = vrot.slane %v9632, 4
      %v9681 = vsel %vm4191, %v9679, %v9680
      %v9682 = vrot.slane %v9633, 4
      %v9683 = vsel %vm4191, %v9680, %v9682
      %v9684 = vrot.slane %v9634, 4
      %v9685 = vrot.slane %v9635, 4
      %v9686 = vsel %vm4191, %v9684, %v9685
      %v9687 = vrot.slane %v9636, 4
      %v9688 = vsel %vm4191, %v9685, %v9687
      %v9689 = vrot.slane %v9637, 4
      %v9690 = vrot.slane %v9638, 4
      %v9691 = vsel %vm4191, %v9689, %v9690
      %v9692 = vrot.slane %v9639, 4
      %v9693 = vsel %vm4191, %v9690, %v9692
      %v9694 = vrot.slane %v9640, 4
      %v9695 = vrot.slane %v9641, 4
      %v9696 = vsel %vm4191, %v9694, %v9695
      %v9697 = vrot.slane %v9642, 4
      %v9698 = vsel %vm4191, %v9695, %v9697
      %v9699 = vrot.slane %v9643, 4
      %v9700 = vrot.slane %v9644, 4
      %v9701 = vsel %vm4191, %v9699, %v9700
      %v9702 = vrot.slane %v9645, 4
      %v9703 = vsel %vm4191, %v9700, %v9702
      %v9704 = vrot.slane %v9646, 4
      %v9705 = vrot.slane %v9647, 4
      %v9706 = vsel %vm4191, %v9704, %v9705
      %v9707 = vrot.slane %v9648, 4
      %v9708 = vsel %vm4191, %v9705, %v9707
      %v9709 = vrot.slane %v9649, 4
      %v9710 = vrot.slane %v9650, 4
      %v9711 = vsel %vm4191, %v9709, %v9710
      %v9712 = vrot.slane %v9651, 4
      %v9713 = vsel %vm4191, %v9710, %v9712
      %v9714 = vrot.slane %v9652, 4
      %v9715 = vrot.slane %v9653, 4
      %v9716 = vsel %vm4191, %v9714, %v9715
      %v9717 = vrot.slane %v9654, 4
      %v9718 = vsel %vm4191, %v9715, %v9717
      %v9719 = vld [vmem:[%s5] sm:$0xf]
      %v9721 = vperm.slane %v521, 0
      %vm9723 = vcmask 31744
      %v9724 = vsel %vm9723, %v9681, 0
      %v9726 = vsel %vm9723, %v9683, 0
      %v9728 = vsel %vm9723, %v9686, 0
      %v9730 = vsel %vm9723, %v9688, 0
      %v9732 = vsel %vm9723, %v9691, 0
      %v9734 = vsel %vm9723, %v9693, 0
      %v9736 = vsel %vm9723, %v9696, 0
      %v9738 = vsel %vm9723, %v9698, 0
      %v9740 = vsel %vm9723, %v9701, 0
      %v9742 = vsel %vm9723, %v9703, 0
      %v9744 = vsel %vm9723, %v9706, 0
      %v9746 = vsel %vm9723, %v9708, 0
      %v9748 = vsel %vm9723, %v9711, 0
      %v9750 = vsel %vm9723, %v9713, 0
      %v9752 = vsel %vm9723, %v9716, 0
      %v9754 = vsel %vm9723, %v9718, 0
      %v9757 = vsel %vm4191, %v9719, 0
      %9759 = vmatpush.msra.mxu0 0.0
      %9760 = vmatpush.msra.mxu0 0.0
      %9761 = vmatpush.msra.mxu0 0.0
      %9762 = vmatpush.msra.mxu0 0.0
      %9763 = vmatpush.msra.mxu0 0.0
      %9764 = vmatpush.msra.mxu0 0.0
      %9765 = vmatpush.msra.mxu0 0.0
      %9766 = vmatpush.msra.mxu0 0.0
      %9767 = vmatpush.msra.mxu0 0.0
      %9768 = vmatpush.msra.mxu0 0.0
      %9769 = vmatpush.msra.mxu0 0.0
      %9770 = vmatpush.msra.mxu0 0.0
      %9771 = vmatpush.msra.mxu0 0.0
      %9772 = vmatpush.msra.mxu0 0.0
      %9773 = vmatpush.msra.mxu0 0.0
      %9774 = vmatpush.msra.mxu0 %v9757
      %9775 = vmatmul.f32.gmra.mxu0 %v9724
      %v9776 = vpop.f32.mrf.mxu0
      %v9777 = vadd.f32 %v9721, %v9776
      %9778 = vmatmul.f32.gmra.mxu0 %v9726
      %v9779 = vpop.f32.mrf.mxu0
      %v9780 = vadd.f32 %v9721, %v9779
      %9781 = vmatmul.f32.gmra.mxu0 %v9728
      %v9782 = vpop.f32.mrf.mxu0
      %v9783 = vadd.f32 %v9721, %v9782
      %9784 = vmatmul.f32.gmra.mxu0 %v9730
      %v9785 = vpop.f32.mrf.mxu0
      %v9786 = vadd.f32 %v9721, %v9785
      %9787 = vmatmul.f32.gmra.mxu0 %v9732
      %v9788 = vpop.f32.mrf.mxu0
      %v9789 = vadd.f32 %v9721, %v9788
      %9790 = vmatmul.f32.gmra.mxu0 %v9734
      %v9791 = vpop.f32.mrf.mxu0
      %v9792 = vadd.f32 %v9721, %v9791
      %9793 = vmatmul.f32.gmra.mxu0 %v9736
      %v9794 = vpop.f32.mrf.mxu0
      %v9795 = vadd.f32 %v9721, %v9794
      %9796 = vmatmul.f32.gmra.mxu0 %v9738
      %v9797 = vpop.f32.mrf.mxu0
      %v9798 = vadd.f32 %v9721, %v9797
      %9799 = vmatmul.f32.gmra.mxu0 %v9740
      %v9800 = vpop.f32.mrf.mxu0
      %v9801 = vadd.f32 %v9721, %v9800
      %9802 = vmatmul.f32.gmra.mxu0 %v9742
      %v9803 = vpop.f32.mrf.mxu0
      %v9804 = vadd.f32 %v9721, %v9803
      %9805 = vmatmul.f32.gmra.mxu0 %v9744
      %v9806 = vpop.f32.mrf.mxu0
      %v9807 = vadd.f32 %v9721, %v9806
      %9808 = vmatmul.f32.gmra.mxu0 %v9746
      %v9809 = vpop.f32.mrf.mxu0
      %v9810 = vadd.f32 %v9721, %v9809
      %9811 = vmatmul.f32.gmra.mxu0 %v9748
      %v9812 = vpop.f32.mrf.mxu0
      %v9813 = vadd.f32 %v9721, %v9812
      %9814 = vmatmul.f32.gmra.mxu0 %v9750
      %v9815 = vpop.f32.mrf.mxu0
      %v9816 = vadd.f32 %v9721, %v9815
      %9817 = vmatmul.f32.gmra.mxu0 %v9752
      %v9818 = vpop.f32.mrf.mxu0
      %v9819 = vadd.f32 %v9721, %v9818
      %9820 = vmatmul.f32.gmra.mxu0 %v9754
      %v9821 = vpop.f32.mrf.mxu0
      %v9822 = vadd.f32 %v9721, %v9821
      %9823 = vdwg.mxu0
      %v9824 = vmul.f32 %v9777, 0.5
      %v9825 = vmul.f32 %v9780, 0.5
      %v9826 = vmul.f32 %v9783, 0.5
      %v9827 = vmul.f32 %v9786, 0.5
      %v9828 = vmul.f32 %v9789, 0.5
      %v9829 = vmul.f32 %v9792, 0.5
      %v9830 = vmul.f32 %v9795, 0.5
      %v9831 = vmul.f32 %v9798, 0.5
      %v9832 = vmul.f32 %v9801, 0.5
      %v9833 = vmul.f32 %v9804, 0.5
      %v9834 = vmul.f32 %v9807, 0.5
      %v9835 = vmul.f32 %v9810, 0.5
      %v9836 = vmul.f32 %v9813, 0.5
      %v9837 = vmul.f32 %v9816, 0.5
      %v9838 = vmul.f32 %v9819, 0.5
      %v9839 = vmul.f32 %v9822, 0.5
      %v9840 = vmul.f32 %v9777, %v8840
      %v9841 = vmul.f32 %v9780, %v8840
      %v9842 = vmul.f32 %v9783, %v8840
      %v9843 = vmul.f32 %v9786, %v8840
      %v9844 = vmul.f32 %v9789, %v8840
      %v9845 = vmul.f32 %v9792, %v8840
      %v9846 = vmul.f32 %v9795, %v8840
      %v9847 = vmul.f32 %v9798, %v8840
      %v9848 = vmul.f32 %v9801, %v8840
      %v9849 = vmul.f32 %v9804, %v8840
      %v9850 = vmul.f32 %v9807, %v8840
      %v9851 = vmul.f32 %v9810, %v8840
      %v9852 = vmul.f32 %v9813, %v8840
      %v9853 = vmul.f32 %v9816, %v8840
      %v9854 = vmul.f32 %v9819, %v8840
      %v9855 = vmul.f32 %v9822, %v8840
      %v9856 = vmul.f32 %v9840, %v9840
      %v9857 = vmin.f32 16.0, %v9856
      %v9858 = vmul.f32 %v9857, 2.1237322e-06
      %v9859 = vadd.f32 %v9858, 0.00028619796
      %v9860 = vmul.f32 %v9857, %v9859
      %v9861 = vadd.f32 %v9860, 0.0036580483
      %v9862 = vmul.f32 %v9857, %v9861
      %v9863 = vadd.f32 %v9862, 0.05243302
      %v9864 = vmul.f32 %v9857, %v9863
      %v9865 = vadd.f32 %v9864, 0.18741608
      %v9866 = vmul.f32 %v9857, %v9865
      %v9867 = vadd.f32 %v9866, 1.1283791
      %v9868 = vmul.f32 %v9840, %v9867
      %v9869 = vmul.f32 %v9857, 3.8918573e-05
      %v9870 = vadd.f32 %v9869, 0.001143296
      %v9871 = vmul.f32 %v9857, %v9870
      %v9872 = vadd.f32 %v9871, 0.014752088
      %v9873 = vmul.f32 %v9857, %v9872
      %v9874 = vadd.f32 %v9873, 0.112945676
      %v9875 = vmul.f32 %v9857, %v9874
      %v9876 = vadd.f32 %v9875, 0.4994258
      %v9877 = vmul.f32 %v9857, %v9876
      %v9878 = vadd.f32 %v9877, 1.0
      %v9879 = vrcp.pop %v9878
      %v9880 = vmul.f32 %v9878, %v9879
      %v9881 = vsub.f32 1.0, %v9880
      %v9882 = vmul.f32 %v9879, %v9881
      %v9883 = vadd.f32 %v9879, %v9882
      %vm9884 = vweird.f32 %v9878
      %vm9885 = vweird.f32 %v9879
      %vm9886 = vmor %vm9884, %vm9885
      %v9887 = vsel %vm9886, %v9879, %v9883
      %v9888 = vand.u32 2147483647, %v9878
      %vm9889 = vcmp.eq.f32.partialorder %v9888, 8.507059e+37
      %v9890 = vand.u32 %v9878, 2147483648
      %v9891 = vor.u32 1.1754944e-38, %v9890
      %v9892 = vsel %vm9889, %v9891, %v9887
      %v9893 = vmul.f32 %v9868, %v9892
      %v9894 = vmin.f32 %v9893, 1.0
      %v9895 = vmax.f32 %v9894, -1.0
      %v9896 = vmul.f32 %v9841, %v9841
      %v9897 = vmin.f32 16.0, %v9896
      %v9898 = vmul.f32 %v9897, 2.1237322e-06
      %v9899 = vadd.f32 %v9898, 0.00028619796
      %v9900 = vmul.f32 %v9897, %v9899
      %v9901 = vadd.f32 %v9900, 0.0036580483
      %v9902 = vmul.f32 %v9897, %v9901
      %v9903 = vadd.f32 %v9902, 0.05243302
      %v9904 = vmul.f32 %v9897, %v9903
      %v9905 = vadd.f32 %v9904, 0.18741608
      %v9906 = vmul.f32 %v9897, %v9905
      %v9907 = vadd.f32 %v9906, 1.1283791
      %v9908 = vmul.f32 %v9841, %v9907
      %v9909 = vmul.f32 %v9897, 3.8918573e-05
      %v9910 = vadd.f32 %v9909, 0.001143296
      %v9911 = vmul.f32 %v9897, %v9910
      %v9912 = vadd.f32 %v9911, 0.014752088
      %v9913 = vmul.f32 %v9897, %v9912
      %v9914 = vadd.f32 %v9913, 0.112945676
      %v9915 = vmul.f32 %v9897, %v9914
      %v9916 = vadd.f32 %v9915, 0.4994258
      %v9917 = vmul.f32 %v9897, %v9916
      %v9918 = vadd.f32 %v9917, 1.0
      %v9919 = vrcp.pop %v9918
      %v9920 = vmul.f32 %v9918, %v9919
      %v9921 = vsub.f32 1.0, %v9920
      %v9922 = vmul.f32 %v9919, %v9921
      %v9923 = vadd.f32 %v9919, %v9922
      %vm9924 = vweird.f32 %v9918
      %vm9925 = vweird.f32 %v9919
      %vm9926 = vmor %vm9924, %vm9925
      %v9927 = vsel %vm9926, %v9919, %v9923
      %v9928 = vand.u32 2147483647, %v9918
      %vm9929 = vcmp.eq.f32.partialorder %v9928, 8.507059e+37
      %v9930 = vand.u32 %v9918, 2147483648
      %v9931 = vor.u32 1.1754944e-38, %v9930
      %v9932 = vsel %vm9929, %v9931, %v9927
      %v9933 = vmul.f32 %v9908, %v9932
      %v9934 = vmin.f32 %v9933, 1.0
      %v9935 = vmax.f32 %v9934, -1.0
      %v9936 = vmul.f32 %v9842, %v9842
      %v9937 = vmin.f32 16.0, %v9936
      %v9938 = vmul.f32 %v9937, 2.1237322e-06
      %v9939 = vadd.f32 %v9938, 0.00028619796
      %v9940 = vmul.f32 %v9937, %v9939
      %v9941 = vadd.f32 %v9940, 0.0036580483
      %v9942 = vmul.f32 %v9937, %v9941
      %v9943 = vadd.f32 %v9942, 0.05243302
      %v9944 = vmul.f32 %v9937, %v9943
      %v9945 = vadd.f32 %v9944, 0.18741608
      %v9946 = vmul.f32 %v9937, %v9945
      %v9947 = vadd.f32 %v9946, 1.1283791
      %v9948 = vmul.f32 %v9842, %v9947
      %v9949 = vmul.f32 %v9937, 3.8918573e-05
      %v9950 = vadd.f32 %v9949, 0.001143296
      %v9951 = vmul.f32 %v9937, %v9950
      %v9952 = vadd.f32 %v9951, 0.014752088
      %v9953 = vmul.f32 %v9937, %v9952
      %v9954 = vadd.f32 %v9953, 0.112945676
      %v9955 = vmul.f32 %v9937, %v9954
      %v9956 = vadd.f32 %v9955, 0.4994258
      %v9957 = vmul.f32 %v9937, %v9956
      %v9958 = vadd.f32 %v9957, 1.0
      %v9959 = vrcp.pop %v9958
      %v9960 = vmul.f32 %v9958, %v9959
      %v9961 = vsub.f32 1.0, %v9960
      %v9962 = vmul.f32 %v9959, %v9961
      %v9963 = vadd.f32 %v9959, %v9962
      %vm9964 = vweird.f32 %v9958
      %vm9965 = vweird.f32 %v9959
      %vm9966 = vmor %vm9964, %vm9965
      %v9967 = vsel %vm9966, %v9959, %v9963
      %v9968 = vand.u32 2147483647, %v9958
      %vm9969 = vcmp.eq.f32.partialorder %v9968, 8.507059e+37
      %v9970 = vand.u32 %v9958, 2147483648
      %v9971 = vor.u32 1.1754944e-38, %v9970
      %v9972 = vsel %vm9969, %v9971, %v9967
      %v9973 = vmul.f32 %v9948, %v9972
      %v9974 = vmin.f32 %v9973, 1.0
      %v9975 = vmax.f32 %v9974, -1.0
      %v9976 = vmul.f32 %v9843, %v9843
      %v9977 = vmin.f32 16.0, %v9976
      %v9978 = vmul.f32 %v9977, 2.1237322e-06
      %v9979 = vadd.f32 %v9978, 0.00028619796
      %v9980 = vmul.f32 %v9977, %v9979
      %v9981 = vadd.f32 %v9980, 0.0036580483
      %v9982 = vmul.f32 %v9977, %v9981
      %v9983 = vadd.f32 %v9982, 0.05243302
      %v9984 = vmul.f32 %v9977, %v9983
      %v9985 = vadd.f32 %v9984, 0.18741608
      %v9986 = vmul.f32 %v9977, %v9985
      %v9987 = vadd.f32 %v9986, 1.1283791
      %v9988 = vmul.f32 %v9843, %v9987
      %v9989 = vmul.f32 %v9977, 3.8918573e-05
      %v9990 = vadd.f32 %v9989, 0.001143296
      %v9991 = vmul.f32 %v9977, %v9990
      %v9992 = vadd.f32 %v9991, 0.014752088
      %v9993 = vmul.f32 %v9977, %v9992
      %v9994 = vadd.f32 %v9993, 0.112945676
      %v9995 = vmul.f32 %v9977, %v9994
      %v9996 = vadd.f32 %v9995, 0.4994258
      %v9997 = vmul.f32 %v9977, %v9996
      %v9998 = vadd.f32 %v9997, 1.0
      %v9999 = vrcp.pop %v9998
      %v10000 = vmul.f32 %v9998, %v9999
      %v10001 = vsub.f32 1.0, %v10000
      %v10002 = vmul.f32 %v9999, %v10001
      %v10003 = vadd.f32 %v9999, %v10002
      %vm10004 = vweird.f32 %v9998
      %vm10005 = vweird.f32 %v9999
      %vm10006 = vmor %vm10004, %vm10005
      %v10007 = vsel %vm10006, %v9999, %v10003
      %v10008 = vand.u32 2147483647, %v9998
      %vm10009 = vcmp.eq.f32.partialorder %v10008, 8.507059e+37
      %v10010 = vand.u32 %v9998, 2147483648
      %v10011 = vor.u32 1.1754944e-38, %v10010
      %v10012 = vsel %vm10009, %v10011, %v10007
      %v10013 = vmul.f32 %v9988, %v10012
      %v10014 = vmin.f32 %v10013, 1.0
      %v10015 = vmax.f32 %v10014, -1.0
      %v10016 = vmul.f32 %v9844, %v9844
      %v10017 = vmin.f32 16.0, %v10016
      %v10018 = vmul.f32 %v10017, 2.1237322e-06
      %v10019 = vadd.f32 %v10018, 0.00028619796
      %v10020 = vmul.f32 %v10017, %v10019
      %v10021 = vadd.f32 %v10020, 0.0036580483
      %v10022 = vmul.f32 %v10017, %v10021
      %v10023 = vadd.f32 %v10022, 0.05243302
      %v10024 = vmul.f32 %v10017, %v10023
      %v10025 = vadd.f32 %v10024, 0.18741608
      %v10026 = vmul.f32 %v10017, %v10025
      %v10027 = vadd.f32 %v10026, 1.1283791
      %v10028 = vmul.f32 %v9844, %v10027
      %v10029 = vmul.f32 %v10017, 3.8918573e-05
      %v10030 = vadd.f32 %v10029, 0.001143296
      %v10031 = vmul.f32 %v10017, %v10030
      %v10032 = vadd.f32 %v10031, 0.014752088
      %v10033 = vmul.f32 %v10017, %v10032
      %v10034 = vadd.f32 %v10033, 0.112945676
      %v10035 = vmul.f32 %v10017, %v10034
      %v10036 = vadd.f32 %v10035, 0.4994258
      %v10037 = vmul.f32 %v10017, %v10036
      %v10038 = vadd.f32 %v10037, 1.0
      %v10039 = vrcp.pop %v10038
      %v10040 = vmul.f32 %v10038, %v10039
      %v10041 = vsub.f32 1.0, %v10040
      %v10042 = vmul.f32 %v10039, %v10041
      %v10043 = vadd.f32 %v10039, %v10042
      %vm10044 = vweird.f32 %v10038
      %vm10045 = vweird.f32 %v10039
      %vm10046 = vmor %vm10044, %vm10045
      %v10047 = vsel %vm10046, %v10039, %v10043
      %v10048 = vand.u32 2147483647, %v10038
      %vm10049 = vcmp.eq.f32.partialorder %v10048, 8.507059e+37
      %v10050 = vand.u32 %v10038, 2147483648
      %v10051 = vor.u32 1.1754944e-38, %v10050
      %v10052 = vsel %vm10049, %v10051, %v10047
      %v10053 = vmul.f32 %v10028, %v10052
      %v10054 = vmin.f32 %v10053, 1.0
      %v10055 = vmax.f32 %v10054, -1.0
      %v10056 = vmul.f32 %v9845, %v9845
      %v10057 = vmin.f32 16.0, %v10056
      %v10058 = vmul.f32 %v10057, 2.1237322e-06
      %v10059 = vadd.f32 %v10058, 0.00028619796
      %v10060 = vmul.f32 %v10057, %v10059
      %v10061 = vadd.f32 %v10060, 0.0036580483
      %v10062 = vmul.f32 %v10057, %v10061
      %v10063 = vadd.f32 %v10062, 0.05243302
      %v10064 = vmul.f32 %v10057, %v10063
      %v10065 = vadd.f32 %v10064, 0.18741608
      %v10066 = vmul.f32 %v10057, %v10065
      %v10067 = vadd.f32 %v10066, 1.1283791
      %v10068 = vmul.f32 %v9845, %v10067
      %v10069 = vmul.f32 %v10057, 3.8918573e-05
      %v10070 = vadd.f32 %v10069, 0.001143296
      %v10071 = vmul.f32 %v10057, %v10070
      %v10072 = vadd.f32 %v10071, 0.014752088
      %v10073 = vmul.f32 %v10057, %v10072
      %v10074 = vadd.f32 %v10073, 0.112945676
      %v10075 = vmul.f32 %v10057, %v10074
      %v10076 = vadd.f32 %v10075, 0.4994258
      %v10077 = vmul.f32 %v10057, %v10076
      %v10078 = vadd.f32 %v10077, 1.0
      %v10079 = vrcp.pop %v10078
      %v10080 = vmul.f32 %v10078, %v10079
      %v10081 = vsub.f32 1.0, %v10080
      %v10082 = vmul.f32 %v10079, %v10081
      %v10083 = vadd.f32 %v10079, %v10082
      %vm10084 = vweird.f32 %v10078
      %vm10085 = vweird.f32 %v10079
      %vm10086 = vmor %vm10084, %vm10085
      %v10087 = vsel %vm10086, %v10079, %v10083
      %v10088 = vand.u32 2147483647, %v10078
      %vm10089 = vcmp.eq.f32.partialorder %v10088, 8.507059e+37
      %v10090 = vand.u32 %v10078, 2147483648
      %v10091 = vor.u32 1.1754944e-38, %v10090
      %v10092 = vsel %vm10089, %v10091, %v10087
      %v10093 = vmul.f32 %v10068, %v10092
      %v10094 = vmin.f32 %v10093, 1.0
      %v10095 = vmax.f32 %v10094, -1.0
      %v10096 = vmul.f32 %v9846, %v9846
      %v10097 = vmin.f32 16.0, %v10096
      %v10098 = vmul.f32 %v10097, 2.1237322e-06
      %v10099 = vadd.f32 %v10098, 0.00028619796
      %v10100 = vmul.f32 %v10097, %v10099
      %v10101 = vadd.f32 %v10100, 0.0036580483
      %v10102 = vmul.f32 %v10097, %v10101
      %v10103 = vadd.f32 %v10102, 0.05243302
      %v10104 = vmul.f32 %v10097, %v10103
      %v10105 = vadd.f32 %v10104, 0.18741608
      %v10106 = vmul.f32 %v10097, %v10105
      %v10107 = vadd.f32 %v10106, 1.1283791
      %v10108 = vmul.f32 %v9846, %v10107
      %v10109 = vmul.f32 %v10097, 3.8918573e-05
      %v10110 = vadd.f32 %v10109, 0.001143296
      %v10111 = vmul.f32 %v10097, %v10110
      %v10112 = vadd.f32 %v10111, 0.014752088
      %v10113 = vmul.f32 %v10097, %v10112
      %v10114 = vadd.f32 %v10113, 0.112945676
      %v10115 = vmul.f32 %v10097, %v10114
      %v10116 = vadd.f32 %v10115, 0.4994258
      %v10117 = vmul.f32 %v10097, %v10116
      %v10118 = vadd.f32 %v10117, 1.0
      %v10119 = vrcp.pop %v10118
      %v10120 = vmul.f32 %v10118, %v10119
      %v10121 = vsub.f32 1.0, %v10120
      %v10122 = vmul.f32 %v10119, %v10121
      %v10123 = vadd.f32 %v10119, %v10122
      %vm10124 = vweird.f32 %v10118
      %vm10125 = vweird.f32 %v10119
      %vm10126 = vmor %vm10124, %vm10125
      %v10127 = vsel %vm10126, %v10119, %v10123
      %v10128 = vand.u32 2147483647, %v10118
      %vm10129 = vcmp.eq.f32.partialorder %v10128, 8.507059e+37
      %v10130 = vand.u32 %v10118, 2147483648
      %v10131 = vor.u32 1.1754944e-38, %v10130
      %v10132 = vsel %vm10129, %v10131, %v10127
      %v10133 = vmul.f32 %v10108, %v10132
      %v10134 = vmin.f32 %v10133, 1.0
      %v10135 = vmax.f32 %v10134, -1.0
      %v10136 = vmul.f32 %v9847, %v9847
      %v10137 = vmin.f32 16.0, %v10136
      %v10138 = vmul.f32 %v10137, 2.1237322e-06
      %v10139 = vadd.f32 %v10138, 0.00028619796
      %v10140 = vmul.f32 %v10137, %v10139
      %v10141 = vadd.f32 %v10140, 0.0036580483
      %v10142 = vmul.f32 %v10137, %v10141
      %v10143 = vadd.f32 %v10142, 0.05243302
      %v10144 = vmul.f32 %v10137, %v10143
      %v10145 = vadd.f32 %v10144, 0.18741608
      %v10146 = vmul.f32 %v10137, %v10145
      %v10147 = vadd.f32 %v10146, 1.1283791
      %v10148 = vmul.f32 %v9847, %v10147
      %v10149 = vmul.f32 %v10137, 3.8918573e-05
      %v10150 = vadd.f32 %v10149, 0.001143296
      %v10151 = vmul.f32 %v10137, %v10150
      %v10152 = vadd.f32 %v10151, 0.014752088
      %v10153 = vmul.f32 %v10137, %v10152
      %v10154 = vadd.f32 %v10153, 0.112945676
      %v10155 = vmul.f32 %v10137, %v10154
      %v10156 = vadd.f32 %v10155, 0.4994258
      %v10157 = vmul.f32 %v10137, %v10156
      %v10158 = vadd.f32 %v10157, 1.0
      %v10159 = vrcp.pop %v10158
      %v10160 = vmul.f32 %v10158, %v10159
      %v10161 = vsub.f32 1.0, %v10160
      %v10162 = vmul.f32 %v10159, %v10161
      %v10163 = vadd.f32 %v10159, %v10162
      %vm10164 = vweird.f32 %v10158
      %vm10165 = vweird.f32 %v10159
      %vm10166 = vmor %vm10164, %vm10165
      %v10167 = vsel %vm10166, %v10159, %v10163
      %v10168 = vand.u32 2147483647, %v10158
      %vm10169 = vcmp.eq.f32.partialorder %v10168, 8.507059e+37
      %v10170 = vand.u32 %v10158, 2147483648
      %v10171 = vor.u32 1.1754944e-38, %v10170
      %v10172 = vsel %vm10169, %v10171, %v10167
      %v10173 = vmul.f32 %v10148, %v10172
      %v10174 = vmin.f32 %v10173, 1.0
      %v10175 = vmax.f32 %v10174, -1.0
      %v10176 = vmul.f32 %v9848, %v9848
      %v10177 = vmin.f32 16.0, %v10176
      %v10178 = vmul.f32 %v10177, 2.1237322e-06
      %v10179 = vadd.f32 %v10178, 0.00028619796
      %v10180 = vmul.f32 %v10177, %v10179
      %v10181 = vadd.f32 %v10180, 0.0036580483
      %v10182 = vmul.f32 %v10177, %v10181
      %v10183 = vadd.f32 %v10182, 0.05243302
      %v10184 = vmul.f32 %v10177, %v10183
      %v10185 = vadd.f32 %v10184, 0.18741608
      %v10186 = vmul.f32 %v10177, %v10185
      %v10187 = vadd.f32 %v10186, 1.1283791
      %v10188 = vmul.f32 %v9848, %v10187
      %v10189 = vmul.f32 %v10177, 3.8918573e-05
      %v10190 = vadd.f32 %v10189, 0.001143296
      %v10191 = vmul.f32 %v10177, %v10190
      %v10192 = vadd.f32 %v10191, 0.014752088
      %v10193 = vmul.f32 %v10177, %v10192
      %v10194 = vadd.f32 %v10193, 0.112945676
      %v10195 = vmul.f32 %v10177, %v10194
      %v10196 = vadd.f32 %v10195, 0.4994258
      %v10197 = vmul.f32 %v10177, %v10196
      %v10198 = vadd.f32 %v10197, 1.0
      %v10199 = vrcp.pop %v10198
      %v10200 = vmul.f32 %v10198, %v10199
      %v10201 = vsub.f32 1.0, %v10200
      %v10202 = vmul.f32 %v10199, %v10201
      %v10203 = vadd.f32 %v10199, %v10202
      %vm10204 = vweird.f32 %v10198
      %vm10205 = vweird.f32 %v10199
      %vm10206 = vmor %vm10204, %vm10205
      %v10207 = vsel %vm10206, %v10199, %v10203
      %v10208 = vand.u32 2147483647, %v10198
      %vm10209 = vcmp.eq.f32.partialorder %v10208, 8.507059e+37
      %v10210 = vand.u32 %v10198, 2147483648
      %v10211 = vor.u32 1.1754944e-38, %v10210
      %v10212 = vsel %vm10209, %v10211, %v10207
      %v10213 = vmul.f32 %v10188, %v10212
      %v10214 = vmin.f32 %v10213, 1.0
      %v10215 = vmax.f32 %v10214, -1.0
      %v10216 = vmul.f32 %v9849, %v9849
      %v10217 = vmin.f32 16.0, %v10216
      %v10218 = vmul.f32 %v10217, 2.1237322e-06
      %v10219 = vadd.f32 %v10218, 0.00028619796
      %v10220 = vmul.f32 %v10217, %v10219
      %v10221 = vadd.f32 %v10220, 0.0036580483
      %v10222 = vmul.f32 %v10217, %v10221
      %v10223 = vadd.f32 %v10222, 0.05243302
      %v10224 = vmul.f32 %v10217, %v10223
      %v10225 = vadd.f32 %v10224, 0.18741608
      %v10226 = vmul.f32 %v10217, %v10225
      %v10227 = vadd.f32 %v10226, 1.1283791
      %v10228 = vmul.f32 %v9849, %v10227
      %v10229 = vmul.f32 %v10217, 3.8918573e-05
      %v10230 = vadd.f32 %v10229, 0.001143296
      %v10231 = vmul.f32 %v10217, %v10230
      %v10232 = vadd.f32 %v10231, 0.014752088
      %v10233 = vmul.f32 %v10217, %v10232
      %v10234 = vadd.f32 %v10233, 0.112945676
      %v10235 = vmul.f32 %v10217, %v10234
      %v10236 = vadd.f32 %v10235, 0.4994258
      %v10237 = vmul.f32 %v10217, %v10236
      %v10238 = vadd.f32 %v10237, 1.0
      %v10239 = vrcp.pop %v10238
      %v10240 = vmul.f32 %v10238, %v10239
      %v10241 = vsub.f32 1.0, %v10240
      %v10242 = vmul.f32 %v10239, %v10241
      %v10243 = vadd.f32 %v10239, %v10242
      %vm10244 = vweird.f32 %v10238
      %vm10245 = vweird.f32 %v10239
      %vm10246 = vmor %vm10244, %vm10245
      %v10247 = vsel %vm10246, %v10239, %v10243
      %v10248 = vand.u32 2147483647, %v10238
      %vm10249 = vcmp.eq.f32.partialorder %v10248, 8.507059e+37
      %v10250 = vand.u32 %v10238, 2147483648
      %v10251 = vor.u32 1.1754944e-38, %v10250
      %v10252 = vsel %vm10249, %v10251, %v10247
      %v10253 = vmul.f32 %v10228, %v10252
      %v10254 = vmin.f32 %v10253, 1.0
      %v10255 = vmax.f32 %v10254, -1.0
      %v10256 = vmul.f32 %v9850, %v9850
      %v10257 = vmin.f32 16.0, %v10256
      %v10258 = vmul.f32 %v10257, 2.1237322e-06
      %v10259 = vadd.f32 %v10258, 0.00028619796
      %v10260 = vmul.f32 %v10257, %v10259
      %v10261 = vadd.f32 %v10260, 0.0036580483
      %v10262 = vmul.f32 %v10257, %v10261
      %v10263 = vadd.f32 %v10262, 0.05243302
      %v10264 = vmul.f32 %v10257, %v10263
      %v10265 = vadd.f32 %v10264, 0.18741608
      %v10266 = vmul.f32 %v10257, %v10265
      %v10267 = vadd.f32 %v10266, 1.1283791
      %v10268 = vmul.f32 %v9850, %v10267
      %v10269 = vmul.f32 %v10257, 3.8918573e-05
      %v10270 = vadd.f32 %v10269, 0.001143296
      %v10271 = vmul.f32 %v10257, %v10270
      %v10272 = vadd.f32 %v10271, 0.014752088
      %v10273 = vmul.f32 %v10257, %v10272
      %v10274 = vadd.f32 %v10273, 0.112945676
      %v10275 = vmul.f32 %v10257, %v10274
      %v10276 = vadd.f32 %v10275, 0.4994258
      %v10277 = vmul.f32 %v10257, %v10276
      %v10278 = vadd.f32 %v10277, 1.0
      %v10279 = vrcp.pop %v10278
      %v10280 = vmul.f32 %v10278, %v10279
      %v10281 = vsub.f32 1.0, %v10280
      %v10282 = vmul.f32 %v10279, %v10281
      %v10283 = vadd.f32 %v10279, %v10282
      %vm10284 = vweird.f32 %v10278
      %vm10285 = vweird.f32 %v10279
      %vm10286 = vmor %vm10284, %vm10285
      %v10287 = vsel %vm10286, %v10279, %v10283
      %v10288 = vand.u32 2147483647, %v10278
      %vm10289 = vcmp.eq.f32.partialorder %v10288, 8.507059e+37
      %v10290 = vand.u32 %v10278, 2147483648
      %v10291 = vor.u32 1.1754944e-38, %v10290
      %v10292 = vsel %vm10289, %v10291, %v10287
      %v10293 = vmul.f32 %v10268, %v10292
      %v10294 = vmin.f32 %v10293, 1.0
      %v10295 = vmax.f32 %v10294, -1.0
      %v10296 = vmul.f32 %v9851, %v9851
      %v10297 = vmin.f32 16.0, %v10296
      %v10298 = vmul.f32 %v10297, 2.1237322e-06
      %v10299 = vadd.f32 %v10298, 0.00028619796
      %v10300 = vmul.f32 %v10297, %v10299
      %v10301 = vadd.f32 %v10300, 0.0036580483
      %v10302 = vmul.f32 %v10297, %v10301
      %v10303 = vadd.f32 %v10302, 0.05243302
      %v10304 = vmul.f32 %v10297, %v10303
      %v10305 = vadd.f32 %v10304, 0.18741608
      %v10306 = vmul.f32 %v10297, %v10305
      %v10307 = vadd.f32 %v10306, 1.1283791
      %v10308 = vmul.f32 %v9851, %v10307
      %v10309 = vmul.f32 %v10297, 3.8918573e-05
      %v10310 = vadd.f32 %v10309, 0.001143296
      %v10311 = vmul.f32 %v10297, %v10310
      %v10312 = vadd.f32 %v10311, 0.014752088
      %v10313 = vmul.f32 %v10297, %v10312
      %v10314 = vadd.f32 %v10313, 0.112945676
      %v10315 = vmul.f32 %v10297, %v10314
      %v10316 = vadd.f32 %v10315, 0.4994258
      %v10317 = vmul.f32 %v10297, %v10316
      %v10318 = vadd.f32 %v10317, 1.0
      %v10319 = vrcp.pop %v10318
      %v10320 = vmul.f32 %v10318, %v10319
      %v10321 = vsub.f32 1.0, %v10320
      %v10322 = vmul.f32 %v10319, %v10321
      %v10323 = vadd.f32 %v10319, %v10322
      %vm10324 = vweird.f32 %v10318
      %vm10325 = vweird.f32 %v10319
      %vm10326 = vmor %vm10324, %vm10325
      %v10327 = vsel %vm10326, %v10319, %v10323
      %v10328 = vand.u32 2147483647, %v10318
      %vm10329 = vcmp.eq.f32.partialorder %v10328, 8.507059e+37
      %v10330 = vand.u32 %v10318, 2147483648
      %v10331 = vor.u32 1.1754944e-38, %v10330
      %v10332 = vsel %vm10329, %v10331, %v10327
      %v10333 = vmul.f32 %v10308, %v10332
      %v10334 = vmin.f32 %v10333, 1.0
      %v10335 = vmax.f32 %v10334, -1.0
      %v10336 = vmul.f32 %v9852, %v9852
      %v10337 = vmin.f32 16.0, %v10336
      %v10338 = vmul.f32 %v10337, 2.1237322e-06
      %v10339 = vadd.f32 %v10338, 0.00028619796
      %v10340 = vmul.f32 %v10337, %v10339
      %v10341 = vadd.f32 %v10340, 0.0036580483
      %v10342 = vmul.f32 %v10337, %v10341
      %v10343 = vadd.f32 %v10342, 0.05243302
      %v10344 = vmul.f32 %v10337, %v10343
      %v10345 = vadd.f32 %v10344, 0.18741608
      %v10346 = vmul.f32 %v10337, %v10345
      %v10347 = vadd.f32 %v10346, 1.1283791
      %v10348 = vmul.f32 %v9852, %v10347
      %v10349 = vmul.f32 %v10337, 3.8918573e-05
      %v10350 = vadd.f32 %v10349, 0.001143296
      %v10351 = vmul.f32 %v10337, %v10350
      %v10352 = vadd.f32 %v10351, 0.014752088
      %v10353 = vmul.f32 %v10337, %v10352
      %v10354 = vadd.f32 %v10353, 0.112945676
      %v10355 = vmul.f32 %v10337, %v10354
      %v10356 = vadd.f32 %v10355, 0.4994258
      %v10357 = vmul.f32 %v10337, %v10356
      %v10358 = vadd.f32 %v10357, 1.0
      %v10359 = vrcp.pop %v10358
      %v10360 = vmul.f32 %v10358, %v10359
      %v10361 = vsub.f32 1.0, %v10360
      %v10362 = vmul.f32 %v10359, %v10361
      %v10363 = vadd.f32 %v10359, %v10362
      %vm10364 = vweird.f32 %v10358
      %vm10365 = vweird.f32 %v10359
      %vm10366 = vmor %vm10364, %vm10365
      %v10367 = vsel %vm10366, %v10359, %v10363
      %v10368 = vand.u32 2147483647, %v10358
      %vm10369 = vcmp.eq.f32.partialorder %v10368, 8.507059e+37
      %v10370 = vand.u32 %v10358, 2147483648
      %v10371 = vor.u32 1.1754944e-38, %v10370
      %v10372 = vsel %vm10369, %v10371, %v10367
      %v10373 = vmul.f32 %v10348, %v10372
      %v10374 = vmin.f32 %v10373, 1.0
      %v10375 = vmax.f32 %v10374, -1.0
      %v10376 = vmul.f32 %v9853, %v9853
      %v10377 = vmin.f32 16.0, %v10376
      %v10378 = vmul.f32 %v10377, 2.1237322e-06
      %v10379 = vadd.f32 %v10378, 0.00028619796
      %v10380 = vmul.f32 %v10377, %v10379
      %v10381 = vadd.f32 %v10380, 0.0036580483
      %v10382 = vmul.f32 %v10377, %v10381
      %v10383 = vadd.f32 %v10382, 0.05243302
      %v10384 = vmul.f32 %v10377, %v10383
      %v10385 = vadd.f32 %v10384, 0.18741608
      %v10386 = vmul.f32 %v10377, %v10385
      %v10387 = vadd.f32 %v10386, 1.1283791
      %v10388 = vmul.f32 %v9853, %v10387
      %v10389 = vmul.f32 %v10377, 3.8918573e-05
      %v10390 = vadd.f32 %v10389, 0.001143296
      %v10391 = vmul.f32 %v10377, %v10390
      %v10392 = vadd.f32 %v10391, 0.014752088
      %v10393 = vmul.f32 %v10377, %v10392
      %v10394 = vadd.f32 %v10393, 0.112945676
      %v10395 = vmul.f32 %v10377, %v10394
      %v10396 = vadd.f32 %v10395, 0.4994258
      %v10397 = vmul.f32 %v10377, %v10396
      %v10398 = vadd.f32 %v10397, 1.0
      %v10399 = vrcp.pop %v10398
      %v10400 = vmul.f32 %v10398, %v10399
      %v10401 = vsub.f32 1.0, %v10400
      %v10402 = vmul.f32 %v10399, %v10401
      %v10403 = vadd.f32 %v10399, %v10402
      %vm10404 = vweird.f32 %v10398
      %vm10405 = vweird.f32 %v10399
      %vm10406 = vmor %vm10404, %vm10405
      %v10407 = vsel %vm10406, %v10399, %v10403
      %v10408 = vand.u32 2147483647, %v10398
      %vm10409 = vcmp.eq.f32.partialorder %v10408, 8.507059e+37
      %v10410 = vand.u32 %v10398, 2147483648
      %v10411 = vor.u32 1.1754944e-38, %v10410
      %v10412 = vsel %vm10409, %v10411, %v10407
      %v10413 = vmul.f32 %v10388, %v10412
      %v10414 = vmin.f32 %v10413, 1.0
      %v10415 = vmax.f32 %v10414, -1.0
      %v10416 = vmul.f32 %v9854, %v9854
      %v10417 = vmin.f32 16.0, %v10416
      %v10418 = vmul.f32 %v10417, 2.1237322e-06
      %v10419 = vadd.f32 %v10418, 0.00028619796
      %v10420 = vmul.f32 %v10417, %v10419
      %v10421 = vadd.f32 %v10420, 0.0036580483
      %v10422 = vmul.f32 %v10417, %v10421
      %v10423 = vadd.f32 %v10422, 0.05243302
      %v10424 = vmul.f32 %v10417, %v10423
      %v10425 = vadd.f32 %v10424, 0.18741608
      %v10426 = vmul.f32 %v10417, %v10425
      %v10427 = vadd.f32 %v10426, 1.1283791
      %v10428 = vmul.f32 %v9854, %v10427
      %v10429 = vmul.f32 %v10417, 3.8918573e-05
      %v10430 = vadd.f32 %v10429, 0.001143296
      %v10431 = vmul.f32 %v10417, %v10430
      %v10432 = vadd.f32 %v10431, 0.014752088
      %v10433 = vmul.f32 %v10417, %v10432
      %v10434 = vadd.f32 %v10433, 0.112945676
      %v10435 = vmul.f32 %v10417, %v10434
      %v10436 = vadd.f32 %v10435, 0.4994258
      %v10437 = vmul.f32 %v10417, %v10436
      %v10438 = vadd.f32 %v10437, 1.0
      %v10439 = vrcp.pop %v10438
      %v10440 = vmul.f32 %v10438, %v10439
      %v10441 = vsub.f32 1.0, %v10440
      %v10442 = vmul.f32 %v10439, %v10441
      %v10443 = vadd.f32 %v10439, %v10442
      %vm10444 = vweird.f32 %v10438
      %vm10445 = vweird.f32 %v10439
      %vm10446 = vmor %vm10444, %vm10445
      %v10447 = vsel %vm10446, %v10439, %v10443
      %v10448 = vand.u32 2147483647, %v10438
      %vm10449 = vcmp.eq.f32.partialorder %v10448, 8.507059e+37
      %v10450 = vand.u32 %v10438, 2147483648
      %v10451 = vor.u32 1.1754944e-38, %v10450
      %v10452 = vsel %vm10449, %v10451, %v10447
      %v10453 = vmul.f32 %v10428, %v10452
      %v10454 = vmin.f32 %v10453, 1.0
      %v10455 = vmax.f32 %v10454, -1.0
      %v10456 = vmul.f32 %v9855, %v9855
      %v10457 = vmin.f32 16.0, %v10456
      %v10458 = vmul.f32 %v10457, 2.1237322e-06
      %v10459 = vadd.f32 %v10458, 0.00028619796
      %v10460 = vmul.f32 %v10457, %v10459
      %v10461 = vadd.f32 %v10460, 0.0036580483
      %v10462 = vmul.f32 %v10457, %v10461
      %v10463 = vadd.f32 %v10462, 0.05243302
      %v10464 = vmul.f32 %v10457, %v10463
      %v10465 = vadd.f32 %v10464, 0.18741608
      %v10466 = vmul.f32 %v10457, %v10465
      %v10467 = vadd.f32 %v10466, 1.1283791
      %v10468 = vmul.f32 %v9855, %v10467
      %v10469 = vmul.f32 %v10457, 3.8918573e-05
      %v10470 = vadd.f32 %v10469, 0.001143296
      %v10471 = vmul.f32 %v10457, %v10470
      %v10472 = vadd.f32 %v10471, 0.014752088
      %v10473 = vmul.f32 %v10457, %v10472
      %v10474 = vadd.f32 %v10473, 0.112945676
      %v10475 = vmul.f32 %v10457, %v10474
      %v10476 = vadd.f32 %v10475, 0.4994258
      %v10477 = vmul.f32 %v10457, %v10476
      %v10478 = vadd.f32 %v10477, 1.0
      %v10479 = vrcp.pop %v10478
      %v10480 = vmul.f32 %v10478, %v10479
      %v10481 = vsub.f32 1.0, %v10480
      %v10482 = vmul.f32 %v10479, %v10481
      %v10483 = vadd.f32 %v10479, %v10482
      %vm10484 = vweird.f32 %v10478
      %vm10485 = vweird.f32 %v10479
      %vm10486 = vmor %vm10484, %vm10485
      %v10487 = vsel %vm10486, %v10479, %v10483
      %v10488 = vand.u32 2147483647, %v10478
      %vm10489 = vcmp.eq.f32.partialorder %v10488, 8.507059e+37
      %v10490 = vand.u32 %v10478, 2147483648
      %v10491 = vor.u32 1.1754944e-38, %v10490
      %v10492 = vsel %vm10489, %v10491, %v10487
      %v10493 = vmul.f32 %v10468, %v10492
      %v10494 = vmin.f32 %v10493, 1.0
      %v10495 = vmax.f32 %v10494, -1.0
      %v10496 = vadd.f32 %v9895, 1.0
      %v10497 = vadd.f32 %v9935, 1.0
      %v10498 = vadd.f32 %v9975, 1.0
      %v10499 = vadd.f32 %v10015, 1.0
      %v10500 = vadd.f32 %v10055, 1.0
      %v10501 = vadd.f32 %v10095, 1.0
      %v10502 = vadd.f32 %v10135, 1.0
      %v10503 = vadd.f32 %v10175, 1.0
      %v10504 = vadd.f32 %v10215, 1.0
      %v10505 = vadd.f32 %v10255, 1.0
      %v10506 = vadd.f32 %v10295, 1.0
      %v10507 = vadd.f32 %v10335, 1.0
      %v10508 = vadd.f32 %v10375, 1.0
      %v10509 = vadd.f32 %v10415, 1.0
      %v10510 = vadd.f32 %v10455, 1.0
      %v10511 = vadd.f32 %v10495, 1.0
      %v10512 = vmul.f32 %v9824, %v10496
      %v10513 = vmul.f32 %v9825, %v10497
      %v10514 = vmul.f32 %v9826, %v10498
      %v10515 = vmul.f32 %v9827, %v10499
      %v10516 = vmul.f32 %v9828, %v10500
      %v10517 = vmul.f32 %v9829, %v10501
      %v10518 = vmul.f32 %v9830, %v10502
      %v10519 = vmul.f32 %v9831, %v10503
      %v10520 = vmul.f32 %v9832, %v10504
      %v10521 = vmul.f32 %v9833, %v10505
      %v10522 = vmul.f32 %v9834, %v10506
      %v10523 = vmul.f32 %v9835, %v10507
      %v10524 = vmul.f32 %v9836, %v10508
      %v10525 = vmul.f32 %v9837, %v10509
      %v10526 = vmul.f32 %v9838, %v10510
      %v10527 = vmul.f32 %v9839, %v10511
      %v10529 = vperm.slane %v522, 0
      %v10531 = vmul.f32 %v10512, %v10529
      %v10532 = vmul.f32 %v10513, %v10529
      %v10533 = vmul.f32 %v10514, %v10529
      %v10534 = vmul.f32 %v10515, %v10529
      %v10535 = vmul.f32 %v10516, %v10529
      %v10536 = vmul.f32 %v10517, %v10529
      %v10537 = vmul.f32 %v10518, %v10529
      %v10538 = vmul.f32 %v10519, %v10529
      %v10539 = vmul.f32 %v10520, %v10529
      %v10540 = vmul.f32 %v10521, %v10529
      %v10541 = vmul.f32 %v10522, %v10529
      %v10542 = vmul.f32 %v10523, %v10529
      %v10543 = vmul.f32 %v10524, %v10529
      %v10544 = vmul.f32 %v10525, %v10529
      %v10545 = vmul.f32 %v10526, %v10529
      %v10546 = vmul.f32 %v10527, %v10529
      %v10548 = vperm.slane %v523, 0
      %v10550 = vadd.f32 %v10531, %v10548
      %v10551 = vadd.f32 %v10532, %v10548
      %v10552 = vadd.f32 %v10533, %v10548
      %v10553 = vadd.f32 %v10534, %v10548
      %v10554 = vadd.f32 %v10535, %v10548
      %v10555 = vadd.f32 %v10536, %v10548
      %v10556 = vadd.f32 %v10537, %v10548
      %v10557 = vadd.f32 %v10538, %v10548
      %v10558 = vadd.f32 %v10539, %v10548
      %v10559 = vadd.f32 %v10540, %v10548
      %v10560 = vadd.f32 %v10541, %v10548
      %v10561 = vadd.f32 %v10542, %v10548
      %v10562 = vadd.f32 %v10543, %v10548
      %v10563 = vadd.f32 %v10544, %v10548
      %v10564 = vadd.f32 %v10545, %v10548
      %v10565 = vadd.f32 %v10546, %v10548
      %10566 = vst.msk [vmem:[%s356] sm:$0xff] %vm9723, %v10550
      %10567 = vst.msk [vmem:[%s356 + $0x8] sm:$0xff] %vm9723, %v10551
      %10568 = vst.msk [vmem:[%s356 + $0x10] sm:$0xff] %vm9723, %v10552
      %10569 = vst.msk [vmem:[%s356 + $0x18] sm:$0xff] %vm9723, %v10553
      %10570 = vst.msk [vmem:[%s356 + $0x20] sm:$0xff] %vm9723, %v10554
      %10571 = vst.msk [vmem:[%s356 + $0x28] sm:$0xff] %vm9723, %v10555
      %10572 = vst.msk [vmem:[%s356 + $0x30] sm:$0xff] %vm9723, %v10556
      %10573 = vst.msk [vmem:[%s356 + $0x38] sm:$0xff] %vm9723, %v10557
      %10574 = vst.msk [vmem:[%s356 + $0x40] sm:$0xff] %vm9723, %v10558
      %10575 = vst.msk [vmem:[%s356 + $0x48] sm:$0xff] %vm9723, %v10559
      %10576 = vst.msk [vmem:[%s356 + $0x50] sm:$0xff] %vm9723, %v10560
      %10577 = vst.msk [vmem:[%s356 + $0x58] sm:$0xff] %vm9723, %v10561
      %10578 = vst.msk [vmem:[%s356 + $0x60] sm:$0xff] %vm9723, %v10562
      %10579 = vst.msk [vmem:[%s356 + $0x68] sm:$0xff] %vm9723, %v10563
      %10580 = vst.msk [vmem:[%s356 + $0x70] sm:$0xff] %vm9723, %v10564
      %10581 = vst.msk [vmem:[%s356 + $0x78] sm:$0xff] %vm9723, %v10565
      %s10582 = smul.u32 8, %s25
      %p10583 = scmp.lt.s32.totalorder %s24, 1
      %s10584 = scalar_select %p10583, %s24, 1
      %p10585 = scmp.lt.s32.totalorder %s10582, 15
      %s10586 = scalar_select %p10585, %s10582, 15
      %s10587 = smul.addr %s10586, 2
      %s10588 = smul.addr %s10584, 32
      %s10589 = sadd.s32 %s10587, %s10588
      %s10590 = smul.addr %s10589, 8
      %s10591 = scalar_lea.vmem %s9, %s10590
      // Predicated region
      $region61: #{tpu_custom_call.1} parent=55 // pred_check
        %p10592 = pneg %p246
      $region62: #{tpu_custom_call.1} parent=55 // pred_check_branch
        %10594 = sbr.rel (%p10592) target = $region64
      $region63: #{tpu_custom_call.1} parent=55 // pred_region
        %s10595 = smul.u32 8, %s25
      $region64: #{tpu_custom_call.1} parent=55 // pred_fallthru
        _
    $region56: #{tpu_custom_call.1} parent=5 // pred_fallthru
      _
    %p10596 = scmp.le.s32.totalorder 2, %s15
    // Predicated region
    $region65: #{tpu_custom_call.1} parent=5 // pred_check
      %p10597 = pneg %p10596
    $region66: #{tpu_custom_call.1} parent=5 // pred_check_branch
      %10599 = sbr.rel (%p10597) target = $region68
    $region67: #{tpu_custom_call.1} parent=5 // pred_region
      %s10600 = ssub.s32 %s15, 2
      // Predicated region
      $region69: #{tpu_custom_call.1} parent=67 // pred_check
        %p10601 = pneg %p252
      $region70: #{tpu_custom_call.1} parent=67 // pred_check_branch
        %10603 = sbr.rel (%p10601) target = $region72
      $region71: #{tpu_custom_call.1} parent=67 // pred_region
        %s10604 = smul.u32 8, %s27
        %p10605 = scmp.lt.s32.totalorder %s26, 1
        %s10606 = scalar_select %p10605, %s26, 1
        %p10607 = scmp.lt.s32.totalorder %s10604, 15
        %s10608 = scalar_select %p10607, %s10604, 15
        %s10609 = smul.addr %s10608, 2
        %s10610 = smul.addr %s10606, 32
        %s10611 = sadd.s32 %s10609, %s10610
        %s10612 = smul.addr %s10611, 8
        %s10613 = scalar_lea.vmem %s9, %s10612
      $region72: #{tpu_custom_call.1} parent=67 // pred_fallthru
        _
    $region68: #{tpu_custom_call.1} parent=5 // pred_fallthru
      _
  $region6: #{tpu_custom_call.1} parent=0 // loop_footer
    %s19 = sadd.s32 1, %s15
  $region7: #{tpu_custom_call.1} parent=0 // loop_footer_branch
    %14 = sbr.rel target = $region3
  $region8: #{tpu_custom_call.1} parent=0 // loop_exit
    _

</llo_original>
